<compile_context>
chip_gen: v7x
topology: tpu7x:2x2x1
jax: 0.10.0
libtpu: 0.0.40
codegen_flags: <defaults>
</compile_context>

<pallas_src>
import functools

import numpy as np

import jax
import jax.numpy as jnp
from jax.experimental import pallas as pl
from jax.experimental.pallas import tpu as pltpu

EPS = 1e-5          # torch.nn.InstanceNorm2d default eps
NEG_SLOPE = 0.01    # DynUNet LeakyReLU negative_slope


# --------------------- host-side constants (built ONCE at init) --------------------- #

def _conv_selectors(H, W, k, stride, pad):
    """0/1 matrices S[t] of shape (Ho*Wo, H*W), one per tap t = di*k + dj (stride-2 convs)."""
    Ho = (H + 2 * pad - k) // stride + 1
    Wo = (W + 2 * pad - k) // stride + 1
    S = np.zeros((k * k, Ho * Wo, H * W), np.float32)
    for di in range(k):
        for dj in range(k):
            t = di * k + dj
            for i in range(Ho):
                r = stride * i + di - pad
                if not (0 <= r < H):
                    continue
                for j in range(Wo):
                    c = stride * j + dj - pad
                    if 0 <= c < W:
                        S[t, i * Wo + j, r * W + c] = 1.0
    return S, Ho, Wo


def _transp_scatter_cat(h, w, k, stride):
    """Lane-concatenated 0/1 scatter matrix (stride*h*stride*w, k*k*h*w) for ConvTranspose(k=s)."""
    Ho, Wo = stride * h, stride * w
    U = np.zeros((Ho * Wo, k * k * h * w), np.float32)
    for p in range(k):
        for q in range(k):
            t = p * k + q
            for i in range(h):
                for j in range(w):
                    U[(stride * i + p) * Wo + (stride * j + q), t * h * w + i * w + j] = 1.0
    return U, Ho, Wo


def _roll_masks(H, W):
    """Zero-padding border masks (9, H*W, 1) for the roll-based stride-1 3x3 gather."""
    m = np.zeros((9, H * W, 1), np.float32)
    for di in range(3):
        for dj in range(3):
            t = di * 3 + dj
            for i in range(H):
                for j in range(W):
                    if 0 <= i + di - 1 < H and 0 <= j + dj - 1 < W:
                        m[t, i * W + j, 0] = 1.0
    return m


# --------------------------------- fused kernel ------------------------------------ #

def _skip_layer_kernel(
    x_ref,
    s_d1_ref, s_b1_ref, u_cat_ref, m8_ref, m4_ref,
    w_d1_ref, w_d2_ref, w_b1_ref, w_b2_ref, w_t_ref,
    w_u1a_ref, w_u1b_ref, w_u2_ref, w_h_ref,
    gb_d1_ref, gb_d2_ref, gb_b1_ref, gb_b2_ref, gb_u1_ref, gb_u2_ref, bh_ref,
    out_ref,
    *, W1, HW1, W2, HW2,
):
    f32 = jnp.float32
    bf16 = jnp.bfloat16

    def gather_s1(x_f32, m_ref, HW, W):
        # stride-1 3x3 gather: 9 sublane rolls (XLU) + 0/1 border masks (VPU),
        # lane-stacked so the channel contraction is ONE K-deep MXU matmul.
        pieces = []
        for di in range(3):
            for dj in range(3):
                t = di * 3 + dj
                off = (di - 1) * W + (dj - 1)
                shift = (-off) % HW
                r = x_f32 if shift == 0 else pltpu.roll(x_f32, shift=shift, axis=0)
                pieces.append(r * m_ref[t])
        return jnp.concatenate(pieces, axis=1).astype(bf16)

    def gather_s2(x_bf16, s_ref):
        # stride-2 3x3 gather via 0/1 selector matmuls (pure selection -> exact in bf16).
        pieces = [
            jnp.dot(s_ref[t], x_bf16, preferred_element_type=f32).astype(bf16)
            for t in range(9)
        ]
        return jnp.concatenate(pieces, axis=1)

    def in_lrelu(acc, gb_ref, inv_hw):
        # InstanceNorm (affine) with fused single-pass sum / sum-of-squares, then LeakyReLU.
        # All statistics / elementwise math in f32 (v5e-safe).
        s1 = jnp.sum(acc, axis=0, keepdims=True)
        s2 = jnp.sum(acc * acc, axis=0, keepdims=True)
        mean = s1 * inv_hw
        var = s2 * inv_hw - mean * mean
        gb = gb_ref[...]
        z = (acc - mean) * jax.lax.rsqrt(var + EPS) * gb[0:1, :] + gb[1:2, :]
        return jnp.where(z >= 0, z, NEG_SLOPE * z)

    inv1 = 1.0 / HW1
    inv2 = 1.0 / HW2

    x = x_ref[...]                                                     # (H*W, N*4) bf16

    # downout = self.downsample(x)          UnetBasicBlock(4 -> 8, stride 2)
    p = gather_s2(x, s_d1_ref)                                         # (HW1, 9*N*4)
    d = in_lrelu(jnp.dot(p, w_d1_ref[...], preferred_element_type=f32), gb_d1_ref, inv1)
    p = gather_s1(d, m8_ref, HW1, W1)                                  # (HW1, 9*N*8)
    d = in_lrelu(jnp.dot(p, w_d2_ref[...], preferred_element_type=f32), gb_d2_ref, inv1)

    # nextout = self.next_layer(downout)    bottleneck (8 -> 16, stride 2)
    p = gather_s2(d.astype(bf16), s_b1_ref)                            # (HW2, 9*N*8)
    b = in_lrelu(jnp.dot(p, w_b1_ref[...], preferred_element_type=f32), gb_b1_ref, inv2)
    p = gather_s1(b, m4_ref, HW2, W2)                                  # (HW2, 9*N*16)
    b = in_lrelu(jnp.dot(p, w_b2_ref[...], preferred_element_type=f32), gb_b2_ref, inv2)

    # upout = self.upsample(nextout, downout)
    #   ConvTranspose2d(16 -> 8, k=2, s=2, bias=False): 4 channel matmuls + one scatter matmul.
    b16 = b.astype(bf16)
    y = jnp.concatenate(
        [jnp.dot(b16, w_t_ref[t], preferred_element_type=f32).astype(bf16) for t in range(4)],
        axis=0)                                                        # (4*HW2, N*8)
    up = jnp.dot(u_cat_ref[...], y, preferred_element_type=f32)        # (HW1, N*8)

    #   up-block conv1: concat-free — two tap-stacked contractions ([up | skip] halves).
    p_up = gather_s1(up, m8_ref, HW1, W1)
    p_sk = gather_s1(d, m8_ref, HW1, W1)
    a = (jnp.dot(p_up, w_u1a_ref[...], preferred_element_type=f32)
         + jnp.dot(p_sk, w_u1b_ref[...], preferred_element_type=f32))
    u1 = in_lrelu(a, gb_u1_ref, inv1)

    p = gather_s1(u1, m8_ref, HW1, W1)
    u2 = in_lrelu(jnp.dot(p, w_u2_ref[...], preferred_element_type=f32), gb_u2_ref, inv1)

    # super_head: 1x1 conv 8 -> 3 classes (class dim zero-padded to 4), bias=True.
    head = jnp.dot(u2, w_h_ref[...], preferred_element_type=f32) + bh_ref[...]

    # Single lane-packed store: [upout | head].
    out_ref[...] = jnp.concatenate([u2, head], axis=1)


# ----------------------------- parameters (random init) ----------------------------- #

def _conv_p(key, cin, cout, k=3):
    # Per-tap weights w[t=di*k+dj, ci, co].
    # (From a real PyTorch Conv2d weight (Cout, Cin, k, k): w[di*k+dj, ci, co] = W[co, ci, di, dj].)
    return {
        "w": 0.1 * jax.random.normal(key, (k * k, cin, cout), jnp.float32),
        "gamma": jnp.ones((cout,), jnp.float32),   # InstanceNorm affine=True
        "beta": jnp.zeros((cout,), jnp.float32),
    }


def make_params(key):
    ks = jax.random.split(key, 8)
    return {
        "down": {"conv1": _conv_p(ks[0], 4, 8), "conv2": _conv_p(ks[1], 8, 8)},
        "bottleneck": {"conv1": _conv_p(ks[2], 8, 16), "conv2": _conv_p(ks[3], 16, 16)},
        "up": {
            # ConvTranspose2d(16 -> 8, k=2, s=2), bias=False (MONAI trans_bias default).
            # (From PyTorch weight (Cin, Cout, 2, 2): wt[p*2+q, ci, co] = W[ci, co, p, q].)
            "wt": 0.1 * jax.random.normal(ks[4], (4, 16, 8), jnp.float32),
            "block": {"conv1": _conv_p(ks[5], 16, 8), "conv2": _conv_p(ks[6], 8, 8)},
        },
        "head": {  # UnetOutBlock: 1x1 conv, 8 -> 3 classes, bias=True
            "w": 0.1 * jax.random.normal(ks[7], (8, 3), jnp.float32),
            "b": 0.01 * jnp.ones((3,), jnp.float32),
        },
    }


def _prepare_constants(params, N, H, W):
    """One-time host prep: selectors, masks, tap/K-stacked kron weights, norm affines."""
    s_d1, H1, W1 = _conv_selectors(H, W, 3, 2, 1)        # 16x16 -> 8x8 (stride 2)
    s_b1, H2, W2 = _conv_selectors(H1, W1, 3, 2, 1)      # 8x8  -> 4x4 (stride 2)
    u_cat, Hu, Wu = _transp_scatter_cat(H2, W2, 2, 2)    # 4x4  -> 8x8 (transp conv scatter)
    assert (Hu, Wu) == (H1, W1)
    m8 = _roll_masks(H1, W1)
    m4 = _roll_masks(H2, W2)

    to_np = lambda a: np.asarray(a, np.float32)
    eye = np.eye(N, dtype=np.float32)

    def stack_kron(w):
        # (T, cin, cout) -> (T*N*cin, N*cout): kron(I_N, w_t) blocks K-stacked in tap order.
        w = to_np(w)
        return np.concatenate([np.kron(eye, w[t]) for t in range(w.shape[0])], axis=0)

    def kron_pertap(w):
        w = to_np(w)
        return np.stack([np.kron(eye, w[t]) for t in range(w.shape[0])])

    def gb(p):
        return np.stack([np.tile(to_np(p["gamma"]), N), np.tile(to_np(p["beta"]), N)])

    pd, pb, pu, ph = params["down"], params["bottleneck"], params["up"], params["head"]

    # Up-block conv1: 16 input channels = [8 up | 8 skip]; split halves (concat-free in-kernel).
    w_u1 = to_np(pu["block"]["conv1"]["w"])               # (9, 16, 8)

    wh = np.pad(to_np(ph["w"]), ((0, 0), (0, 1)))         # (8, 4) class dim padded for lanes
    bh = np.pad(to_np(ph["b"]), (0, 1))                   # (4,)

    bf, f32 = jnp.bfloat16, jnp.float32
    consts = (
        jnp.asarray(s_d1, bf), jnp.asarray(s_b1, bf), jnp.asarray(u_cat, bf),
        jnp.asarray(m8, f32), jnp.asarray(m4, f32),
        jnp.asarray(stack_kron(pd["conv1"]["w"]), bf),
        jnp.asarray(stack_kron(pd["conv2"]["w"]), bf),
        jnp.asarray(stack_kron(pb["conv1"]["w"]), bf),
        jnp.asarray(stack_kron(pb["conv2"]["w"]), bf),
        jnp.asarray(kron_pertap(pu["wt"]), bf),
        jnp.asarray(stack_kron(w_u1[:, :8, :]), bf),       # up half
        jnp.asarray(stack_kron(w_u1[:, 8:, :]), bf),       # skip half
        jnp.asarray(stack_kron(pu["block"]["conv2"]["w"]), bf),
        jnp.asarray(np.kron(eye, wh), f32),
        jnp.asarray(gb(pd["conv1"]), f32), jnp.asarray(gb(pd["conv2"]), f32),
        jnp.asarray(gb(pb["conv1"]), f32), jnp.asarray(gb(pb["conv2"]), f32),
        jnp.asarray(gb(pu["block"]["conv1"]), f32), jnp.asarray(gb(pu["block"]["conv2"]), f32),
        jnp.asarray(np.tile(bh, N).reshape(1, -1), f32),
    )
    return consts, (H1, W1, H2, W2)


# --------------------------- DynUNetSkipLayer "module" ------------------------------ #

def make_dynunet_skip_layer(params, N, H, W, num_classes=3):
    """Build the skip layer once (constants + jit); returns forward(x) -> (upout, head)."""
    consts, (H1, W1, H2, W2) = _prepare_constants(params, N, H, W)
    c_up, c_head_pad = 8, 4

    kernel = functools.partial(_skip_layer_kernel, W1=W1, HW1=H1 * W1, W2=W2, HW2=H2 * W2)

    vmem = pl.BlockSpec(memory_space=pltpu.MemorySpace.VMEM)
    call = pl.pallas_call(
        kernel,
        out_shape=jax.ShapeDtypeStruct((H1 * W1, N * (c_up + c_head_pad)), jnp.float32),
        in_specs=[vmem] * (1 + len(consts)),
        out_specs=vmem,
        compiler_params=pltpu.CompilerParams(vmem_limit_bytes=32 * 1024 * 1024),
    )

    @jax.jit
    def forward(x_nchw, consts):
        n, cin, h, w = x_nchw.shape
        # NCHW -> (H*W, N*Cin) slab (columns sample-major: col = n*Cin + c), bf16 operands.
        x_slab = jnp.transpose(x_nchw, (2, 3, 0, 1)).reshape(h * w, n * cin).astype(jnp.bfloat16)
        out = call(x_slab, *consts)                                   # (HW1, N*(8+4)) f32
        up_slab = out[:, : N * c_up]
        head_slab = out[:, N * c_up:]
        upout = jnp.transpose(up_slab.reshape(H1, W1, N, c_up), (2, 3, 0, 1))           # NCHW
        head = jnp.transpose(head_slab.reshape(H1, W1, N, c_head_pad), (2, 3, 0, 1))[:, :num_classes]
        return upout, head

    return lambda x: forward(x, consts)


def dynunet_skip_layer_forward(layer_fn, x, heads, index):
    """Mirrors DynUNetSkipLayer.forward. The super_head output is returned functionally from
    the jitted forward; the shared `heads` list (nn.Module side effect) is mutated outside jit,
    so there is no stale-value hazard."""
    upout, head = layer_fn(x)
    if heads is not None and index > 0:
        heads[index - 1] = head
    return upout


if __name__ == "__main__":
    key = jax.random.PRNGKey(0)
    kx, kp = jax.random.split(key)

    N, C, H, W = 2, 4, 16, 16
    x = jax.random.normal(kx, (N, C, H, W), jnp.float32)   # NCHW, like PyTorch
    params = make_params(kp)

    # "Module init": one-time constant construction + jitted forward.
    layer = make_dynunet_skip_layer(params, N, H, W)

    heads = [None]   # shared deep-supervision heads list
    index = 1        # index > 0 -> super_head output stored in heads[index - 1]

    upout = dynunet_skip_layer_forward(layer, x, heads, index)
    jax.block_until_ready(upout)
    jax.block_until_ready(heads[0])

    assert upout.shape == (2, 8, 8, 8)
    assert heads[0].shape == (2, 3, 8, 8)
    assert bool(jnp.all(jnp.isfinite(upout)))
    assert bool(jnp.all(jnp.isfinite(heads[0])))
    print("KERNEL_OK")
</pallas_src>

<mosaic_0001>
module attributes {stable_mosaic.version = 11 : i64} {
  func.func @_skip_layer_kernel(%arg0: memref<256x8xbf16, #tpu.memory_space<vmem>>, %arg1: memref<9x64x256xbf16, #tpu.memory_space<vmem>>, %arg2: memref<9x16x64xbf16, #tpu.memory_space<vmem>>, %arg3: memref<64x64xbf16, #tpu.memory_space<vmem>>, %arg4: memref<9x64x1xf32, #tpu.memory_space<vmem>>, %arg5: memref<9x16x1xf32, #tpu.memory_space<vmem>>, %arg6: memref<72x16xbf16, #tpu.memory_space<vmem>>, %arg7: memref<144x16xbf16, #tpu.memory_space<vmem>>, %arg8: memref<144x32xbf16, #tpu.memory_space<vmem>>, %arg9: memref<288x32xbf16, #tpu.memory_space<vmem>>, %arg10: memref<4x32x16xbf16, #tpu.memory_space<vmem>>, %arg11: memref<144x16xbf16, #tpu.memory_space<vmem>>, %arg12: memref<144x16xbf16, #tpu.memory_space<vmem>>, %arg13: memref<144x16xbf16, #tpu.memory_space<vmem>>, %arg14: memref<16x8xf32, #tpu.memory_space<vmem>>, %arg15: memref<2x16xf32, #tpu.memory_space<vmem>>, %arg16: memref<2x16xf32, #tpu.memory_space<vmem>>, %arg17: memref<2x32xf32, #tpu.memory_space<vmem>>, %arg18: memref<2x32xf32, #tpu.memory_space<vmem>>, %arg19: memref<2x16xf32, #tpu.memory_space<vmem>>, %arg20: memref<2x16xf32, #tpu.memory_space<vmem>>, %arg21: memref<1x8xf32, #tpu.memory_space<vmem>>, %arg22: memref<64x24xf32, #tpu.memory_space<vmem>>) attributes {dimension_semantics = [], scalar_prefetch = 0 : i64, scratch_operands = 0 : i64, tpu.core_type = #tpu.core_type<tc>} {
    %c0 = arith.constant 0 : index
    %c0_0 = arith.constant 0 : index
    %0 = vector.load %arg0[%c0, %c0_0] : memref<256x8xbf16, #tpu.memory_space<vmem>>, vector<256x8xbf16>
    %c0_1 = arith.constant 0 : index
    %c0_2 = arith.constant 0 : index
    %c0_3 = arith.constant 0 : index
    %1 = vector.load %arg1[%c0_1, %c0_2, %c0_3] : memref<9x64x256xbf16, #tpu.memory_space<vmem>>, vector<1x64x256xbf16>
    %2 = vector.shape_cast %1 : vector<1x64x256xbf16> to vector<64x256xbf16>
    %cst = arith.constant dense<0.000000e+00> : vector<64x8xf32>
    %3 = tpu.matmul %2, %0, %cst {dimension_numbers = #tpu.dot_dimension_numbers<[1], [0], [0], [1], [0, 0, 1, 1], [], []>} : vector<64x256xbf16>, vector<256x8xbf16>, vector<64x8xf32> -> vector<64x8xf32>
    %4 = arith.truncf %3 : vector<64x8xf32> to vector<64x8xbf16>
    %c1 = arith.constant 1 : index
    %c0_4 = arith.constant 0 : index
    %c0_5 = arith.constant 0 : index
    %5 = vector.load %arg1[%c1, %c0_4, %c0_5] : memref<9x64x256xbf16, #tpu.memory_space<vmem>>, vector<1x64x256xbf16>
    %6 = vector.shape_cast %5 : vector<1x64x256xbf16> to vector<64x256xbf16>
    %cst_6 = arith.constant dense<0.000000e+00> : vector<64x8xf32>
    %7 = tpu.matmul %6, %0, %cst_6 {dimension_numbers = #tpu.dot_dimension_numbers<[1], [0], [0], [1], [0, 0, 1, 1], [], []>} : vector<64x256xbf16>, vector<256x8xbf16>, vector<64x8xf32> -> vector<64x8xf32>
    %8 = arith.truncf %7 : vector<64x8xf32> to vector<64x8xbf16>
    %c2 = arith.constant 2 : index
    %c0_7 = arith.constant 0 : index
    %c0_8 = arith.constant 0 : index
    %9 = vector.load %arg1[%c2, %c0_7, %c0_8] : memref<9x64x256xbf16, #tpu.memory_space<vmem>>, vector<1x64x256xbf16>
    %10 = vector.shape_cast %9 : vector<1x64x256xbf16> to vector<64x256xbf16>
    %cst_9 = arith.constant dense<0.000000e+00> : vector<64x8xf32>
    %11 = tpu.matmul %10, %0, %cst_9 {dimension_numbers = #tpu.dot_dimension_numbers<[1], [0], [0], [1], [0, 0, 1, 1], [], []>} : vector<64x256xbf16>, vector<256x8xbf16>, vector<64x8xf32> -> vector<64x8xf32>
    %12 = arith.truncf %11 : vector<64x8xf32> to vector<64x8xbf16>
    %c3 = arith.constant 3 : index
    %c0_10 = arith.constant 0 : index
    %c0_11 = arith.constant 0 : index
    %13 = vector.load %arg1[%c3, %c0_10, %c0_11] : memref<9x64x256xbf16, #tpu.memory_space<vmem>>, vector<1x64x256xbf16>
    %14 = vector.shape_cast %13 : vector<1x64x256xbf16> to vector<64x256xbf16>
    %cst_12 = arith.constant dense<0.000000e+00> : vector<64x8xf32>
    %15 = tpu.matmul %14, %0, %cst_12 {dimension_numbers = #tpu.dot_dimension_numbers<[1], [0], [0], [1], [0, 0, 1, 1], [], []>} : vector<64x256xbf16>, vector<256x8xbf16>, vector<64x8xf32> -> vector<64x8xf32>
    %16 = arith.truncf %15 : vector<64x8xf32> to vector<64x8xbf16>
    %c4 = arith.constant 4 : index
    %c0_13 = arith.constant 0 : index
    %c0_14 = arith.constant 0 : index
    %17 = vector.load %arg1[%c4, %c0_13, %c0_14] : memref<9x64x256xbf16, #tpu.memory_space<vmem>>, vector<1x64x256xbf16>
    %18 = vector.shape_cast %17 : vector<1x64x256xbf16> to vector<64x256xbf16>
    %cst_15 = arith.constant dense<0.000000e+00> : vector<64x8xf32>
    %19 = tpu.matmul %18, %0, %cst_15 {dimension_numbers = #tpu.dot_dimension_numbers<[1], [0], [0], [1], [0, 0, 1, 1], [], []>} : vector<64x256xbf16>, vector<256x8xbf16>, vector<64x8xf32> -> vector<64x8xf32>
    %20 = arith.truncf %19 : vector<64x8xf32> to vector<64x8xbf16>
    %c5 = arith.constant 5 : index
    %c0_16 = arith.constant 0 : index
    %c0_17 = arith.constant 0 : index
    %21 = vector.load %arg1[%c5, %c0_16, %c0_17] : memref<9x64x256xbf16, #tpu.memory_space<vmem>>, vector<1x64x256xbf16>
    %22 = vector.shape_cast %21 : vector<1x64x256xbf16> to vector<64x256xbf16>
    %cst_18 = arith.constant dense<0.000000e+00> : vector<64x8xf32>
    %23 = tpu.matmul %22, %0, %cst_18 {dimension_numbers = #tpu.dot_dimension_numbers<[1], [0], [0], [1], [0, 0, 1, 1], [], []>} : vector<64x256xbf16>, vector<256x8xbf16>, vector<64x8xf32> -> vector<64x8xf32>
    %24 = arith.truncf %23 : vector<64x8xf32> to vector<64x8xbf16>
    %c6 = arith.constant 6 : index
    %c0_19 = arith.constant 0 : index
    %c0_20 = arith.constant 0 : index
    %25 = vector.load %arg1[%c6, %c0_19, %c0_20] : memref<9x64x256xbf16, #tpu.memory_space<vmem>>, vector<1x64x256xbf16>
    %26 = vector.shape_cast %25 : vector<1x64x256xbf16> to vector<64x256xbf16>
    %cst_21 = arith.constant dense<0.000000e+00> : vector<64x8xf32>
    %27 = tpu.matmul %26, %0, %cst_21 {dimension_numbers = #tpu.dot_dimension_numbers<[1], [0], [0], [1], [0, 0, 1, 1], [], []>} : vector<64x256xbf16>, vector<256x8xbf16>, vector<64x8xf32> -> vector<64x8xf32>
    %28 = arith.truncf %27 : vector<64x8xf32> to vector<64x8xbf16>
    %c7 = arith.constant 7 : index
    %c0_22 = arith.constant 0 : index
    %c0_23 = arith.constant 0 : index
    %29 = vector.load %arg1[%c7, %c0_22, %c0_23] : memref<9x64x256xbf16, #tpu.memory_space<vmem>>, vector<1x64x256xbf16>
    %30 = vector.shape_cast %29 : vector<1x64x256xbf16> to vector<64x256xbf16>
    %cst_24 = arith.constant dense<0.000000e+00> : vector<64x8xf32>
    %31 = tpu.matmul %30, %0, %cst_24 {dimension_numbers = #tpu.dot_dimension_numbers<[1], [0], [0], [1], [0, 0, 1, 1], [], []>} : vector<64x256xbf16>, vector<256x8xbf16>, vector<64x8xf32> -> vector<64x8xf32>
    %32 = arith.truncf %31 : vector<64x8xf32> to vector<64x8xbf16>
    %c8 = arith.constant 8 : index
    %c0_25 = arith.constant 0 : index
    %c0_26 = arith.constant 0 : index
    %33 = vector.load %arg1[%c8, %c0_25, %c0_26] : memref<9x64x256xbf16, #tpu.memory_space<vmem>>, vector<1x64x256xbf16>
    %34 = vector.shape_cast %33 : vector<1x64x256xbf16> to vector<64x256xbf16>
    %cst_27 = arith.constant dense<0.000000e+00> : vector<64x8xf32>
    %35 = tpu.matmul %34, %0, %cst_27 {dimension_numbers = #tpu.dot_dimension_numbers<[1], [0], [0], [1], [0, 0, 1, 1], [], []>} : vector<64x256xbf16>, vector<256x8xbf16>, vector<64x8xf32> -> vector<64x8xf32>
    %36 = arith.truncf %35 : vector<64x8xf32> to vector<64x8xbf16>
    %37 = tpu.concatenate %4, %8, %12, %16, %20, %24, %28, %32, %36 in 1 : vector<64x8xbf16>, vector<64x8xbf16>, vector<64x8xbf16>, vector<64x8xbf16>, vector<64x8xbf16>, vector<64x8xbf16>, vector<64x8xbf16>, vector<64x8xbf16>, vector<64x8xbf16> -> vector<64x72xbf16>
    %c0_28 = arith.constant 0 : index
    %c0_29 = arith.constant 0 : index
    %38 = vector.load %arg6[%c0_28, %c0_29] : memref<72x16xbf16, #tpu.memory_space<vmem>>, vector<72x16xbf16>
    %cst_30 = arith.constant dense<0.000000e+00> : vector<64x16xf32>
    %39 = tpu.matmul %37, %38, %cst_30 {dimension_numbers = #tpu.dot_dimension_numbers<[1], [0], [0], [1], [0, 0, 1, 1], [], []>} : vector<64x72xbf16>, vector<72x16xbf16>, vector<64x16xf32> -> vector<64x16xf32>
    %cst_31 = arith.constant dense<0.000000e+00> : vector<16xf32>
    %40 = vector.multi_reduction <add>, %39, %cst_31 [0] : vector<64x16xf32> to vector<16xf32>
    %41 = vector.shape_cast %40 : vector<16xf32> to vector<1x16xf32>
    %42 = arith.mulf %39, %39 : vector<64x16xf32>
    %cst_32 = arith.constant dense<0.000000e+00> : vector<16xf32>
    %43 = vector.multi_reduction <add>, %42, %cst_32 [0] : vector<64x16xf32> to vector<16xf32>
    %44 = vector.shape_cast %43 : vector<16xf32> to vector<1x16xf32>
    %cst_33 = arith.constant 1.562500e-02 : f32
    %45 = vector.broadcast %cst_33 : f32 to vector<1x16xf32>
    %46 = arith.mulf %41, %45 : vector<1x16xf32>
    %cst_34 = arith.constant 1.562500e-02 : f32
    %47 = vector.broadcast %cst_34 : f32 to vector<1x16xf32>
    %48 = arith.mulf %44, %47 : vector<1x16xf32>
    %49 = arith.mulf %46, %46 : vector<1x16xf32>
    %50 = arith.subf %48, %49 : vector<1x16xf32>
    %c0_35 = arith.constant 0 : index
    %c0_36 = arith.constant 0 : index
    %51 = vector.load %arg15[%c0_35, %c0_36] : memref<2x16xf32, #tpu.memory_space<vmem>>, vector<2x16xf32>
    %52 = vector.broadcast %46 : vector<1x16xf32> to vector<64x16xf32>
    %53 = arith.subf %39, %52 : vector<64x16xf32>
    %cst_37 = arith.constant 9.99999974E-6 : f32
    %54 = vector.broadcast %cst_37 : f32 to vector<1x16xf32>
    %55 = arith.addf %50, %54 : vector<1x16xf32>
    %56 = math.rsqrt %55 : vector<1x16xf32>
    %57 = vector.broadcast %56 : vector<1x16xf32> to vector<64x16xf32>
    %58 = arith.mulf %53, %57 : vector<64x16xf32>
    %59 = vector.extract_strided_slice %51 {offsets = [0, 0], sizes = [1, 16], strides = [1, 1]} : vector<2x16xf32> to vector<1x16xf32>
    %60 = vector.broadcast %59 : vector<1x16xf32> to vector<64x16xf32>
    %61 = arith.mulf %58, %60 : vector<64x16xf32>
    %62 = vector.extract_strided_slice %51 {offsets = [1, 0], sizes = [1, 16], strides = [1, 1]} : vector<2x16xf32> to vector<1x16xf32>
    %63 = vector.broadcast %62 : vector<1x16xf32> to vector<64x16xf32>
    %64 = arith.addf %61, %63 : vector<64x16xf32>
    %cst_38 = arith.constant 0.000000e+00 : f32
    %65 = vector.broadcast %cst_38 : f32 to vector<64x16xf32>
    %66 = arith.cmpf oge, %64, %65 : vector<64x16xf32>
    %cst_39 = arith.constant 0.00999999977 : f32
    %67 = vector.broadcast %cst_39 : f32 to vector<64x16xf32>
    %68 = arith.mulf %67, %64 : vector<64x16xf32>
    %69 = arith.select %66, %64, %68 : vector<64x16xi1>, vector<64x16xf32>
    %c9_i32 = arith.constant 9 : i32
    %70 = tpu.dynamic_rotate %69 by %c9_i32 dim 0 : vector<64x16xf32>, i32 -> vector<64x16xf32>
    %c0_40 = arith.constant 0 : index
    %c0_41 = arith.constant 0 : index
    %c0_42 = arith.constant 0 : index
    %71 = vector.load %arg4[%c0_40, %c0_41, %c0_42] : memref<9x64x1xf32, #tpu.memory_space<vmem>>, vector<1x64x1xf32>
    %72 = vector.shape_cast %71 : vector<1x64x1xf32> to vector<64x1xf32>
    %73 = vector.broadcast %72 : vector<64x1xf32> to vector<64x16xf32>
    %74 = arith.mulf %70, %73 : vector<64x16xf32>
    %c8_i32 = arith.constant 8 : i32
    %75 = tpu.dynamic_rotate %69 by %c8_i32 dim 0 : vector<64x16xf32>, i32 -> vector<64x16xf32>
    %c1_43 = arith.constant 1 : index
    %c0_44 = arith.constant 0 : index
    %c0_45 = arith.constant 0 : index
    %76 = vector.load %arg4[%c1_43, %c0_44, %c0_45] : memref<9x64x1xf32, #tpu.memory_space<vmem>>, vector<1x64x1xf32>
    %77 = vector.shape_cast %76 : vector<1x64x1xf32> to vector<64x1xf32>
    %78 = vector.broadcast %77 : vector<64x1xf32> to vector<64x16xf32>
    %79 = arith.mulf %75, %78 : vector<64x16xf32>
    %c7_i32 = arith.constant 7 : i32
    %80 = tpu.dynamic_rotate %69 by %c7_i32 dim 0 : vector<64x16xf32>, i32 -> vector<64x16xf32>
    %c2_46 = arith.constant 2 : index
    %c0_47 = arith.constant 0 : index
    %c0_48 = arith.constant 0 : index
    %81 = vector.load %arg4[%c2_46, %c0_47, %c0_48] : memref<9x64x1xf32, #tpu.memory_space<vmem>>, vector<1x64x1xf32>
    %82 = vector.shape_cast %81 : vector<1x64x1xf32> to vector<64x1xf32>
    %83 = vector.broadcast %82 : vector<64x1xf32> to vector<64x16xf32>
    %84 = arith.mulf %80, %83 : vector<64x16xf32>
    %c1_i32 = arith.constant 1 : i32
    %85 = tpu.dynamic_rotate %69 by %c1_i32 dim 0 : vector<64x16xf32>, i32 -> vector<64x16xf32>
    %c3_49 = arith.constant 3 : index
    %c0_50 = arith.constant 0 : index
    %c0_51 = arith.constant 0 : index
    %86 = vector.load %arg4[%c3_49, %c0_50, %c0_51] : memref<9x64x1xf32, #tpu.memory_space<vmem>>, vector<1x64x1xf32>
    %87 = vector.shape_cast %86 : vector<1x64x1xf32> to vector<64x1xf32>
    %88 = vector.broadcast %87 : vector<64x1xf32> to vector<64x16xf32>
    %89 = arith.mulf %85, %88 : vector<64x16xf32>
    %c4_52 = arith.constant 4 : index
    %c0_53 = arith.constant 0 : index
    %c0_54 = arith.constant 0 : index
    %90 = vector.load %arg4[%c4_52, %c0_53, %c0_54] : memref<9x64x1xf32, #tpu.memory_space<vmem>>, vector<1x64x1xf32>
    %91 = vector.shape_cast %90 : vector<1x64x1xf32> to vector<64x1xf32>
    %92 = vector.broadcast %91 : vector<64x1xf32> to vector<64x16xf32>
    %93 = arith.mulf %69, %92 : vector<64x16xf32>
    %c63_i32 = arith.constant 63 : i32
    %94 = tpu.dynamic_rotate %69 by %c63_i32 dim 0 : vector<64x16xf32>, i32 -> vector<64x16xf32>
    %c5_55 = arith.constant 5 : index
    %c0_56 = arith.constant 0 : index
    %c0_57 = arith.constant 0 : index
    %95 = vector.load %arg4[%c5_55, %c0_56, %c0_57] : memref<9x64x1xf32, #tpu.memory_space<vmem>>, vector<1x64x1xf32>
    %96 = vector.shape_cast %95 : vector<1x64x1xf32> to vector<64x1xf32>
    %97 = vector.broadcast %96 : vector<64x1xf32> to vector<64x16xf32>
    %98 = arith.mulf %94, %97 : vector<64x16xf32>
    %c57_i32 = arith.constant 57 : i32
    %99 = tpu.dynamic_rotate %69 by %c57_i32 dim 0 : vector<64x16xf32>, i32 -> vector<64x16xf32>
    %c6_58 = arith.constant 6 : index
    %c0_59 = arith.constant 0 : index
    %c0_60 = arith.constant 0 : index
    %100 = vector.load %arg4[%c6_58, %c0_59, %c0_60] : memref<9x64x1xf32, #tpu.memory_space<vmem>>, vector<1x64x1xf32>
    %101 = vector.shape_cast %100 : vector<1x64x1xf32> to vector<64x1xf32>
    %102 = vector.broadcast %101 : vector<64x1xf32> to vector<64x16xf32>
    %103 = arith.mulf %99, %102 : vector<64x16xf32>
    %c56_i32 = arith.constant 56 : i32
    %104 = tpu.dynamic_rotate %69 by %c56_i32 dim 0 : vector<64x16xf32>, i32 -> vector<64x16xf32>
    %c7_61 = arith.constant 7 : index
    %c0_62 = arith.constant 0 : index
    %c0_63 = arith.constant 0 : index
    %105 = vector.load %arg4[%c7_61, %c0_62, %c0_63] : memref<9x64x1xf32, #tpu.memory_space<vmem>>, vector<1x64x1xf32>
    %106 = vector.shape_cast %105 : vector<1x64x1xf32> to vector<64x1xf32>
    %107 = vector.broadcast %106 : vector<64x1xf32> to vector<64x16xf32>
    %108 = arith.mulf %104, %107 : vector<64x16xf32>
    %c55_i32 = arith.constant 55 : i32
    %109 = tpu.dynamic_rotate %69 by %c55_i32 dim 0 : vector<64x16xf32>, i32 -> vector<64x16xf32>
    %c8_64 = arith.constant 8 : index
    %c0_65 = arith.constant 0 : index
    %c0_66 = arith.constant 0 : index
    %110 = vector.load %arg4[%c8_64, %c0_65, %c0_66] : memref<9x64x1xf32, #tpu.memory_space<vmem>>, vector<1x64x1xf32>
    %111 = vector.shape_cast %110 : vector<1x64x1xf32> to vector<64x1xf32>
    %112 = vector.broadcast %111 : vector<64x1xf32> to vector<64x16xf32>
    %113 = arith.mulf %109, %112 : vector<64x16xf32>
    %114 = tpu.concatenate %74, %79, %84, %89, %93, %98, %103, %108, %113 in 1 : vector<64x16xf32>, vector<64x16xf32>, vector<64x16xf32>, vector<64x16xf32>, vector<64x16xf32>, vector<64x16xf32>, vector<64x16xf32>, vector<64x16xf32>, vector<64x16xf32> -> vector<64x144xf32>
    %115 = arith.truncf %114 : vector<64x144xf32> to vector<64x144xbf16>
    %c0_67 = arith.constant 0 : index
    %c0_68 = arith.constant 0 : index
    %116 = vector.load %arg7[%c0_67, %c0_68] : memref<144x16xbf16, #tpu.memory_space<vmem>>, vector<144x16xbf16>
    %cst_69 = arith.constant dense<0.000000e+00> : vector<64x16xf32>
    %117 = tpu.matmul %115, %116, %cst_69 {dimension_numbers = #tpu.dot_dimension_numbers<[1], [0], [0], [1], [0, 0, 1, 1], [], []>} : vector<64x144xbf16>, vector<144x16xbf16>, vector<64x16xf32> -> vector<64x16xf32>
    %cst_70 = arith.constant dense<0.000000e+00> : vector<16xf32>
    %118 = vector.multi_reduction <add>, %117, %cst_70 [0] : vector<64x16xf32> to vector<16xf32>
    %119 = vector.shape_cast %118 : vector<16xf32> to vector<1x16xf32>
    %120 = arith.mulf %117, %117 : vector<64x16xf32>
    %cst_71 = arith.constant dense<0.000000e+00> : vector<16xf32>
    %121 = vector.multi_reduction <add>, %120, %cst_71 [0] : vector<64x16xf32> to vector<16xf32>
    %122 = vector.shape_cast %121 : vector<16xf32> to vector<1x16xf32>
    %cst_72 = arith.constant 1.562500e-02 : f32
    %123 = vector.broadcast %cst_72 : f32 to vector<1x16xf32>
    %124 = arith.mulf %119, %123 : vector<1x16xf32>
    %cst_73 = arith.constant 1.562500e-02 : f32
    %125 = vector.broadcast %cst_73 : f32 to vector<1x16xf32>
    %126 = arith.mulf %122, %125 : vector<1x16xf32>
    %127 = arith.mulf %124, %124 : vector<1x16xf32>
    %128 = arith.subf %126, %127 : vector<1x16xf32>
    %c0_74 = arith.constant 0 : index
    %c0_75 = arith.constant 0 : index
    %129 = vector.load %arg16[%c0_74, %c0_75] : memref<2x16xf32, #tpu.memory_space<vmem>>, vector<2x16xf32>
    %130 = vector.broadcast %124 : vector<1x16xf32> to vector<64x16xf32>
    %131 = arith.subf %117, %130 : vector<64x16xf32>
    %cst_76 = arith.constant 9.99999974E-6 : f32
    %132 = vector.broadcast %cst_76 : f32 to vector<1x16xf32>
    %133 = arith.addf %128, %132 : vector<1x16xf32>
    %134 = math.rsqrt %133 : vector<1x16xf32>
    %135 = vector.broadcast %134 : vector<1x16xf32> to vector<64x16xf32>
    %136 = arith.mulf %131, %135 : vector<64x16xf32>
    %137 = vector.extract_strided_slice %129 {offsets = [0, 0], sizes = [1, 16], strides = [1, 1]} : vector<2x16xf32> to vector<1x16xf32>
    %138 = vector.broadcast %137 : vector<1x16xf32> to vector<64x16xf32>
    %139 = arith.mulf %136, %138 : vector<64x16xf32>
    %140 = vector.extract_strided_slice %129 {offsets = [1, 0], sizes = [1, 16], strides = [1, 1]} : vector<2x16xf32> to vector<1x16xf32>
    %141 = vector.broadcast %140 : vector<1x16xf32> to vector<64x16xf32>
    %142 = arith.addf %139, %141 : vector<64x16xf32>
    %cst_77 = arith.constant 0.000000e+00 : f32
    %143 = vector.broadcast %cst_77 : f32 to vector<64x16xf32>
    %144 = arith.cmpf oge, %142, %143 : vector<64x16xf32>
    %cst_78 = arith.constant 0.00999999977 : f32
    %145 = vector.broadcast %cst_78 : f32 to vector<64x16xf32>
    %146 = arith.mulf %145, %142 : vector<64x16xf32>
    %147 = arith.select %144, %142, %146 : vector<64x16xi1>, vector<64x16xf32>
    %148 = arith.truncf %147 : vector<64x16xf32> to vector<64x16xbf16>
    %c0_79 = arith.constant 0 : index
    %c0_80 = arith.constant 0 : index
    %c0_81 = arith.constant 0 : index
    %149 = vector.load %arg2[%c0_79, %c0_80, %c0_81] : memref<9x16x64xbf16, #tpu.memory_space<vmem>>, vector<1x16x64xbf16>
    %150 = vector.shape_cast %149 : vector<1x16x64xbf16> to vector<16x64xbf16>
    %cst_82 = arith.constant dense<0.000000e+00> : vector<16x16xf32>
    %151 = tpu.matmul %150, %148, %cst_82 {dimension_numbers = #tpu.dot_dimension_numbers<[1], [0], [0], [1], [0, 0, 1, 1], [], []>} : vector<16x64xbf16>, vector<64x16xbf16>, vector<16x16xf32> -> vector<16x16xf32>
    %152 = arith.truncf %151 : vector<16x16xf32> to vector<16x16xbf16>
    %c1_83 = arith.constant 1 : index
    %c0_84 = arith.constant 0 : index
    %c0_85 = arith.constant 0 : index
    %153 = vector.load %arg2[%c1_83, %c0_84, %c0_85] : memref<9x16x64xbf16, #tpu.memory_space<vmem>>, vector<1x16x64xbf16>
    %154 = vector.shape_cast %153 : vector<1x16x64xbf16> to vector<16x64xbf16>
    %cst_86 = arith.constant dense<0.000000e+00> : vector<16x16xf32>
    %155 = tpu.matmul %154, %148, %cst_86 {dimension_numbers = #tpu.dot_dimension_numbers<[1], [0], [0], [1], [0, 0, 1, 1], [], []>} : vector<16x64xbf16>, vector<64x16xbf16>, vector<16x16xf32> -> vector<16x16xf32>
    %156 = arith.truncf %155 : vector<16x16xf32> to vector<16x16xbf16>
    %c2_87 = arith.constant 2 : index
    %c0_88 = arith.constant 0 : index
    %c0_89 = arith.constant 0 : index
    %157 = vector.load %arg2[%c2_87, %c0_88, %c0_89] : memref<9x16x64xbf16, #tpu.memory_space<vmem>>, vector<1x16x64xbf16>
    %158 = vector.shape_cast %157 : vector<1x16x64xbf16> to vector<16x64xbf16>
    %cst_90 = arith.constant dense<0.000000e+00> : vector<16x16xf32>
    %159 = tpu.matmul %158, %148, %cst_90 {dimension_numbers = #tpu.dot_dimension_numbers<[1], [0], [0], [1], [0, 0, 1, 1], [], []>} : vector<16x64xbf16>, vector<64x16xbf16>, vector<16x16xf32> -> vector<16x16xf32>
    %160 = arith.truncf %159 : vector<16x16xf32> to vector<16x16xbf16>
    %c3_91 = arith.constant 3 : index
    %c0_92 = arith.constant 0 : index
    %c0_93 = arith.constant 0 : index
    %161 = vector.load %arg2[%c3_91, %c0_92, %c0_93] : memref<9x16x64xbf16, #tpu.memory_space<vmem>>, vector<1x16x64xbf16>
    %162 = vector.shape_cast %161 : vector<1x16x64xbf16> to vector<16x64xbf16>
    %cst_94 = arith.constant dense<0.000000e+00> : vector<16x16xf32>
    %163 = tpu.matmul %162, %148, %cst_94 {dimension_numbers = #tpu.dot_dimension_numbers<[1], [0], [0], [1], [0, 0, 1, 1], [], []>} : vector<16x64xbf16>, vector<64x16xbf16>, vector<16x16xf32> -> vector<16x16xf32>
    %164 = arith.truncf %163 : vector<16x16xf32> to vector<16x16xbf16>
    %c4_95 = arith.constant 4 : index
    %c0_96 = arith.constant 0 : index
    %c0_97 = arith.constant 0 : index
    %165 = vector.load %arg2[%c4_95, %c0_96, %c0_97] : memref<9x16x64xbf16, #tpu.memory_space<vmem>>, vector<1x16x64xbf16>
    %166 = vector.shape_cast %165 : vector<1x16x64xbf16> to vector<16x64xbf16>
    %cst_98 = arith.constant dense<0.000000e+00> : vector<16x16xf32>
    %167 = tpu.matmul %166, %148, %cst_98 {dimension_numbers = #tpu.dot_dimension_numbers<[1], [0], [0], [1], [0, 0, 1, 1], [], []>} : vector<16x64xbf16>, vector<64x16xbf16>, vector<16x16xf32> -> vector<16x16xf32>
    %168 = arith.truncf %167 : vector<16x16xf32> to vector<16x16xbf16>
    %c5_99 = arith.constant 5 : index
    %c0_100 = arith.constant 0 : index
    %c0_101 = arith.constant 0 : index
    %169 = vector.load %arg2[%c5_99, %c0_100, %c0_101] : memref<9x16x64xbf16, #tpu.memory_space<vmem>>, vector<1x16x64xbf16>
    %170 = vector.shape_cast %169 : vector<1x16x64xbf16> to vector<16x64xbf16>
    %cst_102 = arith.constant dense<0.000000e+00> : vector<16x16xf32>
    %171 = tpu.matmul %170, %148, %cst_102 {dimension_numbers = #tpu.dot_dimension_numbers<[1], [0], [0], [1], [0, 0, 1, 1], [], []>} : vector<16x64xbf16>, vector<64x16xbf16>, vector<16x16xf32> -> vector<16x16xf32>
    %172 = arith.truncf %171 : vector<16x16xf32> to vector<16x16xbf16>
    %c6_103 = arith.constant 6 : index
    %c0_104 = arith.constant 0 : index
    %c0_105 = arith.constant 0 : index
    %173 = vector.load %arg2[%c6_103, %c0_104, %c0_105] : memref<9x16x64xbf16, #tpu.memory_space<vmem>>, vector<1x16x64xbf16>
    %174 = vector.shape_cast %173 : vector<1x16x64xbf16> to vector<16x64xbf16>
    %cst_106 = arith.constant dense<0.000000e+00> : vector<16x16xf32>
    %175 = tpu.matmul %174, %148, %cst_106 {dimension_numbers = #tpu.dot_dimension_numbers<[1], [0], [0], [1], [0, 0, 1, 1], [], []>} : vector<16x64xbf16>, vector<64x16xbf16>, vector<16x16xf32> -> vector<16x16xf32>
    %176 = arith.truncf %175 : vector<16x16xf32> to vector<16x16xbf16>
    %c7_107 = arith.constant 7 : index
    %c0_108 = arith.constant 0 : index
    %c0_109 = arith.constant 0 : index
    %177 = vector.load %arg2[%c7_107, %c0_108, %c0_109] : memref<9x16x64xbf16, #tpu.memory_space<vmem>>, vector<1x16x64xbf16>
    %178 = vector.shape_cast %177 : vector<1x16x64xbf16> to vector<16x64xbf16>
    %cst_110 = arith.constant dense<0.000000e+00> : vector<16x16xf32>
    %179 = tpu.matmul %178, %148, %cst_110 {dimension_numbers = #tpu.dot_dimension_numbers<[1], [0], [0], [1], [0, 0, 1, 1], [], []>} : vector<16x64xbf16>, vector<64x16xbf16>, vector<16x16xf32> -> vector<16x16xf32>
    %180 = arith.truncf %179 : vector<16x16xf32> to vector<16x16xbf16>
    %c8_111 = arith.constant 8 : index
    %c0_112 = arith.constant 0 : index
    %c0_113 = arith.constant 0 : index
    %181 = vector.load %arg2[%c8_111, %c0_112, %c0_113] : memref<9x16x64xbf16, #tpu.memory_space<vmem>>, vector<1x16x64xbf16>
    %182 = vector.shape_cast %181 : vector<1x16x64xbf16> to vector<16x64xbf16>
    %cst_114 = arith.constant dense<0.000000e+00> : vector<16x16xf32>
    %183 = tpu.matmul %182, %148, %cst_114 {dimension_numbers = #tpu.dot_dimension_numbers<[1], [0], [0], [1], [0, 0, 1, 1], [], []>} : vector<16x64xbf16>, vector<64x16xbf16>, vector<16x16xf32> -> vector<16x16xf32>
    %184 = arith.truncf %183 : vector<16x16xf32> to vector<16x16xbf16>
    %185 = tpu.concatenate %152, %156, %160, %164, %168, %172, %176, %180, %184 in 1 : vector<16x16xbf16>, vector<16x16xbf16>, vector<16x16xbf16>, vector<16x16xbf16>, vector<16x16xbf16>, vector<16x16xbf16>, vector<16x16xbf16>, vector<16x16xbf16>, vector<16x16xbf16> -> vector<16x144xbf16>
    %c0_115 = arith.constant 0 : index
    %c0_116 = arith.constant 0 : index
    %186 = vector.load %arg8[%c0_115, %c0_116] : memref<144x32xbf16, #tpu.memory_space<vmem>>, vector<144x32xbf16>
    %cst_117 = arith.constant dense<0.000000e+00> : vector<16x32xf32>
    %187 = tpu.matmul %185, %186, %cst_117 {dimension_numbers = #tpu.dot_dimension_numbers<[1], [0], [0], [1], [0, 0, 1, 1], [], []>} : vector<16x144xbf16>, vector<144x32xbf16>, vector<16x32xf32> -> vector<16x32xf32>
    %cst_118 = arith.constant dense<0.000000e+00> : vector<32xf32>
    %188 = vector.multi_reduction <add>, %187, %cst_118 [0] : vector<16x32xf32> to vector<32xf32>
    %189 = vector.shape_cast %188 : vector<32xf32> to vector<1x32xf32>
    %190 = arith.mulf %187, %187 : vector<16x32xf32>
    %cst_119 = arith.constant dense<0.000000e+00> : vector<32xf32>
    %191 = vector.multi_reduction <add>, %190, %cst_119 [0] : vector<16x32xf32> to vector<32xf32>
    %192 = vector.shape_cast %191 : vector<32xf32> to vector<1x32xf32>
    %cst_120 = arith.constant 6.250000e-02 : f32
    %193 = vector.broadcast %cst_120 : f32 to vector<1x32xf32>
    %194 = arith.mulf %189, %193 : vector<1x32xf32>
    %cst_121 = arith.constant 6.250000e-02 : f32
    %195 = vector.broadcast %cst_121 : f32 to vector<1x32xf32>
    %196 = arith.mulf %192, %195 : vector<1x32xf32>
    %197 = arith.mulf %194, %194 : vector<1x32xf32>
    %198 = arith.subf %196, %197 : vector<1x32xf32>
    %c0_122 = arith.constant 0 : index
    %c0_123 = arith.constant 0 : index
    %199 = vector.load %arg17[%c0_122, %c0_123] : memref<2x32xf32, #tpu.memory_space<vmem>>, vector<2x32xf32>
    %200 = vector.broadcast %194 : vector<1x32xf32> to vector<16x32xf32>
    %201 = arith.subf %187, %200 : vector<16x32xf32>
    %cst_124 = arith.constant 9.99999974E-6 : f32
    %202 = vector.broadcast %cst_124 : f32 to vector<1x32xf32>
    %203 = arith.addf %198, %202 : vector<1x32xf32>
    %204 = math.rsqrt %203 : vector<1x32xf32>
    %205 = vector.broadcast %204 : vector<1x32xf32> to vector<16x32xf32>
    %206 = arith.mulf %201, %205 : vector<16x32xf32>
    %207 = vector.extract_strided_slice %199 {offsets = [0, 0], sizes = [1, 32], strides = [1, 1]} : vector<2x32xf32> to vector<1x32xf32>
    %208 = vector.broadcast %207 : vector<1x32xf32> to vector<16x32xf32>
    %209 = arith.mulf %206, %208 : vector<16x32xf32>
    %210 = vector.extract_strided_slice %199 {offsets = [1, 0], sizes = [1, 32], strides = [1, 1]} : vector<2x32xf32> to vector<1x32xf32>
    %211 = vector.broadcast %210 : vector<1x32xf32> to vector<16x32xf32>
    %212 = arith.addf %209, %211 : vector<16x32xf32>
    %cst_125 = arith.constant 0.000000e+00 : f32
    %213 = vector.broadcast %cst_125 : f32 to vector<16x32xf32>
    %214 = arith.cmpf oge, %212, %213 : vector<16x32xf32>
    %cst_126 = arith.constant 0.00999999977 : f32
    %215 = vector.broadcast %cst_126 : f32 to vector<16x32xf32>
    %216 = arith.mulf %215, %212 : vector<16x32xf32>
    %217 = arith.select %214, %212, %216 : vector<16x32xi1>, vector<16x32xf32>
    %c5_i32 = arith.constant 5 : i32
    %218 = tpu.dynamic_rotate %217 by %c5_i32 dim 0 : vector<16x32xf32>, i32 -> vector<16x32xf32>
    %c0_127 = arith.constant 0 : index
    %c0_128 = arith.constant 0 : index
    %c0_129 = arith.constant 0 : index
    %219 = vector.load %arg5[%c0_127, %c0_128, %c0_129] : memref<9x16x1xf32, #tpu.memory_space<vmem>>, vector<1x16x1xf32>
    %220 = vector.shape_cast %219 : vector<1x16x1xf32> to vector<16x1xf32>
    %221 = vector.broadcast %220 : vector<16x1xf32> to vector<16x32xf32>
    %222 = arith.mulf %218, %221 : vector<16x32xf32>
    %c4_i32 = arith.constant 4 : i32
    %223 = tpu.dynamic_rotate %217 by %c4_i32 dim 0 : vector<16x32xf32>, i32 -> vector<16x32xf32>
    %c1_130 = arith.constant 1 : index
    %c0_131 = arith.constant 0 : index
    %c0_132 = arith.constant 0 : index
    %224 = vector.load %arg5[%c1_130, %c0_131, %c0_132] : memref<9x16x1xf32, #tpu.memory_space<vmem>>, vector<1x16x1xf32>
    %225 = vector.shape_cast %224 : vector<1x16x1xf32> to vector<16x1xf32>
    %226 = vector.broadcast %225 : vector<16x1xf32> to vector<16x32xf32>
    %227 = arith.mulf %223, %226 : vector<16x32xf32>
    %c3_i32 = arith.constant 3 : i32
    %228 = tpu.dynamic_rotate %217 by %c3_i32 dim 0 : vector<16x32xf32>, i32 -> vector<16x32xf32>
    %c2_133 = arith.constant 2 : index
    %c0_134 = arith.constant 0 : index
    %c0_135 = arith.constant 0 : index
    %229 = vector.load %arg5[%c2_133, %c0_134, %c0_135] : memref<9x16x1xf32, #tpu.memory_space<vmem>>, vector<1x16x1xf32>
    %230 = vector.shape_cast %229 : vector<1x16x1xf32> to vector<16x1xf32>
    %231 = vector.broadcast %230 : vector<16x1xf32> to vector<16x32xf32>
    %232 = arith.mulf %228, %231 : vector<16x32xf32>
    %c1_i32_136 = arith.constant 1 : i32
    %233 = tpu.dynamic_rotate %217 by %c1_i32_136 dim 0 : vector<16x32xf32>, i32 -> vector<16x32xf32>
    %c3_137 = arith.constant 3 : index
    %c0_138 = arith.constant 0 : index
    %c0_139 = arith.constant 0 : index
    %234 = vector.load %arg5[%c3_137, %c0_138, %c0_139] : memref<9x16x1xf32, #tpu.memory_space<vmem>>, vector<1x16x1xf32>
    %235 = vector.shape_cast %234 : vector<1x16x1xf32> to vector<16x1xf32>
    %236 = vector.broadcast %235 : vector<16x1xf32> to vector<16x32xf32>
    %237 = arith.mulf %233, %236 : vector<16x32xf32>
    %c4_140 = arith.constant 4 : index
    %c0_141 = arith.constant 0 : index
    %c0_142 = arith.constant 0 : index
    %238 = vector.load %arg5[%c4_140, %c0_141, %c0_142] : memref<9x16x1xf32, #tpu.memory_space<vmem>>, vector<1x16x1xf32>
    %239 = vector.shape_cast %238 : vector<1x16x1xf32> to vector<16x1xf32>
    %240 = vector.broadcast %239 : vector<16x1xf32> to vector<16x32xf32>
    %241 = arith.mulf %217, %240 : vector<16x32xf32>
    %c15_i32 = arith.constant 15 : i32
    %242 = tpu.dynamic_rotate %217 by %c15_i32 dim 0 : vector<16x32xf32>, i32 -> vector<16x32xf32>
    %c5_143 = arith.constant 5 : index
    %c0_144 = arith.constant 0 : index
    %c0_145 = arith.constant 0 : index
    %243 = vector.load %arg5[%c5_143, %c0_144, %c0_145] : memref<9x16x1xf32, #tpu.memory_space<vmem>>, vector<1x16x1xf32>
    %244 = vector.shape_cast %243 : vector<1x16x1xf32> to vector<16x1xf32>
    %245 = vector.broadcast %244 : vector<16x1xf32> to vector<16x32xf32>
    %246 = arith.mulf %242, %245 : vector<16x32xf32>
    %c13_i32 = arith.constant 13 : i32
    %247 = tpu.dynamic_rotate %217 by %c13_i32 dim 0 : vector<16x32xf32>, i32 -> vector<16x32xf32>
    %c6_146 = arith.constant 6 : index
    %c0_147 = arith.constant 0 : index
    %c0_148 = arith.constant 0 : index
    %248 = vector.load %arg5[%c6_146, %c0_147, %c0_148] : memref<9x16x1xf32, #tpu.memory_space<vmem>>, vector<1x16x1xf32>
    %249 = vector.shape_cast %248 : vector<1x16x1xf32> to vector<16x1xf32>
    %250 = vector.broadcast %249 : vector<16x1xf32> to vector<16x32xf32>
    %251 = arith.mulf %247, %250 : vector<16x32xf32>
    %c12_i32 = arith.constant 12 : i32
    %252 = tpu.dynamic_rotate %217 by %c12_i32 dim 0 : vector<16x32xf32>, i32 -> vector<16x32xf32>
    %c7_149 = arith.constant 7 : index
    %c0_150 = arith.constant 0 : index
    %c0_151 = arith.constant 0 : index
    %253 = vector.load %arg5[%c7_149, %c0_150, %c0_151] : memref<9x16x1xf32, #tpu.memory_space<vmem>>, vector<1x16x1xf32>
    %254 = vector.shape_cast %253 : vector<1x16x1xf32> to vector<16x1xf32>
    %255 = vector.broadcast %254 : vector<16x1xf32> to vector<16x32xf32>
    %256 = arith.mulf %252, %255 : vector<16x32xf32>
    %c11_i32 = arith.constant 11 : i32
    %257 = tpu.dynamic_rotate %217 by %c11_i32 dim 0 : vector<16x32xf32>, i32 -> vector<16x32xf32>
    %c8_152 = arith.constant 8 : index
    %c0_153 = arith.constant 0 : index
    %c0_154 = arith.constant 0 : index
    %258 = vector.load %arg5[%c8_152, %c0_153, %c0_154] : memref<9x16x1xf32, #tpu.memory_space<vmem>>, vector<1x16x1xf32>
    %259 = vector.shape_cast %258 : vector<1x16x1xf32> to vector<16x1xf32>
    %260 = vector.broadcast %259 : vector<16x1xf32> to vector<16x32xf32>
    %261 = arith.mulf %257, %260 : vector<16x32xf32>
    %262 = tpu.concatenate %222, %227, %232, %237, %241, %246, %251, %256, %261 in 1 : vector<16x32xf32>, vector<16x32xf32>, vector<16x32xf32>, vector<16x32xf32>, vector<16x32xf32>, vector<16x32xf32>, vector<16x32xf32>, vector<16x32xf32>, vector<16x32xf32> -> vector<16x288xf32>
    %263 = arith.truncf %262 : vector<16x288xf32> to vector<16x288xbf16>
    %c0_155 = arith.constant 0 : index
    %c0_156 = arith.constant 0 : index
    %264 = vector.load %arg9[%c0_155, %c0_156] : memref<288x32xbf16, #tpu.memory_space<vmem>>, vector<288x32xbf16>
    %cst_157 = arith.constant dense<0.000000e+00> : vector<16x32xf32>
    %265 = tpu.matmul %263, %264, %cst_157 {dimension_numbers = #tpu.dot_dimension_numbers<[1], [0], [0], [1], [0, 0, 1, 1], [], []>} : vector<16x288xbf16>, vector<288x32xbf16>, vector<16x32xf32> -> vector<16x32xf32>
    %cst_158 = arith.constant dense<0.000000e+00> : vector<32xf32>
    %266 = vector.multi_reduction <add>, %265, %cst_158 [0] : vector<16x32xf32> to vector<32xf32>
    %267 = vector.shape_cast %266 : vector<32xf32> to vector<1x32xf32>
    %268 = arith.mulf %265, %265 : vector<16x32xf32>
    %cst_159 = arith.constant dense<0.000000e+00> : vector<32xf32>
    %269 = vector.multi_reduction <add>, %268, %cst_159 [0] : vector<16x32xf32> to vector<32xf32>
    %270 = vector.shape_cast %269 : vector<32xf32> to vector<1x32xf32>
    %cst_160 = arith.constant 6.250000e-02 : f32
    %271 = vector.broadcast %cst_160 : f32 to vector<1x32xf32>
    %272 = arith.mulf %267, %271 : vector<1x32xf32>
    %cst_161 = arith.constant 6.250000e-02 : f32
    %273 = vector.broadcast %cst_161 : f32 to vector<1x32xf32>
    %274 = arith.mulf %270, %273 : vector<1x32xf32>
    %275 = arith.mulf %272, %272 : vector<1x32xf32>
    %276 = arith.subf %274, %275 : vector<1x32xf32>
    %c0_162 = arith.constant 0 : index
    %c0_163 = arith.constant 0 : index
    %277 = vector.load %arg18[%c0_162, %c0_163] : memref<2x32xf32, #tpu.memory_space<vmem>>, vector<2x32xf32>
    %278 = vector.broadcast %272 : vector<1x32xf32> to vector<16x32xf32>
    %279 = arith.subf %265, %278 : vector<16x32xf32>
    %cst_164 = arith.constant 9.99999974E-6 : f32
    %280 = vector.broadcast %cst_164 : f32 to vector<1x32xf32>
    %281 = arith.addf %276, %280 : vector<1x32xf32>
    %282 = math.rsqrt %281 : vector<1x32xf32>
    %283 = vector.broadcast %282 : vector<1x32xf32> to vector<16x32xf32>
    %284 = arith.mulf %279, %283 : vector<16x32xf32>
    %285 = vector.extract_strided_slice %277 {offsets = [0, 0], sizes = [1, 32], strides = [1, 1]} : vector<2x32xf32> to vector<1x32xf32>
    %286 = vector.broadcast %285 : vector<1x32xf32> to vector<16x32xf32>
    %287 = arith.mulf %284, %286 : vector<16x32xf32>
    %288 = vector.extract_strided_slice %277 {offsets = [1, 0], sizes = [1, 32], strides = [1, 1]} : vector<2x32xf32> to vector<1x32xf32>
    %289 = vector.broadcast %288 : vector<1x32xf32> to vector<16x32xf32>
    %290 = arith.addf %287, %289 : vector<16x32xf32>
    %cst_165 = arith.constant 0.000000e+00 : f32
    %291 = vector.broadcast %cst_165 : f32 to vector<16x32xf32>
    %292 = arith.cmpf oge, %290, %291 : vector<16x32xf32>
    %cst_166 = arith.constant 0.00999999977 : f32
    %293 = vector.broadcast %cst_166 : f32 to vector<16x32xf32>
    %294 = arith.mulf %293, %290 : vector<16x32xf32>
    %295 = arith.select %292, %290, %294 : vector<16x32xi1>, vector<16x32xf32>
    %296 = arith.truncf %295 : vector<16x32xf32> to vector<16x32xbf16>
    %c0_167 = arith.constant 0 : index
    %c0_168 = arith.constant 0 : index
    %c0_169 = arith.constant 0 : index
    %297 = vector.load %arg10[%c0_167, %c0_168, %c0_169] : memref<4x32x16xbf16, #tpu.memory_space<vmem>>, vector<1x32x16xbf16>
    %298 = vector.shape_cast %297 : vector<1x32x16xbf16> to vector<32x16xbf16>
    %cst_170 = arith.constant dense<0.000000e+00> : vector<16x16xf32>
    %299 = tpu.matmul %296, %298, %cst_170 {dimension_numbers = #tpu.dot_dimension_numbers<[1], [0], [0], [1], [0, 0, 1, 1], [], []>} : vector<16x32xbf16>, vector<32x16xbf16>, vector<16x16xf32> -> vector<16x16xf32>
    %300 = arith.truncf %299 : vector<16x16xf32> to vector<16x16xbf16>
    %c1_171 = arith.constant 1 : index
    %c0_172 = arith.constant 0 : index
    %c0_173 = arith.constant 0 : index
    %301 = vector.load %arg10[%c1_171, %c0_172, %c0_173] : memref<4x32x16xbf16, #tpu.memory_space<vmem>>, vector<1x32x16xbf16>
    %302 = vector.shape_cast %301 : vector<1x32x16xbf16> to vector<32x16xbf16>
    %cst_174 = arith.constant dense<0.000000e+00> : vector<16x16xf32>
    %303 = tpu.matmul %296, %302, %cst_174 {dimension_numbers = #tpu.dot_dimension_numbers<[1], [0], [0], [1], [0, 0, 1, 1], [], []>} : vector<16x32xbf16>, vector<32x16xbf16>, vector<16x16xf32> -> vector<16x16xf32>
    %304 = arith.truncf %303 : vector<16x16xf32> to vector<16x16xbf16>
    %c2_175 = arith.constant 2 : index
    %c0_176 = arith.constant 0 : index
    %c0_177 = arith.constant 0 : index
    %305 = vector.load %arg10[%c2_175, %c0_176, %c0_177] : memref<4x32x16xbf16, #tpu.memory_space<vmem>>, vector<1x32x16xbf16>
    %306 = vector.shape_cast %305 : vector<1x32x16xbf16> to vector<32x16xbf16>
    %cst_178 = arith.constant dense<0.000000e+00> : vector<16x16xf32>
    %307 = tpu.matmul %296, %306, %cst_178 {dimension_numbers = #tpu.dot_dimension_numbers<[1], [0], [0], [1], [0, 0, 1, 1], [], []>} : vector<16x32xbf16>, vector<32x16xbf16>, vector<16x16xf32> -> vector<16x16xf32>
    %308 = arith.truncf %307 : vector<16x16xf32> to vector<16x16xbf16>
    %c3_179 = arith.constant 3 : index
    %c0_180 = arith.constant 0 : index
    %c0_181 = arith.constant 0 : index
    %309 = vector.load %arg10[%c3_179, %c0_180, %c0_181] : memref<4x32x16xbf16, #tpu.memory_space<vmem>>, vector<1x32x16xbf16>
    %310 = vector.shape_cast %309 : vector<1x32x16xbf16> to vector<32x16xbf16>
    %cst_182 = arith.constant dense<0.000000e+00> : vector<16x16xf32>
    %311 = tpu.matmul %296, %310, %cst_182 {dimension_numbers = #tpu.dot_dimension_numbers<[1], [0], [0], [1], [0, 0, 1, 1], [], []>} : vector<16x32xbf16>, vector<32x16xbf16>, vector<16x16xf32> -> vector<16x16xf32>
    %312 = arith.truncf %311 : vector<16x16xf32> to vector<16x16xbf16>
    %313 = tpu.concatenate %300, %304, %308, %312 in 0 : vector<16x16xbf16>, vector<16x16xbf16>, vector<16x16xbf16>, vector<16x16xbf16> -> vector<64x16xbf16>
    %c0_183 = arith.constant 0 : index
    %c0_184 = arith.constant 0 : index
    %314 = vector.load %arg3[%c0_183, %c0_184] : memref<64x64xbf16, #tpu.memory_space<vmem>>, vector<64x64xbf16>
    %cst_185 = arith.constant dense<0.000000e+00> : vector<64x16xf32>
    %315 = tpu.matmul %314, %313, %cst_185 {dimension_numbers = #tpu.dot_dimension_numbers<[1], [0], [0], [1], [0, 0, 1, 1], [], []>} : vector<64x64xbf16>, vector<64x16xbf16>, vector<64x16xf32> -> vector<64x16xf32>
    %c9_i32_186 = arith.constant 9 : i32
    %316 = tpu.dynamic_rotate %315 by %c9_i32_186 dim 0 : vector<64x16xf32>, i32 -> vector<64x16xf32>
    %c0_187 = arith.constant 0 : index
    %c0_188 = arith.constant 0 : index
    %c0_189 = arith.constant 0 : index
    %317 = vector.load %arg4[%c0_187, %c0_188, %c0_189] : memref<9x64x1xf32, #tpu.memory_space<vmem>>, vector<1x64x1xf32>
    %318 = vector.shape_cast %317 : vector<1x64x1xf32> to vector<64x1xf32>
    %319 = vector.broadcast %318 : vector<64x1xf32> to vector<64x16xf32>
    %320 = arith.mulf %316, %319 : vector<64x16xf32>
    %c8_i32_190 = arith.constant 8 : i32
    %321 = tpu.dynamic_rotate %315 by %c8_i32_190 dim 0 : vector<64x16xf32>, i32 -> vector<64x16xf32>
    %c1_191 = arith.constant 1 : index
    %c0_192 = arith.constant 0 : index
    %c0_193 = arith.constant 0 : index
    %322 = vector.load %arg4[%c1_191, %c0_192, %c0_193] : memref<9x64x1xf32, #tpu.memory_space<vmem>>, vector<1x64x1xf32>
    %323 = vector.shape_cast %322 : vector<1x64x1xf32> to vector<64x1xf32>
    %324 = vector.broadcast %323 : vector<64x1xf32> to vector<64x16xf32>
    %325 = arith.mulf %321, %324 : vector<64x16xf32>
    %c7_i32_194 = arith.constant 7 : i32
    %326 = tpu.dynamic_rotate %315 by %c7_i32_194 dim 0 : vector<64x16xf32>, i32 -> vector<64x16xf32>
    %c2_195 = arith.constant 2 : index
    %c0_196 = arith.constant 0 : index
    %c0_197 = arith.constant 0 : index
    %327 = vector.load %arg4[%c2_195, %c0_196, %c0_197] : memref<9x64x1xf32, #tpu.memory_space<vmem>>, vector<1x64x1xf32>
    %328 = vector.shape_cast %327 : vector<1x64x1xf32> to vector<64x1xf32>
    %329 = vector.broadcast %328 : vector<64x1xf32> to vector<64x16xf32>
    %330 = arith.mulf %326, %329 : vector<64x16xf32>
    %c1_i32_198 = arith.constant 1 : i32
    %331 = tpu.dynamic_rotate %315 by %c1_i32_198 dim 0 : vector<64x16xf32>, i32 -> vector<64x16xf32>
    %c3_199 = arith.constant 3 : index
    %c0_200 = arith.constant 0 : index
    %c0_201 = arith.constant 0 : index
    %332 = vector.load %arg4[%c3_199, %c0_200, %c0_201] : memref<9x64x1xf32, #tpu.memory_space<vmem>>, vector<1x64x1xf32>
    %333 = vector.shape_cast %332 : vector<1x64x1xf32> to vector<64x1xf32>
    %334 = vector.broadcast %333 : vector<64x1xf32> to vector<64x16xf32>
    %335 = arith.mulf %331, %334 : vector<64x16xf32>
    %c4_202 = arith.constant 4 : index
    %c0_203 = arith.constant 0 : index
    %c0_204 = arith.constant 0 : index
    %336 = vector.load %arg4[%c4_202, %c0_203, %c0_204] : memref<9x64x1xf32, #tpu.memory_space<vmem>>, vector<1x64x1xf32>
    %337 = vector.shape_cast %336 : vector<1x64x1xf32> to vector<64x1xf32>
    %338 = vector.broadcast %337 : vector<64x1xf32> to vector<64x16xf32>
    %339 = arith.mulf %315, %338 : vector<64x16xf32>
    %c63_i32_205 = arith.constant 63 : i32
    %340 = tpu.dynamic_rotate %315 by %c63_i32_205 dim 0 : vector<64x16xf32>, i32 -> vector<64x16xf32>
    %c5_206 = arith.constant 5 : index
    %c0_207 = arith.constant 0 : index
    %c0_208 = arith.constant 0 : index
    %341 = vector.load %arg4[%c5_206, %c0_207, %c0_208] : memref<9x64x1xf32, #tpu.memory_space<vmem>>, vector<1x64x1xf32>
    %342 = vector.shape_cast %341 : vector<1x64x1xf32> to vector<64x1xf32>
    %343 = vector.broadcast %342 : vector<64x1xf32> to vector<64x16xf32>
    %344 = arith.mulf %340, %343 : vector<64x16xf32>
    %c57_i32_209 = arith.constant 57 : i32
    %345 = tpu.dynamic_rotate %315 by %c57_i32_209 dim 0 : vector<64x16xf32>, i32 -> vector<64x16xf32>
    %c6_210 = arith.constant 6 : index
    %c0_211 = arith.constant 0 : index
    %c0_212 = arith.constant 0 : index
    %346 = vector.load %arg4[%c6_210, %c0_211, %c0_212] : memref<9x64x1xf32, #tpu.memory_space<vmem>>, vector<1x64x1xf32>
    %347 = vector.shape_cast %346 : vector<1x64x1xf32> to vector<64x1xf32>
    %348 = vector.broadcast %347 : vector<64x1xf32> to vector<64x16xf32>
    %349 = arith.mulf %345, %348 : vector<64x16xf32>
    %c56_i32_213 = arith.constant 56 : i32
    %350 = tpu.dynamic_rotate %315 by %c56_i32_213 dim 0 : vector<64x16xf32>, i32 -> vector<64x16xf32>
    %c7_214 = arith.constant 7 : index
    %c0_215 = arith.constant 0 : index
    %c0_216 = arith.constant 0 : index
    %351 = vector.load %arg4[%c7_214, %c0_215, %c0_216] : memref<9x64x1xf32, #tpu.memory_space<vmem>>, vector<1x64x1xf32>
    %352 = vector.shape_cast %351 : vector<1x64x1xf32> to vector<64x1xf32>
    %353 = vector.broadcast %352 : vector<64x1xf32> to vector<64x16xf32>
    %354 = arith.mulf %350, %353 : vector<64x16xf32>
    %c55_i32_217 = arith.constant 55 : i32
    %355 = tpu.dynamic_rotate %315 by %c55_i32_217 dim 0 : vector<64x16xf32>, i32 -> vector<64x16xf32>
    %c8_218 = arith.constant 8 : index
    %c0_219 = arith.constant 0 : index
    %c0_220 = arith.constant 0 : index
    %356 = vector.load %arg4[%c8_218, %c0_219, %c0_220] : memref<9x64x1xf32, #tpu.memory_space<vmem>>, vector<1x64x1xf32>
    %357 = vector.shape_cast %356 : vector<1x64x1xf32> to vector<64x1xf32>
    %358 = vector.broadcast %357 : vector<64x1xf32> to vector<64x16xf32>
    %359 = arith.mulf %355, %358 : vector<64x16xf32>
    %360 = tpu.concatenate %320, %325, %330, %335, %339, %344, %349, %354, %359 in 1 : vector<64x16xf32>, vector<64x16xf32>, vector<64x16xf32>, vector<64x16xf32>, vector<64x16xf32>, vector<64x16xf32>, vector<64x16xf32>, vector<64x16xf32>, vector<64x16xf32> -> vector<64x144xf32>
    %361 = arith.truncf %360 : vector<64x144xf32> to vector<64x144xbf16>
    %c9_i32_221 = arith.constant 9 : i32
    %362 = tpu.dynamic_rotate %147 by %c9_i32_221 dim 0 : vector<64x16xf32>, i32 -> vector<64x16xf32>
    %c0_222 = arith.constant 0 : index
    %c0_223 = arith.constant 0 : index
    %c0_224 = arith.constant 0 : index
    %363 = vector.load %arg4[%c0_222, %c0_223, %c0_224] : memref<9x64x1xf32, #tpu.memory_space<vmem>>, vector<1x64x1xf32>
    %364 = vector.shape_cast %363 : vector<1x64x1xf32> to vector<64x1xf32>
    %365 = vector.broadcast %364 : vector<64x1xf32> to vector<64x16xf32>
    %366 = arith.mulf %362, %365 : vector<64x16xf32>
    %c8_i32_225 = arith.constant 8 : i32
    %367 = tpu.dynamic_rotate %147 by %c8_i32_225 dim 0 : vector<64x16xf32>, i32 -> vector<64x16xf32>
    %c1_226 = arith.constant 1 : index
    %c0_227 = arith.constant 0 : index
    %c0_228 = arith.constant 0 : index
    %368 = vector.load %arg4[%c1_226, %c0_227, %c0_228] : memref<9x64x1xf32, #tpu.memory_space<vmem>>, vector<1x64x1xf32>
    %369 = vector.shape_cast %368 : vector<1x64x1xf32> to vector<64x1xf32>
    %370 = vector.broadcast %369 : vector<64x1xf32> to vector<64x16xf32>
    %371 = arith.mulf %367, %370 : vector<64x16xf32>
    %c7_i32_229 = arith.constant 7 : i32
    %372 = tpu.dynamic_rotate %147 by %c7_i32_229 dim 0 : vector<64x16xf32>, i32 -> vector<64x16xf32>
    %c2_230 = arith.constant 2 : index
    %c0_231 = arith.constant 0 : index
    %c0_232 = arith.constant 0 : index
    %373 = vector.load %arg4[%c2_230, %c0_231, %c0_232] : memref<9x64x1xf32, #tpu.memory_space<vmem>>, vector<1x64x1xf32>
    %374 = vector.shape_cast %373 : vector<1x64x1xf32> to vector<64x1xf32>
    %375 = vector.broadcast %374 : vector<64x1xf32> to vector<64x16xf32>
    %376 = arith.mulf %372, %375 : vector<64x16xf32>
    %c1_i32_233 = arith.constant 1 : i32
    %377 = tpu.dynamic_rotate %147 by %c1_i32_233 dim 0 : vector<64x16xf32>, i32 -> vector<64x16xf32>
    %c3_234 = arith.constant 3 : index
    %c0_235 = arith.constant 0 : index
    %c0_236 = arith.constant 0 : index
    %378 = vector.load %arg4[%c3_234, %c0_235, %c0_236] : memref<9x64x1xf32, #tpu.memory_space<vmem>>, vector<1x64x1xf32>
    %379 = vector.shape_cast %378 : vector<1x64x1xf32> to vector<64x1xf32>
    %380 = vector.broadcast %379 : vector<64x1xf32> to vector<64x16xf32>
    %381 = arith.mulf %377, %380 : vector<64x16xf32>
    %c4_237 = arith.constant 4 : index
    %c0_238 = arith.constant 0 : index
    %c0_239 = arith.constant 0 : index
    %382 = vector.load %arg4[%c4_237, %c0_238, %c0_239] : memref<9x64x1xf32, #tpu.memory_space<vmem>>, vector<1x64x1xf32>
    %383 = vector.shape_cast %382 : vector<1x64x1xf32> to vector<64x1xf32>
    %384 = vector.broadcast %383 : vector<64x1xf32> to vector<64x16xf32>
    %385 = arith.mulf %147, %384 : vector<64x16xf32>
    %c63_i32_240 = arith.constant 63 : i32
    %386 = tpu.dynamic_rotate %147 by %c63_i32_240 dim 0 : vector<64x16xf32>, i32 -> vector<64x16xf32>
    %c5_241 = arith.constant 5 : index
    %c0_242 = arith.constant 0 : index
    %c0_243 = arith.constant 0 : index
    %387 = vector.load %arg4[%c5_241, %c0_242, %c0_243] : memref<9x64x1xf32, #tpu.memory_space<vmem>>, vector<1x64x1xf32>
    %388 = vector.shape_cast %387 : vector<1x64x1xf32> to vector<64x1xf32>
    %389 = vector.broadcast %388 : vector<64x1xf32> to vector<64x16xf32>
    %390 = arith.mulf %386, %389 : vector<64x16xf32>
    %c57_i32_244 = arith.constant 57 : i32
    %391 = tpu.dynamic_rotate %147 by %c57_i32_244 dim 0 : vector<64x16xf32>, i32 -> vector<64x16xf32>
    %c6_245 = arith.constant 6 : index
    %c0_246 = arith.constant 0 : index
    %c0_247 = arith.constant 0 : index
    %392 = vector.load %arg4[%c6_245, %c0_246, %c0_247] : memref<9x64x1xf32, #tpu.memory_space<vmem>>, vector<1x64x1xf32>
    %393 = vector.shape_cast %392 : vector<1x64x1xf32> to vector<64x1xf32>
    %394 = vector.broadcast %393 : vector<64x1xf32> to vector<64x16xf32>
    %395 = arith.mulf %391, %394 : vector<64x16xf32>
    %c56_i32_248 = arith.constant 56 : i32
    %396 = tpu.dynamic_rotate %147 by %c56_i32_248 dim 0 : vector<64x16xf32>, i32 -> vector<64x16xf32>
    %c7_249 = arith.constant 7 : index
    %c0_250 = arith.constant 0 : index
    %c0_251 = arith.constant 0 : index
    %397 = vector.load %arg4[%c7_249, %c0_250, %c0_251] : memref<9x64x1xf32, #tpu.memory_space<vmem>>, vector<1x64x1xf32>
    %398 = vector.shape_cast %397 : vector<1x64x1xf32> to vector<64x1xf32>
    %399 = vector.broadcast %398 : vector<64x1xf32> to vector<64x16xf32>
    %400 = arith.mulf %396, %399 : vector<64x16xf32>
    %c55_i32_252 = arith.constant 55 : i32
    %401 = tpu.dynamic_rotate %147 by %c55_i32_252 dim 0 : vector<64x16xf32>, i32 -> vector<64x16xf32>
    %c8_253 = arith.constant 8 : index
    %c0_254 = arith.constant 0 : index
    %c0_255 = arith.constant 0 : index
    %402 = vector.load %arg4[%c8_253, %c0_254, %c0_255] : memref<9x64x1xf32, #tpu.memory_space<vmem>>, vector<1x64x1xf32>
    %403 = vector.shape_cast %402 : vector<1x64x1xf32> to vector<64x1xf32>
    %404 = vector.broadcast %403 : vector<64x1xf32> to vector<64x16xf32>
    %405 = arith.mulf %401, %404 : vector<64x16xf32>
    %406 = tpu.concatenate %366, %371, %376, %381, %385, %390, %395, %400, %405 in 1 : vector<64x16xf32>, vector<64x16xf32>, vector<64x16xf32>, vector<64x16xf32>, vector<64x16xf32>, vector<64x16xf32>, vector<64x16xf32>, vector<64x16xf32>, vector<64x16xf32> -> vector<64x144xf32>
    %407 = arith.truncf %406 : vector<64x144xf32> to vector<64x144xbf16>
    %c0_256 = arith.constant 0 : index
    %c0_257 = arith.constant 0 : index
    %408 = vector.load %arg11[%c0_256, %c0_257] : memref<144x16xbf16, #tpu.memory_space<vmem>>, vector<144x16xbf16>
    %cst_258 = arith.constant dense<0.000000e+00> : vector<64x16xf32>
    %409 = tpu.matmul %361, %408, %cst_258 {dimension_numbers = #tpu.dot_dimension_numbers<[1], [0], [0], [1], [0, 0, 1, 1], [], []>} : vector<64x144xbf16>, vector<144x16xbf16>, vector<64x16xf32> -> vector<64x16xf32>
    %c0_259 = arith.constant 0 : index
    %c0_260 = arith.constant 0 : index
    %410 = vector.load %arg12[%c0_259, %c0_260] : memref<144x16xbf16, #tpu.memory_space<vmem>>, vector<144x16xbf16>
    %cst_261 = arith.constant dense<0.000000e+00> : vector<64x16xf32>
    %411 = tpu.matmul %407, %410, %cst_261 {dimension_numbers = #tpu.dot_dimension_numbers<[1], [0], [0], [1], [0, 0, 1, 1], [], []>} : vector<64x144xbf16>, vector<144x16xbf16>, vector<64x16xf32> -> vector<64x16xf32>
    %412 = arith.addf %409, %411 : vector<64x16xf32>
    %cst_262 = arith.constant dense<0.000000e+00> : vector<16xf32>
    %413 = vector.multi_reduction <add>, %412, %cst_262 [0] : vector<64x16xf32> to vector<16xf32>
    %414 = vector.shape_cast %413 : vector<16xf32> to vector<1x16xf32>
    %415 = arith.mulf %412, %412 : vector<64x16xf32>
    %cst_263 = arith.constant dense<0.000000e+00> : vector<16xf32>
    %416 = vector.multi_reduction <add>, %415, %cst_263 [0] : vector<64x16xf32> to vector<16xf32>
    %417 = vector.shape_cast %416 : vector<16xf32> to vector<1x16xf32>
    %cst_264 = arith.constant 1.562500e-02 : f32
    %418 = vector.broadcast %cst_264 : f32 to vector<1x16xf32>
    %419 = arith.mulf %414, %418 : vector<1x16xf32>
    %cst_265 = arith.constant 1.562500e-02 : f32
    %420 = vector.broadcast %cst_265 : f32 to vector<1x16xf32>
    %421 = arith.mulf %417, %420 : vector<1x16xf32>
    %422 = arith.mulf %419, %419 : vector<1x16xf32>
    %423 = arith.subf %421, %422 : vector<1x16xf32>
    %c0_266 = arith.constant 0 : index
    %c0_267 = arith.constant 0 : index
    %424 = vector.load %arg19[%c0_266, %c0_267] : memref<2x16xf32, #tpu.memory_space<vmem>>, vector<2x16xf32>
    %425 = vector.broadcast %419 : vector<1x16xf32> to vector<64x16xf32>
    %426 = arith.subf %412, %425 : vector<64x16xf32>
    %cst_268 = arith.constant 9.99999974E-6 : f32
    %427 = vector.broadcast %cst_268 : f32 to vector<1x16xf32>
    %428 = arith.addf %423, %427 : vector<1x16xf32>
    %429 = math.rsqrt %428 : vector<1x16xf32>
    %430 = vector.broadcast %429 : vector<1x16xf32> to vector<64x16xf32>
    %431 = arith.mulf %426, %430 : vector<64x16xf32>
    %432 = vector.extract_strided_slice %424 {offsets = [0, 0], sizes = [1, 16], strides = [1, 1]} : vector<2x16xf32> to vector<1x16xf32>
    %433 = vector.broadcast %432 : vector<1x16xf32> to vector<64x16xf32>
    %434 = arith.mulf %431, %433 : vector<64x16xf32>
    %435 = vector.extract_strided_slice %424 {offsets = [1, 0], sizes = [1, 16], strides = [1, 1]} : vector<2x16xf32> to vector<1x16xf32>
    %436 = vector.broadcast %435 : vector<1x16xf32> to vector<64x16xf32>
    %437 = arith.addf %434, %436 : vector<64x16xf32>
    %cst_269 = arith.constant 0.000000e+00 : f32
    %438 = vector.broadcast %cst_269 : f32 to vector<64x16xf32>
    %439 = arith.cmpf oge, %437, %438 : vector<64x16xf32>
    %cst_270 = arith.constant 0.00999999977 : f32
    %440 = vector.broadcast %cst_270 : f32 to vector<64x16xf32>
    %441 = arith.mulf %440, %437 : vector<64x16xf32>
    %442 = arith.select %439, %437, %441 : vector<64x16xi1>, vector<64x16xf32>
    %c9_i32_271 = arith.constant 9 : i32
    %443 = tpu.dynamic_rotate %442 by %c9_i32_271 dim 0 : vector<64x16xf32>, i32 -> vector<64x16xf32>
    %c0_272 = arith.constant 0 : index
    %c0_273 = arith.constant 0 : index
    %c0_274 = arith.constant 0 : index
    %444 = vector.load %arg4[%c0_272, %c0_273, %c0_274] : memref<9x64x1xf32, #tpu.memory_space<vmem>>, vector<1x64x1xf32>
    %445 = vector.shape_cast %444 : vector<1x64x1xf32> to vector<64x1xf32>
    %446 = vector.broadcast %445 : vector<64x1xf32> to vector<64x16xf32>
    %447 = arith.mulf %443, %446 : vector<64x16xf32>
    %c8_i32_275 = arith.constant 8 : i32
    %448 = tpu.dynamic_rotate %442 by %c8_i32_275 dim 0 : vector<64x16xf32>, i32 -> vector<64x16xf32>
    %c1_276 = arith.constant 1 : index
    %c0_277 = arith.constant 0 : index
    %c0_278 = arith.constant 0 : index
    %449 = vector.load %arg4[%c1_276, %c0_277, %c0_278] : memref<9x64x1xf32, #tpu.memory_space<vmem>>, vector<1x64x1xf32>
    %450 = vector.shape_cast %449 : vector<1x64x1xf32> to vector<64x1xf32>
    %451 = vector.broadcast %450 : vector<64x1xf32> to vector<64x16xf32>
    %452 = arith.mulf %448, %451 : vector<64x16xf32>
    %c7_i32_279 = arith.constant 7 : i32
    %453 = tpu.dynamic_rotate %442 by %c7_i32_279 dim 0 : vector<64x16xf32>, i32 -> vector<64x16xf32>
    %c2_280 = arith.constant 2 : index
    %c0_281 = arith.constant 0 : index
    %c0_282 = arith.constant 0 : index
    %454 = vector.load %arg4[%c2_280, %c0_281, %c0_282] : memref<9x64x1xf32, #tpu.memory_space<vmem>>, vector<1x64x1xf32>
    %455 = vector.shape_cast %454 : vector<1x64x1xf32> to vector<64x1xf32>
    %456 = vector.broadcast %455 : vector<64x1xf32> to vector<64x16xf32>
    %457 = arith.mulf %453, %456 : vector<64x16xf32>
    %c1_i32_283 = arith.constant 1 : i32
    %458 = tpu.dynamic_rotate %442 by %c1_i32_283 dim 0 : vector<64x16xf32>, i32 -> vector<64x16xf32>
    %c3_284 = arith.constant 3 : index
    %c0_285 = arith.constant 0 : index
    %c0_286 = arith.constant 0 : index
    %459 = vector.load %arg4[%c3_284, %c0_285, %c0_286] : memref<9x64x1xf32, #tpu.memory_space<vmem>>, vector<1x64x1xf32>
    %460 = vector.shape_cast %459 : vector<1x64x1xf32> to vector<64x1xf32>
    %461 = vector.broadcast %460 : vector<64x1xf32> to vector<64x16xf32>
    %462 = arith.mulf %458, %461 : vector<64x16xf32>
    %c4_287 = arith.constant 4 : index
    %c0_288 = arith.constant 0 : index
    %c0_289 = arith.constant 0 : index
    %463 = vector.load %arg4[%c4_287, %c0_288, %c0_289] : memref<9x64x1xf32, #tpu.memory_space<vmem>>, vector<1x64x1xf32>
    %464 = vector.shape_cast %463 : vector<1x64x1xf32> to vector<64x1xf32>
    %465 = vector.broadcast %464 : vector<64x1xf32> to vector<64x16xf32>
    %466 = arith.mulf %442, %465 : vector<64x16xf32>
    %c63_i32_290 = arith.constant 63 : i32
    %467 = tpu.dynamic_rotate %442 by %c63_i32_290 dim 0 : vector<64x16xf32>, i32 -> vector<64x16xf32>
    %c5_291 = arith.constant 5 : index
    %c0_292 = arith.constant 0 : index
    %c0_293 = arith.constant 0 : index
    %468 = vector.load %arg4[%c5_291, %c0_292, %c0_293] : memref<9x64x1xf32, #tpu.memory_space<vmem>>, vector<1x64x1xf32>
    %469 = vector.shape_cast %468 : vector<1x64x1xf32> to vector<64x1xf32>
    %470 = vector.broadcast %469 : vector<64x1xf32> to vector<64x16xf32>
    %471 = arith.mulf %467, %470 : vector<64x16xf32>
    %c57_i32_294 = arith.constant 57 : i32
    %472 = tpu.dynamic_rotate %442 by %c57_i32_294 dim 0 : vector<64x16xf32>, i32 -> vector<64x16xf32>
    %c6_295 = arith.constant 6 : index
    %c0_296 = arith.constant 0 : index
    %c0_297 = arith.constant 0 : index
    %473 = vector.load %arg4[%c6_295, %c0_296, %c0_297] : memref<9x64x1xf32, #tpu.memory_space<vmem>>, vector<1x64x1xf32>
    %474 = vector.shape_cast %473 : vector<1x64x1xf32> to vector<64x1xf32>
    %475 = vector.broadcast %474 : vector<64x1xf32> to vector<64x16xf32>
    %476 = arith.mulf %472, %475 : vector<64x16xf32>
    %c56_i32_298 = arith.constant 56 : i32
    %477 = tpu.dynamic_rotate %442 by %c56_i32_298 dim 0 : vector<64x16xf32>, i32 -> vector<64x16xf32>
    %c7_299 = arith.constant 7 : index
    %c0_300 = arith.constant 0 : index
    %c0_301 = arith.constant 0 : index
    %478 = vector.load %arg4[%c7_299, %c0_300, %c0_301] : memref<9x64x1xf32, #tpu.memory_space<vmem>>, vector<1x64x1xf32>
    %479 = vector.shape_cast %478 : vector<1x64x1xf32> to vector<64x1xf32>
    %480 = vector.broadcast %479 : vector<64x1xf32> to vector<64x16xf32>
    %481 = arith.mulf %477, %480 : vector<64x16xf32>
    %c55_i32_302 = arith.constant 55 : i32
    %482 = tpu.dynamic_rotate %442 by %c55_i32_302 dim 0 : vector<64x16xf32>, i32 -> vector<64x16xf32>
    %c8_303 = arith.constant 8 : index
    %c0_304 = arith.constant 0 : index
    %c0_305 = arith.constant 0 : index
    %483 = vector.load %arg4[%c8_303, %c0_304, %c0_305] : memref<9x64x1xf32, #tpu.memory_space<vmem>>, vector<1x64x1xf32>
    %484 = vector.shape_cast %483 : vector<1x64x1xf32> to vector<64x1xf32>
    %485 = vector.broadcast %484 : vector<64x1xf32> to vector<64x16xf32>
    %486 = arith.mulf %482, %485 : vector<64x16xf32>
    %487 = tpu.concatenate %447, %452, %457, %462, %466, %471, %476, %481, %486 in 1 : vector<64x16xf32>, vector<64x16xf32>, vector<64x16xf32>, vector<64x16xf32>, vector<64x16xf32>, vector<64x16xf32>, vector<64x16xf32>, vector<64x16xf32>, vector<64x16xf32> -> vector<64x144xf32>
    %488 = arith.truncf %487 : vector<64x144xf32> to vector<64x144xbf16>
    %c0_306 = arith.constant 0 : index
    %c0_307 = arith.constant 0 : index
    %489 = vector.load %arg13[%c0_306, %c0_307] : memref<144x16xbf16, #tpu.memory_space<vmem>>, vector<144x16xbf16>
    %cst_308 = arith.constant dense<0.000000e+00> : vector<64x16xf32>
    %490 = tpu.matmul %488, %489, %cst_308 {dimension_numbers = #tpu.dot_dimension_numbers<[1], [0], [0], [1], [0, 0, 1, 1], [], []>} : vector<64x144xbf16>, vector<144x16xbf16>, vector<64x16xf32> -> vector<64x16xf32>
    %cst_309 = arith.constant dense<0.000000e+00> : vector<16xf32>
    %491 = vector.multi_reduction <add>, %490, %cst_309 [0] : vector<64x16xf32> to vector<16xf32>
    %492 = vector.shape_cast %491 : vector<16xf32> to vector<1x16xf32>
    %493 = arith.mulf %490, %490 : vector<64x16xf32>
    %cst_310 = arith.constant dense<0.000000e+00> : vector<16xf32>
    %494 = vector.multi_reduction <add>, %493, %cst_310 [0] : vector<64x16xf32> to vector<16xf32>
    %495 = vector.shape_cast %494 : vector<16xf32> to vector<1x16xf32>
    %cst_311 = arith.constant 1.562500e-02 : f32
    %496 = vector.broadcast %cst_311 : f32 to vector<1x16xf32>
    %497 = arith.mulf %492, %496 : vector<1x16xf32>
    %cst_312 = arith.constant 1.562500e-02 : f32
    %498 = vector.broadcast %cst_312 : f32 to vector<1x16xf32>
    %499 = arith.mulf %495, %498 : vector<1x16xf32>
    %500 = arith.mulf %497, %497 : vector<1x16xf32>
    %501 = arith.subf %499, %500 : vector<1x16xf32>
    %c0_313 = arith.constant 0 : index
    %c0_314 = arith.constant 0 : index
    %502 = vector.load %arg20[%c0_313, %c0_314] : memref<2x16xf32, #tpu.memory_space<vmem>>, vector<2x16xf32>
    %503 = vector.broadcast %497 : vector<1x16xf32> to vector<64x16xf32>
    %504 = arith.subf %490, %503 : vector<64x16xf32>
    %cst_315 = arith.constant 9.99999974E-6 : f32
    %505 = vector.broadcast %cst_315 : f32 to vector<1x16xf32>
    %506 = arith.addf %501, %505 : vector<1x16xf32>
    %507 = math.rsqrt %506 : vector<1x16xf32>
    %508 = vector.broadcast %507 : vector<1x16xf32> to vector<64x16xf32>
    %509 = arith.mulf %504, %508 : vector<64x16xf32>
    %510 = vector.extract_strided_slice %502 {offsets = [0, 0], sizes = [1, 16], strides = [1, 1]} : vector<2x16xf32> to vector<1x16xf32>
    %511 = vector.broadcast %510 : vector<1x16xf32> to vector<64x16xf32>
    %512 = arith.mulf %509, %511 : vector<64x16xf32>
    %513 = vector.extract_strided_slice %502 {offsets = [1, 0], sizes = [1, 16], strides = [1, 1]} : vector<2x16xf32> to vector<1x16xf32>
    %514 = vector.broadcast %513 : vector<1x16xf32> to vector<64x16xf32>
    %515 = arith.addf %512, %514 : vector<64x16xf32>
    %cst_316 = arith.constant 0.000000e+00 : f32
    %516 = vector.broadcast %cst_316 : f32 to vector<64x16xf32>
    %517 = arith.cmpf oge, %515, %516 : vector<64x16xf32>
    %cst_317 = arith.constant 0.00999999977 : f32
    %518 = vector.broadcast %cst_317 : f32 to vector<64x16xf32>
    %519 = arith.mulf %518, %515 : vector<64x16xf32>
    %520 = arith.select %517, %515, %519 : vector<64x16xi1>, vector<64x16xf32>
    %c0_318 = arith.constant 0 : index
    %c0_319 = arith.constant 0 : index
    %521 = vector.load %arg14[%c0_318, %c0_319] : memref<16x8xf32, #tpu.memory_space<vmem>>, vector<16x8xf32>
    %cst_320 = arith.constant dense<0.000000e+00> : vector<64x8xf32>
    %522 = tpu.matmul %520, %521, %cst_320 {dimension_numbers = #tpu.dot_dimension_numbers<[1], [0], [0], [1], [0, 0, 1, 1], [], []>} : vector<64x16xf32>, vector<16x8xf32>, vector<64x8xf32> -> vector<64x8xf32>
    %c0_321 = arith.constant 0 : index
    %c0_322 = arith.constant 0 : index
    %523 = vector.load %arg21[%c0_321, %c0_322] : memref<1x8xf32, #tpu.memory_space<vmem>>, vector<1x8xf32>
    %524 = vector.broadcast %523 : vector<1x8xf32> to vector<64x8xf32>
    %525 = arith.addf %522, %524 : vector<64x8xf32>
    %526 = tpu.concatenate %520, %525 in 1 : vector<64x16xf32>, vector<64x8xf32> -> vector<64x24xf32>
    %c0_323 = arith.constant 0 : index
    %c0_324 = arith.constant 0 : index
    %527 = vector.load %arg22[%c0_323, %c0_324] : memref<64x24xf32, #tpu.memory_space<vmem>>, vector<64x24xf32>
    tpu.vector_store %arg22[%c0_323, %c0_324], %526 {strides = array<i32>} : memref<64x24xf32, #tpu.memory_space<vmem>>, vector<64x24xf32>,
    return
  }
}

</mosaic_0001>

<llo_original>
// kernel: forward.1
$region0: #{forward.1}
  #allocation0 [shape = 'u32[]', space=smem, size = 0x4, offset = 0x4, fixed_abs, tag = 'smem constant byte address 0x4 - core index']
  #allocation1 [shape = 'u32[144,128]{1,0:T(1,128)}', space=vmem, size = 0x12000, scoped, tag = 'internal scratch']
  %s0 = inlined_call_operand.vmem [shape: bf16[256,8], index: 0, kind: input, shape index: {}]
  %s1 = inlined_call_operand.vmem [shape: bf16[9,64,256], index: 1, kind: input, shape index: {}]
  %s2 = inlined_call_operand.vmem [shape: bf16[9,16,64], index: 2, kind: input, shape index: {}]
  %s3 = inlined_call_operand.vmem [shape: bf16[64,64], index: 3, kind: input, shape index: {}]
  %s4 = inlined_call_operand.vmem [shape: f32[9,64,1], index: 4, kind: input, shape index: {}]
  %s5 = inlined_call_operand.vmem [shape: f32[9,16,1], index: 5, kind: input, shape index: {}]
  %s6 = inlined_call_operand.vmem [shape: bf16[72,16], index: 6, kind: input, shape index: {}]
  %s7 = inlined_call_operand.vmem [shape: bf16[144,16], index: 7, kind: input, shape index: {}]
  %s8 = inlined_call_operand.vmem [shape: bf16[144,32], index: 8, kind: input, shape index: {}]
  %s9 = inlined_call_operand.vmem [shape: bf16[288,32], index: 9, kind: input, shape index: {}]
  %s10 = inlined_call_operand.vmem [shape: bf16[4,32,16], index: 10, kind: input, shape index: {}]
  %s11 = inlined_call_operand.vmem [shape: bf16[144,16], index: 11, kind: input, shape index: {}]
  %s12 = inlined_call_operand.vmem [shape: bf16[144,16], index: 12, kind: input, shape index: {}]
  %s13 = inlined_call_operand.vmem [shape: bf16[144,16], index: 13, kind: input, shape index: {}]
  %s14 = inlined_call_operand.vmem [shape: f32[16,8], index: 14, kind: input, shape index: {}]
  %s15 = inlined_call_operand.vmem [shape: f32[2,16], index: 15, kind: input, shape index: {}]
  %s16 = inlined_call_operand.vmem [shape: f32[2,16], index: 16, kind: input, shape index: {}]
  %s17 = inlined_call_operand.vmem [shape: f32[2,32], index: 17, kind: input, shape index: {}]
  %s18 = inlined_call_operand.vmem [shape: f32[2,32], index: 18, kind: input, shape index: {}]
  %s19 = inlined_call_operand.vmem [shape: f32[2,16], index: 19, kind: input, shape index: {}]
  %s20 = inlined_call_operand.vmem [shape: f32[2,16], index: 20, kind: input, shape index: {}]
  %s21 = inlined_call_operand.vmem [shape: f32[1,8], index: 21, kind: input, shape index: {}]
  %s22 = inlined_call_operand.vmem [shape: f32[64,24], index: 22, kind: output, shape index: {}]
  %s23 = sld [smem:[#allocation0]]
  $region98: #{forward.1} parent=0
    _
  %s25 = ssub.s32 1, %s23
  %s26 = scalar_select 0, %s25, %s23
  // Predicated region
  $region2: #{forward.1} parent=0 // pred_check
    _
  $region3: #{forward.1} parent=0 // pred_check_branch
    %28 = sbr.rel (0) target = $region5
  $region4: #{forward.1} parent=0 // pred_region
    _
  $region5: #{forward.1} parent=0 // pred_fallthru
    _
  // Predicated region
  $region6: #{forward.1} parent=0 // pred_check
    _
  $region7: #{forward.1} parent=0 // pred_check_branch
    %30 = sbr.rel (0) target = $region9
  $region8: #{forward.1} parent=0 // pred_region
    _
  $region9: #{forward.1} parent=0 // pred_fallthru
    _
  // Predicated region
  $region10: #{forward.1} parent=0 // pred_check
    _
  $region11: #{forward.1} parent=0 // pred_check_branch
    %32 = sbr.rel (0) target = $region13
  $region12: #{forward.1} parent=0 // pred_region
    _
  $region13: #{forward.1} parent=0 // pred_fallthru
    _
  // Predicated region
  $region14: #{forward.1} parent=0 // pred_check
    _
  $region15: #{forward.1} parent=0 // pred_check_branch
    %34 = sbr.rel (0) target = $region17
  $region16: #{forward.1} parent=0 // pred_region
    _
  $region17: #{forward.1} parent=0 // pred_fallthru
    _
  // Predicated region
  $region18: #{forward.1} parent=0 // pred_check
    _
  $region19: #{forward.1} parent=0 // pred_check_branch
    %36 = sbr.rel (0) target = $region21
  $region20: #{forward.1} parent=0 // pred_region
    _
  $region21: #{forward.1} parent=0 // pred_fallthru
    _
  // Predicated region
  $region22: #{forward.1} parent=0 // pred_check
    _
  $region23: #{forward.1} parent=0 // pred_check_branch
    %38 = sbr.rel (0) target = $region25
  $region24: #{forward.1} parent=0 // pred_region
    _
  $region25: #{forward.1} parent=0 // pred_fallthru
    _
  // Predicated region
  $region26: #{forward.1} parent=0 // pred_check
    _
  $region27: #{forward.1} parent=0 // pred_check_branch
    %40 = sbr.rel (0) target = $region29
  $region28: #{forward.1} parent=0 // pred_region
    _
  $region29: #{forward.1} parent=0 // pred_fallthru
    _
  // Predicated region
  $region30: #{forward.1} parent=0 // pred_check
    _
  $region31: #{forward.1} parent=0 // pred_check_branch
    %42 = sbr.rel (0) target = $region33
  $region32: #{forward.1} parent=0 // pred_region
    _
  $region33: #{forward.1} parent=0 // pred_fallthru
    _
  // Predicated region
  $region34: #{forward.1} parent=0 // pred_check
    _
  $region35: #{forward.1} parent=0 // pred_check_branch
    %44 = sbr.rel (0) target = $region37
  $region36: #{forward.1} parent=0 // pred_region
    _
  $region37: #{forward.1} parent=0 // pred_fallthru
    _
  // Predicated region
  $region38: #{forward.1} parent=0 // pred_check
    _
  $region39: #{forward.1} parent=0 // pred_check_branch
    %46 = sbr.rel (0) target = $region41
  $region40: #{forward.1} parent=0 // pred_region
    _
  $region41: #{forward.1} parent=0 // pred_fallthru
    _
  // Predicated region
  $region42: #{forward.1} parent=0 // pred_check
    _
  $region43: #{forward.1} parent=0 // pred_check_branch
    %48 = sbr.rel (0) target = $region45
  $region44: #{forward.1} parent=0 // pred_region
    _
  $region45: #{forward.1} parent=0 // pred_fallthru
    _
  // Predicated region
  $region46: #{forward.1} parent=0 // pred_check
    _
  $region47: #{forward.1} parent=0 // pred_check_branch
    %50 = sbr.rel (0) target = $region49
  $region48: #{forward.1} parent=0 // pred_region
    _
  $region49: #{forward.1} parent=0 // pred_fallthru
    _
  // Predicated region
  $region50: #{forward.1} parent=0 // pred_check
    _
  $region51: #{forward.1} parent=0 // pred_check_branch
    %52 = sbr.rel (0) target = $region53
  $region52: #{forward.1} parent=0 // pred_region
    _
  $region53: #{forward.1} parent=0 // pred_fallthru
    _
  // Predicated region
  $region54: #{forward.1} parent=0 // pred_check
    _
  $region55: #{forward.1} parent=0 // pred_check_branch
    %54 = sbr.rel (0) target = $region57
  $region56: #{forward.1} parent=0 // pred_region
    _
  $region57: #{forward.1} parent=0 // pred_fallthru
    _
  // Predicated region
  $region58: #{forward.1} parent=0 // pred_check
    _
  $region59: #{forward.1} parent=0 // pred_check_branch
    %56 = sbr.rel (0) target = $region61
  $region60: #{forward.1} parent=0 // pred_region
    _
  $region61: #{forward.1} parent=0 // pred_fallthru
    _
  // Predicated region
  $region62: #{forward.1} parent=0 // pred_check
    _
  $region63: #{forward.1} parent=0 // pred_check_branch
    %58 = sbr.rel (0) target = $region65
  $region64: #{forward.1} parent=0 // pred_region
    _
  $region65: #{forward.1} parent=0 // pred_fallthru
    _
  // Predicated region
  $region66: #{forward.1} parent=0 // pred_check
    _
  $region67: #{forward.1} parent=0 // pred_check_branch
    %60 = sbr.rel (0) target = $region69
  $region68: #{forward.1} parent=0 // pred_region
    _
  $region69: #{forward.1} parent=0 // pred_fallthru
    _
  // Predicated region
  $region70: #{forward.1} parent=0 // pred_check
    _
  $region71: #{forward.1} parent=0 // pred_check_branch
    %62 = sbr.rel (0) target = $region73
  $region72: #{forward.1} parent=0 // pred_region
    _
  $region73: #{forward.1} parent=0 // pred_fallthru
    _
  // Predicated region
  $region74: #{forward.1} parent=0 // pred_check
    _
  $region75: #{forward.1} parent=0 // pred_check_branch
    %64 = sbr.rel (0) target = $region77
  $region76: #{forward.1} parent=0 // pred_region
    _
  $region77: #{forward.1} parent=0 // pred_fallthru
    _
  // Predicated region
  $region78: #{forward.1} parent=0 // pred_check
    _
  $region79: #{forward.1} parent=0 // pred_check_branch
    %66 = sbr.rel (0) target = $region81
  $region80: #{forward.1} parent=0 // pred_region
    _
  $region81: #{forward.1} parent=0 // pred_fallthru
    _
  // Predicated region
  $region82: #{forward.1} parent=0 // pred_check
    _
  $region83: #{forward.1} parent=0 // pred_check_branch
    %68 = sbr.rel (0) target = $region85
  $region84: #{forward.1} parent=0 // pred_region
    _
  $region85: #{forward.1} parent=0 // pred_fallthru
    _
  // Predicated region
  $region86: #{forward.1} parent=0 // pred_check
    _
  $region87: #{forward.1} parent=0 // pred_check_branch
    %70 = sbr.rel (0) target = $region89
  $region88: #{forward.1} parent=0 // pred_region
    _
  $region89: #{forward.1} parent=0 // pred_fallthru
    _
  %v72 = vld [vmem:[%s0] sm:$0xf]
  %v73 = vld [vmem:[%s0 + $0x4] sm:$0xf]
  %v74 = vld [vmem:[%s0 + $0x8] sm:$0xf]
  %v75 = vld [vmem:[%s0 + $0xc] sm:$0xf]
  %v76 = vld [vmem:[%s0 + $0x10] sm:$0xf]
  %v77 = vld [vmem:[%s0 + $0x14] sm:$0xf]
  %v78 = vld [vmem:[%s0 + $0x18] sm:$0xf]
  %v79 = vld [vmem:[%s0 + $0x1c] sm:$0xf]
  %v80 = vld [vmem:[%s0 + $0x20] sm:$0xf]
  %v81 = vld [vmem:[%s0 + $0x24] sm:$0xf]
  %v82 = vld [vmem:[%s0 + $0x28] sm:$0xf]
  %v83 = vld [vmem:[%s0 + $0x2c] sm:$0xf]
  %v84 = vld [vmem:[%s0 + $0x30] sm:$0xf]
  %v85 = vld [vmem:[%s0 + $0x34] sm:$0xf]
  %v86 = vld [vmem:[%s0 + $0x38] sm:$0xf]
  %v87 = vld [vmem:[%s0 + $0x3c] sm:$0xf]
  %v88 = vld [vmem:[%s0 + $0x40] sm:$0xf]
  %v89 = vld [vmem:[%s0 + $0x44] sm:$0xf]
  %v90 = vld [vmem:[%s0 + $0x48] sm:$0xf]
  %v91 = vld [vmem:[%s0 + $0x4c] sm:$0xf]
  %v92 = vld [vmem:[%s0 + $0x50] sm:$0xf]
  %v93 = vld [vmem:[%s0 + $0x54] sm:$0xf]
  %v94 = vld [vmem:[%s0 + $0x58] sm:$0xf]
  %v95 = vld [vmem:[%s0 + $0x5c] sm:$0xf]
  %v96 = vld [vmem:[%s0 + $0x60] sm:$0xf]
  %v97 = vld [vmem:[%s0 + $0x64] sm:$0xf]
  %v98 = vld [vmem:[%s0 + $0x68] sm:$0xf]
  %v99 = vld [vmem:[%s0 + $0x6c] sm:$0xf]
  %v100 = vld [vmem:[%s0 + $0x70] sm:$0xf]
  %v101 = vld [vmem:[%s0 + $0x74] sm:$0xf]
  %v102 = vld [vmem:[%s0 + $0x78] sm:$0xf]
  %v103 = vld [vmem:[%s0 + $0x7c] sm:$0xf]
  %v104 = vld [vmem:[%s1] sm:$0xff]
  %v105 = vld [vmem:[%s1 + $0x8] sm:$0xff]
  %v106 = vld [vmem:[%s1 + $0x10] sm:$0xff]
  %v107 = vld [vmem:[%s1 + $0x18] sm:$0xff]
  %v108 = vld [vmem:[%s1 + $0x20] sm:$0xff]
  %v109 = vld [vmem:[%s1 + $0x28] sm:$0xff]
  %v110 = vld [vmem:[%s1 + $0x30] sm:$0xff]
  %v111 = vld [vmem:[%s1 + $0x38] sm:$0xff]
  %v120 = vunpack.c.l.b16 %v104
  %v121 = vunpack.c.h.b16 %v104
  %v122 = vunpack.c.l.b16 %v105
  %v123 = vunpack.c.h.b16 %v105
  %v124 = vunpack.c.l.b16 %v106
  %v125 = vunpack.c.h.b16 %v106
  %v126 = vunpack.c.l.b16 %v107
  %v127 = vunpack.c.h.b16 %v107
  %v128 = vunpack.c.l.b16 %v108
  %v129 = vunpack.c.h.b16 %v108
  %v130 = vunpack.c.l.b16 %v109
  %v131 = vunpack.c.h.b16 %v109
  %v132 = vunpack.c.l.b16 %v110
  %v133 = vunpack.c.h.b16 %v110
  %v134 = vunpack.c.l.b16 %v111
  %v135 = vunpack.c.h.b16 %v111
  %v136 = vpack.c.b16 %v122, %v120
  %v137 = vpack.c.b16 %v123, %v121
  %v138 = vpack.c.b16 %v126, %v124
  %v139 = vpack.c.b16 %v127, %v125
  %v140 = vpack.c.b16 %v130, %v128
  %v141 = vpack.c.b16 %v131, %v129
  %v142 = vpack.c.b16 %v134, %v132
  %v143 = vpack.c.b16 %v135, %v133
  %v184 = vunpack.c.l.b16 %v72
  %v185 = vunpack.c.l.b16 %v73
  %v186 = vunpack.c.l.b16 %v74
  %v187 = vunpack.c.l.b16 %v75
  %v188 = vunpack.c.l.b16 %v76
  %v189 = vunpack.c.l.b16 %v77
  %v190 = vunpack.c.l.b16 %v78
  %v191 = vunpack.c.l.b16 %v79
  %v192 = vunpack.c.l.b16 %v80
  %v193 = vunpack.c.l.b16 %v81
  %v194 = vunpack.c.l.b16 %v82
  %v195 = vunpack.c.l.b16 %v83
  %v196 = vunpack.c.l.b16 %v84
  %v197 = vunpack.c.l.b16 %v85
  %v198 = vunpack.c.l.b16 %v86
  %v199 = vunpack.c.l.b16 %v87
  %v200 = vunpack.c.l.b16 %v88
  %v201 = vunpack.c.l.b16 %v89
  %v202 = vunpack.c.l.b16 %v90
  %v203 = vunpack.c.l.b16 %v91
  %v204 = vunpack.c.l.b16 %v92
  %v205 = vunpack.c.l.b16 %v93
  %v206 = vunpack.c.l.b16 %v94
  %v207 = vunpack.c.l.b16 %v95
  %v208 = vunpack.c.l.b16 %v96
  %v209 = vunpack.c.l.b16 %v97
  %v210 = vunpack.c.l.b16 %v98
  %v211 = vunpack.c.l.b16 %v99
  %v212 = vunpack.c.l.b16 %v100
  %v213 = vunpack.c.l.b16 %v101
  %v214 = vunpack.c.l.b16 %v102
  %v215 = vunpack.c.l.b16 %v103
  %v216 = vpack.c.b16 %v185, %v184
  %v217 = vpack.c.b16 %v187, %v186
  %v218 = vpack.c.b16 %v189, %v188
  %v219 = vpack.c.b16 %v191, %v190
  %v220 = vpack.c.b16 %v193, %v192
  %v221 = vpack.c.b16 %v195, %v194
  %v222 = vpack.c.b16 %v197, %v196
  %v223 = vpack.c.b16 %v199, %v198
  %v224 = vpack.c.b16 %v201, %v200
  %v225 = vpack.c.b16 %v203, %v202
  %v226 = vpack.c.b16 %v205, %v204
  %v227 = vpack.c.b16 %v207, %v206
  %v228 = vpack.c.b16 %v209, %v208
  %v229 = vpack.c.b16 %v211, %v210
  %v230 = vpack.c.b16 %v213, %v212
  %v231 = vpack.c.b16 %v215, %v214
  %248 = vmatprep.subr.bf16.mxu0 0
  %249 = vmatpush1.bf16.msra.mxu0 %v216
  %250 = vmatprep.subr.bf16.mxu0 0
  %251 = vmatpush1.bf16.msra.mxu0 %v217
  %252 = vmatprep.subr.bf16.mxu0 0
  %253 = vmatpush1.bf16.msra.mxu0 %v218
  %254 = vmatprep.subr.bf16.mxu0 0
  %255 = vmatpush1.bf16.msra.mxu0 %v219
  %256 = vmatprep.subr.bf16.mxu0 0
  %257 = vmatpush1.bf16.msra.mxu0 %v220
  %258 = vmatprep.subr.bf16.mxu0 0
  %259 = vmatpush1.bf16.msra.mxu0 %v221
  %260 = vmatprep.subr.bf16.mxu0 0
  %261 = vmatpush1.bf16.msra.mxu0 %v222
  %262 = vmatprep.subr.bf16.mxu0 0
  %263 = vmatpush1.bf16.msra.mxu0 %v223
  %264 = vmatprep.subr.bf16.mxu0 0
  %265 = vmatpush1.bf16.msra.mxu0 %v224
  %266 = vmatprep.subr.bf16.mxu0 0
  %267 = vmatpush1.bf16.msra.mxu0 %v225
  %268 = vmatprep.subr.bf16.mxu0 0
  %269 = vmatpush1.bf16.msra.mxu0 %v226
  %270 = vmatprep.subr.bf16.mxu0 0
  %271 = vmatpush1.bf16.msra.mxu0 %v227
  %272 = vmatprep.subr.bf16.mxu0 0
  %273 = vmatpush1.bf16.msra.mxu0 %v228
  %274 = vmatprep.subr.bf16.mxu0 0
  %275 = vmatpush1.bf16.msra.mxu0 %v229
  %276 = vmatprep.subr.bf16.mxu0 0
  %277 = vmatpush1.bf16.msra.mxu0 %v230
  %278 = vmatprep.subr.bf16.mxu0 0
  %279 = vmatpush1.bf16.msra.mxu0 %v231
  %280 = vmatprep.mubr.bf16.mxu0 %v137
  %281 = vmatmul.mubr.bf16.gmra.mrb[0].mxu0 %v136
  %v282 = vpop.f32.mrb[0].mxu0
  %v283 = vadd.f32 0.0, %v282
  %v284 = vpop.f32.mrb[0].mxu0
  %v285 = vpop.f32.mrb[0].mxu0
  %v286 = vadd.f32 0.0, %v285
  %v287 = vpop.f32.mrb[0].mxu0
  %288 = vmatprep.mubr.bf16.mxu0 %v139
  %289 = vmatmul.mubr.bf16.gmra.mrb[0].mxu0 %v138
  %v290 = vpop.f32.mrb[0].mxu0
  %v291 = vadd.f32 0.0, %v290
  %v292 = vpop.f32.mrb[0].mxu0
  %v293 = vpop.f32.mrb[0].mxu0
  %v294 = vadd.f32 0.0, %v293
  %v295 = vpop.f32.mrb[0].mxu0
  %296 = vmatprep.mubr.bf16.mxu0 %v141
  %297 = vmatmul.mubr.bf16.gmra.mrb[0].mxu0 %v140
  %v298 = vpop.f32.mrb[0].mxu0
  %v299 = vadd.f32 0.0, %v298
  %v300 = vpop.f32.mrb[0].mxu0
  %v301 = vpop.f32.mrb[0].mxu0
  %v302 = vadd.f32 0.0, %v301
  %v303 = vpop.f32.mrb[0].mxu0
  %304 = vmatprep.mubr.bf16.mxu0 %v143
  %305 = vmatmul.mubr.bf16.gmra.mrb[0].mxu0 %v142
  %v306 = vpop.f32.mrb[0].mxu0
  %v307 = vadd.f32 0.0, %v306
  %v308 = vpop.f32.mrb[0].mxu0
  %v309 = vpop.f32.mrb[0].mxu0
  %v310 = vadd.f32 0.0, %v309
  %v311 = vpop.f32.mrb[0].mxu0
  %312 = vdwg.mxu0
  %v313 = vpack.c.bf16 %v286, %v283
  %v314 = vpack.c.bf16 %v294, %v291
  %v315 = vpack.c.bf16 %v302, %v299
  %v316 = vpack.c.bf16 %v310, %v307
  %s317 = scalar_lea.vmem %s1, 64
  %v318 = vld [vmem:[%s317] sm:$0xff]
  %v319 = vld [vmem:[%s317 + $0x8] sm:$0xff]
  %v320 = vld [vmem:[%s317 + $0x10] sm:$0xff]
  %v321 = vld [vmem:[%s317 + $0x18] sm:$0xff]
  %v322 = vld [vmem:[%s317 + $0x20] sm:$0xff]
  %v323 = vld [vmem:[%s317 + $0x28] sm:$0xff]
  %v324 = vld [vmem:[%s317 + $0x30] sm:$0xff]
  %v325 = vld [vmem:[%s317 + $0x38] sm:$0xff]
  %v334 = vunpack.c.l.b16 %v318
  %v335 = vunpack.c.h.b16 %v318
  %v336 = vunpack.c.l.b16 %v319
  %v337 = vunpack.c.h.b16 %v319
  %v338 = vunpack.c.l.b16 %v320
  %v339 = vunpack.c.h.b16 %v320
  %v340 = vunpack.c.l.b16 %v321
  %v341 = vunpack.c.h.b16 %v321
  %v342 = vunpack.c.l.b16 %v322
  %v343 = vunpack.c.h.b16 %v322
  %v344 = vunpack.c.l.b16 %v323
  %v345 = vunpack.c.h.b16 %v323
  %v346 = vunpack.c.l.b16 %v324
  %v347 = vunpack.c.h.b16 %v324
  %v348 = vunpack.c.l.b16 %v325
  %v349 = vunpack.c.h.b16 %v325
  %v350 = vpack.c.b16 %v336, %v334
  %v351 = vpack.c.b16 %v337, %v335
  %v352 = vpack.c.b16 %v340, %v338
  %v353 = vpack.c.b16 %v341, %v339
  %v354 = vpack.c.b16 %v344, %v342
  %v355 = vpack.c.b16 %v345, %v343
  %v356 = vpack.c.b16 %v348, %v346
  %v357 = vpack.c.b16 %v349, %v347
  %366 = vmatprep.subr.bf16.mxu0 0
  %367 = vmatpush1.bf16.msra.mxu0 %v216
  %368 = vmatprep.subr.bf16.mxu0 0
  %369 = vmatpush1.bf16.msra.mxu0 %v217
  %370 = vmatprep.subr.bf16.mxu0 0
  %371 = vmatpush1.bf16.msra.mxu0 %v218
  %372 = vmatprep.subr.bf16.mxu0 0
  %373 = vmatpush1.bf16.msra.mxu0 %v219
  %374 = vmatprep.subr.bf16.mxu0 0
  %375 = vmatpush1.bf16.msra.mxu0 %v220
  %376 = vmatprep.subr.bf16.mxu0 0
  %377 = vmatpush1.bf16.msra.mxu0 %v221
  %378 = vmatprep.subr.bf16.mxu0 0
  %379 = vmatpush1.bf16.msra.mxu0 %v222
  %380 = vmatprep.subr.bf16.mxu0 0
  %381 = vmatpush1.bf16.msra.mxu0 %v223
  %382 = vmatprep.subr.bf16.mxu0 0
  %383 = vmatpush1.bf16.msra.mxu0 %v224
  %384 = vmatprep.subr.bf16.mxu0 0
  %385 = vmatpush1.bf16.msra.mxu0 %v225
  %386 = vmatprep.subr.bf16.mxu0 0
  %387 = vmatpush1.bf16.msra.mxu0 %v226
  %388 = vmatprep.subr.bf16.mxu0 0
  %389 = vmatpush1.bf16.msra.mxu0 %v227
  %390 = vmatprep.subr.bf16.mxu0 0
  %391 = vmatpush1.bf16.msra.mxu0 %v228
  %392 = vmatprep.subr.bf16.mxu0 0
  %393 = vmatpush1.bf16.msra.mxu0 %v229
  %394 = vmatprep.subr.bf16.mxu0 0
  %395 = vmatpush1.bf16.msra.mxu0 %v230
  %396 = vmatprep.subr.bf16.mxu0 0
  %397 = vmatpush1.bf16.msra.mxu0 %v231
  %398 = vmatprep.mubr.bf16.mxu0 %v351
  %399 = vmatmul.mubr.bf16.gmra.mrb[0].mxu0 %v350
  %v400 = vpop.f32.mrb[0].mxu0
  %v401 = vadd.f32 0.0, %v400
  %v402 = vpop.f32.mrb[0].mxu0
  %v403 = vpop.f32.mrb[0].mxu0
  %v404 = vadd.f32 0.0, %v403
  %v405 = vpop.f32.mrb[0].mxu0
  %406 = vmatprep.mubr.bf16.mxu0 %v353
  %407 = vmatmul.mubr.bf16.gmra.mrb[0].mxu0 %v352
  %v408 = vpop.f32.mrb[0].mxu0
  %v409 = vadd.f32 0.0, %v408
  %v410 = vpop.f32.mrb[0].mxu0
  %v411 = vpop.f32.mrb[0].mxu0
  %v412 = vadd.f32 0.0, %v411
  %v413 = vpop.f32.mrb[0].mxu0
  %414 = vmatprep.mubr.bf16.mxu0 %v355
  %415 = vmatmul.mubr.bf16.gmra.mrb[0].mxu0 %v354
  %v416 = vpop.f32.mrb[0].mxu0
  %v417 = vadd.f32 0.0, %v416
  %v418 = vpop.f32.mrb[0].mxu0
  %v419 = vpop.f32.mrb[0].mxu0
  %v420 = vadd.f32 0.0, %v419
  %v421 = vpop.f32.mrb[0].mxu0
  %422 = vmatprep.mubr.bf16.mxu0 %v357
  %423 = vmatmul.mubr.bf16.gmra.mrb[0].mxu0 %v356
  %v424 = vpop.f32.mrb[0].mxu0
  %v425 = vadd.f32 0.0, %v424
  %v426 = vpop.f32.mrb[0].mxu0
  %v427 = vpop.f32.mrb[0].mxu0
  %v428 = vadd.f32 0.0, %v427
  %v429 = vpop.f32.mrb[0].mxu0
  %430 = vdwg.mxu0
  %v431 = vpack.c.bf16 %v404, %v401
  %v432 = vpack.c.bf16 %v412, %v409
  %v433 = vpack.c.bf16 %v420, %v417
  %v434 = vpack.c.bf16 %v428, %v425
  %s435 = scalar_lea.vmem %s1, 128
  %v436 = vld [vmem:[%s435] sm:$0xff]
  %v437 = vld [vmem:[%s435 + $0x8] sm:$0xff]
  %v438 = vld [vmem:[%s435 + $0x10] sm:$0xff]
  %v439 = vld [vmem:[%s435 + $0x18] sm:$0xff]
  %v440 = vld [vmem:[%s435 + $0x20] sm:$0xff]
  %v441 = vld [vmem:[%s435 + $0x28] sm:$0xff]
  %v442 = vld [vmem:[%s435 + $0x30] sm:$0xff]
  %v443 = vld [vmem:[%s435 + $0x38] sm:$0xff]
  %v452 = vunpack.c.l.b16 %v436
  %v453 = vunpack.c.h.b16 %v436
  %v454 = vunpack.c.l.b16 %v437
  %v455 = vunpack.c.h.b16 %v437
  %v456 = vunpack.c.l.b16 %v438
  %v457 = vunpack.c.h.b16 %v438
  %v458 = vunpack.c.l.b16 %v439
  %v459 = vunpack.c.h.b16 %v439
  %v460 = vunpack.c.l.b16 %v440
  %v461 = vunpack.c.h.b16 %v440
  %v462 = vunpack.c.l.b16 %v441
  %v463 = vunpack.c.h.b16 %v441
  %v464 = vunpack.c.l.b16 %v442
  %v465 = vunpack.c.h.b16 %v442
  %v466 = vunpack.c.l.b16 %v443
  %v467 = vunpack.c.h.b16 %v443
  %v468 = vpack.c.b16 %v454, %v452
  %v469 = vpack.c.b16 %v455, %v453
  %v470 = vpack.c.b16 %v458, %v456
  %v471 = vpack.c.b16 %v459, %v457
  %v472 = vpack.c.b16 %v462, %v460
  %v473 = vpack.c.b16 %v463, %v461
  %v474 = vpack.c.b16 %v466, %v464
  %v475 = vpack.c.b16 %v467, %v465
  %484 = vmatprep.subr.bf16.mxu0 0
  %485 = vmatpush1.bf16.msra.mxu0 %v216
  %486 = vmatprep.subr.bf16.mxu0 0
  %487 = vmatpush1.bf16.msra.mxu0 %v217
  %488 = vmatprep.subr.bf16.mxu0 0
  %489 = vmatpush1.bf16.msra.mxu0 %v218
  %490 = vmatprep.subr.bf16.mxu0 0
  %491 = vmatpush1.bf16.msra.mxu0 %v219
  %492 = vmatprep.subr.bf16.mxu0 0
  %493 = vmatpush1.bf16.msra.mxu0 %v220
  %494 = vmatprep.subr.bf16.mxu0 0
  %495 = vmatpush1.bf16.msra.mxu0 %v221
  %496 = vmatprep.subr.bf16.mxu0 0
  %497 = vmatpush1.bf16.msra.mxu0 %v222
  %498 = vmatprep.subr.bf16.mxu0 0
  %499 = vmatpush1.bf16.msra.mxu0 %v223
  %500 = vmatprep.subr.bf16.mxu0 0
  %501 = vmatpush1.bf16.msra.mxu0 %v224
  %502 = vmatprep.subr.bf16.mxu0 0
  %503 = vmatpush1.bf16.msra.mxu0 %v225
  %504 = vmatprep.subr.bf16.mxu0 0
  %505 = vmatpush1.bf16.msra.mxu0 %v226
  %506 = vmatprep.subr.bf16.mxu0 0
  %507 = vmatpush1.bf16.msra.mxu0 %v227
  %508 = vmatprep.subr.bf16.mxu0 0
  %509 = vmatpush1.bf16.msra.mxu0 %v228
  %510 = vmatprep.subr.bf16.mxu0 0
  %511 = vmatpush1.bf16.msra.mxu0 %v229
  %512 = vmatprep.subr.bf16.mxu0 0
  %513 = vmatpush1.bf16.msra.mxu0 %v230
  %514 = vmatprep.subr.bf16.mxu0 0
  %515 = vmatpush1.bf16.msra.mxu0 %v231
  %516 = vmatprep.mubr.bf16.mxu0 %v469
  %517 = vmatmul.mubr.bf16.gmra.mrb[0].mxu0 %v468
  %v518 = vpop.f32.mrb[0].mxu0
  %v519 = vadd.f32 0.0, %v518
  %v520 = vpop.f32.mrb[0].mxu0
  %v521 = vpop.f32.mrb[0].mxu0
  %v522 = vadd.f32 0.0, %v521
  %v523 = vpop.f32.mrb[0].mxu0
  %524 = vmatprep.mubr.bf16.mxu0 %v471
  %525 = vmatmul.mubr.bf16.gmra.mrb[0].mxu0 %v470
  %v526 = vpop.f32.mrb[0].mxu0
  %v527 = vadd.f32 0.0, %v526
  %v528 = vpop.f32.mrb[0].mxu0
  %v529 = vpop.f32.mrb[0].mxu0
  %v530 = vadd.f32 0.0, %v529
  %v531 = vpop.f32.mrb[0].mxu0
  %532 = vmatprep.mubr.bf16.mxu0 %v473
  %533 = vmatmul.mubr.bf16.gmra.mrb[0].mxu0 %v472
  %v534 = vpop.f32.mrb[0].mxu0
  %v535 = vadd.f32 0.0, %v534
  %v536 = vpop.f32.mrb[0].mxu0
  %v537 = vpop.f32.mrb[0].mxu0
  %v538 = vadd.f32 0.0, %v537
  %v539 = vpop.f32.mrb[0].mxu0
  %540 = vmatprep.mubr.bf16.mxu0 %v475
  %541 = vmatmul.mubr.bf16.gmra.mrb[0].mxu0 %v474
  %v542 = vpop.f32.mrb[0].mxu0
  %v543 = vadd.f32 0.0, %v542
  %v544 = vpop.f32.mrb[0].mxu0
  %v545 = vpop.f32.mrb[0].mxu0
  %v546 = vadd.f32 0.0, %v545
  %v547 = vpop.f32.mrb[0].mxu0
  %548 = vdwg.mxu0
  %v549 = vpack.c.bf16 %v522, %v519
  %v550 = vpack.c.bf16 %v530, %v527
  %v551 = vpack.c.bf16 %v538, %v535
  %v552 = vpack.c.bf16 %v546, %v543
  %s553 = scalar_lea.vmem %s1, 192
  %v554 = vld [vmem:[%s553] sm:$0xff]
  %v555 = vld [vmem:[%s553 + $0x8] sm:$0xff]
  %v556 = vld [vmem:[%s553 + $0x10] sm:$0xff]
  %v557 = vld [vmem:[%s553 + $0x18] sm:$0xff]
  %v558 = vld [vmem:[%s553 + $0x20] sm:$0xff]
  %v559 = vld [vmem:[%s553 + $0x28] sm:$0xff]
  %v560 = vld [vmem:[%s553 + $0x30] sm:$0xff]
  %v561 = vld [vmem:[%s553 + $0x38] sm:$0xff]
  %v570 = vunpack.c.l.b16 %v554
  %v571 = vunpack.c.h.b16 %v554
  %v572 = vunpack.c.l.b16 %v555
  %v573 = vunpack.c.h.b16 %v555
  %v574 = vunpack.c.l.b16 %v556
  %v575 = vunpack.c.h.b16 %v556
  %v576 = vunpack.c.l.b16 %v557
  %v577 = vunpack.c.h.b16 %v557
  %v578 = vunpack.c.l.b16 %v558
  %v579 = vunpack.c.h.b16 %v558
  %v580 = vunpack.c.l.b16 %v559
  %v581 = vunpack.c.h.b16 %v559
  %v582 = vunpack.c.l.b16 %v560
  %v583 = vunpack.c.h.b16 %v560
  %v584 = vunpack.c.l.b16 %v561
  %v585 = vunpack.c.h.b16 %v561
  %v586 = vpack.c.b16 %v572, %v570
  %v587 = vpack.c.b16 %v573, %v571
  %v588 = vpack.c.b16 %v576, %v574
  %v589 = vpack.c.b16 %v577, %v575
  %v590 = vpack.c.b16 %v580, %v578
  %v591 = vpack.c.b16 %v581, %v579
  %v592 = vpack.c.b16 %v584, %v582
  %v593 = vpack.c.b16 %v585, %v583
  %602 = vmatprep.subr.bf16.mxu0 0
  %603 = vmatpush1.bf16.msra.mxu0 %v216
  %604 = vmatprep.subr.bf16.mxu0 0
  %605 = vmatpush1.bf16.msra.mxu0 %v217
  %606 = vmatprep.subr.bf16.mxu0 0
  %607 = vmatpush1.bf16.msra.mxu0 %v218
  %608 = vmatprep.subr.bf16.mxu0 0
  %609 = vmatpush1.bf16.msra.mxu0 %v219
  %610 = vmatprep.subr.bf16.mxu0 0
  %611 = vmatpush1.bf16.msra.mxu0 %v220
  %612 = vmatprep.subr.bf16.mxu0 0
  %613 = vmatpush1.bf16.msra.mxu0 %v221
  %614 = vmatprep.subr.bf16.mxu0 0
  %615 = vmatpush1.bf16.msra.mxu0 %v222
  %616 = vmatprep.subr.bf16.mxu0 0
  %617 = vmatpush1.bf16.msra.mxu0 %v223
  %618 = vmatprep.subr.bf16.mxu0 0
  %619 = vmatpush1.bf16.msra.mxu0 %v224
  %620 = vmatprep.subr.bf16.mxu0 0
  %621 = vmatpush1.bf16.msra.mxu0 %v225
  %622 = vmatprep.subr.bf16.mxu0 0
  %623 = vmatpush1.bf16.msra.mxu0 %v226
  %624 = vmatprep.subr.bf16.mxu0 0
  %625 = vmatpush1.bf16.msra.mxu0 %v227
  %626 = vmatprep.subr.bf16.mxu0 0
  %627 = vmatpush1.bf16.msra.mxu0 %v228
  %628 = vmatprep.subr.bf16.mxu0 0
  %629 = vmatpush1.bf16.msra.mxu0 %v229
  %630 = vmatprep.subr.bf16.mxu0 0
  %631 = vmatpush1.bf16.msra.mxu0 %v230
  %632 = vmatprep.subr.bf16.mxu0 0
  %633 = vmatpush1.bf16.msra.mxu0 %v231
  %634 = vmatprep.mubr.bf16.mxu0 %v587
  %635 = vmatmul.mubr.bf16.gmra.mrb[0].mxu0 %v586
  %v636 = vpop.f32.mrb[0].mxu0
  %v637 = vadd.f32 0.0, %v636
  %v638 = vpop.f32.mrb[0].mxu0
  %v639 = vpop.f32.mrb[0].mxu0
  %v640 = vadd.f32 0.0, %v639
  %v641 = vpop.f32.mrb[0].mxu0
  %642 = vmatprep.mubr.bf16.mxu0 %v589
  %643 = vmatmul.mubr.bf16.gmra.mrb[0].mxu0 %v588
  %v644 = vpop.f32.mrb[0].mxu0
  %v645 = vadd.f32 0.0, %v644
  %v646 = vpop.f32.mrb[0].mxu0
  %v647 = vpop.f32.mrb[0].mxu0
  %v648 = vadd.f32 0.0, %v647
  %v649 = vpop.f32.mrb[0].mxu0
  %650 = vmatprep.mubr.bf16.mxu0 %v591
  %651 = vmatmul.mubr.bf16.gmra.mrb[0].mxu0 %v590
  %v652 = vpop.f32.mrb[0].mxu0
  %v653 = vadd.f32 0.0, %v652
  %v654 = vpop.f32.mrb[0].mxu0
  %v655 = vpop.f32.mrb[0].mxu0
  %v656 = vadd.f32 0.0, %v655
  %v657 = vpop.f32.mrb[0].mxu0
  %658 = vmatprep.mubr.bf16.mxu0 %v593
  %659 = vmatmul.mubr.bf16.gmra.mrb[0].mxu0 %v592
  %v660 = vpop.f32.mrb[0].mxu0
  %v661 = vadd.f32 0.0, %v660
  %v662 = vpop.f32.mrb[0].mxu0
  %v663 = vpop.f32.mrb[0].mxu0
  %v664 = vadd.f32 0.0, %v663
  %v665 = vpop.f32.mrb[0].mxu0
  %666 = vdwg.mxu0
  %v667 = vpack.c.bf16 %v640, %v637
  %v668 = vpack.c.bf16 %v648, %v645
  %v669 = vpack.c.bf16 %v656, %v653
  %v670 = vpack.c.bf16 %v664, %v661
  %s671 = scalar_lea.vmem %s1, 256
  %v672 = vld [vmem:[%s671] sm:$0xff]
  %v673 = vld [vmem:[%s671 + $0x8] sm:$0xff]
  %v674 = vld [vmem:[%s671 + $0x10] sm:$0xff]
  %v675 = vld [vmem:[%s671 + $0x18] sm:$0xff]
  %v676 = vld [vmem:[%s671 + $0x20] sm:$0xff]
  %v677 = vld [vmem:[%s671 + $0x28] sm:$0xff]
  %v678 = vld [vmem:[%s671 + $0x30] sm:$0xff]
  %v679 = vld [vmem:[%s671 + $0x38] sm:$0xff]
  %v688 = vunpack.c.l.b16 %v672
  %v689 = vunpack.c.h.b16 %v672
  %v690 = vunpack.c.l.b16 %v673
  %v691 = vunpack.c.h.b16 %v673
  %v692 = vunpack.c.l.b16 %v674
  %v693 = vunpack.c.h.b16 %v674
  %v694 = vunpack.c.l.b16 %v675
  %v695 = vunpack.c.h.b16 %v675
  %v696 = vunpack.c.l.b16 %v676
  %v697 = vunpack.c.h.b16 %v676
  %v698 = vunpack.c.l.b16 %v677
  %v699 = vunpack.c.h.b16 %v677
  %v700 = vunpack.c.l.b16 %v678
  %v701 = vunpack.c.h.b16 %v678
  %v702 = vunpack.c.l.b16 %v679
  %v703 = vunpack.c.h.b16 %v679
  %v704 = vpack.c.b16 %v690, %v688
  %v705 = vpack.c.b16 %v691, %v689
  %v706 = vpack.c.b16 %v694, %v692
  %v707 = vpack.c.b16 %v695, %v693
  %v708 = vpack.c.b16 %v698, %v696
  %v709 = vpack.c.b16 %v699, %v697
  %v710 = vpack.c.b16 %v702, %v700
  %v711 = vpack.c.b16 %v703, %v701
  %720 = vmatprep.subr.bf16.mxu0 0
  %721 = vmatpush1.bf16.msra.mxu0 %v216
  %722 = vmatprep.subr.bf16.mxu0 0
  %723 = vmatpush1.bf16.msra.mxu0 %v217
  %724 = vmatprep.subr.bf16.mxu0 0
  %725 = vmatpush1.bf16.msra.mxu0 %v218
  %726 = vmatprep.subr.bf16.mxu0 0
  %727 = vmatpush1.bf16.msra.mxu0 %v219
  %728 = vmatprep.subr.bf16.mxu0 0
  %729 = vmatpush1.bf16.msra.mxu0 %v220
  %730 = vmatprep.subr.bf16.mxu0 0
  %731 = vmatpush1.bf16.msra.mxu0 %v221
  %732 = vmatprep.subr.bf16.mxu0 0
  %733 = vmatpush1.bf16.msra.mxu0 %v222
  %734 = vmatprep.subr.bf16.mxu0 0
  %735 = vmatpush1.bf16.msra.mxu0 %v223
  %736 = vmatprep.subr.bf16.mxu0 0
  %737 = vmatpush1.bf16.msra.mxu0 %v224
  %738 = vmatprep.subr.bf16.mxu0 0
  %739 = vmatpush1.bf16.msra.mxu0 %v225
  %740 = vmatprep.subr.bf16.mxu0 0
  %741 = vmatpush1.bf16.msra.mxu0 %v226
  %742 = vmatprep.subr.bf16.mxu0 0
  %743 = vmatpush1.bf16.msra.mxu0 %v227
  %744 = vmatprep.subr.bf16.mxu0 0
  %745 = vmatpush1.bf16.msra.mxu0 %v228
  %746 = vmatprep.subr.bf16.mxu0 0
  %747 = vmatpush1.bf16.msra.mxu0 %v229
  %748 = vmatprep.subr.bf16.mxu0 0
  %749 = vmatpush1.bf16.msra.mxu0 %v230
  %750 = vmatprep.subr.bf16.mxu0 0
  %751 = vmatpush1.bf16.msra.mxu0 %v231
  %752 = vmatprep.mubr.bf16.mxu0 %v705
  %753 = vmatmul.mubr.bf16.gmra.mrb[0].mxu0 %v704
  %v754 = vpop.f32.mrb[0].mxu0
  %v755 = vadd.f32 0.0, %v754
  %v756 = vpop.f32.mrb[0].mxu0
  %v757 = vpop.f32.mrb[0].mxu0
  %v758 = vadd.f32 0.0, %v757
  %v759 = vpop.f32.mrb[0].mxu0
  %760 = vmatprep.mubr.bf16.mxu0 %v707
  %761 = vmatmul.mubr.bf16.gmra.mrb[0].mxu0 %v706
  %v762 = vpop.f32.mrb[0].mxu0
  %v763 = vadd.f32 0.0, %v762
  %v764 = vpop.f32.mrb[0].mxu0
  %v765 = vpop.f32.mrb[0].mxu0
  %v766 = vadd.f32 0.0, %v765
  %v767 = vpop.f32.mrb[0].mxu0
  %768 = vmatprep.mubr.bf16.mxu0 %v709
  %769 = vmatmul.mubr.bf16.gmra.mrb[0].mxu0 %v708
  %v770 = vpop.f32.mrb[0].mxu0
  %v771 = vadd.f32 0.0, %v770
  %v772 = vpop.f32.mrb[0].mxu0
  %v773 = vpop.f32.mrb[0].mxu0
  %v774 = vadd.f32 0.0, %v773
  %v775 = vpop.f32.mrb[0].mxu0
  %776 = vmatprep.mubr.bf16.mxu0 %v711
  %777 = vmatmul.mubr.bf16.gmra.mrb[0].mxu0 %v710
  %v778 = vpop.f32.mrb[0].mxu0
  %v779 = vadd.f32 0.0, %v778
  %v780 = vpop.f32.mrb[0].mxu0
  %v781 = vpop.f32.mrb[0].mxu0
  %v782 = vadd.f32 0.0, %v781
  %v783 = vpop.f32.mrb[0].mxu0
  %784 = vdwg.mxu0
  %v785 = vpack.c.bf16 %v758, %v755
  %v786 = vpack.c.bf16 %v766, %v763
  %v787 = vpack.c.bf16 %v774, %v771
  %v788 = vpack.c.bf16 %v782, %v779
  %s789 = scalar_lea.vmem %s1, 320
  %v790 = vld [vmem:[%s789] sm:$0xff]
  %v791 = vld [vmem:[%s789 + $0x8] sm:$0xff]
  %v792 = vld [vmem:[%s789 + $0x10] sm:$0xff]
  %v793 = vld [vmem:[%s789 + $0x18] sm:$0xff]
  %v794 = vld [vmem:[%s789 + $0x20] sm:$0xff]
  %v795 = vld [vmem:[%s789 + $0x28] sm:$0xff]
  %v796 = vld [vmem:[%s789 + $0x30] sm:$0xff]
  %v797 = vld [vmem:[%s789 + $0x38] sm:$0xff]
  %v806 = vunpack.c.l.b16 %v790
  %v807 = vunpack.c.h.b16 %v790
  %v808 = vunpack.c.l.b16 %v791
  %v809 = vunpack.c.h.b16 %v791
  %v810 = vunpack.c.l.b16 %v792
  %v811 = vunpack.c.h.b16 %v792
  %v812 = vunpack.c.l.b16 %v793
  %v813 = vunpack.c.h.b16 %v793
  %v814 = vunpack.c.l.b16 %v794
  %v815 = vunpack.c.h.b16 %v794
  %v816 = vunpack.c.l.b16 %v795
  %v817 = vunpack.c.h.b16 %v795
  %v818 = vunpack.c.l.b16 %v796
  %v819 = vunpack.c.h.b16 %v796
  %v820 = vunpack.c.l.b16 %v797
  %v821 = vunpack.c.h.b16 %v797
  %v822 = vpack.c.b16 %v808, %v806
  %v823 = vpack.c.b16 %v809, %v807
  %v824 = vpack.c.b16 %v812, %v810
  %v825 = vpack.c.b16 %v813, %v811
  %v826 = vpack.c.b16 %v816, %v814
  %v827 = vpack.c.b16 %v817, %v815
  %v828 = vpack.c.b16 %v820, %v818
  %v829 = vpack.c.b16 %v821, %v819
  %838 = vmatprep.subr.bf16.mxu0 0
  %839 = vmatpush1.bf16.msra.mxu0 %v216
  %840 = vmatprep.subr.bf16.mxu0 0
  %841 = vmatpush1.bf16.msra.mxu0 %v217
  %842 = vmatprep.subr.bf16.mxu0 0
  %843 = vmatpush1.bf16.msra.mxu0 %v218
  %844 = vmatprep.subr.bf16.mxu0 0
  %845 = vmatpush1.bf16.msra.mxu0 %v219
  %846 = vmatprep.subr.bf16.mxu0 0
  %847 = vmatpush1.bf16.msra.mxu0 %v220
  %848 = vmatprep.subr.bf16.mxu0 0
  %849 = vmatpush1.bf16.msra.mxu0 %v221
  %850 = vmatprep.subr.bf16.mxu0 0
  %851 = vmatpush1.bf16.msra.mxu0 %v222
  %852 = vmatprep.subr.bf16.mxu0 0
  %853 = vmatpush1.bf16.msra.mxu0 %v223
  %854 = vmatprep.subr.bf16.mxu0 0
  %855 = vmatpush1.bf16.msra.mxu0 %v224
  %856 = vmatprep.subr.bf16.mxu0 0
  %857 = vmatpush1.bf16.msra.mxu0 %v225
  %858 = vmatprep.subr.bf16.mxu0 0
  %859 = vmatpush1.bf16.msra.mxu0 %v226
  %860 = vmatprep.subr.bf16.mxu0 0
  %861 = vmatpush1.bf16.msra.mxu0 %v227
  %862 = vmatprep.subr.bf16.mxu0 0
  %863 = vmatpush1.bf16.msra.mxu0 %v228
  %864 = vmatprep.subr.bf16.mxu0 0
  %865 = vmatpush1.bf16.msra.mxu0 %v229
  %866 = vmatprep.subr.bf16.mxu0 0
  %867 = vmatpush1.bf16.msra.mxu0 %v230
  %868 = vmatprep.subr.bf16.mxu0 0
  %869 = vmatpush1.bf16.msra.mxu0 %v231
  %870 = vmatprep.mubr.bf16.mxu0 %v823
  %871 = vmatmul.mubr.bf16.gmra.mrb[0].mxu0 %v822
  %v872 = vpop.f32.mrb[0].mxu0
  %v873 = vadd.f32 0.0, %v872
  %v874 = vpop.f32.mrb[0].mxu0
  %v875 = vpop.f32.mrb[0].mxu0
  %v876 = vadd.f32 0.0, %v875
  %v877 = vpop.f32.mrb[0].mxu0
  %878 = vmatprep.mubr.bf16.mxu0 %v825
  %879 = vmatmul.mubr.bf16.gmra.mrb[0].mxu0 %v824
  %v880 = vpop.f32.mrb[0].mxu0
  %v881 = vadd.f32 0.0, %v880
  %v882 = vpop.f32.mrb[0].mxu0
  %v883 = vpop.f32.mrb[0].mxu0
  %v884 = vadd.f32 0.0, %v883
  %v885 = vpop.f32.mrb[0].mxu0
  %886 = vmatprep.mubr.bf16.mxu0 %v827
  %887 = vmatmul.mubr.bf16.gmra.mrb[0].mxu0 %v826
  %v888 = vpop.f32.mrb[0].mxu0
  %v889 = vadd.f32 0.0, %v888
  %v890 = vpop.f32.mrb[0].mxu0
  %v891 = vpop.f32.mrb[0].mxu0
  %v892 = vadd.f32 0.0, %v891
  %v893 = vpop.f32.mrb[0].mxu0
  %894 = vmatprep.mubr.bf16.mxu0 %v829
  %895 = vmatmul.mubr.bf16.gmra.mrb[0].mxu0 %v828
  %v896 = vpop.f32.mrb[0].mxu0
  %v897 = vadd.f32 0.0, %v896
  %v898 = vpop.f32.mrb[0].mxu0
  %v899 = vpop.f32.mrb[0].mxu0
  %v900 = vadd.f32 0.0, %v899
  %v901 = vpop.f32.mrb[0].mxu0
  %902 = vdwg.mxu0
  %v903 = vpack.c.bf16 %v876, %v873
  %v904 = vpack.c.bf16 %v884, %v881
  %v905 = vpack.c.bf16 %v892, %v889
  %v906 = vpack.c.bf16 %v900, %v897
  %s907 = scalar_lea.vmem %s1, 384
  %v908 = vld [vmem:[%s907] sm:$0xff]
  %v909 = vld [vmem:[%s907 + $0x8] sm:$0xff]
  %v910 = vld [vmem:[%s907 + $0x10] sm:$0xff]
  %v911 = vld [vmem:[%s907 + $0x18] sm:$0xff]
  %v912 = vld [vmem:[%s907 + $0x20] sm:$0xff]
  %v913 = vld [vmem:[%s907 + $0x28] sm:$0xff]
  %v914 = vld [vmem:[%s907 + $0x30] sm:$0xff]
  %v915 = vld [vmem:[%s907 + $0x38] sm:$0xff]
  %v924 = vunpack.c.l.b16 %v908
  %v925 = vunpack.c.h.b16 %v908
  %v926 = vunpack.c.l.b16 %v909
  %v927 = vunpack.c.h.b16 %v909
  %v928 = vunpack.c.l.b16 %v910
  %v929 = vunpack.c.h.b16 %v910
  %v930 = vunpack.c.l.b16 %v911
  %v931 = vunpack.c.h.b16 %v911
  %v932 = vunpack.c.l.b16 %v912
  %v933 = vunpack.c.h.b16 %v912
  %v934 = vunpack.c.l.b16 %v913
  %v935 = vunpack.c.h.b16 %v913
  %v936 = vunpack.c.l.b16 %v914
  %v937 = vunpack.c.h.b16 %v914
  %v938 = vunpack.c.l.b16 %v915
  %v939 = vunpack.c.h.b16 %v915
  %v940 = vpack.c.b16 %v926, %v924
  %v941 = vpack.c.b16 %v927, %v925
  %v942 = vpack.c.b16 %v930, %v928
  %v943 = vpack.c.b16 %v931, %v929
  %v944 = vpack.c.b16 %v934, %v932
  %v945 = vpack.c.b16 %v935, %v933
  %v946 = vpack.c.b16 %v938, %v936
  %v947 = vpack.c.b16 %v939, %v937
  %956 = vmatprep.subr.bf16.mxu0 0
  %957 = vmatpush1.bf16.msra.mxu0 %v216
  %958 = vmatprep.subr.bf16.mxu0 0
  %959 = vmatpush1.bf16.msra.mxu0 %v217
  %960 = vmatprep.subr.bf16.mxu0 0
  %961 = vmatpush1.bf16.msra.mxu0 %v218
  %962 = vmatprep.subr.bf16.mxu0 0
  %963 = vmatpush1.bf16.msra.mxu0 %v219
  %964 = vmatprep.subr.bf16.mxu0 0
  %965 = vmatpush1.bf16.msra.mxu0 %v220
  %966 = vmatprep.subr.bf16.mxu0 0
  %967 = vmatpush1.bf16.msra.mxu0 %v221
  %968 = vmatprep.subr.bf16.mxu0 0
  %969 = vmatpush1.bf16.msra.mxu0 %v222
  %970 = vmatprep.subr.bf16.mxu0 0
  %971 = vmatpush1.bf16.msra.mxu0 %v223
  %972 = vmatprep.subr.bf16.mxu0 0
  %973 = vmatpush1.bf16.msra.mxu0 %v224
  %974 = vmatprep.subr.bf16.mxu0 0
  %975 = vmatpush1.bf16.msra.mxu0 %v225
  %976 = vmatprep.subr.bf16.mxu0 0
  %977 = vmatpush1.bf16.msra.mxu0 %v226
  %978 = vmatprep.subr.bf16.mxu0 0
  %979 = vmatpush1.bf16.msra.mxu0 %v227
  %980 = vmatprep.subr.bf16.mxu0 0
  %981 = vmatpush1.bf16.msra.mxu0 %v228
  %982 = vmatprep.subr.bf16.mxu0 0
  %983 = vmatpush1.bf16.msra.mxu0 %v229
  %984 = vmatprep.subr.bf16.mxu0 0
  %985 = vmatpush1.bf16.msra.mxu0 %v230
  %986 = vmatprep.subr.bf16.mxu0 0
  %987 = vmatpush1.bf16.msra.mxu0 %v231
  %988 = vmatprep.mubr.bf16.mxu0 %v941
  %989 = vmatmul.mubr.bf16.gmra.mrb[0].mxu0 %v940
  %v990 = vpop.f32.mrb[0].mxu0
  %v991 = vadd.f32 0.0, %v990
  %v992 = vpop.f32.mrb[0].mxu0
  %v993 = vpop.f32.mrb[0].mxu0
  %v994 = vadd.f32 0.0, %v993
  %v995 = vpop.f32.mrb[0].mxu0
  %996 = vmatprep.mubr.bf16.mxu0 %v943
  %997 = vmatmul.mubr.bf16.gmra.mrb[0].mxu0 %v942
  %v998 = vpop.f32.mrb[0].mxu0
  %v999 = vadd.f32 0.0, %v998
  %v1000 = vpop.f32.mrb[0].mxu0
  %v1001 = vpop.f32.mrb[0].mxu0
  %v1002 = vadd.f32 0.0, %v1001
  %v1003 = vpop.f32.mrb[0].mxu0
  %1004 = vmatprep.mubr.bf16.mxu0 %v945
  %1005 = vmatmul.mubr.bf16.gmra.mrb[0].mxu0 %v944
  %v1006 = vpop.f32.mrb[0].mxu0
  %v1007 = vadd.f32 0.0, %v1006
  %v1008 = vpop.f32.mrb[0].mxu0
  %v1009 = vpop.f32.mrb[0].mxu0
  %v1010 = vadd.f32 0.0, %v1009
  %v1011 = vpop.f32.mrb[0].mxu0
  %1012 = vmatprep.mubr.bf16.mxu0 %v947
  %1013 = vmatmul.mubr.bf16.gmra.mrb[0].mxu0 %v946
  %v1014 = vpop.f32.mrb[0].mxu0
  %v1015 = vadd.f32 0.0, %v1014
  %v1016 = vpop.f32.mrb[0].mxu0
  %v1017 = vpop.f32.mrb[0].mxu0
  %v1018 = vadd.f32 0.0, %v1017
  %v1019 = vpop.f32.mrb[0].mxu0
  %1020 = vdwg.mxu0
  %v1021 = vpack.c.bf16 %v994, %v991
  %v1022 = vpack.c.bf16 %v1002, %v999
  %v1023 = vpack.c.bf16 %v1010, %v1007
  %v1024 = vpack.c.bf16 %v1018, %v1015
  %s1025 = scalar_lea.vmem %s1, 448
  %v1026 = vld [vmem:[%s1025] sm:$0xff]
  %v1027 = vld [vmem:[%s1025 + $0x8] sm:$0xff]
  %v1028 = vld [vmem:[%s1025 + $0x10] sm:$0xff]
  %v1029 = vld [vmem:[%s1025 + $0x18] sm:$0xff]
  %v1030 = vld [vmem:[%s1025 + $0x20] sm:$0xff]
  %v1031 = vld [vmem:[%s1025 + $0x28] sm:$0xff]
  %v1032 = vld [vmem:[%s1025 + $0x30] sm:$0xff]
  %v1033 = vld [vmem:[%s1025 + $0x38] sm:$0xff]
  %v1042 = vunpack.c.l.b16 %v1026
  %v1043 = vunpack.c.h.b16 %v1026
  %v1044 = vunpack.c.l.b16 %v1027
  %v1045 = vunpack.c.h.b16 %v1027
  %v1046 = vunpack.c.l.b16 %v1028
  %v1047 = vunpack.c.h.b16 %v1028
  %v1048 = vunpack.c.l.b16 %v1029
  %v1049 = vunpack.c.h.b16 %v1029
  %v1050 = vunpack.c.l.b16 %v1030
  %v1051 = vunpack.c.h.b16 %v1030
  %v1052 = vunpack.c.l.b16 %v1031
  %v1053 = vunpack.c.h.b16 %v1031
  %v1054 = vunpack.c.l.b16 %v1032
  %v1055 = vunpack.c.h.b16 %v1032
  %v1056 = vunpack.c.l.b16 %v1033
  %v1057 = vunpack.c.h.b16 %v1033
  %v1058 = vpack.c.b16 %v1044, %v1042
  %v1059 = vpack.c.b16 %v1045, %v1043
  %v1060 = vpack.c.b16 %v1048, %v1046
  %v1061 = vpack.c.b16 %v1049, %v1047
  %v1062 = vpack.c.b16 %v1052, %v1050
  %v1063 = vpack.c.b16 %v1053, %v1051
  %v1064 = vpack.c.b16 %v1056, %v1054
  %v1065 = vpack.c.b16 %v1057, %v1055
  %1074 = vmatprep.subr.bf16.mxu0 0
  %1075 = vmatpush1.bf16.msra.mxu0 %v216
  %1076 = vmatprep.subr.bf16.mxu0 0
  %1077 = vmatpush1.bf16.msra.mxu0 %v217
  %1078 = vmatprep.subr.bf16.mxu0 0
  %1079 = vmatpush1.bf16.msra.mxu0 %v218
  %1080 = vmatprep.subr.bf16.mxu0 0
  %1081 = vmatpush1.bf16.msra.mxu0 %v219
  %1082 = vmatprep.subr.bf16.mxu0 0
  %1083 = vmatpush1.bf16.msra.mxu0 %v220
  %1084 = vmatprep.subr.bf16.mxu0 0
  %1085 = vmatpush1.bf16.msra.mxu0 %v221
  %1086 = vmatprep.subr.bf16.mxu0 0
  %1087 = vmatpush1.bf16.msra.mxu0 %v222
  %1088 = vmatprep.subr.bf16.mxu0 0
  %1089 = vmatpush1.bf16.msra.mxu0 %v223
  %1090 = vmatprep.subr.bf16.mxu0 0
  %1091 = vmatpush1.bf16.msra.mxu0 %v224
  %1092 = vmatprep.subr.bf16.mxu0 0
  %1093 = vmatpush1.bf16.msra.mxu0 %v225
  %1094 = vmatprep.subr.bf16.mxu0 0
  %1095 = vmatpush1.bf16.msra.mxu0 %v226
  %1096 = vmatprep.subr.bf16.mxu0 0
  %1097 = vmatpush1.bf16.msra.mxu0 %v227
  %1098 = vmatprep.subr.bf16.mxu0 0
  %1099 = vmatpush1.bf16.msra.mxu0 %v228
  %1100 = vmatprep.subr.bf16.mxu0 0
  %1101 = vmatpush1.bf16.msra.mxu0 %v229
  %1102 = vmatprep.subr.bf16.mxu0 0
  %1103 = vmatpush1.bf16.msra.mxu0 %v230
  %1104 = vmatprep.subr.bf16.mxu0 0
  %1105 = vmatpush1.bf16.msra.mxu0 %v231
  %1106 = vmatprep.mubr.bf16.mxu0 %v1059
  %1107 = vmatmul.mubr.bf16.gmra.mrb[0].mxu0 %v1058
  %v1108 = vpop.f32.mrb[0].mxu0
  %v1109 = vadd.f32 0.0, %v1108
  %v1110 = vpop.f32.mrb[0].mxu0
  %v1111 = vpop.f32.mrb[0].mxu0
  %v1112 = vadd.f32 0.0, %v1111
  %v1113 = vpop.f32.mrb[0].mxu0
  %1114 = vmatprep.mubr.bf16.mxu0 %v1061
  %1115 = vmatmul.mubr.bf16.gmra.mrb[0].mxu0 %v1060
  %v1116 = vpop.f32.mrb[0].mxu0
  %v1117 = vadd.f32 0.0, %v1116
  %v1118 = vpop.f32.mrb[0].mxu0
  %v1119 = vpop.f32.mrb[0].mxu0
  %v1120 = vadd.f32 0.0, %v1119
  %v1121 = vpop.f32.mrb[0].mxu0
  %1122 = vmatprep.mubr.bf16.mxu0 %v1063
  %1123 = vmatmul.mubr.bf16.gmra.mrb[0].mxu0 %v1062
  %v1124 = vpop.f32.mrb[0].mxu0
  %v1125 = vadd.f32 0.0, %v1124
  %v1126 = vpop.f32.mrb[0].mxu0
  %v1127 = vpop.f32.mrb[0].mxu0
  %v1128 = vadd.f32 0.0, %v1127
  %v1129 = vpop.f32.mrb[0].mxu0
  %1130 = vmatprep.mubr.bf16.mxu0 %v1065
  %1131 = vmatmul.mubr.bf16.gmra.mrb[0].mxu0 %v1064
  %v1132 = vpop.f32.mrb[0].mxu0
  %v1133 = vadd.f32 0.0, %v1132
  %v1134 = vpop.f32.mrb[0].mxu0
  %v1135 = vpop.f32.mrb[0].mxu0
  %v1136 = vadd.f32 0.0, %v1135
  %v1137 = vpop.f32.mrb[0].mxu0
  %1138 = vdwg.mxu0
  %v1139 = vpack.c.bf16 %v1112, %v1109
  %v1140 = vpack.c.bf16 %v1120, %v1117
  %v1141 = vpack.c.bf16 %v1128, %v1125
  %v1142 = vpack.c.bf16 %v1136, %v1133
  %s1143 = scalar_lea.vmem %s1, 512
  %v1144 = vld [vmem:[%s1143] sm:$0xff]
  %v1145 = vld [vmem:[%s1143 + $0x8] sm:$0xff]
  %v1146 = vld [vmem:[%s1143 + $0x10] sm:$0xff]
  %v1147 = vld [vmem:[%s1143 + $0x18] sm:$0xff]
  %v1148 = vld [vmem:[%s1143 + $0x20] sm:$0xff]
  %v1149 = vld [vmem:[%s1143 + $0x28] sm:$0xff]
  %v1150 = vld [vmem:[%s1143 + $0x30] sm:$0xff]
  %v1151 = vld [vmem:[%s1143 + $0x38] sm:$0xff]
  %v1160 = vunpack.c.l.b16 %v1144
  %v1161 = vunpack.c.h.b16 %v1144
  %v1162 = vunpack.c.l.b16 %v1145
  %v1163 = vunpack.c.h.b16 %v1145
  %v1164 = vunpack.c.l.b16 %v1146
  %v1165 = vunpack.c.h.b16 %v1146
  %v1166 = vunpack.c.l.b16 %v1147
  %v1167 = vunpack.c.h.b16 %v1147
  %v1168 = vunpack.c.l.b16 %v1148
  %v1169 = vunpack.c.h.b16 %v1148
  %v1170 = vunpack.c.l.b16 %v1149
  %v1171 = vunpack.c.h.b16 %v1149
  %v1172 = vunpack.c.l.b16 %v1150
  %v1173 = vunpack.c.h.b16 %v1150
  %v1174 = vunpack.c.l.b16 %v1151
  %v1175 = vunpack.c.h.b16 %v1151
  %v1176 = vpack.c.b16 %v1162, %v1160
  %v1177 = vpack.c.b16 %v1163, %v1161
  %v1178 = vpack.c.b16 %v1166, %v1164
  %v1179 = vpack.c.b16 %v1167, %v1165
  %v1180 = vpack.c.b16 %v1170, %v1168
  %v1181 = vpack.c.b16 %v1171, %v1169
  %v1182 = vpack.c.b16 %v1174, %v1172
  %v1183 = vpack.c.b16 %v1175, %v1173
  %1192 = vmatprep.subr.bf16.mxu0 0
  %1193 = vmatpush1.bf16.msra.mxu0 %v216
  %1194 = vmatprep.subr.bf16.mxu0 0
  %1195 = vmatpush1.bf16.msra.mxu0 %v217
  %1196 = vmatprep.subr.bf16.mxu0 0
  %1197 = vmatpush1.bf16.msra.mxu0 %v218
  %1198 = vmatprep.subr.bf16.mxu0 0
  %1199 = vmatpush1.bf16.msra.mxu0 %v219
  %1200 = vmatprep.subr.bf16.mxu0 0
  %1201 = vmatpush1.bf16.msra.mxu0 %v220
  %1202 = vmatprep.subr.bf16.mxu0 0
  %1203 = vmatpush1.bf16.msra.mxu0 %v221
  %1204 = vmatprep.subr.bf16.mxu0 0
  %1205 = vmatpush1.bf16.msra.mxu0 %v222
  %1206 = vmatprep.subr.bf16.mxu0 0
  %1207 = vmatpush1.bf16.msra.mxu0 %v223
  %1208 = vmatprep.subr.bf16.mxu0 0
  %1209 = vmatpush1.bf16.msra.mxu0 %v224
  %1210 = vmatprep.subr.bf16.mxu0 0
  %1211 = vmatpush1.bf16.msra.mxu0 %v225
  %1212 = vmatprep.subr.bf16.mxu0 0
  %1213 = vmatpush1.bf16.msra.mxu0 %v226
  %1214 = vmatprep.subr.bf16.mxu0 0
  %1215 = vmatpush1.bf16.msra.mxu0 %v227
  %1216 = vmatprep.subr.bf16.mxu0 0
  %1217 = vmatpush1.bf16.msra.mxu0 %v228
  %1218 = vmatprep.subr.bf16.mxu0 0
  %1219 = vmatpush1.bf16.msra.mxu0 %v229
  %1220 = vmatprep.subr.bf16.mxu0 0
  %1221 = vmatpush1.bf16.msra.mxu0 %v230
  %1222 = vmatprep.subr.bf16.mxu0 0
  %1223 = vmatpush1.bf16.msra.mxu0 %v231
  %1224 = vmatprep.mubr.bf16.mxu0 %v1177
  %1225 = vmatmul.mubr.bf16.gmra.mrb[0].mxu0 %v1176
  %v1226 = vpop.f32.mrb[0].mxu0
  %v1227 = vadd.f32 0.0, %v1226
  %v1228 = vpop.f32.mrb[0].mxu0
  %v1229 = vpop.f32.mrb[0].mxu0
  %v1230 = vadd.f32 0.0, %v1229
  %v1231 = vpop.f32.mrb[0].mxu0
  %1232 = vmatprep.mubr.bf16.mxu0 %v1179
  %1233 = vmatmul.mubr.bf16.gmra.mrb[0].mxu0 %v1178
  %v1234 = vpop.f32.mrb[0].mxu0
  %v1235 = vadd.f32 0.0, %v1234
  %v1236 = vpop.f32.mrb[0].mxu0
  %v1237 = vpop.f32.mrb[0].mxu0
  %v1238 = vadd.f32 0.0, %v1237
  %v1239 = vpop.f32.mrb[0].mxu0
  %1240 = vmatprep.mubr.bf16.mxu0 %v1181
  %1241 = vmatmul.mubr.bf16.gmra.mrb[0].mxu0 %v1180
  %v1242 = vpop.f32.mrb[0].mxu0
  %v1243 = vadd.f32 0.0, %v1242
  %v1244 = vpop.f32.mrb[0].mxu0
  %v1245 = vpop.f32.mrb[0].mxu0
  %v1246 = vadd.f32 0.0, %v1245
  %v1247 = vpop.f32.mrb[0].mxu0
  %1248 = vmatprep.mubr.bf16.mxu0 %v1183
  %1249 = vmatmul.mubr.bf16.gmra.mrb[0].mxu0 %v1182
  %v1250 = vpop.f32.mrb[0].mxu0
  %v1251 = vadd.f32 0.0, %v1250
  %v1252 = vpop.f32.mrb[0].mxu0
  %v1253 = vpop.f32.mrb[0].mxu0
  %v1254 = vadd.f32 0.0, %v1253
  %v1255 = vpop.f32.mrb[0].mxu0
  %1256 = vdwg.mxu0
  %v1257 = vpack.c.bf16 %v1230, %v1227
  %v1258 = vpack.c.bf16 %v1238, %v1235
  %v1259 = vpack.c.bf16 %v1246, %v1243
  %v1260 = vpack.c.bf16 %v1254, %v1251
  %1265 = vrot.lane.b32.xlu0 %v431, 8
  %v1266 = vpop.permute.xlu0 %1265
  %1267 = vrot.lane.b32.xlu0 %v432, 8
  %v1268 = vpop.permute.xlu0 %1267
  %1269 = vrot.lane.b32.xlu0 %v433, 8
  %v1270 = vpop.permute.xlu0 %1269
  %1271 = vrot.lane.b32.xlu0 %v434, 8
  %v1272 = vpop.permute.xlu0 %1271
  %1277 = vrot.lane.b32.xlu0 %v549, 16
  %v1278 = vpop.permute.xlu0 %1277
  %1279 = vrot.lane.b32.xlu0 %v550, 16
  %v1280 = vpop.permute.xlu0 %1279
  %1281 = vrot.lane.b32.xlu0 %v551, 16
  %v1282 = vpop.permute.xlu0 %1281
  %1283 = vrot.lane.b32.xlu0 %v552, 16
  %v1284 = vpop.permute.xlu0 %1283
  %1289 = vrot.lane.b32.xlu0 %v667, 24
  %v1290 = vpop.permute.xlu0 %1289
  %1291 = vrot.lane.b32.xlu0 %v668, 24
  %v1292 = vpop.permute.xlu0 %1291
  %1293 = vrot.lane.b32.xlu0 %v669, 24
  %v1294 = vpop.permute.xlu0 %1293
  %1295 = vrot.lane.b32.xlu0 %v670, 24
  %v1296 = vpop.permute.xlu0 %1295
  %1301 = vrot.lane.b32.xlu0 %v785, 32
  %v1302 = vpop.permute.xlu0 %1301
  %1303 = vrot.lane.b32.xlu0 %v786, 32
  %v1304 = vpop.permute.xlu0 %1303
  %1305 = vrot.lane.b32.xlu0 %v787, 32
  %v1306 = vpop.permute.xlu0 %1305
  %1307 = vrot.lane.b32.xlu0 %v788, 32
  %v1308 = vpop.permute.xlu0 %1307
  %1313 = vrot.lane.b32.xlu0 %v903, 40
  %v1314 = vpop.permute.xlu0 %1313
  %1315 = vrot.lane.b32.xlu0 %v904, 40
  %v1316 = vpop.permute.xlu0 %1315
  %1317 = vrot.lane.b32.xlu0 %v905, 40
  %v1318 = vpop.permute.xlu0 %1317
  %1319 = vrot.lane.b32.xlu0 %v906, 40
  %v1320 = vpop.permute.xlu0 %1319
  %1325 = vrot.lane.b32.xlu0 %v1021, 48
  %v1326 = vpop.permute.xlu0 %1325
  %1327 = vrot.lane.b32.xlu0 %v1022, 48
  %v1328 = vpop.permute.xlu0 %1327
  %1329 = vrot.lane.b32.xlu0 %v1023, 48
  %v1330 = vpop.permute.xlu0 %1329
  %1331 = vrot.lane.b32.xlu0 %v1024, 48
  %v1332 = vpop.permute.xlu0 %1331
  %1337 = vrot.lane.b32.xlu0 %v1139, 56
  %v1338 = vpop.permute.xlu0 %1337
  %1339 = vrot.lane.b32.xlu0 %v1140, 56
  %v1340 = vpop.permute.xlu0 %1339
  %1341 = vrot.lane.b32.xlu0 %v1141, 56
  %v1342 = vpop.permute.xlu0 %1341
  %1343 = vrot.lane.b32.xlu0 %v1142, 56
  %v1344 = vpop.permute.xlu0 %1343
  %1349 = vrot.lane.b32.xlu0 %v1257, 64
  %v1350 = vpop.permute.xlu0 %1349
  %1351 = vrot.lane.b32.xlu0 %v1258, 64
  %v1352 = vpop.permute.xlu0 %1351
  %1353 = vrot.lane.b32.xlu0 %v1259, 64
  %v1354 = vpop.permute.xlu0 %1353
  %1355 = vrot.lane.b32.xlu0 %v1260, 64
  %v1356 = vpop.permute.xlu0 %1355
  %vm1357 = vcmask 64512
  %v1360 = vsel %vm1357, %v313, %v1266
  %v1363 = vsel %vm1357, %v314, %v1268
  %v1366 = vsel %vm1357, %v315, %v1270
  %v1369 = vsel %vm1357, %v316, %v1272
  %vm1370 = vcmask 130048
  %v1372 = vsel %vm1370, %v1360, %v1278
  %v1374 = vsel %vm1370, %v1363, %v1280
  %v1376 = vsel %vm1370, %v1366, %v1282
  %v1378 = vsel %vm1370, %v1369, %v1284
  %vm1379 = vcmask 195584
  %v1381 = vsel %vm1379, %v1372, %v1290
  %v1383 = vsel %vm1379, %v1374, %v1292
  %v1385 = vsel %vm1379, %v1376, %v1294
  %v1387 = vsel %vm1379, %v1378, %v1296
  %vm1388 = vcmask 261120
  %v1390 = vsel %vm1388, %v1381, %v1302
  %v1392 = vsel %vm1388, %v1383, %v1304
  %v1394 = vsel %vm1388, %v1385, %v1306
  %v1396 = vsel %vm1388, %v1387, %v1308
  %vm1397 = vcmask 326656
  %v1399 = vsel %vm1397, %v1390, %v1314
  %v1401 = vsel %vm1397, %v1392, %v1316
  %v1403 = vsel %vm1397, %v1394, %v1318
  %v1405 = vsel %vm1397, %v1396, %v1320
  %vm1406 = vcmask 392192
  %v1408 = vsel %vm1406, %v1399, %v1326
  %v1410 = vsel %vm1406, %v1401, %v1328
  %v1412 = vsel %vm1406, %v1403, %v1330
  %v1414 = vsel %vm1406, %v1405, %v1332
  %vm1415 = vcmask 457728
  %v1417 = vsel %vm1415, %v1408, %v1338
  %v1419 = vsel %vm1415, %v1410, %v1340
  %v1421 = vsel %vm1415, %v1412, %v1342
  %v1423 = vsel %vm1415, %v1414, %v1344
  %vm1424 = vcmask 523264
  %v1426 = vsel %vm1424, %v1417, %v1350
  %v1428 = vsel %vm1424, %v1419, %v1352
  %v1430 = vsel %vm1424, %v1421, %v1354
  %v1432 = vsel %vm1424, %v1423, %v1356
  %v1433 = vld [vmem:[%s6] sm:$0xf]
  %v1434 = vld [vmem:[%s6 + $0x4] sm:$0xf]
  %v1435 = vld [vmem:[%s6 + $0x8] sm:$0xf]
  %v1436 = vld [vmem:[%s6 + $0xc] sm:$0xf]
  %v1437 = vld [vmem:[%s6 + $0x10] sm:$0xf]
  %v1438 = vld [vmem:[%s6 + $0x14] sm:$0xf]
  %v1439 = vld [vmem:[%s6 + $0x18] sm:$0xf]
  %v1440 = vld [vmem:[%s6 + $0x1c] sm:$0xf]
  %v1441 = vld [vmem:[%s6 + $0x20] sm:$0xf]
  %v1451 = vunpack.c.l.b16 %v1433
  %v1452 = vunpack.c.l.b16 %v1434
  %v1453 = vunpack.c.l.b16 %v1435
  %v1454 = vunpack.c.l.b16 %v1436
  %v1455 = vunpack.c.l.b16 %v1437
  %v1456 = vunpack.c.l.b16 %v1438
  %v1457 = vunpack.c.l.b16 %v1439
  %v1458 = vunpack.c.l.b16 %v1440
  %v1459 = vunpack.c.l.b16 %v1441
  %v1460 = vpack.c.b16 %v1452, %v1451
  %v1461 = vpack.c.b16 %v1454, %v1453
  %v1462 = vpack.c.b16 %v1456, %v1455
  %v1463 = vpack.c.b16 %v1458, %v1457
  %v1464 = vpack.c.b16 %v1459, %v1459
  %vm1469 = vcmask 588800
  %v1470 = vsel %vm1469, %v1426, 0
  %v1472 = vsel %vm1469, %v1428, 0
  %v1474 = vsel %vm1469, %v1430, 0
  %v1476 = vsel %vm1469, %v1432, 0
  %vm1478 = vcmask 1043456
  %v1480 = vsel %vm1478, %v1464, 0
  %1482 = vmatprep.subr.bf16.mxu0 0
  %1483 = vmatpush1.bf16.msra.mxu0 %v1460
  %1484 = vmatprep.subr.bf16.mxu0 0
  %1485 = vmatpush1.bf16.msra.mxu0 %v1461
  %1486 = vmatprep.subr.bf16.mxu0 0
  %1487 = vmatpush1.bf16.msra.mxu0 %v1462
  %1488 = vmatprep.subr.bf16.mxu0 0
  %1489 = vmatpush1.bf16.msra.mxu0 %v1463
  %1490 = vmatprep.subr.bf16.mxu0 0
  %1491 = vmatpush1.bf16.msra.mxu0 %v1480
  %1492 = vmatprep.subr.bf16.mxu0 0
  %1493 = vmatpush1.bf16.msra.mxu0 0
  %1494 = vmatprep.subr.bf16.mxu0 0
  %1495 = vmatpush1.bf16.msra.mxu0 0
  %1496 = vmatprep.subr.bf16.mxu0 0
  %1497 = vmatpush1.bf16.msra.mxu0 0
  %1498 = vmatprep.subr.bf16.mxu0 0
  %1499 = vmatpush1.bf16.msra.mxu0 0
  %1500 = vmatprep.subr.bf16.mxu0 0
  %1501 = vmatpush1.bf16.msra.mxu0 0
  %1502 = vmatprep.subr.bf16.mxu0 0
  %1503 = vmatpush1.bf16.msra.mxu0 0
  %1504 = vmatprep.subr.bf16.mxu0 0
  %1505 = vmatpush1.bf16.msra.mxu0 0
  %1506 = vmatprep.subr.bf16.mxu0 0
  %1507 = vmatpush1.bf16.msra.mxu0 0
  %1508 = vmatprep.subr.bf16.mxu0 0
  %1509 = vmatpush1.bf16.msra.mxu0 0
  %1510 = vmatprep.subr.bf16.mxu0 0
  %1511 = vmatpush1.bf16.msra.mxu0 0
  %1512 = vmatprep.subr.bf16.mxu0 0
  %1513 = vmatpush1.bf16.msra.mxu0 0
  %1514 = vmatprep.mubr.bf16.mxu0 0
  %1515 = vmatmul.mubr.bf16.gmra.mrb[0].mxu0 %v1470
  %v1516 = vpop.f32.mrb[0].mxu0
  %v1517 = vadd.f32 0.0, %v1516
  %v1518 = vpop.f32.mrb[0].mxu0
  %v1519 = vpop.f32.mrb[0].mxu0
  %v1520 = vadd.f32 0.0, %v1519
  %v1521 = vpop.f32.mrb[0].mxu0
  %1522 = vmatprep.mubr.bf16.mxu0 0
  %1523 = vmatmul.mubr.bf16.gmra.mrb[0].mxu0 %v1472
  %v1524 = vpop.f32.mrb[0].mxu0
  %v1525 = vadd.f32 0.0, %v1524
  %v1526 = vpop.f32.mrb[0].mxu0
  %v1527 = vpop.f32.mrb[0].mxu0
  %v1528 = vadd.f32 0.0, %v1527
  %v1529 = vpop.f32.mrb[0].mxu0
  %1530 = vmatprep.mubr.bf16.mxu0 0
  %1531 = vmatmul.mubr.bf16.gmra.mrb[0].mxu0 %v1474
  %v1532 = vpop.f32.mrb[0].mxu0
  %v1533 = vadd.f32 0.0, %v1532
  %v1534 = vpop.f32.mrb[0].mxu0
  %v1535 = vpop.f32.mrb[0].mxu0
  %v1536 = vadd.f32 0.0, %v1535
  %v1537 = vpop.f32.mrb[0].mxu0
  %1538 = vmatprep.mubr.bf16.mxu0 0
  %1539 = vmatmul.mubr.bf16.gmra.mrb[0].mxu0 %v1476
  %v1540 = vpop.f32.mrb[0].mxu0
  %v1541 = vadd.f32 0.0, %v1540
  %v1542 = vpop.f32.mrb[0].mxu0
  %v1543 = vpop.f32.mrb[0].mxu0
  %v1544 = vadd.f32 0.0, %v1543
  %v1545 = vpop.f32.mrb[0].mxu0
  %1546 = vdwg.mxu0
  %v1547 = vsel %vm1370, %v1517, 0.0
  %v1548 = vsel %vm1370, %v1520, 0.0
  %v1549 = vadd.f32 %v1547, %v1548
  %v1550 = vsel %vm1370, %v1525, 0.0
  %v1551 = vadd.f32 %v1549, %v1550
  %v1552 = vsel %vm1370, %v1528, 0.0
  %v1553 = vadd.f32 %v1551, %v1552
  %v1554 = vsel %vm1370, %v1533, 0.0
  %v1555 = vadd.f32 %v1553, %v1554
  %v1556 = vsel %vm1370, %v1536, 0.0
  %v1557 = vadd.f32 %v1555, %v1556
  %v1558 = vsel %vm1370, %v1541, 0.0
  %v1559 = vadd.f32 %v1557, %v1558
  %v1560 = vsel %vm1370, %v1544, 0.0
  %v1561 = vadd.f32 %v1559, %v1560
  %v1562 = vrot.slane %v1561, 4
  %v1563 = vadd.f32 %v1561, %v1562
  %v1564 = vrot.slane %v1563, 2
  %v1565 = vadd.f32 %v1563, %v1564
  %v1566 = vrot.slane %v1565, 1
  %v1567 = vadd.f32 %v1565, %v1566
  %v1568 = vmul.f32 %v1517, %v1517
  %v1569 = vmul.f32 %v1520, %v1520
  %v1570 = vmul.f32 %v1525, %v1525
  %v1571 = vmul.f32 %v1528, %v1528
  %v1572 = vmul.f32 %v1533, %v1533
  %v1573 = vmul.f32 %v1536, %v1536
  %v1574 = vmul.f32 %v1541, %v1541
  %v1575 = vmul.f32 %v1544, %v1544
  %v1576 = vsel %vm1370, %v1568, 0.0
  %v1577 = vsel %vm1370, %v1569, 0.0
  %v1578 = vadd.f32 %v1576, %v1577
  %v1579 = vsel %vm1370, %v1570, 0.0
  %v1580 = vadd.f32 %v1578, %v1579
  %v1581 = vsel %vm1370, %v1571, 0.0
  %v1582 = vadd.f32 %v1580, %v1581
  %v1583 = vsel %vm1370, %v1572, 0.0
  %v1584 = vadd.f32 %v1582, %v1583
  %v1585 = vsel %vm1370, %v1573, 0.0
  %v1586 = vadd.f32 %v1584, %v1585
  %v1587 = vsel %vm1370, %v1574, 0.0
  %v1588 = vadd.f32 %v1586, %v1587
  %v1589 = vsel %vm1370, %v1575, 0.0
  %v1590 = vadd.f32 %v1588, %v1589
  %v1591 = vrot.slane %v1590, 4
  %v1592 = vadd.f32 %v1590, %v1591
  %v1593 = vrot.slane %v1592, 2
  %v1594 = vadd.f32 %v1592, %v1593
  %v1595 = vrot.slane %v1594, 1
  %v1596 = vadd.f32 %v1594, %v1595
  %v1597 = vmul.f32 %v1567, 0.015625
  %v1598 = vmul.f32 %v1596, 0.015625
  %v1599 = vmul.f32 %v1597, %v1597
  %v1600 = vsub.f32 %v1598, %v1599
  %v1601 = vld [vmem:[%s15] sm:$0x3]
  %v1602 = vsub.f32 %v1517, %v1597
  %v1603 = vsub.f32 %v1520, %v1597
  %v1604 = vsub.f32 %v1525, %v1597
  %v1605 = vsub.f32 %v1528, %v1597
  %v1606 = vsub.f32 %v1533, %v1597
  %v1607 = vsub.f32 %v1536, %v1597
  %v1608 = vsub.f32 %v1541, %v1597
  %v1609 = vsub.f32 %v1544, %v1597
  %v1610 = vadd.f32 %v1600, 1e-05
  %v1611 = vrsqrt.pop %v1610
  %v1612 = vmul.f32 %v1602, %v1611
  %v1613 = vmul.f32 %v1603, %v1611
  %v1614 = vmul.f32 %v1604, %v1611
  %v1615 = vmul.f32 %v1605, %v1611
  %v1616 = vmul.f32 %v1606, %v1611
  %v1617 = vmul.f32 %v1607, %v1611
  %v1618 = vmul.f32 %v1608, %v1611
  %v1619 = vmul.f32 %v1609, %v1611
  %v1620 = vlaneseq
  %v1621 = vshrl.u32 %v1620, 7
  %v1622 = vsub.s32 0, %v1621
  %v1623 = vrot.slane %v1601, %v1622
  %v1624 = vmul.f32 %v1612, %v1623
  %v1625 = vmul.f32 %v1613, %v1623
  %v1626 = vmul.f32 %v1614, %v1623
  %v1627 = vmul.f32 %v1615, %v1623
  %v1628 = vmul.f32 %v1616, %v1623
  %v1629 = vmul.f32 %v1617, %v1623
  %v1630 = vmul.f32 %v1618, %v1623
  %v1631 = vmul.f32 %v1619, %v1623
  %v1632 = vlaneseq
  %v1633 = vshrl.u32 %v1632, 7
  %v1634 = vsub.s32 1, %v1633
  %v1635 = vrot.slane %v1601, %v1634
  %v1636 = vadd.f32 %v1624, %v1635
  %v1637 = vadd.f32 %v1625, %v1635
  %v1638 = vadd.f32 %v1626, %v1635
  %v1639 = vadd.f32 %v1627, %v1635
  %v1640 = vadd.f32 %v1628, %v1635
  %v1641 = vadd.f32 %v1629, %v1635
  %v1642 = vadd.f32 %v1630, %v1635
  %v1643 = vadd.f32 %v1631, %v1635
  %vm1644 = vcmp.ge.f32.partialorder %v1636, 0.0
  %vm1645 = vcmp.ge.f32.partialorder %v1637, 0.0
  %vm1646 = vcmp.ge.f32.partialorder %v1638, 0.0
  %vm1647 = vcmp.ge.f32.partialorder %v1639, 0.0
  %vm1648 = vcmp.ge.f32.partialorder %v1640, 0.0
  %vm1649 = vcmp.ge.f32.partialorder %v1641, 0.0
  %vm1650 = vcmp.ge.f32.partialorder %v1642, 0.0
  %vm1651 = vcmp.ge.f32.partialorder %v1643, 0.0
  %v1652 = vmul.f32 %v1636, 0.01
  %v1653 = vmul.f32 %v1637, 0.01
  %v1654 = vmul.f32 %v1638, 0.01
  %v1655 = vmul.f32 %v1639, 0.01
  %v1656 = vmul.f32 %v1640, 0.01
  %v1657 = vmul.f32 %v1641, 0.01
  %v1658 = vmul.f32 %v1642, 0.01
  %v1659 = vmul.f32 %v1643, 0.01
  %v1660 = vsel %vm1644, %v1636, %v1652
  %v1661 = vsel %vm1645, %v1637, %v1653
  %v1662 = vsel %vm1646, %v1638, %v1654
  %v1663 = vsel %vm1647, %v1639, %v1655
  %v1664 = vsel %vm1648, %v1640, %v1656
  %v1665 = vsel %vm1649, %v1641, %v1657
  %v1666 = vsel %vm1650, %v1642, %v1658
  %v1667 = vsel %vm1651, %v1643, %v1659
  %v1668 = vrot.slane %v1660, 7
  %v1669 = vrot.slane %v1661, 7
  %v1670 = vrot.slane %v1662, 7
  %v1671 = vrot.slane %v1663, 7
  %v1672 = vrot.slane %v1664, 7
  %v1673 = vrot.slane %v1665, 7
  %v1674 = vrot.slane %v1666, 7
  %v1675 = vrot.slane %v1667, 7
  %v1676 = vlaneseq
  %v1677 = vshrl.u32 %v1676, 7
  %vm1678 = vcmp.lt.s32.totalorder %v1677, 1
  %v1679 = vsel %vm1678, %v1674, %v1675
  %v1680 = vsel %vm1678, %v1673, %v1674
  %v1681 = vsel %vm1678, %v1672, %v1673
  %v1682 = vsel %vm1678, %v1671, %v1672
  %v1683 = vsel %vm1678, %v1670, %v1671
  %v1684 = vsel %vm1678, %v1669, %v1670
  %v1685 = vsel %vm1678, %v1668, %v1669
  %v1686 = vsel %vm1678, %v1675, %v1668
  %v1687 = vld [vmem:[%s4] sm:$0xff]
  %v1688 = vld [vmem:[%s4 + $0x8] sm:$0xff]
  %v1689 = vld [vmem:[%s4 + $0x10] sm:$0xff]
  %v1690 = vld [vmem:[%s4 + $0x18] sm:$0xff]
  %v1691 = vld [vmem:[%s4 + $0x20] sm:$0xff]
  %v1692 = vld [vmem:[%s4 + $0x28] sm:$0xff]
  %v1693 = vld [vmem:[%s4 + $0x30] sm:$0xff]
  %v1694 = vld [vmem:[%s4 + $0x38] sm:$0xff]
  %1696 = vset.pattern.permute.xlu0 0
  %1697 = vperm.xlu0 %1696, %v1687
  %v1698 = vpop.permute.xlu0 %1697
  %1701 = vset.pattern.permute.xlu0 0
  %1702 = vperm.xlu0 %1701, %v1688
  %v1703 = vpop.permute.xlu0 %1702
  %1706 = vset.pattern.permute.xlu0 0
  %1707 = vperm.xlu0 %1706, %v1689
  %v1708 = vpop.permute.xlu0 %1707
  %1711 = vset.pattern.permute.xlu0 0
  %1712 = vperm.xlu0 %1711, %v1690
  %v1713 = vpop.permute.xlu0 %1712
  %1716 = vset.pattern.permute.xlu0 0
  %1717 = vperm.xlu0 %1716, %v1691
  %v1718 = vpop.permute.xlu0 %1717
  %1721 = vset.pattern.permute.xlu0 0
  %1722 = vperm.xlu0 %1721, %v1692
  %v1723 = vpop.permute.xlu0 %1722
  %1726 = vset.pattern.permute.xlu0 0
  %1727 = vperm.xlu0 %1726, %v1693
  %v1728 = vpop.permute.xlu0 %1727
  %1731 = vset.pattern.permute.xlu0 0
  %1732 = vperm.xlu0 %1731, %v1694
  %v1733 = vpop.permute.xlu0 %1732
  %v1735 = vmul.f32 %v1679, %v1698
  %v1736 = vmul.f32 %v1686, %v1703
  %v1737 = vmul.f32 %v1685, %v1708
  %v1738 = vmul.f32 %v1684, %v1713
  %v1739 = vmul.f32 %v1683, %v1718
  %v1740 = vmul.f32 %v1682, %v1723
  %v1741 = vmul.f32 %v1681, %v1728
  %v1742 = vmul.f32 %v1680, %v1733
  %s1743 = scalar_lea.vmem %s4, 64
  %v1744 = vld [vmem:[%s1743] sm:$0xff]
  %v1745 = vld [vmem:[%s1743 + $0x8] sm:$0xff]
  %v1746 = vld [vmem:[%s1743 + $0x10] sm:$0xff]
  %v1747 = vld [vmem:[%s1743 + $0x18] sm:$0xff]
  %v1748 = vld [vmem:[%s1743 + $0x20] sm:$0xff]
  %v1749 = vld [vmem:[%s1743 + $0x28] sm:$0xff]
  %v1750 = vld [vmem:[%s1743 + $0x30] sm:$0xff]
  %v1751 = vld [vmem:[%s1743 + $0x38] sm:$0xff]
  %1753 = vset.pattern.permute.xlu0 0
  %1754 = vperm.xlu0 %1753, %v1744
  %v1755 = vpop.permute.xlu0 %1754
  %1758 = vset.pattern.permute.xlu0 0
  %1759 = vperm.xlu0 %1758, %v1745
  %v1760 = vpop.permute.xlu0 %1759
  %1763 = vset.pattern.permute.xlu0 0
  %1764 = vperm.xlu0 %1763, %v1746
  %v1765 = vpop.permute.xlu0 %1764
  %1768 = vset.pattern.permute.xlu0 0
  %1769 = vperm.xlu0 %1768, %v1747
  %v1770 = vpop.permute.xlu0 %1769
  %1773 = vset.pattern.permute.xlu0 0
  %1774 = vperm.xlu0 %1773, %v1748
  %v1775 = vpop.permute.xlu0 %1774
  %1778 = vset.pattern.permute.xlu0 0
  %1779 = vperm.xlu0 %1778, %v1749
  %v1780 = vpop.permute.xlu0 %1779
  %1783 = vset.pattern.permute.xlu0 0
  %1784 = vperm.xlu0 %1783, %v1750
  %v1785 = vpop.permute.xlu0 %1784
  %1788 = vset.pattern.permute.xlu0 0
  %1789 = vperm.xlu0 %1788, %v1751
  %v1790 = vpop.permute.xlu0 %1789
  %v1792 = vmul.f32 %v1667, %v1755
  %v1793 = vmul.f32 %v1660, %v1760
  %v1794 = vmul.f32 %v1661, %v1765
  %v1795 = vmul.f32 %v1662, %v1770
  %v1796 = vmul.f32 %v1663, %v1775
  %v1797 = vmul.f32 %v1664, %v1780
  %v1798 = vmul.f32 %v1665, %v1785
  %v1799 = vmul.f32 %v1666, %v1790
  %v1800 = vrot.slane %v1660, 1
  %v1801 = vrot.slane %v1661, 1
  %v1802 = vrot.slane %v1662, 1
  %v1803 = vrot.slane %v1663, 1
  %v1804 = vrot.slane %v1664, 1
  %v1805 = vrot.slane %v1665, 1
  %v1806 = vrot.slane %v1666, 1
  %v1807 = vrot.slane %v1667, 1
  %vm1808 = vcmp.lt.s32.totalorder %v1677, 7
  %v1809 = vsel %vm1808, %v1806, %v1807
  %v1810 = vsel %vm1808, %v1805, %v1806
  %v1811 = vsel %vm1808, %v1804, %v1805
  %v1812 = vsel %vm1808, %v1803, %v1804
  %v1813 = vsel %vm1808, %v1802, %v1803
  %v1814 = vsel %vm1808, %v1801, %v1802
  %v1815 = vsel %vm1808, %v1800, %v1801
  %v1816 = vsel %vm1808, %v1807, %v1800
  %s1817 = scalar_lea.vmem %s4, 128
  %v1818 = vld [vmem:[%s1817] sm:$0xff]
  %v1819 = vld [vmem:[%s1817 + $0x8] sm:$0xff]
  %v1820 = vld [vmem:[%s1817 + $0x10] sm:$0xff]
  %v1821 = vld [vmem:[%s1817 + $0x18] sm:$0xff]
  %v1822 = vld [vmem:[%s1817 + $0x20] sm:$0xff]
  %v1823 = vld [vmem:[%s1817 + $0x28] sm:$0xff]
  %v1824 = vld [vmem:[%s1817 + $0x30] sm:$0xff]
  %v1825 = vld [vmem:[%s1817 + $0x38] sm:$0xff]
  %1827 = vset.pattern.permute.xlu0 0
  %1828 = vperm.xlu0 %1827, %v1818
  %v1829 = vpop.permute.xlu0 %1828
  %1832 = vset.pattern.permute.xlu0 0
  %1833 = vperm.xlu0 %1832, %v1819
  %v1834 = vpop.permute.xlu0 %1833
  %1837 = vset.pattern.permute.xlu0 0
  %1838 = vperm.xlu0 %1837, %v1820
  %v1839 = vpop.permute.xlu0 %1838
  %1842 = vset.pattern.permute.xlu0 0
  %1843 = vperm.xlu0 %1842, %v1821
  %v1844 = vpop.permute.xlu0 %1843
  %1847 = vset.pattern.permute.xlu0 0
  %1848 = vperm.xlu0 %1847, %v1822
  %v1849 = vpop.permute.xlu0 %1848
  %1852 = vset.pattern.permute.xlu0 0
  %1853 = vperm.xlu0 %1852, %v1823
  %v1854 = vpop.permute.xlu0 %1853
  %1857 = vset.pattern.permute.xlu0 0
  %1858 = vperm.xlu0 %1857, %v1824
  %v1859 = vpop.permute.xlu0 %1858
  %1862 = vset.pattern.permute.xlu0 0
  %1863 = vperm.xlu0 %1862, %v1825
  %v1864 = vpop.permute.xlu0 %1863
  %v1866 = vmul.f32 %v1816, %v1829
  %v1867 = vmul.f32 %v1815, %v1834
  %v1868 = vmul.f32 %v1814, %v1839
  %v1869 = vmul.f32 %v1813, %v1844
  %v1870 = vmul.f32 %v1812, %v1849
  %v1871 = vmul.f32 %v1811, %v1854
  %v1872 = vmul.f32 %v1810, %v1859
  %v1873 = vmul.f32 %v1809, %v1864
  %s1874 = scalar_lea.vmem %s4, 192
  %v1875 = vld [vmem:[%s1874] sm:$0xff]
  %v1876 = vld [vmem:[%s1874 + $0x8] sm:$0xff]
  %v1877 = vld [vmem:[%s1874 + $0x10] sm:$0xff]
  %v1878 = vld [vmem:[%s1874 + $0x18] sm:$0xff]
  %v1879 = vld [vmem:[%s1874 + $0x20] sm:$0xff]
  %v1880 = vld [vmem:[%s1874 + $0x28] sm:$0xff]
  %v1881 = vld [vmem:[%s1874 + $0x30] sm:$0xff]
  %v1882 = vld [vmem:[%s1874 + $0x38] sm:$0xff]
  %1884 = vset.pattern.permute.xlu0 0
  %1885 = vperm.xlu0 %1884, %v1875
  %v1886 = vpop.permute.xlu0 %1885
  %1889 = vset.pattern.permute.xlu0 0
  %1890 = vperm.xlu0 %1889, %v1876
  %v1891 = vpop.permute.xlu0 %1890
  %1894 = vset.pattern.permute.xlu0 0
  %1895 = vperm.xlu0 %1894, %v1877
  %v1896 = vpop.permute.xlu0 %1895
  %1899 = vset.pattern.permute.xlu0 0
  %1900 = vperm.xlu0 %1899, %v1878
  %v1901 = vpop.permute.xlu0 %1900
  %1904 = vset.pattern.permute.xlu0 0
  %1905 = vperm.xlu0 %1904, %v1879
  %v1906 = vpop.permute.xlu0 %1905
  %1909 = vset.pattern.permute.xlu0 0
  %1910 = vperm.xlu0 %1909, %v1880
  %v1911 = vpop.permute.xlu0 %1910
  %1914 = vset.pattern.permute.xlu0 0
  %1915 = vperm.xlu0 %1914, %v1881
  %v1916 = vpop.permute.xlu0 %1915
  %1919 = vset.pattern.permute.xlu0 0
  %1920 = vperm.xlu0 %1919, %v1882
  %v1921 = vpop.permute.xlu0 %1920
  %v1923 = vmul.f32 %v1686, %v1886
  %v1924 = vmul.f32 %v1685, %v1891
  %v1925 = vmul.f32 %v1684, %v1896
  %v1926 = vmul.f32 %v1683, %v1901
  %v1927 = vmul.f32 %v1682, %v1906
  %v1928 = vmul.f32 %v1681, %v1911
  %v1929 = vmul.f32 %v1680, %v1916
  %v1930 = vmul.f32 %v1679, %v1921
  %s1931 = scalar_lea.vmem %s4, 256
  %v1932 = vld [vmem:[%s1931] sm:$0xff]
  %v1933 = vld [vmem:[%s1931 + $0x8] sm:$0xff]
  %v1934 = vld [vmem:[%s1931 + $0x10] sm:$0xff]
  %v1935 = vld [vmem:[%s1931 + $0x18] sm:$0xff]
  %v1936 = vld [vmem:[%s1931 + $0x20] sm:$0xff]
  %v1937 = vld [vmem:[%s1931 + $0x28] sm:$0xff]
  %v1938 = vld [vmem:[%s1931 + $0x30] sm:$0xff]
  %v1939 = vld [vmem:[%s1931 + $0x38] sm:$0xff]
  %1941 = vset.pattern.permute.xlu0 0
  %1942 = vperm.xlu0 %1941, %v1932
  %v1943 = vpop.permute.xlu0 %1942
  %1946 = vset.pattern.permute.xlu0 0
  %1947 = vperm.xlu0 %1946, %v1933
  %v1948 = vpop.permute.xlu0 %1947
  %1951 = vset.pattern.permute.xlu0 0
  %1952 = vperm.xlu0 %1951, %v1934
  %v1953 = vpop.permute.xlu0 %1952
  %1956 = vset.pattern.permute.xlu0 0
  %1957 = vperm.xlu0 %1956, %v1935
  %v1958 = vpop.permute.xlu0 %1957
  %1961 = vset.pattern.permute.xlu0 0
  %1962 = vperm.xlu0 %1961, %v1936
  %v1963 = vpop.permute.xlu0 %1962
  %1966 = vset.pattern.permute.xlu0 0
  %1967 = vperm.xlu0 %1966, %v1937
  %v1968 = vpop.permute.xlu0 %1967
  %1971 = vset.pattern.permute.xlu0 0
  %1972 = vperm.xlu0 %1971, %v1938
  %v1973 = vpop.permute.xlu0 %1972
  %1976 = vset.pattern.permute.xlu0 0
  %1977 = vperm.xlu0 %1976, %v1939
  %v1978 = vpop.permute.xlu0 %1977
  %v1980 = vmul.f32 %v1660, %v1943
  %v1981 = vmul.f32 %v1661, %v1948
  %v1982 = vmul.f32 %v1662, %v1953
  %v1983 = vmul.f32 %v1663, %v1958
  %v1984 = vmul.f32 %v1664, %v1963
  %v1985 = vmul.f32 %v1665, %v1968
  %v1986 = vmul.f32 %v1666, %v1973
  %v1987 = vmul.f32 %v1667, %v1978
  %s1988 = scalar_lea.vmem %s4, 320
  %v1989 = vld [vmem:[%s1988] sm:$0xff]
  %v1990 = vld [vmem:[%s1988 + $0x8] sm:$0xff]
  %v1991 = vld [vmem:[%s1988 + $0x10] sm:$0xff]
  %v1992 = vld [vmem:[%s1988 + $0x18] sm:$0xff]
  %v1993 = vld [vmem:[%s1988 + $0x20] sm:$0xff]
  %v1994 = vld [vmem:[%s1988 + $0x28] sm:$0xff]
  %v1995 = vld [vmem:[%s1988 + $0x30] sm:$0xff]
  %v1996 = vld [vmem:[%s1988 + $0x38] sm:$0xff]
  %1998 = vset.pattern.permute.xlu0 0
  %1999 = vperm.xlu0 %1998, %v1989
  %v2000 = vpop.permute.xlu0 %1999
  %2003 = vset.pattern.permute.xlu0 0
  %2004 = vperm.xlu0 %2003, %v1990
  %v2005 = vpop.permute.xlu0 %2004
  %2008 = vset.pattern.permute.xlu0 0
  %2009 = vperm.xlu0 %2008, %v1991
  %v2010 = vpop.permute.xlu0 %2009
  %2013 = vset.pattern.permute.xlu0 0
  %2014 = vperm.xlu0 %2013, %v1992
  %v2015 = vpop.permute.xlu0 %2014
  %2018 = vset.pattern.permute.xlu0 0
  %2019 = vperm.xlu0 %2018, %v1993
  %v2020 = vpop.permute.xlu0 %2019
  %2023 = vset.pattern.permute.xlu0 0
  %2024 = vperm.xlu0 %2023, %v1994
  %v2025 = vpop.permute.xlu0 %2024
  %2028 = vset.pattern.permute.xlu0 0
  %2029 = vperm.xlu0 %2028, %v1995
  %v2030 = vpop.permute.xlu0 %2029
  %2033 = vset.pattern.permute.xlu0 0
  %2034 = vperm.xlu0 %2033, %v1996
  %v2035 = vpop.permute.xlu0 %2034
  %v2037 = vmul.f32 %v1815, %v2000
  %v2038 = vmul.f32 %v1814, %v2005
  %v2039 = vmul.f32 %v1813, %v2010
  %v2040 = vmul.f32 %v1812, %v2015
  %v2041 = vmul.f32 %v1811, %v2020
  %v2042 = vmul.f32 %v1810, %v2025
  %v2043 = vmul.f32 %v1809, %v2030
  %v2044 = vmul.f32 %v1816, %v2035
  %s2045 = scalar_lea.vmem %s4, 384
  %v2046 = vld [vmem:[%s2045] sm:$0xff]
  %v2047 = vld [vmem:[%s2045 + $0x8] sm:$0xff]
  %v2048 = vld [vmem:[%s2045 + $0x10] sm:$0xff]
  %v2049 = vld [vmem:[%s2045 + $0x18] sm:$0xff]
  %v2050 = vld [vmem:[%s2045 + $0x20] sm:$0xff]
  %v2051 = vld [vmem:[%s2045 + $0x28] sm:$0xff]
  %v2052 = vld [vmem:[%s2045 + $0x30] sm:$0xff]
  %v2053 = vld [vmem:[%s2045 + $0x38] sm:$0xff]
  %2055 = vset.pattern.permute.xlu0 0
  %2056 = vperm.xlu0 %2055, %v2046
  %v2057 = vpop.permute.xlu0 %2056
  %2060 = vset.pattern.permute.xlu0 0
  %2061 = vperm.xlu0 %2060, %v2047
  %v2062 = vpop.permute.xlu0 %2061
  %2065 = vset.pattern.permute.xlu0 0
  %2066 = vperm.xlu0 %2065, %v2048
  %v2067 = vpop.permute.xlu0 %2066
  %2070 = vset.pattern.permute.xlu0 0
  %2071 = vperm.xlu0 %2070, %v2049
  %v2072 = vpop.permute.xlu0 %2071
  %2075 = vset.pattern.permute.xlu0 0
  %2076 = vperm.xlu0 %2075, %v2050
  %v2077 = vpop.permute.xlu0 %2076
  %2080 = vset.pattern.permute.xlu0 0
  %2081 = vperm.xlu0 %2080, %v2051
  %v2082 = vpop.permute.xlu0 %2081
  %2085 = vset.pattern.permute.xlu0 0
  %2086 = vperm.xlu0 %2085, %v2052
  %v2087 = vpop.permute.xlu0 %2086
  %2090 = vset.pattern.permute.xlu0 0
  %2091 = vperm.xlu0 %2090, %v2053
  %v2092 = vpop.permute.xlu0 %2091
  %v2094 = vmul.f32 %v1685, %v2057
  %v2095 = vmul.f32 %v1684, %v2062
  %v2096 = vmul.f32 %v1683, %v2067
  %v2097 = vmul.f32 %v1682, %v2072
  %v2098 = vmul.f32 %v1681, %v2077
  %v2099 = vmul.f32 %v1680, %v2082
  %v2100 = vmul.f32 %v1679, %v2087
  %v2101 = vmul.f32 %v1686, %v2092
  %s2102 = scalar_lea.vmem %s4, 448
  %v2103 = vld [vmem:[%s2102] sm:$0xff]
  %v2104 = vld [vmem:[%s2102 + $0x8] sm:$0xff]
  %v2105 = vld [vmem:[%s2102 + $0x10] sm:$0xff]
  %v2106 = vld [vmem:[%s2102 + $0x18] sm:$0xff]
  %v2107 = vld [vmem:[%s2102 + $0x20] sm:$0xff]
  %v2108 = vld [vmem:[%s2102 + $0x28] sm:$0xff]
  %v2109 = vld [vmem:[%s2102 + $0x30] sm:$0xff]
  %v2110 = vld [vmem:[%s2102 + $0x38] sm:$0xff]
  %2112 = vset.pattern.permute.xlu0 0
  %2113 = vperm.xlu0 %2112, %v2103
  %v2114 = vpop.permute.xlu0 %2113
  %2117 = vset.pattern.permute.xlu0 0
  %2118 = vperm.xlu0 %2117, %v2104
  %v2119 = vpop.permute.xlu0 %2118
  %2122 = vset.pattern.permute.xlu0 0
  %2123 = vperm.xlu0 %2122, %v2105
  %v2124 = vpop.permute.xlu0 %2123
  %2127 = vset.pattern.permute.xlu0 0
  %2128 = vperm.xlu0 %2127, %v2106
  %v2129 = vpop.permute.xlu0 %2128
  %2132 = vset.pattern.permute.xlu0 0
  %2133 = vperm.xlu0 %2132, %v2107
  %v2134 = vpop.permute.xlu0 %2133
  %2137 = vset.pattern.permute.xlu0 0
  %2138 = vperm.xlu0 %2137, %v2108
  %v2139 = vpop.permute.xlu0 %2138
  %2142 = vset.pattern.permute.xlu0 0
  %2143 = vperm.xlu0 %2142, %v2109
  %v2144 = vpop.permute.xlu0 %2143
  %2147 = vset.pattern.permute.xlu0 0
  %2148 = vperm.xlu0 %2147, %v2110
  %v2149 = vpop.permute.xlu0 %2148
  %v2151 = vmul.f32 %v1661, %v2114
  %v2152 = vmul.f32 %v1662, %v2119
  %v2153 = vmul.f32 %v1663, %v2124
  %v2154 = vmul.f32 %v1664, %v2129
  %v2155 = vmul.f32 %v1665, %v2134
  %v2156 = vmul.f32 %v1666, %v2139
  %v2157 = vmul.f32 %v1667, %v2144
  %v2158 = vmul.f32 %v1660, %v2149
  %s2159 = scalar_lea.vmem %s4, 512
  %v2160 = vld [vmem:[%s2159] sm:$0xff]
  %v2161 = vld [vmem:[%s2159 + $0x8] sm:$0xff]
  %v2162 = vld [vmem:[%s2159 + $0x10] sm:$0xff]
  %v2163 = vld [vmem:[%s2159 + $0x18] sm:$0xff]
  %v2164 = vld [vmem:[%s2159 + $0x20] sm:$0xff]
  %v2165 = vld [vmem:[%s2159 + $0x28] sm:$0xff]
  %v2166 = vld [vmem:[%s2159 + $0x30] sm:$0xff]
  %v2167 = vld [vmem:[%s2159 + $0x38] sm:$0xff]
  %2169 = vset.pattern.permute.xlu0 0
  %2170 = vperm.xlu0 %2169, %v2160
  %v2171 = vpop.permute.xlu0 %2170
  %2174 = vset.pattern.permute.xlu0 0
  %2175 = vperm.xlu0 %2174, %v2161
  %v2176 = vpop.permute.xlu0 %2175
  %2179 = vset.pattern.permute.xlu0 0
  %2180 = vperm.xlu0 %2179, %v2162
  %v2181 = vpop.permute.xlu0 %2180
  %2184 = vset.pattern.permute.xlu0 0
  %2185 = vperm.xlu0 %2184, %v2163
  %v2186 = vpop.permute.xlu0 %2185
  %2189 = vset.pattern.permute.xlu0 0
  %2190 = vperm.xlu0 %2189, %v2164
  %v2191 = vpop.permute.xlu0 %2190
  %2194 = vset.pattern.permute.xlu0 0
  %2195 = vperm.xlu0 %2194, %v2165
  %v2196 = vpop.permute.xlu0 %2195
  %2199 = vset.pattern.permute.xlu0 0
  %2200 = vperm.xlu0 %2199, %v2166
  %v2201 = vpop.permute.xlu0 %2200
  %2204 = vset.pattern.permute.xlu0 0
  %2205 = vperm.xlu0 %2204, %v2167
  %v2206 = vpop.permute.xlu0 %2205
  %v2208 = vmul.f32 %v1814, %v2171
  %v2209 = vmul.f32 %v1813, %v2176
  %v2210 = vmul.f32 %v1812, %v2181
  %v2211 = vmul.f32 %v1811, %v2186
  %v2212 = vmul.f32 %v1810, %v2191
  %v2213 = vmul.f32 %v1809, %v2196
  %v2214 = vmul.f32 %v1816, %v2201
  %v2215 = vmul.f32 %v1815, %v2206
  %2224 = vrot.lane.b32.xlu0 %v1792, 16
  %v2225 = vpop.permute.xlu0 %2224
  %2226 = vrot.lane.b32.xlu0 %v1793, 16
  %v2227 = vpop.permute.xlu0 %2226
  %2228 = vrot.lane.b32.xlu0 %v1794, 16
  %v2229 = vpop.permute.xlu0 %2228
  %2230 = vrot.lane.b32.xlu0 %v1795, 16
  %v2231 = vpop.permute.xlu0 %2230
  %2232 = vrot.lane.b32.xlu0 %v1796, 16
  %v2233 = vpop.permute.xlu0 %2232
  %2234 = vrot.lane.b32.xlu0 %v1797, 16
  %v2235 = vpop.permute.xlu0 %2234
  %2236 = vrot.lane.b32.xlu0 %v1798, 16
  %v2237 = vpop.permute.xlu0 %2236
  %2238 = vrot.lane.b32.xlu0 %v1799, 16
  %v2239 = vpop.permute.xlu0 %2238
  %2256 = vrot.lane.b32.xlu0 %v1866, 32
  %v2257 = vpop.permute.xlu0 %2256
  %2258 = vrot.lane.b32.xlu0 %v1867, 32
  %v2259 = vpop.permute.xlu0 %2258
  %2260 = vrot.lane.b32.xlu0 %v1868, 32
  %v2261 = vpop.permute.xlu0 %2260
  %2262 = vrot.lane.b32.xlu0 %v1869, 32
  %v2263 = vpop.permute.xlu0 %2262
  %2264 = vrot.lane.b32.xlu0 %v1870, 32
  %v2265 = vpop.permute.xlu0 %2264
  %2266 = vrot.lane.b32.xlu0 %v1871, 32
  %v2267 = vpop.permute.xlu0 %2266
  %2268 = vrot.lane.b32.xlu0 %v1872, 32
  %v2269 = vpop.permute.xlu0 %2268
  %2270 = vrot.lane.b32.xlu0 %v1873, 32
  %v2271 = vpop.permute.xlu0 %2270
  %2288 = vrot.lane.b32.xlu0 %v1923, 48
  %v2289 = vpop.permute.xlu0 %2288
  %2290 = vrot.lane.b32.xlu0 %v1924, 48
  %v2291 = vpop.permute.xlu0 %2290
  %2292 = vrot.lane.b32.xlu0 %v1925, 48
  %v2293 = vpop.permute.xlu0 %2292
  %2294 = vrot.lane.b32.xlu0 %v1926, 48
  %v2295 = vpop.permute.xlu0 %2294
  %2296 = vrot.lane.b32.xlu0 %v1927, 48
  %v2297 = vpop.permute.xlu0 %2296
  %2298 = vrot.lane.b32.xlu0 %v1928, 48
  %v2299 = vpop.permute.xlu0 %2298
  %2300 = vrot.lane.b32.xlu0 %v1929, 48
  %v2301 = vpop.permute.xlu0 %2300
  %2302 = vrot.lane.b32.xlu0 %v1930, 48
  %v2303 = vpop.permute.xlu0 %2302
  %2320 = vrot.lane.b32.xlu0 %v1980, 64
  %v2321 = vpop.permute.xlu0 %2320
  %2322 = vrot.lane.b32.xlu0 %v1981, 64
  %v2323 = vpop.permute.xlu0 %2322
  %2324 = vrot.lane.b32.xlu0 %v1982, 64
  %v2325 = vpop.permute.xlu0 %2324
  %2326 = vrot.lane.b32.xlu0 %v1983, 64
  %v2327 = vpop.permute.xlu0 %2326
  %2328 = vrot.lane.b32.xlu0 %v1984, 64
  %v2329 = vpop.permute.xlu0 %2328
  %2330 = vrot.lane.b32.xlu0 %v1985, 64
  %v2331 = vpop.permute.xlu0 %2330
  %2332 = vrot.lane.b32.xlu0 %v1986, 64
  %v2333 = vpop.permute.xlu0 %2332
  %2334 = vrot.lane.b32.xlu0 %v1987, 64
  %v2335 = vpop.permute.xlu0 %2334
  %2352 = vrot.lane.b32.xlu0 %v2037, 80
  %v2353 = vpop.permute.xlu0 %2352
  %2354 = vrot.lane.b32.xlu0 %v2038, 80
  %v2355 = vpop.permute.xlu0 %2354
  %2356 = vrot.lane.b32.xlu0 %v2039, 80
  %v2357 = vpop.permute.xlu0 %2356
  %2358 = vrot.lane.b32.xlu0 %v2040, 80
  %v2359 = vpop.permute.xlu0 %2358
  %2360 = vrot.lane.b32.xlu0 %v2041, 80
  %v2361 = vpop.permute.xlu0 %2360
  %2362 = vrot.lane.b32.xlu0 %v2042, 80
  %v2363 = vpop.permute.xlu0 %2362
  %2364 = vrot.lane.b32.xlu0 %v2043, 80
  %v2365 = vpop.permute.xlu0 %2364
  %2366 = vrot.lane.b32.xlu0 %v2044, 80
  %v2367 = vpop.permute.xlu0 %2366
  %2384 = vrot.lane.b32.xlu0 %v2094, 96
  %v2385 = vpop.permute.xlu0 %2384
  %2386 = vrot.lane.b32.xlu0 %v2095, 96
  %v2387 = vpop.permute.xlu0 %2386
  %2388 = vrot.lane.b32.xlu0 %v2096, 96
  %v2389 = vpop.permute.xlu0 %2388
  %2390 = vrot.lane.b32.xlu0 %v2097, 96
  %v2391 = vpop.permute.xlu0 %2390
  %2392 = vrot.lane.b32.xlu0 %v2098, 96
  %v2393 = vpop.permute.xlu0 %2392
  %2394 = vrot.lane.b32.xlu0 %v2099, 96
  %v2395 = vpop.permute.xlu0 %2394
  %2396 = vrot.lane.b32.xlu0 %v2100, 96
  %v2397 = vpop.permute.xlu0 %2396
  %2398 = vrot.lane.b32.xlu0 %v2101, 96
  %v2399 = vpop.permute.xlu0 %2398
  %2416 = vrot.lane.b32.xlu0 %v2151, 112
  %v2417 = vpop.permute.xlu0 %2416
  %2418 = vrot.lane.b32.xlu0 %v2152, 112
  %v2419 = vpop.permute.xlu0 %2418
  %2420 = vrot.lane.b32.xlu0 %v2153, 112
  %v2421 = vpop.permute.xlu0 %2420
  %2422 = vrot.lane.b32.xlu0 %v2154, 112
  %v2423 = vpop.permute.xlu0 %2422
  %2424 = vrot.lane.b32.xlu0 %v2155, 112
  %v2425 = vpop.permute.xlu0 %2424
  %2426 = vrot.lane.b32.xlu0 %v2156, 112
  %v2427 = vpop.permute.xlu0 %2426
  %2428 = vrot.lane.b32.xlu0 %v2157, 112
  %v2429 = vpop.permute.xlu0 %2428
  %2430 = vrot.lane.b32.xlu0 %v2158, 112
  %v2431 = vpop.permute.xlu0 %2430
  %v2440 = vsel %vm1370, %v1735, %v2225
  %v2441 = vsel %vm1370, %v1736, %v2227
  %v2442 = vsel %vm1370, %v1737, %v2229
  %v2443 = vsel %vm1370, %v1738, %v2231
  %v2444 = vsel %vm1370, %v1739, %v2233
  %v2445 = vsel %vm1370, %v1740, %v2235
  %v2446 = vsel %vm1370, %v1741, %v2237
  %v2447 = vsel %vm1370, %v1742, %v2239
  %v2448 = vsel %vm1388, %v2440, %v2257
  %v2449 = vsel %vm1388, %v2441, %v2259
  %v2450 = vsel %vm1388, %v2442, %v2261
  %v2451 = vsel %vm1388, %v2443, %v2263
  %v2452 = vsel %vm1388, %v2444, %v2265
  %v2453 = vsel %vm1388, %v2445, %v2267
  %v2454 = vsel %vm1388, %v2446, %v2269
  %v2455 = vsel %vm1388, %v2447, %v2271
  %v2456 = vsel %vm1406, %v2448, %v2289
  %v2457 = vsel %vm1406, %v2449, %v2291
  %v2458 = vsel %vm1406, %v2450, %v2293
  %v2459 = vsel %vm1406, %v2451, %v2295
  %v2460 = vsel %vm1406, %v2452, %v2297
  %v2461 = vsel %vm1406, %v2453, %v2299
  %v2462 = vsel %vm1406, %v2454, %v2301
  %v2463 = vsel %vm1406, %v2455, %v2303
  %v2464 = vsel %vm1424, %v2456, %v2321
  %v2465 = vsel %vm1424, %v2457, %v2323
  %v2466 = vsel %vm1424, %v2458, %v2325
  %v2467 = vsel %vm1424, %v2459, %v2327
  %v2468 = vsel %vm1424, %v2460, %v2329
  %v2469 = vsel %vm1424, %v2461, %v2331
  %v2470 = vsel %vm1424, %v2462, %v2333
  %v2471 = vsel %vm1424, %v2463, %v2335
  %vm2472 = vcmask 654336
  %v2473 = vsel %vm2472, %v2464, %v2353
  %v2474 = vsel %vm2472, %v2465, %v2355
  %v2475 = vsel %vm2472, %v2466, %v2357
  %v2476 = vsel %vm2472, %v2467, %v2359
  %v2477 = vsel %vm2472, %v2468, %v2361
  %v2478 = vsel %vm2472, %v2469, %v2363
  %v2479 = vsel %vm2472, %v2470, %v2365
  %v2480 = vsel %vm2472, %v2471, %v2367
  %vm2481 = vcmask 785408
  %v2482 = vsel %vm2481, %v2473, %v2385
  %v2483 = vsel %vm2481, %v2474, %v2387
  %v2484 = vsel %vm2481, %v2475, %v2389
  %v2485 = vsel %vm2481, %v2476, %v2391
  %v2486 = vsel %vm2481, %v2477, %v2393
  %v2487 = vsel %vm2481, %v2478, %v2395
  %v2488 = vsel %vm2481, %v2479, %v2397
  %v2489 = vsel %vm2481, %v2480, %v2399
  %vm2490 = vcmask 916480
  %v2491 = vsel %vm2490, %v2482, %v2417
  %v2492 = vsel %vm2490, %v2483, %v2419
  %v2493 = vsel %vm2490, %v2484, %v2421
  %v2494 = vsel %vm2490, %v2485, %v2423
  %v2495 = vsel %vm2490, %v2486, %v2425
  %v2496 = vsel %vm2490, %v2487, %v2427
  %v2497 = vsel %vm2490, %v2488, %v2429
  %v2498 = vsel %vm2490, %v2489, %v2431
  %v2499 = vpack.c.bf16 %v2492, %v2491
  %v2500 = vpack.c.bf16 %v2209, %v2208
  %v2501 = vpack.c.bf16 %v2494, %v2493
  %v2502 = vpack.c.bf16 %v2211, %v2210
  %v2503 = vpack.c.bf16 %v2496, %v2495
  %v2504 = vpack.c.bf16 %v2213, %v2212
  %v2505 = vpack.c.bf16 %v2498, %v2497
  %v2506 = vpack.c.bf16 %v2215, %v2214
  %v2507 = vld [vmem:[%s7] sm:$0xf]
  %v2508 = vld [vmem:[%s7 + $0x4] sm:$0xf]
  %v2509 = vld [vmem:[%s7 + $0x8] sm:$0xf]
  %v2510 = vld [vmem:[%s7 + $0xc] sm:$0xf]
  %v2511 = vld [vmem:[%s7 + $0x10] sm:$0xf]
  %v2512 = vld [vmem:[%s7 + $0x14] sm:$0xf]
  %v2513 = vld [vmem:[%s7 + $0x18] sm:$0xf]
  %v2514 = vld [vmem:[%s7 + $0x1c] sm:$0xf]
  %v2515 = vld [vmem:[%s7 + $0x20] sm:$0xf]
  %v2516 = vld [vmem:[%s7 + $0x24] sm:$0xf]
  %v2517 = vld [vmem:[%s7 + $0x28] sm:$0xf]
  %v2518 = vld [vmem:[%s7 + $0x2c] sm:$0xf]
  %v2519 = vld [vmem:[%s7 + $0x30] sm:$0xf]
  %v2520 = vld [vmem:[%s7 + $0x34] sm:$0xf]
  %v2521 = vld [vmem:[%s7 + $0x38] sm:$0xf]
  %v2522 = vld [vmem:[%s7 + $0x3c] sm:$0xf]
  %v2523 = vld [vmem:[%s7 + $0x40] sm:$0xf]
  %v2524 = vld [vmem:[%s7 + $0x44] sm:$0xf]
  %v2543 = vunpack.c.l.b16 %v2507
  %v2544 = vunpack.c.l.b16 %v2508
  %v2545 = vunpack.c.l.b16 %v2509
  %v2546 = vunpack.c.l.b16 %v2510
  %v2547 = vunpack.c.l.b16 %v2511
  %v2548 = vunpack.c.l.b16 %v2512
  %v2549 = vunpack.c.l.b16 %v2513
  %v2550 = vunpack.c.l.b16 %v2514
  %v2551 = vunpack.c.l.b16 %v2515
  %v2552 = vunpack.c.l.b16 %v2516
  %v2553 = vunpack.c.l.b16 %v2517
  %v2554 = vunpack.c.l.b16 %v2518
  %v2555 = vunpack.c.l.b16 %v2519
  %v2556 = vunpack.c.l.b16 %v2520
  %v2557 = vunpack.c.l.b16 %v2521
  %v2558 = vunpack.c.l.b16 %v2522
  %v2559 = vunpack.c.l.b16 %v2523
  %v2560 = vunpack.c.l.b16 %v2524
  %v2561 = vpack.c.b16 %v2544, %v2543
  %v2562 = vpack.c.b16 %v2546, %v2545
  %v2563 = vpack.c.b16 %v2548, %v2547
  %v2564 = vpack.c.b16 %v2550, %v2549
  %v2565 = vpack.c.b16 %v2552, %v2551
  %v2566 = vpack.c.b16 %v2554, %v2553
  %v2567 = vpack.c.b16 %v2556, %v2555
  %v2568 = vpack.c.b16 %v2558, %v2557
  %v2569 = vpack.c.b16 %v2560, %v2559
  %v2580 = vsel %vm1370, %v2500, 0
  %v2583 = vsel %vm1370, %v2502, 0
  %v2586 = vsel %vm1370, %v2504, 0
  %v2589 = vsel %vm1370, %v2506, 0
  %2591 = vmatprep.subr.bf16.mxu0 0
  %2592 = vmatpush1.bf16.msra.mxu0 %v2561
  %2593 = vmatprep.subr.bf16.mxu0 0
  %2594 = vmatpush1.bf16.msra.mxu0 %v2562
  %2595 = vmatprep.subr.bf16.mxu0 0
  %2596 = vmatpush1.bf16.msra.mxu0 %v2563
  %2597 = vmatprep.subr.bf16.mxu0 0
  %2598 = vmatpush1.bf16.msra.mxu0 %v2564
  %2599 = vmatprep.subr.bf16.mxu0 0
  %2600 = vmatpush1.bf16.msra.mxu0 %v2565
  %2601 = vmatprep.subr.bf16.mxu0 0
  %2602 = vmatpush1.bf16.msra.mxu0 %v2566
  %2603 = vmatprep.subr.bf16.mxu0 0
  %2604 = vmatpush1.bf16.msra.mxu0 %v2567
  %2605 = vmatprep.subr.bf16.mxu0 0
  %2606 = vmatpush1.bf16.msra.mxu0 %v2568
  %2607 = vmatprep.subr.bf16.mxu0 0
  %2608 = vmatpush1.bf16.msra.mxu0 %v2569
  %2609 = vmatprep.subr.bf16.mxu0 0
  %2610 = vmatpush1.bf16.msra.mxu0 0
  %2611 = vmatprep.subr.bf16.mxu0 0
  %2612 = vmatpush1.bf16.msra.mxu0 0
  %2613 = vmatprep.subr.bf16.mxu0 0
  %2614 = vmatpush1.bf16.msra.mxu0 0
  %2615 = vmatprep.subr.bf16.mxu0 0
  %2616 = vmatpush1.bf16.msra.mxu0 0
  %2617 = vmatprep.subr.bf16.mxu0 0
  %2618 = vmatpush1.bf16.msra.mxu0 0
  %2619 = vmatprep.subr.bf16.mxu0 0
  %2620 = vmatpush1.bf16.msra.mxu0 0
  %2621 = vmatprep.subr.bf16.mxu0 0
  %2622 = vmatpush1.bf16.msra.mxu0 0
  %2623 = vmatprep.mubr.bf16.mxu0 %v2580
  %2624 = vmatmul.mubr.bf16.gmra.mrb[0].mxu0 %v2499
  %v2625 = vpop.f32.mrb[0].mxu0
  %v2626 = vadd.f32 0.0, %v2625
  %v2627 = vpop.f32.mrb[0].mxu0
  %v2628 = vpop.f32.mrb[0].mxu0
  %v2629 = vadd.f32 0.0, %v2628
  %v2630 = vpop.f32.mrb[0].mxu0
  %2631 = vmatprep.mubr.bf16.mxu0 %v2583
  %2632 = vmatmul.mubr.bf16.gmra.mrb[0].mxu0 %v2501
  %v2633 = vpop.f32.mrb[0].mxu0
  %v2634 = vadd.f32 0.0, %v2633
  %v2635 = vpop.f32.mrb[0].mxu0
  %v2636 = vpop.f32.mrb[0].mxu0
  %v2637 = vadd.f32 0.0, %v2636
  %v2638 = vpop.f32.mrb[0].mxu0
  %2639 = vmatprep.mubr.bf16.mxu0 %v2586
  %2640 = vmatmul.mubr.bf16.gmra.mrb[0].mxu0 %v2503
  %v2641 = vpop.f32.mrb[0].mxu0
  %v2642 = vadd.f32 0.0, %v2641
  %v2643 = vpop.f32.mrb[0].mxu0
  %v2644 = vpop.f32.mrb[0].mxu0
  %v2645 = vadd.f32 0.0, %v2644
  %v2646 = vpop.f32.mrb[0].mxu0
  %2647 = vmatprep.mubr.bf16.mxu0 %v2589
  %2648 = vmatmul.mubr.bf16.gmra.mrb[0].mxu0 %v2505
  %v2649 = vpop.f32.mrb[0].mxu0
  %v2650 = vadd.f32 0.0, %v2649
  %v2651 = vpop.f32.mrb[0].mxu0
  %v2652 = vpop.f32.mrb[0].mxu0
  %v2653 = vadd.f32 0.0, %v2652
  %v2654 = vpop.f32.mrb[0].mxu0
  %2655 = vdwg.mxu0
  %v2656 = vsel %vm1370, %v2626, 0.0
  %v2657 = vsel %vm1370, %v2629, 0.0
  %v2658 = vadd.f32 %v2656, %v2657
  %v2659 = vsel %vm1370, %v2634, 0.0
  %v2660 = vadd.f32 %v2658, %v2659
  %v2661 = vsel %vm1370, %v2637, 0.0
  %v2662 = vadd.f32 %v2660, %v2661
  %v2663 = vsel %vm1370, %v2642, 0.0
  %v2664 = vadd.f32 %v2662, %v2663
  %v2665 = vsel %vm1370, %v2645, 0.0
  %v2666 = vadd.f32 %v2664, %v2665
  %v2667 = vsel %vm1370, %v2650, 0.0
  %v2668 = vadd.f32 %v2666, %v2667
  %v2669 = vsel %vm1370, %v2653, 0.0
  %v2670 = vadd.f32 %v2668, %v2669
  %v2671 = vrot.slane %v2670, 4
  %v2672 = vadd.f32 %v2670, %v2671
  %v2673 = vrot.slane %v2672, 2
  %v2674 = vadd.f32 %v2672, %v2673
  %v2675 = vrot.slane %v2674, 1
  %v2676 = vadd.f32 %v2674, %v2675
  %v2677 = vmul.f32 %v2626, %v2626
  %v2678 = vmul.f32 %v2629, %v2629
  %v2679 = vmul.f32 %v2634, %v2634
  %v2680 = vmul.f32 %v2637, %v2637
  %v2681 = vmul.f32 %v2642, %v2642
  %v2682 = vmul.f32 %v2645, %v2645
  %v2683 = vmul.f32 %v2650, %v2650
  %v2684 = vmul.f32 %v2653, %v2653
  %v2685 = vsel %vm1370, %v2677, 0.0
  %v2686 = vsel %vm1370, %v2678, 0.0
  %v2687 = vadd.f32 %v2685, %v2686
  %v2688 = vsel %vm1370, %v2679, 0.0
  %v2689 = vadd.f32 %v2687, %v2688
  %v2690 = vsel %vm1370, %v2680, 0.0
  %v2691 = vadd.f32 %v2689, %v2690
  %v2692 = vsel %vm1370, %v2681, 0.0
  %v2693 = vadd.f32 %v2691, %v2692
  %v2694 = vsel %vm1370, %v2682, 0.0
  %v2695 = vadd.f32 %v2693, %v2694
  %v2696 = vsel %vm1370, %v2683, 0.0
  %v2697 = vadd.f32 %v2695, %v2696
  %v2698 = vsel %vm1370, %v2684, 0.0
  %v2699 = vadd.f32 %v2697, %v2698
  %v2700 = vrot.slane %v2699, 4
  %v2701 = vadd.f32 %v2699, %v2700
  %v2702 = vrot.slane %v2701, 2
  %v2703 = vadd.f32 %v2701, %v2702
  %v2704 = vrot.slane %v2703, 1
  %v2705 = vadd.f32 %v2703, %v2704
  %v2706 = vmul.f32 %v2676, 0.015625
  %v2707 = vmul.f32 %v2705, 0.015625
  %v2708 = vmul.f32 %v2706, %v2706
  %v2709 = vsub.f32 %v2707, %v2708
  %v2710 = vld [vmem:[%s16] sm:$0x3]
  %v2711 = vsub.f32 %v2626, %v2706
  %v2712 = vsub.f32 %v2629, %v2706
  %v2713 = vsub.f32 %v2634, %v2706
  %v2714 = vsub.f32 %v2637, %v2706
  %v2715 = vsub.f32 %v2642, %v2706
  %v2716 = vsub.f32 %v2645, %v2706
  %v2717 = vsub.f32 %v2650, %v2706
  %v2718 = vsub.f32 %v2653, %v2706
  %v2719 = vadd.f32 %v2709, 1e-05
  %v2720 = vrsqrt.pop %v2719
  %v2721 = vmul.f32 %v2711, %v2720
  %v2722 = vmul.f32 %v2712, %v2720
  %v2723 = vmul.f32 %v2713, %v2720
  %v2724 = vmul.f32 %v2714, %v2720
  %v2725 = vmul.f32 %v2715, %v2720
  %v2726 = vmul.f32 %v2716, %v2720
  %v2727 = vmul.f32 %v2717, %v2720
  %v2728 = vmul.f32 %v2718, %v2720
  %v2729 = vlaneseq
  %v2730 = vshrl.u32 %v2729, 7
  %v2731 = vsub.s32 0, %v2730
  %v2732 = vrot.slane %v2710, %v2731
  %v2733 = vmul.f32 %v2721, %v2732
  %v2734 = vmul.f32 %v2722, %v2732
  %v2735 = vmul.f32 %v2723, %v2732
  %v2736 = vmul.f32 %v2724, %v2732
  %v2737 = vmul.f32 %v2725, %v2732
  %v2738 = vmul.f32 %v2726, %v2732
  %v2739 = vmul.f32 %v2727, %v2732
  %v2740 = vmul.f32 %v2728, %v2732
  %v2741 = vlaneseq
  %v2742 = vshrl.u32 %v2741, 7
  %v2743 = vsub.s32 1, %v2742
  %v2744 = vrot.slane %v2710, %v2743
  %v2745 = vadd.f32 %v2733, %v2744
  %v2746 = vadd.f32 %v2734, %v2744
  %v2747 = vadd.f32 %v2735, %v2744
  %v2748 = vadd.f32 %v2736, %v2744
  %v2749 = vadd.f32 %v2737, %v2744
  %v2750 = vadd.f32 %v2738, %v2744
  %v2751 = vadd.f32 %v2739, %v2744
  %v2752 = vadd.f32 %v2740, %v2744
  %vm2753 = vcmp.ge.f32.partialorder %v2745, 0.0
  %vm2754 = vcmp.ge.f32.partialorder %v2746, 0.0
  %vm2755 = vcmp.ge.f32.partialorder %v2747, 0.0
  %vm2756 = vcmp.ge.f32.partialorder %v2748, 0.0
  %vm2757 = vcmp.ge.f32.partialorder %v2749, 0.0
  %vm2758 = vcmp.ge.f32.partialorder %v2750, 0.0
  %vm2759 = vcmp.ge.f32.partialorder %v2751, 0.0
  %vm2760 = vcmp.ge.f32.partialorder %v2752, 0.0
  %v2761 = vmul.f32 %v2745, 0.01
  %v2762 = vmul.f32 %v2746, 0.01
  %v2763 = vmul.f32 %v2747, 0.01
  %v2764 = vmul.f32 %v2748, 0.01
  %v2765 = vmul.f32 %v2749, 0.01
  %v2766 = vmul.f32 %v2750, 0.01
  %v2767 = vmul.f32 %v2751, 0.01
  %v2768 = vmul.f32 %v2752, 0.01
  %v2769 = vsel %vm2753, %v2745, %v2761
  %v2770 = vsel %vm2754, %v2746, %v2762
  %v2771 = vsel %vm2755, %v2747, %v2763
  %v2772 = vsel %vm2756, %v2748, %v2764
  %v2773 = vsel %vm2757, %v2749, %v2765
  %v2774 = vsel %vm2758, %v2750, %v2766
  %v2775 = vsel %vm2759, %v2751, %v2767
  %v2776 = vsel %vm2760, %v2752, %v2768
  %v2777 = vpack.c.bf16 %v2770, %v2769
  %v2778 = vpack.c.bf16 %v2772, %v2771
  %v2779 = vpack.c.bf16 %v2774, %v2773
  %v2780 = vpack.c.bf16 %v2776, %v2775
  %v2781 = vld [vmem:[%s2] sm:$0xf]
  %v2782 = vld [vmem:[%s2 + $0x4] sm:$0xf]
  %v2785 = vunpack.c.l.b16 %v2781
  %v2786 = vunpack.c.l.b16 %v2782
  %v2787 = vpack.c.b16 %v2786, %v2785
  %v2789 = vsel %vm1424, %v2787, 0
  %2791 = vmatprep.subr.bf16.mxu0 0
  %2792 = vmatpush1.bf16.msra.mxu0 %v2777
  %2793 = vmatprep.subr.bf16.mxu0 0
  %2794 = vmatpush1.bf16.msra.mxu0 %v2778
  %2795 = vmatprep.subr.bf16.mxu0 0
  %2796 = vmatpush1.bf16.msra.mxu0 %v2779
  %2797 = vmatprep.subr.bf16.mxu0 0
  %2798 = vmatpush1.bf16.msra.mxu0 %v2780
  %2799 = vmatprep.subr.bf16.mxu0 0
  %2800 = vmatpush1.bf16.msra.mxu0 0
  %2801 = vmatprep.subr.bf16.mxu0 0
  %2802 = vmatpush1.bf16.msra.mxu0 0
  %2803 = vmatprep.subr.bf16.mxu0 0
  %2804 = vmatpush1.bf16.msra.mxu0 0
  %2805 = vmatprep.subr.bf16.mxu0 0
  %2806 = vmatpush1.bf16.msra.mxu0 0
  %2807 = vmatprep.subr.bf16.mxu0 0
  %2808 = vmatpush1.bf16.msra.mxu0 0
  %2809 = vmatprep.subr.bf16.mxu0 0
  %2810 = vmatpush1.bf16.msra.mxu0 0
  %2811 = vmatprep.subr.bf16.mxu0 0
  %2812 = vmatpush1.bf16.msra.mxu0 0
  %2813 = vmatprep.subr.bf16.mxu0 0
  %2814 = vmatpush1.bf16.msra.mxu0 0
  %2815 = vmatprep.subr.bf16.mxu0 0
  %2816 = vmatpush1.bf16.msra.mxu0 0
  %2817 = vmatprep.subr.bf16.mxu0 0
  %2818 = vmatpush1.bf16.msra.mxu0 0
  %2819 = vmatprep.subr.bf16.mxu0 0
  %2820 = vmatpush1.bf16.msra.mxu0 0
  %2821 = vmatprep.subr.bf16.mxu0 0
  %2822 = vmatpush1.bf16.msra.mxu0 0
  %2823 = vmatprep.mubr.bf16.mxu0 0
  %2824 = vmatmul.mubr.bf16.gmra.mrb[0].mxu0 %v2789
  %v2825 = vpop.f32.mrb[0].mxu0
  %v2826 = vadd.f32 0.0, %v2825
  %v2827 = vpop.f32.mrb[0].mxu0
  %v2828 = vpop.f32.mrb[0].mxu0
  %v2829 = vadd.f32 0.0, %v2828
  %v2830 = vpop.f32.mrb[0].mxu0
  %2831 = vdwg.mxu0
  %v2832 = vpack.c.bf16 %v2829, %v2826
  %s2833 = scalar_lea.vmem %s2, 8
  %v2834 = vld [vmem:[%s2833] sm:$0xf]
  %v2835 = vld [vmem:[%s2833 + $0x4] sm:$0xf]
  %v2838 = vunpack.c.l.b16 %v2834
  %v2839 = vunpack.c.l.b16 %v2835
  %v2840 = vpack.c.b16 %v2839, %v2838
  %v2842 = vsel %vm1424, %v2840, 0
  %2844 = vmatprep.subr.bf16.mxu0 0
  %2845 = vmatpush1.bf16.msra.mxu0 %v2777
  %2846 = vmatprep.subr.bf16.mxu0 0
  %2847 = vmatpush1.bf16.msra.mxu0 %v2778
  %2848 = vmatprep.subr.bf16.mxu0 0
  %2849 = vmatpush1.bf16.msra.mxu0 %v2779
  %2850 = vmatprep.subr.bf16.mxu0 0
  %2851 = vmatpush1.bf16.msra.mxu0 %v2780
  %2852 = vmatprep.subr.bf16.mxu0 0
  %2853 = vmatpush1.bf16.msra.mxu0 0
  %2854 = vmatprep.subr.bf16.mxu0 0
  %2855 = vmatpush1.bf16.msra.mxu0 0
  %2856 = vmatprep.subr.bf16.mxu0 0
  %2857 = vmatpush1.bf16.msra.mxu0 0
  %2858 = vmatprep.subr.bf16.mxu0 0
  %2859 = vmatpush1.bf16.msra.mxu0 0
  %2860 = vmatprep.subr.bf16.mxu0 0
  %2861 = vmatpush1.bf16.msra.mxu0 0
  %2862 = vmatprep.subr.bf16.mxu0 0
  %2863 = vmatpush1.bf16.msra.mxu0 0
  %2864 = vmatprep.subr.bf16.mxu0 0
  %2865 = vmatpush1.bf16.msra.mxu0 0
  %2866 = vmatprep.subr.bf16.mxu0 0
  %2867 = vmatpush1.bf16.msra.mxu0 0
  %2868 = vmatprep.subr.bf16.mxu0 0
  %2869 = vmatpush1.bf16.msra.mxu0 0
  %2870 = vmatprep.subr.bf16.mxu0 0
  %2871 = vmatpush1.bf16.msra.mxu0 0
  %2872 = vmatprep.subr.bf16.mxu0 0
  %2873 = vmatpush1.bf16.msra.mxu0 0
  %2874 = vmatprep.subr.bf16.mxu0 0
  %2875 = vmatpush1.bf16.msra.mxu0 0
  %2876 = vmatprep.mubr.bf16.mxu0 0
  %2877 = vmatmul.mubr.bf16.gmra.mrb[0].mxu0 %v2842
  %v2878 = vpop.f32.mrb[0].mxu0
  %v2879 = vadd.f32 0.0, %v2878
  %v2880 = vpop.f32.mrb[0].mxu0
  %v2881 = vpop.f32.mrb[0].mxu0
  %v2882 = vadd.f32 0.0, %v2881
  %v2883 = vpop.f32.mrb[0].mxu0
  %2884 = vdwg.mxu0
  %v2885 = vpack.c.bf16 %v2882, %v2879
  %s2886 = scalar_lea.vmem %s2, 16
  %v2887 = vld [vmem:[%s2886] sm:$0xf]
  %v2888 = vld [vmem:[%s2886 + $0x4] sm:$0xf]
  %v2891 = vunpack.c.l.b16 %v2887
  %v2892 = vunpack.c.l.b16 %v2888
  %v2893 = vpack.c.b16 %v2892, %v2891
  %v2895 = vsel %vm1424, %v2893, 0
  %2897 = vmatprep.subr.bf16.mxu0 0
  %2898 = vmatpush1.bf16.msra.mxu0 %v2777
  %2899 = vmatprep.subr.bf16.mxu0 0
  %2900 = vmatpush1.bf16.msra.mxu0 %v2778
  %2901 = vmatprep.subr.bf16.mxu0 0
  %2902 = vmatpush1.bf16.msra.mxu0 %v2779
  %2903 = vmatprep.subr.bf16.mxu0 0
  %2904 = vmatpush1.bf16.msra.mxu0 %v2780
  %2905 = vmatprep.subr.bf16.mxu0 0
  %2906 = vmatpush1.bf16.msra.mxu0 0
  %2907 = vmatprep.subr.bf16.mxu0 0
  %2908 = vmatpush1.bf16.msra.mxu0 0
  %2909 = vmatprep.subr.bf16.mxu0 0
  %2910 = vmatpush1.bf16.msra.mxu0 0
  %2911 = vmatprep.subr.bf16.mxu0 0
  %2912 = vmatpush1.bf16.msra.mxu0 0
  %2913 = vmatprep.subr.bf16.mxu0 0
  %2914 = vmatpush1.bf16.msra.mxu0 0
  %2915 = vmatprep.subr.bf16.mxu0 0
  %2916 = vmatpush1.bf16.msra.mxu0 0
  %2917 = vmatprep.subr.bf16.mxu0 0
  %2918 = vmatpush1.bf16.msra.mxu0 0
  %2919 = vmatprep.subr.bf16.mxu0 0
  %2920 = vmatpush1.bf16.msra.mxu0 0
  %2921 = vmatprep.subr.bf16.mxu0 0
  %2922 = vmatpush1.bf16.msra.mxu0 0
  %2923 = vmatprep.subr.bf16.mxu0 0
  %2924 = vmatpush1.bf16.msra.mxu0 0
  %2925 = vmatprep.subr.bf16.mxu0 0
  %2926 = vmatpush1.bf16.msra.mxu0 0
  %2927 = vmatprep.subr.bf16.mxu0 0
  %2928 = vmatpush1.bf16.msra.mxu0 0
  %2929 = vmatprep.mubr.bf16.mxu0 0
  %2930 = vmatmul.mubr.bf16.gmra.mrb[0].mxu0 %v2895
  %v2931 = vpop.f32.mrb[0].mxu0
  %v2932 = vadd.f32 0.0, %v2931
  %v2933 = vpop.f32.mrb[0].mxu0
  %v2934 = vpop.f32.mrb[0].mxu0
  %v2935 = vadd.f32 0.0, %v2934
  %v2936 = vpop.f32.mrb[0].mxu0
  %2937 = vdwg.mxu0
  %v2938 = vpack.c.bf16 %v2935, %v2932
  %s2939 = scalar_lea.vmem %s2, 24
  %v2940 = vld [vmem:[%s2939] sm:$0xf]
  %v2941 = vld [vmem:[%s2939 + $0x4] sm:$0xf]
  %v2944 = vunpack.c.l.b16 %v2940
  %v2945 = vunpack.c.l.b16 %v2941
  %v2946 = vpack.c.b16 %v2945, %v2944
  %v2948 = vsel %vm1424, %v2946, 0
  %2950 = vmatprep.subr.bf16.mxu0 0
  %2951 = vmatpush1.bf16.msra.mxu0 %v2777
  %2952 = vmatprep.subr.bf16.mxu0 0
  %2953 = vmatpush1.bf16.msra.mxu0 %v2778
  %2954 = vmatprep.subr.bf16.mxu0 0
  %2955 = vmatpush1.bf16.msra.mxu0 %v2779
  %2956 = vmatprep.subr.bf16.mxu0 0
  %2957 = vmatpush1.bf16.msra.mxu0 %v2780
  %2958 = vmatprep.subr.bf16.mxu0 0
  %2959 = vmatpush1.bf16.msra.mxu0 0
  %2960 = vmatprep.subr.bf16.mxu0 0
  %2961 = vmatpush1.bf16.msra.mxu0 0
  %2962 = vmatprep.subr.bf16.mxu0 0
  %2963 = vmatpush1.bf16.msra.mxu0 0
  %2964 = vmatprep.subr.bf16.mxu0 0
  %2965 = vmatpush1.bf16.msra.mxu0 0
  %2966 = vmatprep.subr.bf16.mxu0 0
  %2967 = vmatpush1.bf16.msra.mxu0 0
  %2968 = vmatprep.subr.bf16.mxu0 0
  %2969 = vmatpush1.bf16.msra.mxu0 0
  %2970 = vmatprep.subr.bf16.mxu0 0
  %2971 = vmatpush1.bf16.msra.mxu0 0
  %2972 = vmatprep.subr.bf16.mxu0 0
  %2973 = vmatpush1.bf16.msra.mxu0 0
  %2974 = vmatprep.subr.bf16.mxu0 0
  %2975 = vmatpush1.bf16.msra.mxu0 0
  %2976 = vmatprep.subr.bf16.mxu0 0
  %2977 = vmatpush1.bf16.msra.mxu0 0
  %2978 = vmatprep.subr.bf16.mxu0 0
  %2979 = vmatpush1.bf16.msra.mxu0 0
  %2980 = vmatprep.subr.bf16.mxu0 0
  %2981 = vmatpush1.bf16.msra.mxu0 0
  %2982 = vmatprep.mubr.bf16.mxu0 0
  %2983 = vmatmul.mubr.bf16.gmra.mrb[0].mxu0 %v2948
  %v2984 = vpop.f32.mrb[0].mxu0
  %v2985 = vadd.f32 0.0, %v2984
  %v2986 = vpop.f32.mrb[0].mxu0
  %v2987 = vpop.f32.mrb[0].mxu0
  %v2988 = vadd.f32 0.0, %v2987
  %v2989 = vpop.f32.mrb[0].mxu0
  %2990 = vdwg.mxu0
  %v2991 = vpack.c.bf16 %v2988, %v2985
  %s2992 = scalar_lea.vmem %s2, 32
  %v2993 = vld [vmem:[%s2992] sm:$0xf]
  %v2994 = vld [vmem:[%s2992 + $0x4] sm:$0xf]
  %v2997 = vunpack.c.l.b16 %v2993
  %v2998 = vunpack.c.l.b16 %v2994
  %v2999 = vpack.c.b16 %v2998, %v2997
  %v3001 = vsel %vm1424, %v2999, 0
  %3003 = vmatprep.subr.bf16.mxu0 0
  %3004 = vmatpush1.bf16.msra.mxu0 %v2777
  %3005 = vmatprep.subr.bf16.mxu0 0
  %3006 = vmatpush1.bf16.msra.mxu0 %v2778
  %3007 = vmatprep.subr.bf16.mxu0 0
  %3008 = vmatpush1.bf16.msra.mxu0 %v2779
  %3009 = vmatprep.subr.bf16.mxu0 0
  %3010 = vmatpush1.bf16.msra.mxu0 %v2780
  %3011 = vmatprep.subr.bf16.mxu0 0
  %3012 = vmatpush1.bf16.msra.mxu0 0
  %3013 = vmatprep.subr.bf16.mxu0 0
  %3014 = vmatpush1.bf16.msra.mxu0 0
  %3015 = vmatprep.subr.bf16.mxu0 0
  %3016 = vmatpush1.bf16.msra.mxu0 0
  %3017 = vmatprep.subr.bf16.mxu0 0
  %3018 = vmatpush1.bf16.msra.mxu0 0
  %3019 = vmatprep.subr.bf16.mxu0 0
  %3020 = vmatpush1.bf16.msra.mxu0 0
  %3021 = vmatprep.subr.bf16.mxu0 0
  %3022 = vmatpush1.bf16.msra.mxu0 0
  %3023 = vmatprep.subr.bf16.mxu0 0
  %3024 = vmatpush1.bf16.msra.mxu0 0
  %3025 = vmatprep.subr.bf16.mxu0 0
  %3026 = vmatpush1.bf16.msra.mxu0 0
  %3027 = vmatprep.subr.bf16.mxu0 0
  %3028 = vmatpush1.bf16.msra.mxu0 0
  %3029 = vmatprep.subr.bf16.mxu0 0
  %3030 = vmatpush1.bf16.msra.mxu0 0
  %3031 = vmatprep.subr.bf16.mxu0 0
  %3032 = vmatpush1.bf16.msra.mxu0 0
  %3033 = vmatprep.subr.bf16.mxu0 0
  %3034 = vmatpush1.bf16.msra.mxu0 0
  %3035 = vmatprep.mubr.bf16.mxu0 0
  %3036 = vmatmul.mubr.bf16.gmra.mrb[0].mxu0 %v3001
  %v3037 = vpop.f32.mrb[0].mxu0
  %v3038 = vadd.f32 0.0, %v3037
  %v3039 = vpop.f32.mrb[0].mxu0
  %v3040 = vpop.f32.mrb[0].mxu0
  %v3041 = vadd.f32 0.0, %v3040
  %v3042 = vpop.f32.mrb[0].mxu0
  %3043 = vdwg.mxu0
  %v3044 = vpack.c.bf16 %v3041, %v3038
  %s3045 = scalar_lea.vmem %s2, 40
  %v3046 = vld [vmem:[%s3045] sm:$0xf]
  %v3047 = vld [vmem:[%s3045 + $0x4] sm:$0xf]
  %v3050 = vunpack.c.l.b16 %v3046
  %v3051 = vunpack.c.l.b16 %v3047
  %v3052 = vpack.c.b16 %v3051, %v3050
  %v3054 = vsel %vm1424, %v3052, 0
  %3056 = vmatprep.subr.bf16.mxu0 0
  %3057 = vmatpush1.bf16.msra.mxu0 %v2777
  %3058 = vmatprep.subr.bf16.mxu0 0
  %3059 = vmatpush1.bf16.msra.mxu0 %v2778
  %3060 = vmatprep.subr.bf16.mxu0 0
  %3061 = vmatpush1.bf16.msra.mxu0 %v2779
  %3062 = vmatprep.subr.bf16.mxu0 0
  %3063 = vmatpush1.bf16.msra.mxu0 %v2780
  %3064 = vmatprep.subr.bf16.mxu0 0
  %3065 = vmatpush1.bf16.msra.mxu0 0
  %3066 = vmatprep.subr.bf16.mxu0 0
  %3067 = vmatpush1.bf16.msra.mxu0 0
  %3068 = vmatprep.subr.bf16.mxu0 0
  %3069 = vmatpush1.bf16.msra.mxu0 0
  %3070 = vmatprep.subr.bf16.mxu0 0
  %3071 = vmatpush1.bf16.msra.mxu0 0
  %3072 = vmatprep.subr.bf16.mxu0 0
  %3073 = vmatpush1.bf16.msra.mxu0 0
  %3074 = vmatprep.subr.bf16.mxu0 0
  %3075 = vmatpush1.bf16.msra.mxu0 0
  %3076 = vmatprep.subr.bf16.mxu0 0
  %3077 = vmatpush1.bf16.msra.mxu0 0
  %3078 = vmatprep.subr.bf16.mxu0 0
  %3079 = vmatpush1.bf16.msra.mxu0 0
  %3080 = vmatprep.subr.bf16.mxu0 0
  %3081 = vmatpush1.bf16.msra.mxu0 0
  %3082 = vmatprep.subr.bf16.mxu0 0
  %3083 = vmatpush1.bf16.msra.mxu0 0
  %3084 = vmatprep.subr.bf16.mxu0 0
  %3085 = vmatpush1.bf16.msra.mxu0 0
  %3086 = vmatprep.subr.bf16.mxu0 0
  %3087 = vmatpush1.bf16.msra.mxu0 0
  %3088 = vmatprep.mubr.bf16.mxu0 0
  %3089 = vmatmul.mubr.bf16.gmra.mrb[0].mxu0 %v3054
  %v3090 = vpop.f32.mrb[0].mxu0
  %v3091 = vadd.f32 0.0, %v3090
  %v3092 = vpop.f32.mrb[0].mxu0
  %v3093 = vpop.f32.mrb[0].mxu0
  %v3094 = vadd.f32 0.0, %v3093
  %v3095 = vpop.f32.mrb[0].mxu0
  %3096 = vdwg.mxu0
  %v3097 = vpack.c.bf16 %v3094, %v3091
  %s3098 = scalar_lea.vmem %s2, 48
  %v3099 = vld [vmem:[%s3098] sm:$0xf]
  %v3100 = vld [vmem:[%s3098 + $0x4] sm:$0xf]
  %v3103 = vunpack.c.l.b16 %v3099
  %v3104 = vunpack.c.l.b16 %v3100
  %v3105 = vpack.c.b16 %v3104, %v3103
  %v3107 = vsel %vm1424, %v3105, 0
  %3109 = vmatprep.subr.bf16.mxu0 0
  %3110 = vmatpush1.bf16.msra.mxu0 %v2777
  %3111 = vmatprep.subr.bf16.mxu0 0
  %3112 = vmatpush1.bf16.msra.mxu0 %v2778
  %3113 = vmatprep.subr.bf16.mxu0 0
  %3114 = vmatpush1.bf16.msra.mxu0 %v2779
  %3115 = vmatprep.subr.bf16.mxu0 0
  %3116 = vmatpush1.bf16.msra.mxu0 %v2780
  %3117 = vmatprep.subr.bf16.mxu0 0
  %3118 = vmatpush1.bf16.msra.mxu0 0
  %3119 = vmatprep.subr.bf16.mxu0 0
  %3120 = vmatpush1.bf16.msra.mxu0 0
  %3121 = vmatprep.subr.bf16.mxu0 0
  %3122 = vmatpush1.bf16.msra.mxu0 0
  %3123 = vmatprep.subr.bf16.mxu0 0
  %3124 = vmatpush1.bf16.msra.mxu0 0
  %3125 = vmatprep.subr.bf16.mxu0 0
  %3126 = vmatpush1.bf16.msra.mxu0 0
  %3127 = vmatprep.subr.bf16.mxu0 0
  %3128 = vmatpush1.bf16.msra.mxu0 0
  %3129 = vmatprep.subr.bf16.mxu0 0
  %3130 = vmatpush1.bf16.msra.mxu0 0
  %3131 = vmatprep.subr.bf16.mxu0 0
  %3132 = vmatpush1.bf16.msra.mxu0 0
  %3133 = vmatprep.subr.bf16.mxu0 0
  %3134 = vmatpush1.bf16.msra.mxu0 0
  %3135 = vmatprep.subr.bf16.mxu0 0
  %3136 = vmatpush1.bf16.msra.mxu0 0
  %3137 = vmatprep.subr.bf16.mxu0 0
  %3138 = vmatpush1.bf16.msra.mxu0 0
  %3139 = vmatprep.subr.bf16.mxu0 0
  %3140 = vmatpush1.bf16.msra.mxu0 0
  %3141 = vmatprep.mubr.bf16.mxu0 0
  %3142 = vmatmul.mubr.bf16.gmra.mrb[0].mxu0 %v3107
  %v3143 = vpop.f32.mrb[0].mxu0
  %v3144 = vadd.f32 0.0, %v3143
  %v3145 = vpop.f32.mrb[0].mxu0
  %v3146 = vpop.f32.mrb[0].mxu0
  %v3147 = vadd.f32 0.0, %v3146
  %v3148 = vpop.f32.mrb[0].mxu0
  %3149 = vdwg.mxu0
  %v3150 = vpack.c.bf16 %v3147, %v3144
  %s3151 = scalar_lea.vmem %s2, 56
  %v3152 = vld [vmem:[%s3151] sm:$0xf]
  %v3153 = vld [vmem:[%s3151 + $0x4] sm:$0xf]
  %v3156 = vunpack.c.l.b16 %v3152
  %v3157 = vunpack.c.l.b16 %v3153
  %v3158 = vpack.c.b16 %v3157, %v3156
  %v3160 = vsel %vm1424, %v3158, 0
  %3162 = vmatprep.subr.bf16.mxu0 0
  %3163 = vmatpush1.bf16.msra.mxu0 %v2777
  %3164 = vmatprep.subr.bf16.mxu0 0
  %3165 = vmatpush1.bf16.msra.mxu0 %v2778
  %3166 = vmatprep.subr.bf16.mxu0 0
  %3167 = vmatpush1.bf16.msra.mxu0 %v2779
  %3168 = vmatprep.subr.bf16.mxu0 0
  %3169 = vmatpush1.bf16.msra.mxu0 %v2780
  %3170 = vmatprep.subr.bf16.mxu0 0
  %3171 = vmatpush1.bf16.msra.mxu0 0
  %3172 = vmatprep.subr.bf16.mxu0 0
  %3173 = vmatpush1.bf16.msra.mxu0 0
  %3174 = vmatprep.subr.bf16.mxu0 0
  %3175 = vmatpush1.bf16.msra.mxu0 0
  %3176 = vmatprep.subr.bf16.mxu0 0
  %3177 = vmatpush1.bf16.msra.mxu0 0
  %3178 = vmatprep.subr.bf16.mxu0 0
  %3179 = vmatpush1.bf16.msra.mxu0 0
  %3180 = vmatprep.subr.bf16.mxu0 0
  %3181 = vmatpush1.bf16.msra.mxu0 0
  %3182 = vmatprep.subr.bf16.mxu0 0
  %3183 = vmatpush1.bf16.msra.mxu0 0
  %3184 = vmatprep.subr.bf16.mxu0 0
  %3185 = vmatpush1.bf16.msra.mxu0 0
  %3186 = vmatprep.subr.bf16.mxu0 0
  %3187 = vmatpush1.bf16.msra.mxu0 0
  %3188 = vmatprep.subr.bf16.mxu0 0
  %3189 = vmatpush1.bf16.msra.mxu0 0
  %3190 = vmatprep.subr.bf16.mxu0 0
  %3191 = vmatpush1.bf16.msra.mxu0 0
  %3192 = vmatprep.subr.bf16.mxu0 0
  %3193 = vmatpush1.bf16.msra.mxu0 0
  %3194 = vmatprep.mubr.bf16.mxu0 0
  %3195 = vmatmul.mubr.bf16.gmra.mrb[0].mxu0 %v3160
  %v3196 = vpop.f32.mrb[0].mxu0
  %v3197 = vadd.f32 0.0, %v3196
  %v3198 = vpop.f32.mrb[0].mxu0
  %v3199 = vpop.f32.mrb[0].mxu0
  %v3200 = vadd.f32 0.0, %v3199
  %v3201 = vpop.f32.mrb[0].mxu0
  %3202 = vdwg.mxu0
  %v3203 = vpack.c.bf16 %v3200, %v3197
  %s3204 = scalar_lea.vmem %s2, 64
  %v3205 = vld [vmem:[%s3204] sm:$0xf]
  %v3206 = vld [vmem:[%s3204 + $0x4] sm:$0xf]
  %v3209 = vunpack.c.l.b16 %v3205
  %v3210 = vunpack.c.l.b16 %v3206
  %v3211 = vpack.c.b16 %v3210, %v3209
  %v3213 = vsel %vm1424, %v3211, 0
  %3215 = vmatprep.subr.bf16.mxu0 0
  %3216 = vmatpush1.bf16.msra.mxu0 %v2777
  %3217 = vmatprep.subr.bf16.mxu0 0
  %3218 = vmatpush1.bf16.msra.mxu0 %v2778
  %3219 = vmatprep.subr.bf16.mxu0 0
  %3220 = vmatpush1.bf16.msra.mxu0 %v2779
  %3221 = vmatprep.subr.bf16.mxu0 0
  %3222 = vmatpush1.bf16.msra.mxu0 %v2780
  %3223 = vmatprep.subr.bf16.mxu0 0
  %3224 = vmatpush1.bf16.msra.mxu0 0
  %3225 = vmatprep.subr.bf16.mxu0 0
  %3226 = vmatpush1.bf16.msra.mxu0 0
  %3227 = vmatprep.subr.bf16.mxu0 0
  %3228 = vmatpush1.bf16.msra.mxu0 0
  %3229 = vmatprep.subr.bf16.mxu0 0
  %3230 = vmatpush1.bf16.msra.mxu0 0
  %3231 = vmatprep.subr.bf16.mxu0 0
  %3232 = vmatpush1.bf16.msra.mxu0 0
  %3233 = vmatprep.subr.bf16.mxu0 0
  %3234 = vmatpush1.bf16.msra.mxu0 0
  %3235 = vmatprep.subr.bf16.mxu0 0
  %3236 = vmatpush1.bf16.msra.mxu0 0
  %3237 = vmatprep.subr.bf16.mxu0 0
  %3238 = vmatpush1.bf16.msra.mxu0 0
  %3239 = vmatprep.subr.bf16.mxu0 0
  %3240 = vmatpush1.bf16.msra.mxu0 0
  %3241 = vmatprep.subr.bf16.mxu0 0
  %3242 = vmatpush1.bf16.msra.mxu0 0
  %3243 = vmatprep.subr.bf16.mxu0 0
  %3244 = vmatpush1.bf16.msra.mxu0 0
  %3245 = vmatprep.subr.bf16.mxu0 0
  %3246 = vmatpush1.bf16.msra.mxu0 0
  %3247 = vmatprep.mubr.bf16.mxu0 0
  %3248 = vmatmul.mubr.bf16.gmra.mrb[0].mxu0 %v3213
  %v3249 = vpop.f32.mrb[0].mxu0
  %v3250 = vadd.f32 0.0, %v3249
  %v3251 = vpop.f32.mrb[0].mxu0
  %v3252 = vpop.f32.mrb[0].mxu0
  %v3253 = vadd.f32 0.0, %v3252
  %v3254 = vpop.f32.mrb[0].mxu0
  %3255 = vdwg.mxu0
  %v3256 = vpack.c.bf16 %v3253, %v3250
  %3258 = vrot.lane.b32.xlu0 %v2885, 16
  %v3259 = vpop.permute.xlu0 %3258
  %3261 = vrot.lane.b32.xlu0 %v2938, 32
  %v3262 = vpop.permute.xlu0 %3261
  %3264 = vrot.lane.b32.xlu0 %v2991, 48
  %v3265 = vpop.permute.xlu0 %3264
  %3267 = vrot.lane.b32.xlu0 %v3044, 64
  %v3268 = vpop.permute.xlu0 %3267
  %3270 = vrot.lane.b32.xlu0 %v3097, 80
  %v3271 = vpop.permute.xlu0 %3270
  %3273 = vrot.lane.b32.xlu0 %v3150, 96
  %v3274 = vpop.permute.xlu0 %3273
  %3276 = vrot.lane.b32.xlu0 %v3203, 112
  %v3277 = vpop.permute.xlu0 %3276
  %v3280 = vsel %vm1370, %v2832, %v3259
  %v3282 = vsel %vm1388, %v3280, %v3262
  %v3284 = vsel %vm1406, %v3282, %v3265
  %v3286 = vsel %vm1424, %v3284, %v3268
  %v3288 = vsel %vm2472, %v3286, %v3271
  %v3290 = vsel %vm2481, %v3288, %v3274
  %v3292 = vsel %vm2490, %v3290, %v3277
  %v3294 = vld [vmem:[%s8] sm:$0xf]
  %v3295 = vld [vmem:[%s8 + $0x4] sm:$0xf]
  %v3296 = vld [vmem:[%s8 + $0x8] sm:$0xf]
  %v3297 = vld [vmem:[%s8 + $0xc] sm:$0xf]
  %v3298 = vld [vmem:[%s8 + $0x10] sm:$0xf]
  %v3299 = vld [vmem:[%s8 + $0x14] sm:$0xf]
  %v3300 = vld [vmem:[%s8 + $0x18] sm:$0xf]
  %v3301 = vld [vmem:[%s8 + $0x1c] sm:$0xf]
  %v3302 = vld [vmem:[%s8 + $0x20] sm:$0xf]
  %v3303 = vld [vmem:[%s8 + $0x24] sm:$0xf]
  %v3304 = vld [vmem:[%s8 + $0x28] sm:$0xf]
  %v3305 = vld [vmem:[%s8 + $0x2c] sm:$0xf]
  %v3306 = vld [vmem:[%s8 + $0x30] sm:$0xf]
  %v3307 = vld [vmem:[%s8 + $0x34] sm:$0xf]
  %v3308 = vld [vmem:[%s8 + $0x38] sm:$0xf]
  %v3309 = vld [vmem:[%s8 + $0x3c] sm:$0xf]
  %v3310 = vld [vmem:[%s8 + $0x40] sm:$0xf]
  %v3311 = vld [vmem:[%s8 + $0x44] sm:$0xf]
  %v3330 = vunpack.c.l.b16 %v3294
  %v3331 = vunpack.c.l.b16 %v3295
  %v3332 = vunpack.c.l.b16 %v3296
  %v3333 = vunpack.c.l.b16 %v3297
  %v3334 = vunpack.c.l.b16 %v3298
  %v3335 = vunpack.c.l.b16 %v3299
  %v3336 = vunpack.c.l.b16 %v3300
  %v3337 = vunpack.c.l.b16 %v3301
  %v3338 = vunpack.c.l.b16 %v3302
  %v3339 = vunpack.c.l.b16 %v3303
  %v3340 = vunpack.c.l.b16 %v3304
  %v3341 = vunpack.c.l.b16 %v3305
  %v3342 = vunpack.c.l.b16 %v3306
  %v3343 = vunpack.c.l.b16 %v3307
  %v3344 = vunpack.c.l.b16 %v3308
  %v3345 = vunpack.c.l.b16 %v3309
  %v3346 = vunpack.c.l.b16 %v3310
  %v3347 = vunpack.c.l.b16 %v3311
  %v3348 = vpack.c.b16 %v3331, %v3330
  %v3349 = vpack.c.b16 %v3333, %v3332
  %v3350 = vpack.c.b16 %v3335, %v3334
  %v3351 = vpack.c.b16 %v3337, %v3336
  %v3352 = vpack.c.b16 %v3339, %v3338
  %v3353 = vpack.c.b16 %v3341, %v3340
  %v3354 = vpack.c.b16 %v3343, %v3342
  %v3355 = vpack.c.b16 %v3345, %v3344
  %v3356 = vpack.c.b16 %v3347, %v3346
  %v3367 = vsel %vm1370, %v3256, 0
  %3369 = vmatprep.subr.bf16.mxu0 0
  %3370 = vmatpush1.bf16.msra.mxu0 %v3348
  %3371 = vmatprep.subr.bf16.mxu0 0
  %3372 = vmatpush1.bf16.msra.mxu0 %v3349
  %3373 = vmatprep.subr.bf16.mxu0 0
  %3374 = vmatpush1.bf16.msra.mxu0 %v3350
  %3375 = vmatprep.subr.bf16.mxu0 0
  %3376 = vmatpush1.bf16.msra.mxu0 %v3351
  %3377 = vmatprep.subr.bf16.mxu0 0
  %3378 = vmatpush1.bf16.msra.mxu0 %v3352
  %3379 = vmatprep.subr.bf16.mxu0 0
  %3380 = vmatpush1.bf16.msra.mxu0 %v3353
  %3381 = vmatprep.subr.bf16.mxu0 0
  %3382 = vmatpush1.bf16.msra.mxu0 %v3354
  %3383 = vmatprep.subr.bf16.mxu0 0
  %3384 = vmatpush1.bf16.msra.mxu0 %v3355
  %3385 = vmatprep.subr.bf16.mxu0 0
  %3386 = vmatpush1.bf16.msra.mxu0 %v3356
  %3387 = vmatprep.subr.bf16.mxu0 0
  %3388 = vmatpush1.bf16.msra.mxu0 0
  %3389 = vmatprep.subr.bf16.mxu0 0
  %3390 = vmatpush1.bf16.msra.mxu0 0
  %3391 = vmatprep.subr.bf16.mxu0 0
  %3392 = vmatpush1.bf16.msra.mxu0 0
  %3393 = vmatprep.subr.bf16.mxu0 0
  %3394 = vmatpush1.bf16.msra.mxu0 0
  %3395 = vmatprep.subr.bf16.mxu0 0
  %3396 = vmatpush1.bf16.msra.mxu0 0
  %3397 = vmatprep.subr.bf16.mxu0 0
  %3398 = vmatpush1.bf16.msra.mxu0 0
  %3399 = vmatprep.subr.bf16.mxu0 0
  %3400 = vmatpush1.bf16.msra.mxu0 0
  %3401 = vmatprep.mubr.bf16.mxu0 %v3367
  %3402 = vmatmul.mubr.bf16.gmra.mrb[0].mxu0 %v3292
  %v3403 = vpop.f32.mrb[0].mxu0
  %v3404 = vadd.f32 0.0, %v3403
  %v3405 = vpop.f32.mrb[0].mxu0
  %v3406 = vpop.f32.mrb[0].mxu0
  %v3407 = vadd.f32 0.0, %v3406
  %v3408 = vpop.f32.mrb[0].mxu0
  %3409 = vdwg.mxu0
  %v3410 = vsel %vm1388, %v3404, 0.0
  %v3411 = vsel %vm1388, %v3407, 0.0
  %v3412 = vadd.f32 %v3410, %v3411
  %v3413 = vrot.slane %v3412, 4
  %v3414 = vadd.f32 %v3412, %v3413
  %v3415 = vrot.slane %v3414, 2
  %v3416 = vadd.f32 %v3414, %v3415
  %v3417 = vrot.slane %v3416, 1
  %v3418 = vadd.f32 %v3416, %v3417
  %v3419 = vmul.f32 %v3404, %v3404
  %v3420 = vmul.f32 %v3407, %v3407
  %v3421 = vsel %vm1388, %v3419, 0.0
  %v3422 = vsel %vm1388, %v3420, 0.0
  %v3423 = vadd.f32 %v3421, %v3422
  %v3424 = vrot.slane %v3423, 4
  %v3425 = vadd.f32 %v3423, %v3424
  %v3426 = vrot.slane %v3425, 2
  %v3427 = vadd.f32 %v3425, %v3426
  %v3428 = vrot.slane %v3427, 1
  %v3429 = vadd.f32 %v3427, %v3428
  %v3430 = vmul.f32 %v3418, 0.0625
  %v3431 = vmul.f32 %v3429, 0.0625
  %v3432 = vmul.f32 %v3430, %v3430
  %v3433 = vsub.f32 %v3431, %v3432
  %v3434 = vld [vmem:[%s17] sm:$0x3]
  %v3435 = vsub.f32 %v3404, %v3430
  %v3436 = vsub.f32 %v3407, %v3430
  %v3437 = vadd.f32 %v3433, 1e-05
  %v3438 = vrsqrt.pop %v3437
  %v3439 = vmul.f32 %v3435, %v3438
  %v3440 = vmul.f32 %v3436, %v3438
  %v3441 = vlaneseq
  %v3442 = vshrl.u32 %v3441, 7
  %v3443 = vsub.s32 0, %v3442
  %v3444 = vrot.slane %v3434, %v3443
  %v3445 = vmul.f32 %v3439, %v3444
  %v3446 = vmul.f32 %v3440, %v3444
  %v3447 = vlaneseq
  %v3448 = vshrl.u32 %v3447, 7
  %v3449 = vsub.s32 1, %v3448
  %v3450 = vrot.slane %v3434, %v3449
  %v3451 = vadd.f32 %v3445, %v3450
  %v3452 = vadd.f32 %v3446, %v3450
  %vm3453 = vcmp.ge.f32.partialorder %v3451, 0.0
  %vm3454 = vcmp.ge.f32.partialorder %v3452, 0.0
  %v3455 = vmul.f32 %v3451, 0.01
  %v3456 = vmul.f32 %v3452, 0.01
  %v3457 = vsel %vm3453, %v3451, %v3455
  %v3458 = vsel %vm3454, %v3452, %v3456
  %v3459 = vrot.slane %v3457, 3
  %v3460 = vrot.slane %v3458, 3
  %vm3461 = vcmp.lt.s32.totalorder %v1677, 5
  %v3462 = vsel %vm3461, %v3459, %v3460
  %v3463 = vsel %vm3461, %v3460, %v3459
  %v3464 = vld [vmem:[%s5] sm:$0xff]
  %v3465 = vld [vmem:[%s5 + $0x8] sm:$0xff]
  %3467 = vset.pattern.permute.xlu0 0
  %3468 = vperm.xlu0 %3467, %v3464
  %v3469 = vpop.permute.xlu0 %3468
  %3472 = vset.pattern.permute.xlu0 0
  %3473 = vperm.xlu0 %3472, %v3465
  %v3474 = vpop.permute.xlu0 %3473
  %v3476 = vmul.f32 %v3463, %v3469
  %v3477 = vmul.f32 %v3462, %v3474
  %v3478 = vrot.slane %v3457, 4
  %v3479 = vrot.slane %v3458, 4
  %vm3480 = vcmp.lt.s32.totalorder %v1677, 4
  %v3481 = vsel %vm3480, %v3478, %v3479
  %v3482 = vsel %vm3480, %v3479, %v3478
  %s3483 = scalar_lea.vmem %s5, 16
  %v3484 = vld [vmem:[%s3483] sm:$0xff]
  %v3485 = vld [vmem:[%s3483 + $0x8] sm:$0xff]
  %3487 = vset.pattern.permute.xlu0 0
  %3488 = vperm.xlu0 %3487, %v3484
  %v3489 = vpop.permute.xlu0 %3488
  %3492 = vset.pattern.permute.xlu0 0
  %3493 = vperm.xlu0 %3492, %v3485
  %v3494 = vpop.permute.xlu0 %3493
  %v3496 = vmul.f32 %v3482, %v3489
  %v3497 = vmul.f32 %v3481, %v3494
  %v3498 = vrot.slane %v3457, 5
  %v3499 = vrot.slane %v3458, 5
  %vm3500 = vcmp.lt.s32.totalorder %v1677, 3
  %v3501 = vsel %vm3500, %v3498, %v3499
  %v3502 = vsel %vm3500, %v3499, %v3498
  %s3503 = scalar_lea.vmem %s5, 32
  %v3504 = vld [vmem:[%s3503] sm:$0xff]
  %v3505 = vld [vmem:[%s3503 + $0x8] sm:$0xff]
  %3507 = vset.pattern.permute.xlu0 0
  %3508 = vperm.xlu0 %3507, %v3504
  %v3509 = vpop.permute.xlu0 %3508
  %3512 = vset.pattern.permute.xlu0 0
  %3513 = vperm.xlu0 %3512, %v3505
  %v3514 = vpop.permute.xlu0 %3513
  %v3516 = vmul.f32 %v3502, %v3509
  %v3517 = vmul.f32 %v3501, %v3514
  %v3518 = vrot.slane %v3457, 7
  %v3519 = vrot.slane %v3458, 7
  %v3520 = vsel %vm1678, %v3518, %v3519
  %v3521 = vsel %vm1678, %v3519, %v3518
  %s3522 = scalar_lea.vmem %s5, 48
  %v3523 = vld [vmem:[%s3522] sm:$0xff]
  %v3524 = vld [vmem:[%s3522 + $0x8] sm:$0xff]
  %3526 = vset.pattern.permute.xlu0 0
  %3527 = vperm.xlu0 %3526, %v3523
  %v3528 = vpop.permute.xlu0 %3527
  %3531 = vset.pattern.permute.xlu0 0
  %3532 = vperm.xlu0 %3531, %v3524
  %v3533 = vpop.permute.xlu0 %3532
  %v3535 = vmul.f32 %v3521, %v3528
  %v3536 = vmul.f32 %v3520, %v3533
  %s3537 = scalar_lea.vmem %s5, 64
  %v3538 = vld [vmem:[%s3537] sm:$0xff]
  %v3539 = vld [vmem:[%s3537 + $0x8] sm:$0xff]
  %3541 = vset.pattern.permute.xlu0 0
  %3542 = vperm.xlu0 %3541, %v3538
  %v3543 = vpop.permute.xlu0 %3542
  %3546 = vset.pattern.permute.xlu0 0
  %3547 = vperm.xlu0 %3546, %v3539
  %v3548 = vpop.permute.xlu0 %3547
  %v3550 = vmul.f32 %v3457, %v3543
  %v3551 = vmul.f32 %v3458, %v3548
  %v3552 = vrot.slane %v3457, 1
  %v3553 = vrot.slane %v3458, 1
  %v3554 = vsel %vm1808, %v3552, %v3553
  %v3555 = vsel %vm1808, %v3553, %v3552
  %s3556 = scalar_lea.vmem %s5, 80
  %v3557 = vld [vmem:[%s3556] sm:$0xff]
  %v3558 = vld [vmem:[%s3556 + $0x8] sm:$0xff]
  %3560 = vset.pattern.permute.xlu0 0
  %3561 = vperm.xlu0 %3560, %v3557
  %v3562 = vpop.permute.xlu0 %3561
  %3565 = vset.pattern.permute.xlu0 0
  %3566 = vperm.xlu0 %3565, %v3558
  %v3567 = vpop.permute.xlu0 %3566
  %v3569 = vmul.f32 %v3554, %v3562
  %v3570 = vmul.f32 %v3555, %v3567
  %s3571 = scalar_lea.vmem %s5, 96
  %v3572 = vld [vmem:[%s3571] sm:$0xff]
  %v3573 = vld [vmem:[%s3571 + $0x8] sm:$0xff]
  %3575 = vset.pattern.permute.xlu0 0
  %3576 = vperm.xlu0 %3575, %v3572
  %v3577 = vpop.permute.xlu0 %3576
  %3580 = vset.pattern.permute.xlu0 0
  %3581 = vperm.xlu0 %3580, %v3573
  %v3582 = vpop.permute.xlu0 %3581
  %v3584 = vmul.f32 %v3462, %v3577
  %v3585 = vmul.f32 %v3463, %v3582
  %s3586 = scalar_lea.vmem %s5, 112
  %v3587 = vld [vmem:[%s3586] sm:$0xff]
  %v3588 = vld [vmem:[%s3586 + $0x8] sm:$0xff]
  %3590 = vset.pattern.permute.xlu0 0
  %3591 = vperm.xlu0 %3590, %v3587
  %v3592 = vpop.permute.xlu0 %3591
  %3595 = vset.pattern.permute.xlu0 0
  %3596 = vperm.xlu0 %3595, %v3588
  %v3597 = vpop.permute.xlu0 %3596
  %v3599 = vmul.f32 %v3481, %v3592
  %v3600 = vmul.f32 %v3482, %v3597
  %s3601 = scalar_lea.vmem %s5, 128
  %v3602 = vld [vmem:[%s3601] sm:$0xff]
  %v3603 = vld [vmem:[%s3601 + $0x8] sm:$0xff]
  %3605 = vset.pattern.permute.xlu0 0
  %3606 = vperm.xlu0 %3605, %v3602
  %v3607 = vpop.permute.xlu0 %3606
  %3610 = vset.pattern.permute.xlu0 0
  %3611 = vperm.xlu0 %3610, %v3603
  %v3612 = vpop.permute.xlu0 %3611
  %v3614 = vmul.f32 %v3501, %v3607
  %v3615 = vmul.f32 %v3502, %v3612
  %3618 = vrot.lane.b32.xlu0 %v3496, 32
  %v3619 = vpop.permute.xlu0 %3618
  %3620 = vrot.lane.b32.xlu0 %v3497, 32
  %v3621 = vpop.permute.xlu0 %3620
  %3626 = vrot.lane.b32.xlu0 %v3516, 64
  %v3627 = vpop.permute.xlu0 %3626
  %3628 = vrot.lane.b32.xlu0 %v3517, 64
  %v3629 = vpop.permute.xlu0 %3628
  %3634 = vrot.lane.b32.xlu0 %v3535, 96
  %v3635 = vpop.permute.xlu0 %3634
  %3636 = vrot.lane.b32.xlu0 %v3536, 96
  %v3637 = vpop.permute.xlu0 %3636
  %3642 = vrot.lane.b32.xlu0 %v3569, 32
  %v3643 = vpop.permute.xlu0 %3642
  %3644 = vrot.lane.b32.xlu0 %v3570, 32
  %v3645 = vpop.permute.xlu0 %3644
  %3650 = vrot.lane.b32.xlu0 %v3584, 64
  %v3651 = vpop.permute.xlu0 %3650
  %3652 = vrot.lane.b32.xlu0 %v3585, 64
  %v3653 = vpop.permute.xlu0 %3652
  %3658 = vrot.lane.b32.xlu0 %v3599, 96
  %v3659 = vpop.permute.xlu0 %3658
  %3660 = vrot.lane.b32.xlu0 %v3600, 96
  %v3661 = vpop.permute.xlu0 %3660
  %v3664 = vsel %vm1388, %v3476, %v3619
  %v3665 = vsel %vm1388, %v3477, %v3621
  %v3666 = vsel %vm1424, %v3664, %v3627
  %v3667 = vsel %vm1424, %v3665, %v3629
  %v3668 = vsel %vm2481, %v3666, %v3635
  %v3669 = vsel %vm2481, %v3667, %v3637
  %v3670 = vsel %vm1388, %v3550, %v3643
  %v3671 = vsel %vm1388, %v3551, %v3645
  %v3672 = vsel %vm1424, %v3670, %v3651
  %v3673 = vsel %vm1424, %v3671, %v3653
  %v3674 = vsel %vm2481, %v3672, %v3659
  %v3675 = vsel %vm2481, %v3673, %v3661
  %v3676 = vpack.c.bf16 %v3669, %v3668
  %v3677 = vpack.c.bf16 %v3675, %v3674
  %v3678 = vpack.c.bf16 %v3615, %v3614
  %v3679 = vld [vmem:[%s9] sm:$0xf]
  %v3680 = vld [vmem:[%s9 + $0x4] sm:$0xf]
  %v3681 = vld [vmem:[%s9 + $0x8] sm:$0xf]
  %v3682 = vld [vmem:[%s9 + $0xc] sm:$0xf]
  %v3683 = vld [vmem:[%s9 + $0x10] sm:$0xf]
  %v3684 = vld [vmem:[%s9 + $0x14] sm:$0xf]
  %v3685 = vld [vmem:[%s9 + $0x18] sm:$0xf]
  %v3686 = vld [vmem:[%s9 + $0x1c] sm:$0xf]
  %v3687 = vld [vmem:[%s9 + $0x20] sm:$0xf]
  %v3688 = vld [vmem:[%s9 + $0x24] sm:$0xf]
  %v3689 = vld [vmem:[%s9 + $0x28] sm:$0xf]
  %v3690 = vld [vmem:[%s9 + $0x2c] sm:$0xf]
  %v3691 = vld [vmem:[%s9 + $0x30] sm:$0xf]
  %v3692 = vld [vmem:[%s9 + $0x34] sm:$0xf]
  %v3693 = vld [vmem:[%s9 + $0x38] sm:$0xf]
  %v3694 = vld [vmem:[%s9 + $0x3c] sm:$0xf]
  %v3695 = vld [vmem:[%s9 + $0x40] sm:$0xf]
  %v3696 = vld [vmem:[%s9 + $0x44] sm:$0xf]
  %v3697 = vld [vmem:[%s9 + $0x48] sm:$0xf]
  %v3698 = vld [vmem:[%s9 + $0x4c] sm:$0xf]
  %v3699 = vld [vmem:[%s9 + $0x50] sm:$0xf]
  %v3700 = vld [vmem:[%s9 + $0x54] sm:$0xf]
  %v3701 = vld [vmem:[%s9 + $0x58] sm:$0xf]
  %v3702 = vld [vmem:[%s9 + $0x5c] sm:$0xf]
  %v3703 = vld [vmem:[%s9 + $0x60] sm:$0xf]
  %v3704 = vld [vmem:[%s9 + $0x64] sm:$0xf]
  %v3705 = vld [vmem:[%s9 + $0x68] sm:$0xf]
  %v3706 = vld [vmem:[%s9 + $0x6c] sm:$0xf]
  %v3707 = vld [vmem:[%s9 + $0x70] sm:$0xf]
  %v3708 = vld [vmem:[%s9 + $0x74] sm:$0xf]
  %v3709 = vld [vmem:[%s9 + $0x78] sm:$0xf]
  %v3710 = vld [vmem:[%s9 + $0x7c] sm:$0xf]
  %v3711 = vld [vmem:[%s9 + $0x80] sm:$0xf]
  %v3712 = vld [vmem:[%s9 + $0x84] sm:$0xf]
  %v3713 = vld [vmem:[%s9 + $0x88] sm:$0xf]
  %v3714 = vld [vmem:[%s9 + $0x8c] sm:$0xf]
  %v3751 = vunpack.c.l.b16 %v3679
  %v3752 = vunpack.c.l.b16 %v3680
  %v3753 = vunpack.c.l.b16 %v3681
  %v3754 = vunpack.c.l.b16 %v3682
  %v3755 = vunpack.c.l.b16 %v3683
  %v3756 = vunpack.c.l.b16 %v3684
  %v3757 = vunpack.c.l.b16 %v3685
  %v3758 = vunpack.c.l.b16 %v3686
  %v3759 = vunpack.c.l.b16 %v3687
  %v3760 = vunpack.c.l.b16 %v3688
  %v3761 = vunpack.c.l.b16 %v3689
  %v3762 = vunpack.c.l.b16 %v3690
  %v3763 = vunpack.c.l.b16 %v3691
  %v3764 = vunpack.c.l.b16 %v3692
  %v3765 = vunpack.c.l.b16 %v3693
  %v3766 = vunpack.c.l.b16 %v3694
  %v3767 = vunpack.c.l.b16 %v3695
  %v3768 = vunpack.c.l.b16 %v3696
  %v3769 = vunpack.c.l.b16 %v3697
  %v3770 = vunpack.c.l.b16 %v3698
  %v3771 = vunpack.c.l.b16 %v3699
  %v3772 = vunpack.c.l.b16 %v3700
  %v3773 = vunpack.c.l.b16 %v3701
  %v3774 = vunpack.c.l.b16 %v3702
  %v3775 = vunpack.c.l.b16 %v3703
  %v3776 = vunpack.c.l.b16 %v3704
  %v3777 = vunpack.c.l.b16 %v3705
  %v3778 = vunpack.c.l.b16 %v3706
  %v3779 = vunpack.c.l.b16 %v3707
  %v3780 = vunpack.c.l.b16 %v3708
  %v3781 = vunpack.c.l.b16 %v3709
  %v3782 = vunpack.c.l.b16 %v3710
  %v3783 = vunpack.c.l.b16 %v3711
  %v3784 = vunpack.c.l.b16 %v3712
  %v3785 = vunpack.c.l.b16 %v3713
  %v3786 = vunpack.c.l.b16 %v3714
  %v3787 = vpack.c.b16 %v3752, %v3751
  %v3788 = vpack.c.b16 %v3754, %v3753
  %v3789 = vpack.c.b16 %v3756, %v3755
  %v3790 = vpack.c.b16 %v3758, %v3757
  %v3791 = vpack.c.b16 %v3760, %v3759
  %v3792 = vpack.c.b16 %v3762, %v3761
  %v3793 = vpack.c.b16 %v3764, %v3763
  %v3794 = vpack.c.b16 %v3766, %v3765
  %v3795 = vpack.c.b16 %v3768, %v3767
  %v3796 = vpack.c.b16 %v3770, %v3769
  %v3797 = vpack.c.b16 %v3772, %v3771
  %v3798 = vpack.c.b16 %v3774, %v3773
  %v3799 = vpack.c.b16 %v3776, %v3775
  %v3800 = vpack.c.b16 %v3778, %v3777
  %v3801 = vpack.c.b16 %v3780, %v3779
  %v3802 = vpack.c.b16 %v3782, %v3781
  %v3803 = vpack.c.b16 %v3784, %v3783
  %v3804 = vpack.c.b16 %v3786, %v3785
  %v3824 = vsel %vm1388, %v3678, 0
  %3826 = vmatprep.subr.bf16.mxu0 0
  %3827 = vmatpush1.bf16.msra.mxu0 %v3787
  %3828 = vmatprep.subr.bf16.mxu0 0
  %3829 = vmatpush1.bf16.msra.mxu0 %v3788
  %3830 = vmatprep.subr.bf16.mxu0 0
  %3831 = vmatpush1.bf16.msra.mxu0 %v3789
  %3832 = vmatprep.subr.bf16.mxu0 0
  %3833 = vmatpush1.bf16.msra.mxu0 %v3790
  %3834 = vmatprep.subr.bf16.mxu0 0
  %3835 = vmatpush1.bf16.msra.mxu0 %v3791
  %3836 = vmatprep.subr.bf16.mxu0 0
  %3837 = vmatpush1.bf16.msra.mxu0 %v3792
  %3838 = vmatprep.subr.bf16.mxu0 0
  %3839 = vmatpush1.bf16.msra.mxu0 %v3793
  %3840 = vmatprep.subr.bf16.mxu0 0
  %3841 = vmatpush1.bf16.msra.mxu0 %v3794
  %3842 = vmatprep.subr.bf16.mxu0 0
  %3843 = vmatpush1.bf16.msra.mxu0 %v3795
  %3844 = vmatprep.subr.bf16.mxu0 0
  %3845 = vmatpush1.bf16.msra.mxu0 %v3796
  %3846 = vmatprep.subr.bf16.mxu0 0
  %3847 = vmatpush1.bf16.msra.mxu0 %v3797
  %3848 = vmatprep.subr.bf16.mxu0 0
  %3849 = vmatpush1.bf16.msra.mxu0 %v3798
  %3850 = vmatprep.subr.bf16.mxu0 0
  %3851 = vmatpush1.bf16.msra.mxu0 %v3799
  %3852 = vmatprep.subr.bf16.mxu0 0
  %3853 = vmatpush1.bf16.msra.mxu0 %v3800
  %3854 = vmatprep.subr.bf16.mxu0 0
  %3855 = vmatpush1.bf16.msra.mxu0 %v3801
  %3856 = vmatprep.subr.bf16.mxu0 0
  %3857 = vmatpush1.bf16.msra.mxu0 %v3802
  %3858 = vmatprep.mubr.bf16.mxu0 %v3677
  %3859 = vmatmul.mubr.bf16.gmra.mrb[0].mxu0 %v3676
  %v3860 = vpop.f32.mrb[0].mxu0
  %v3861 = vadd.f32 0.0, %v3860
  %v3862 = vpop.f32.mrb[0].mxu0
  %v3863 = vpop.f32.mrb[0].mxu0
  %v3864 = vadd.f32 0.0, %v3863
  %v3865 = vpop.f32.mrb[0].mxu0
  %3866 = vdwg.mxu0
  %3867 = vmatprep.subr.bf16.mxu0 0
  %3868 = vmatpush1.bf16.msra.mxu0 %v3803
  %3869 = vmatprep.subr.bf16.mxu0 0
  %3870 = vmatpush1.bf16.msra.mxu0 %v3804
  %3871 = vmatprep.subr.bf16.mxu0 0
  %3872 = vmatpush1.bf16.msra.mxu0 0
  %3873 = vmatprep.subr.bf16.mxu0 0
  %3874 = vmatpush1.bf16.msra.mxu0 0
  %3875 = vmatprep.subr.bf16.mxu0 0
  %3876 = vmatpush1.bf16.msra.mxu0 0
  %3877 = vmatprep.subr.bf16.mxu0 0
  %3878 = vmatpush1.bf16.msra.mxu0 0
  %3879 = vmatprep.subr.bf16.mxu0 0
  %3880 = vmatpush1.bf16.msra.mxu0 0
  %3881 = vmatprep.subr.bf16.mxu0 0
  %3882 = vmatpush1.bf16.msra.mxu0 0
  %3883 = vmatprep.subr.bf16.mxu0 0
  %3884 = vmatpush1.bf16.msra.mxu0 0
  %3885 = vmatprep.subr.bf16.mxu0 0
  %3886 = vmatpush1.bf16.msra.mxu0 0
  %3887 = vmatprep.subr.bf16.mxu0 0
  %3888 = vmatpush1.bf16.msra.mxu0 0
  %3889 = vmatprep.subr.bf16.mxu0 0
  %3890 = vmatpush1.bf16.msra.mxu0 0
  %3891 = vmatprep.subr.bf16.mxu0 0
  %3892 = vmatpush1.bf16.msra.mxu0 0
  %3893 = vmatprep.subr.bf16.mxu0 0
  %3894 = vmatpush1.bf16.msra.mxu0 0
  %3895 = vmatprep.subr.bf16.mxu0 0
  %3896 = vmatpush1.bf16.msra.mxu0 0
  %3897 = vmatprep.subr.bf16.mxu0 0
  %3898 = vmatpush1.bf16.msra.mxu0 0
  %3899 = vmatprep.mubr.bf16.mxu0 0
  %3900 = vmatmul.mubr.bf16.gmra.mrb[0].mxu0 %v3824
  %v3901 = vpop.f32.mrb[0].mxu0
  %v3902 = vadd.f32 %v3861, %v3901
  %v3903 = vpop.f32.mrb[0].mxu0
  %v3904 = vpop.f32.mrb[0].mxu0
  %v3905 = vadd.f32 %v3864, %v3904
  %v3906 = vpop.f32.mrb[0].mxu0
  %3907 = vdwg.mxu0
  %v3908 = vsel %vm1388, %v3902, 0.0
  %v3909 = vsel %vm1388, %v3905, 0.0
  %v3910 = vadd.f32 %v3908, %v3909
  %v3911 = vrot.slane %v3910, 4
  %v3912 = vadd.f32 %v3910, %v3911
  %v3913 = vrot.slane %v3912, 2
  %v3914 = vadd.f32 %v3912, %v3913
  %v3915 = vrot.slane %v3914, 1
  %v3916 = vadd.f32 %v3914, %v3915
  %v3917 = vmul.f32 %v3902, %v3902
  %v3918 = vmul.f32 %v3905, %v3905
  %v3919 = vsel %vm1388, %v3917, 0.0
  %v3920 = vsel %vm1388, %v3918, 0.0
  %v3921 = vadd.f32 %v3919, %v3920
  %v3922 = vrot.slane %v3921, 4
  %v3923 = vadd.f32 %v3921, %v3922
  %v3924 = vrot.slane %v3923, 2
  %v3925 = vadd.f32 %v3923, %v3924
  %v3926 = vrot.slane %v3925, 1
  %v3927 = vadd.f32 %v3925, %v3926
  %v3928 = vmul.f32 %v3916, 0.0625
  %v3929 = vmul.f32 %v3927, 0.0625
  %v3930 = vmul.f32 %v3928, %v3928
  %v3931 = vsub.f32 %v3929, %v3930
  %v3932 = vld [vmem:[%s18] sm:$0x3]
  %v3933 = vsub.f32 %v3902, %v3928
  %v3934 = vsub.f32 %v3905, %v3928
  %v3935 = vadd.f32 %v3931, 1e-05
  %v3936 = vrsqrt.pop %v3935
  %v3937 = vmul.f32 %v3933, %v3936
  %v3938 = vmul.f32 %v3934, %v3936
  %v3939 = vlaneseq
  %v3940 = vshrl.u32 %v3939, 7
  %v3941 = vsub.s32 0, %v3940
  %v3942 = vrot.slane %v3932, %v3941
  %v3943 = vmul.f32 %v3937, %v3942
  %v3944 = vmul.f32 %v3938, %v3942
  %v3945 = vlaneseq
  %v3946 = vshrl.u32 %v3945, 7
  %v3947 = vsub.s32 1, %v3946
  %v3948 = vrot.slane %v3932, %v3947
  %v3949 = vadd.f32 %v3943, %v3948
  %v3950 = vadd.f32 %v3944, %v3948
  %vm3951 = vcmp.ge.f32.partialorder %v3949, 0.0
  %vm3952 = vcmp.ge.f32.partialorder %v3950, 0.0
  %v3953 = vmul.f32 %v3949, 0.01
  %v3954 = vmul.f32 %v3950, 0.01
  %v3955 = vsel %vm3951, %v3949, %v3953
  %v3956 = vsel %vm3952, %v3950, %v3954
  %v3957 = vpack.c.bf16 %v3956, %v3955
  %v3958 = vld [vmem:[%s10] sm:$0xf]
  %v3959 = vld [vmem:[%s10 + $0x4] sm:$0xf]
  %v3960 = vld [vmem:[%s10 + $0x8] sm:$0xf]
  %v3961 = vld [vmem:[%s10 + $0xc] sm:$0xf]
  %v3966 = vunpack.c.l.b16 %v3958
  %v3967 = vunpack.c.l.b16 %v3959
  %v3968 = vunpack.c.l.b16 %v3960
  %v3969 = vunpack.c.l.b16 %v3961
  %v3970 = vpack.c.b16 %v3967, %v3966
  %v3971 = vpack.c.b16 %v3969, %v3968
  %v3975 = vsel %vm1388, %v3957, 0
  %3977 = vmatprep.subr.bf16.mxu0 0
  %3978 = vmatpush1.bf16.msra.mxu0 %v3970
  %3979 = vmatprep.subr.bf16.mxu0 0
  %3980 = vmatpush1.bf16.msra.mxu0 %v3971
  %3981 = vmatprep.subr.bf16.mxu0 0
  %3982 = vmatpush1.bf16.msra.mxu0 0
  %3983 = vmatprep.subr.bf16.mxu0 0
  %3984 = vmatpush1.bf16.msra.mxu0 0
  %3985 = vmatprep.subr.bf16.mxu0 0
  %3986 = vmatpush1.bf16.msra.mxu0 0
  %3987 = vmatprep.subr.bf16.mxu0 0
  %3988 = vmatpush1.bf16.msra.mxu0 0
  %3989 = vmatprep.subr.bf16.mxu0 0
  %3990 = vmatpush1.bf16.msra.mxu0 0
  %3991 = vmatprep.subr.bf16.mxu0 0
  %3992 = vmatpush1.bf16.msra.mxu0 0
  %3993 = vmatprep.subr.bf16.mxu0 0
  %3994 = vmatpush1.bf16.msra.mxu0 0
  %3995 = vmatprep.subr.bf16.mxu0 0
  %3996 = vmatpush1.bf16.msra.mxu0 0
  %3997 = vmatprep.subr.bf16.mxu0 0
  %3998 = vmatpush1.bf16.msra.mxu0 0
  %3999 = vmatprep.subr.bf16.mxu0 0
  %4000 = vmatpush1.bf16.msra.mxu0 0
  %4001 = vmatprep.subr.bf16.mxu0 0
  %4002 = vmatpush1.bf16.msra.mxu0 0
  %4003 = vmatprep.subr.bf16.mxu0 0
  %4004 = vmatpush1.bf16.msra.mxu0 0
  %4005 = vmatprep.subr.bf16.mxu0 0
  %4006 = vmatpush1.bf16.msra.mxu0 0
  %4007 = vmatprep.subr.bf16.mxu0 0
  %4008 = vmatpush1.bf16.msra.mxu0 0
  %4009 = vmatprep.mubr.bf16.mxu0 0
  %4010 = vmatmul.mubr.bf16.gmra.mrb[0].mxu0 %v3975
  %v4011 = vpop.f32.mrb[0].mxu0
  %v4012 = vadd.f32 0.0, %v4011
  %v4013 = vpop.f32.mrb[0].mxu0
  %v4014 = vpop.f32.mrb[0].mxu0
  %v4015 = vadd.f32 0.0, %v4014
  %v4016 = vpop.f32.mrb[0].mxu0
  %4017 = vdwg.mxu0
  %v4018 = vpack.c.bf16 %v4015, %v4012
  %s4019 = scalar_lea.vmem %s10, 16
  %v4020 = vld [vmem:[%s4019] sm:$0xf]
  %v4021 = vld [vmem:[%s4019 + $0x4] sm:$0xf]
  %v4022 = vld [vmem:[%s4019 + $0x8] sm:$0xf]
  %v4023 = vld [vmem:[%s4019 + $0xc] sm:$0xf]
  %v4028 = vunpack.c.l.b16 %v4020
  %v4029 = vunpack.c.l.b16 %v4021
  %v4030 = vunpack.c.l.b16 %v4022
  %v4031 = vunpack.c.l.b16 %v4023
  %v4032 = vpack.c.b16 %v4029, %v4028
  %v4033 = vpack.c.b16 %v4031, %v4030
  %4036 = vmatprep.subr.bf16.mxu0 0
  %4037 = vmatpush1.bf16.msra.mxu0 %v4032
  %4038 = vmatprep.subr.bf16.mxu0 0
  %4039 = vmatpush1.bf16.msra.mxu0 %v4033
  %4040 = vmatprep.subr.bf16.mxu0 0
  %4041 = vmatpush1.bf16.msra.mxu0 0
  %4042 = vmatprep.subr.bf16.mxu0 0
  %4043 = vmatpush1.bf16.msra.mxu0 0
  %4044 = vmatprep.subr.bf16.mxu0 0
  %4045 = vmatpush1.bf16.msra.mxu0 0
  %4046 = vmatprep.subr.bf16.mxu0 0
  %4047 = vmatpush1.bf16.msra.mxu0 0
  %4048 = vmatprep.subr.bf16.mxu0 0
  %4049 = vmatpush1.bf16.msra.mxu0 0
  %4050 = vmatprep.subr.bf16.mxu0 0
  %4051 = vmatpush1.bf16.msra.mxu0 0
  %4052 = vmatprep.subr.bf16.mxu0 0
  %4053 = vmatpush1.bf16.msra.mxu0 0
  %4054 = vmatprep.subr.bf16.mxu0 0
  %4055 = vmatpush1.bf16.msra.mxu0 0
  %4056 = vmatprep.subr.bf16.mxu0 0
  %4057 = vmatpush1.bf16.msra.mxu0 0
  %4058 = vmatprep.subr.bf16.mxu0 0
  %4059 = vmatpush1.bf16.msra.mxu0 0
  %4060 = vmatprep.subr.bf16.mxu0 0
  %4061 = vmatpush1.bf16.msra.mxu0 0
  %4062 = vmatprep.subr.bf16.mxu0 0
  %4063 = vmatpush1.bf16.msra.mxu0 0
  %4064 = vmatprep.subr.bf16.mxu0 0
  %4065 = vmatpush1.bf16.msra.mxu0 0
  %4066 = vmatprep.subr.bf16.mxu0 0
  %4067 = vmatpush1.bf16.msra.mxu0 0
  %4068 = vmatprep.mubr.bf16.mxu0 0
  %4069 = vmatmul.mubr.bf16.gmra.mrb[0].mxu0 %v3975
  %v4070 = vpop.f32.mrb[0].mxu0
  %v4071 = vadd.f32 0.0, %v4070
  %v4072 = vpop.f32.mrb[0].mxu0
  %v4073 = vpop.f32.mrb[0].mxu0
  %v4074 = vadd.f32 0.0, %v4073
  %v4075 = vpop.f32.mrb[0].mxu0
  %4076 = vdwg.mxu0
  %v4077 = vpack.c.bf16 %v4074, %v4071
  %s4078 = scalar_lea.vmem %s10, 32
  %v4079 = vld [vmem:[%s4078] sm:$0xf]
  %v4080 = vld [vmem:[%s4078 + $0x4] sm:$0xf]
  %v4081 = vld [vmem:[%s4078 + $0x8] sm:$0xf]
  %v4082 = vld [vmem:[%s4078 + $0xc] sm:$0xf]
  %v4087 = vunpack.c.l.b16 %v4079
  %v4088 = vunpack.c.l.b16 %v4080
  %v4089 = vunpack.c.l.b16 %v4081
  %v4090 = vunpack.c.l.b16 %v4082
  %v4091 = vpack.c.b16 %v4088, %v4087
  %v4092 = vpack.c.b16 %v4090, %v4089
  %4095 = vmatprep.subr.bf16.mxu0 0
  %4096 = vmatpush1.bf16.msra.mxu0 %v4091
  %4097 = vmatprep.subr.bf16.mxu0 0
  %4098 = vmatpush1.bf16.msra.mxu0 %v4092
  %4099 = vmatprep.subr.bf16.mxu0 0
  %4100 = vmatpush1.bf16.msra.mxu0 0
  %4101 = vmatprep.subr.bf16.mxu0 0
  %4102 = vmatpush1.bf16.msra.mxu0 0
  %4103 = vmatprep.subr.bf16.mxu0 0
  %4104 = vmatpush1.bf16.msra.mxu0 0
  %4105 = vmatprep.subr.bf16.mxu0 0
  %4106 = vmatpush1.bf16.msra.mxu0 0
  %4107 = vmatprep.subr.bf16.mxu0 0
  %4108 = vmatpush1.bf16.msra.mxu0 0
  %4109 = vmatprep.subr.bf16.mxu0 0
  %4110 = vmatpush1.bf16.msra.mxu0 0
  %4111 = vmatprep.subr.bf16.mxu0 0
  %4112 = vmatpush1.bf16.msra.mxu0 0
  %4113 = vmatprep.subr.bf16.mxu0 0
  %4114 = vmatpush1.bf16.msra.mxu0 0
  %4115 = vmatprep.subr.bf16.mxu0 0
  %4116 = vmatpush1.bf16.msra.mxu0 0
  %4117 = vmatprep.subr.bf16.mxu0 0
  %4118 = vmatpush1.bf16.msra.mxu0 0
  %4119 = vmatprep.subr.bf16.mxu0 0
  %4120 = vmatpush1.bf16.msra.mxu0 0
  %4121 = vmatprep.subr.bf16.mxu0 0
  %4122 = vmatpush1.bf16.msra.mxu0 0
  %4123 = vmatprep.subr.bf16.mxu0 0
  %4124 = vmatpush1.bf16.msra.mxu0 0
  %4125 = vmatprep.subr.bf16.mxu0 0
  %4126 = vmatpush1.bf16.msra.mxu0 0
  %4127 = vmatprep.mubr.bf16.mxu0 0
  %4128 = vmatmul.mubr.bf16.gmra.mrb[0].mxu0 %v3975
  %v4129 = vpop.f32.mrb[0].mxu0
  %v4130 = vadd.f32 0.0, %v4129
  %v4131 = vpop.f32.mrb[0].mxu0
  %v4132 = vpop.f32.mrb[0].mxu0
  %v4133 = vadd.f32 0.0, %v4132
  %v4134 = vpop.f32.mrb[0].mxu0
  %4135 = vdwg.mxu0
  %v4136 = vpack.c.bf16 %v4133, %v4130
  %s4137 = scalar_lea.vmem %s10, 48
  %v4138 = vld [vmem:[%s4137] sm:$0xf]
  %v4139 = vld [vmem:[%s4137 + $0x4] sm:$0xf]
  %v4140 = vld [vmem:[%s4137 + $0x8] sm:$0xf]
  %v4141 = vld [vmem:[%s4137 + $0xc] sm:$0xf]
  %v4146 = vunpack.c.l.b16 %v4138
  %v4147 = vunpack.c.l.b16 %v4139
  %v4148 = vunpack.c.l.b16 %v4140
  %v4149 = vunpack.c.l.b16 %v4141
  %v4150 = vpack.c.b16 %v4147, %v4146
  %v4151 = vpack.c.b16 %v4149, %v4148
  %4154 = vmatprep.subr.bf16.mxu0 0
  %4155 = vmatpush1.bf16.msra.mxu0 %v4150
  %4156 = vmatprep.subr.bf16.mxu0 0
  %4157 = vmatpush1.bf16.msra.mxu0 %v4151
  %4158 = vmatprep.subr.bf16.mxu0 0
  %4159 = vmatpush1.bf16.msra.mxu0 0
  %4160 = vmatprep.subr.bf16.mxu0 0
  %4161 = vmatpush1.bf16.msra.mxu0 0
  %4162 = vmatprep.subr.bf16.mxu0 0
  %4163 = vmatpush1.bf16.msra.mxu0 0
  %4164 = vmatprep.subr.bf16.mxu0 0
  %4165 = vmatpush1.bf16.msra.mxu0 0
  %4166 = vmatprep.subr.bf16.mxu0 0
  %4167 = vmatpush1.bf16.msra.mxu0 0
  %4168 = vmatprep.subr.bf16.mxu0 0
  %4169 = vmatpush1.bf16.msra.mxu0 0
  %4170 = vmatprep.subr.bf16.mxu0 0
  %4171 = vmatpush1.bf16.msra.mxu0 0
  %4172 = vmatprep.subr.bf16.mxu0 0
  %4173 = vmatpush1.bf16.msra.mxu0 0
  %4174 = vmatprep.subr.bf16.mxu0 0
  %4175 = vmatpush1.bf16.msra.mxu0 0
  %4176 = vmatprep.subr.bf16.mxu0 0
  %4177 = vmatpush1.bf16.msra.mxu0 0
  %4178 = vmatprep.subr.bf16.mxu0 0
  %4179 = vmatpush1.bf16.msra.mxu0 0
  %4180 = vmatprep.subr.bf16.mxu0 0
  %4181 = vmatpush1.bf16.msra.mxu0 0
  %4182 = vmatprep.subr.bf16.mxu0 0
  %4183 = vmatpush1.bf16.msra.mxu0 0
  %4184 = vmatprep.subr.bf16.mxu0 0
  %4185 = vmatpush1.bf16.msra.mxu0 0
  %4186 = vmatprep.mubr.bf16.mxu0 0
  %4187 = vmatmul.mubr.bf16.gmra.mrb[0].mxu0 %v3975
  %v4188 = vpop.f32.mrb[0].mxu0
  %v4189 = vadd.f32 0.0, %v4188
  %v4190 = vpop.f32.mrb[0].mxu0
  %v4191 = vpop.f32.mrb[0].mxu0
  %v4192 = vadd.f32 0.0, %v4191
  %v4193 = vpop.f32.mrb[0].mxu0
  %4194 = vdwg.mxu0
  %v4195 = vpack.c.bf16 %v4192, %v4189
  %v4196 = vld [vmem:[%s3] sm:$0xf]
  %v4197 = vld [vmem:[%s3 + $0x4] sm:$0xf]
  %v4198 = vld [vmem:[%s3 + $0x8] sm:$0xf]
  %v4199 = vld [vmem:[%s3 + $0xc] sm:$0xf]
  %v4200 = vld [vmem:[%s3 + $0x10] sm:$0xf]
  %v4201 = vld [vmem:[%s3 + $0x14] sm:$0xf]
  %v4202 = vld [vmem:[%s3 + $0x18] sm:$0xf]
  %v4203 = vld [vmem:[%s3 + $0x1c] sm:$0xf]
  %v4212 = vunpack.c.l.b16 %v4196
  %v4213 = vunpack.c.l.b16 %v4197
  %v4214 = vunpack.c.l.b16 %v4198
  %v4215 = vunpack.c.l.b16 %v4199
  %v4216 = vunpack.c.l.b16 %v4200
  %v4217 = vunpack.c.l.b16 %v4201
  %v4218 = vunpack.c.l.b16 %v4202
  %v4219 = vunpack.c.l.b16 %v4203
  %v4220 = vpack.c.b16 %v4213, %v4212
  %v4221 = vpack.c.b16 %v4215, %v4214
  %v4222 = vpack.c.b16 %v4217, %v4216
  %v4223 = vpack.c.b16 %v4219, %v4218
  %v4225 = vsel %vm1424, %v4220, 0
  %v4228 = vsel %vm1424, %v4221, 0
  %v4231 = vsel %vm1424, %v4222, 0
  %v4234 = vsel %vm1424, %v4223, 0
  %4236 = vmatprep.subr.bf16.mxu0 0
  %4237 = vmatpush1.bf16.msra.mxu0 %v4018
  %4238 = vmatprep.subr.bf16.mxu0 0
  %4239 = vmatpush1.bf16.msra.mxu0 %v4077
  %4240 = vmatprep.subr.bf16.mxu0 0
  %4241 = vmatpush1.bf16.msra.mxu0 %v4136
  %4242 = vmatprep.subr.bf16.mxu0 0
  %4243 = vmatpush1.bf16.msra.mxu0 %v4195
  %4244 = vmatprep.subr.bf16.mxu0 0
  %4245 = vmatpush1.bf16.msra.mxu0 0
  %4246 = vmatprep.subr.bf16.mxu0 0
  %4247 = vmatpush1.bf16.msra.mxu0 0
  %4248 = vmatprep.subr.bf16.mxu0 0
  %4249 = vmatpush1.bf16.msra.mxu0 0
  %4250 = vmatprep.subr.bf16.mxu0 0
  %4251 = vmatpush1.bf16.msra.mxu0 0
  %4252 = vmatprep.subr.bf16.mxu0 0
  %4253 = vmatpush1.bf16.msra.mxu0 0
  %4254 = vmatprep.subr.bf16.mxu0 0
  %4255 = vmatpush1.bf16.msra.mxu0 0
  %4256 = vmatprep.subr.bf16.mxu0 0
  %4257 = vmatpush1.bf16.msra.mxu0 0
  %4258 = vmatprep.subr.bf16.mxu0 0
  %4259 = vmatpush1.bf16.msra.mxu0 0
  %4260 = vmatprep.subr.bf16.mxu0 0
  %4261 = vmatpush1.bf16.msra.mxu0 0
  %4262 = vmatprep.subr.bf16.mxu0 0
  %4263 = vmatpush1.bf16.msra.mxu0 0
  %4264 = vmatprep.subr.bf16.mxu0 0
  %4265 = vmatpush1.bf16.msra.mxu0 0
  %4266 = vmatprep.subr.bf16.mxu0 0
  %4267 = vmatpush1.bf16.msra.mxu0 0
  %4268 = vmatprep.mubr.bf16.mxu0 0
  %4269 = vmatmul.mubr.bf16.gmra.mrb[0].mxu0 %v4225
  %v4270 = vpop.f32.mrb[0].mxu0
  %v4271 = vadd.f32 0.0, %v4270
  %v4272 = vpop.f32.mrb[0].mxu0
  %v4273 = vpop.f32.mrb[0].mxu0
  %v4274 = vadd.f32 0.0, %v4273
  %v4275 = vpop.f32.mrb[0].mxu0
  %4276 = vmatprep.mubr.bf16.mxu0 0
  %4277 = vmatmul.mubr.bf16.gmra.mrb[0].mxu0 %v4228
  %v4278 = vpop.f32.mrb[0].mxu0
  %v4279 = vadd.f32 0.0, %v4278
  %v4280 = vpop.f32.mrb[0].mxu0
  %v4281 = vpop.f32.mrb[0].mxu0
  %v4282 = vadd.f32 0.0, %v4281
  %v4283 = vpop.f32.mrb[0].mxu0
  %4284 = vmatprep.mubr.bf16.mxu0 0
  %4285 = vmatmul.mubr.bf16.gmra.mrb[0].mxu0 %v4231
  %v4286 = vpop.f32.mrb[0].mxu0
  %v4287 = vadd.f32 0.0, %v4286
  %v4288 = vpop.f32.mrb[0].mxu0
  %v4289 = vpop.f32.mrb[0].mxu0
  %v4290 = vadd.f32 0.0, %v4289
  %v4291 = vpop.f32.mrb[0].mxu0
  %4292 = vmatprep.mubr.bf16.mxu0 0
  %4293 = vmatmul.mubr.bf16.gmra.mrb[0].mxu0 %v4234
  %v4294 = vpop.f32.mrb[0].mxu0
  %v4295 = vadd.f32 0.0, %v4294
  %v4296 = vpop.f32.mrb[0].mxu0
  %v4297 = vpop.f32.mrb[0].mxu0
  %v4298 = vadd.f32 0.0, %v4297
  %v4299 = vpop.f32.mrb[0].mxu0
  %4300 = vdwg.mxu0
  %v4301 = vrot.slane %v4271, 7
  %v4302 = vrot.slane %v4274, 7
  %v4303 = vrot.slane %v4279, 7
  %v4304 = vrot.slane %v4282, 7
  %v4305 = vrot.slane %v4287, 7
  %v4306 = vrot.slane %v4290, 7
  %v4307 = vrot.slane %v4295, 7
  %v4308 = vrot.slane %v4298, 7
  %v4309 = vsel %vm1678, %v4307, %v4308
  %v4310 = vsel %vm1678, %v4306, %v4307
  %v4311 = vsel %vm1678, %v4305, %v4306
  %v4312 = vsel %vm1678, %v4304, %v4305
  %v4313 = vsel %vm1678, %v4303, %v4304
  %v4314 = vsel %vm1678, %v4302, %v4303
  %v4315 = vsel %vm1678, %v4301, %v4302
  %v4316 = vsel %vm1678, %v4308, %v4301
  %v4317 = vmul.f32 %v4309, %v1698
  %v4318 = vmul.f32 %v4316, %v1703
  %v4319 = vmul.f32 %v4315, %v1708
  %v4320 = vmul.f32 %v4314, %v1713
  %v4321 = vmul.f32 %v4313, %v1718
  %v4322 = vmul.f32 %v4312, %v1723
  %v4323 = vmul.f32 %v4311, %v1728
  %v4324 = vmul.f32 %v4310, %v1733
  %v4325 = vmul.f32 %v4298, %v1755
  %v4326 = vmul.f32 %v4271, %v1760
  %v4327 = vmul.f32 %v4274, %v1765
  %v4328 = vmul.f32 %v4279, %v1770
  %v4329 = vmul.f32 %v4282, %v1775
  %v4330 = vmul.f32 %v4287, %v1780
  %v4331 = vmul.f32 %v4290, %v1785
  %v4332 = vmul.f32 %v4295, %v1790
  %v4333 = vrot.slane %v4271, 1
  %v4334 = vrot.slane %v4274, 1
  %v4335 = vrot.slane %v4279, 1
  %v4336 = vrot.slane %v4282, 1
  %v4337 = vrot.slane %v4287, 1
  %v4338 = vrot.slane %v4290, 1
  %v4339 = vrot.slane %v4295, 1
  %v4340 = vrot.slane %v4298, 1
  %v4341 = vsel %vm1808, %v4339, %v4340
  %v4342 = vsel %vm1808, %v4338, %v4339
  %v4343 = vsel %vm1808, %v4337, %v4338
  %v4344 = vsel %vm1808, %v4336, %v4337
  %v4345 = vsel %vm1808, %v4335, %v4336
  %v4346 = vsel %vm1808, %v4334, %v4335
  %v4347 = vsel %vm1808, %v4333, %v4334
  %v4348 = vsel %vm1808, %v4340, %v4333
  %v4349 = vmul.f32 %v4348, %v1829
  %v4350 = vmul.f32 %v4347, %v1834
  %v4351 = vmul.f32 %v4346, %v1839
  %v4352 = vmul.f32 %v4345, %v1844
  %v4353 = vmul.f32 %v4344, %v1849
  %v4354 = vmul.f32 %v4343, %v1854
  %v4355 = vmul.f32 %v4342, %v1859
  %v4356 = vmul.f32 %v4341, %v1864
  %v4357 = vmul.f32 %v4316, %v1886
  %v4358 = vmul.f32 %v4315, %v1891
  %v4359 = vmul.f32 %v4314, %v1896
  %v4360 = vmul.f32 %v4313, %v1901
  %v4361 = vmul.f32 %v4312, %v1906
  %v4362 = vmul.f32 %v4311, %v1911
  %v4363 = vmul.f32 %v4310, %v1916
  %v4364 = vmul.f32 %v4309, %v1921
  %v4365 = vmul.f32 %v4271, %v1943
  %v4366 = vmul.f32 %v4274, %v1948
  %v4367 = vmul.f32 %v4279, %v1953
  %v4368 = vmul.f32 %v4282, %v1958
  %v4369 = vmul.f32 %v4287, %v1963
  %v4370 = vmul.f32 %v4290, %v1968
  %v4371 = vmul.f32 %v4295, %v1973
  %v4372 = vmul.f32 %v4298, %v1978
  %v4373 = vmul.f32 %v4347, %v2000
  %v4374 = vmul.f32 %v4346, %v2005
  %v4375 = vmul.f32 %v4345, %v2010
  %v4376 = vmul.f32 %v4344, %v2015
  %v4377 = vmul.f32 %v4343, %v2020
  %v4378 = vmul.f32 %v4342, %v2025
  %v4379 = vmul.f32 %v4341, %v2030
  %v4380 = vmul.f32 %v4348, %v2035
  %v4381 = vmul.f32 %v4315, %v2057
  %v4382 = vmul.f32 %v4314, %v2062
  %v4383 = vmul.f32 %v4313, %v2067
  %v4384 = vmul.f32 %v4312, %v2072
  %v4385 = vmul.f32 %v4311, %v2077
  %v4386 = vmul.f32 %v4310, %v2082
  %v4387 = vmul.f32 %v4309, %v2087
  %v4388 = vmul.f32 %v4316, %v2092
  %v4389 = vmul.f32 %v4274, %v2114
  %v4390 = vmul.f32 %v4279, %v2119
  %v4391 = vmul.f32 %v4282, %v2124
  %v4392 = vmul.f32 %v4287, %v2129
  %v4393 = vmul.f32 %v4290, %v2134
  %v4394 = vmul.f32 %v4295, %v2139
  %v4395 = vmul.f32 %v4298, %v2144
  %v4396 = vmul.f32 %v4271, %v2149
  %v4397 = vmul.f32 %v4346, %v2171
  %v4398 = vmul.f32 %v4345, %v2176
  %v4399 = vmul.f32 %v4344, %v2181
  %v4400 = vmul.f32 %v4343, %v2186
  %v4401 = vmul.f32 %v4342, %v2191
  %v4402 = vmul.f32 %v4341, %v2196
  %v4403 = vmul.f32 %v4348, %v2201
  %v4404 = vmul.f32 %v4347, %v2206
  %4413 = vrot.lane.b32.xlu0 %v4325, 16
  %v4414 = vpop.permute.xlu0 %4413
  %4415 = vrot.lane.b32.xlu0 %v4326, 16
  %v4416 = vpop.permute.xlu0 %4415
  %4417 = vrot.lane.b32.xlu0 %v4327, 16
  %v4418 = vpop.permute.xlu0 %4417
  %4419 = vrot.lane.b32.xlu0 %v4328, 16
  %v4420 = vpop.permute.xlu0 %4419
  %4421 = vrot.lane.b32.xlu0 %v4329, 16
  %v4422 = vpop.permute.xlu0 %4421
  %4423 = vrot.lane.b32.xlu0 %v4330, 16
  %v4424 = vpop.permute.xlu0 %4423
  %4425 = vrot.lane.b32.xlu0 %v4331, 16
  %v4426 = vpop.permute.xlu0 %4425
  %4427 = vrot.lane.b32.xlu0 %v4332, 16
  %v4428 = vpop.permute.xlu0 %4427
  %4445 = vrot.lane.b32.xlu0 %v4349, 32
  %v4446 = vpop.permute.xlu0 %4445
  %4447 = vrot.lane.b32.xlu0 %v4350, 32
  %v4448 = vpop.permute.xlu0 %4447
  %4449 = vrot.lane.b32.xlu0 %v4351, 32
  %v4450 = vpop.permute.xlu0 %4449
  %4451 = vrot.lane.b32.xlu0 %v4352, 32
  %v4452 = vpop.permute.xlu0 %4451
  %4453 = vrot.lane.b32.xlu0 %v4353, 32
  %v4454 = vpop.permute.xlu0 %4453
  %4455 = vrot.lane.b32.xlu0 %v4354, 32
  %v4456 = vpop.permute.xlu0 %4455
  %4457 = vrot.lane.b32.xlu0 %v4355, 32
  %v4458 = vpop.permute.xlu0 %4457
  %4459 = vrot.lane.b32.xlu0 %v4356, 32
  %v4460 = vpop.permute.xlu0 %4459
  %4477 = vrot.lane.b32.xlu0 %v4357, 48
  %v4478 = vpop.permute.xlu0 %4477
  %4479 = vrot.lane.b32.xlu0 %v4358, 48
  %v4480 = vpop.permute.xlu0 %4479
  %4481 = vrot.lane.b32.xlu0 %v4359, 48
  %v4482 = vpop.permute.xlu0 %4481
  %4483 = vrot.lane.b32.xlu0 %v4360, 48
  %v4484 = vpop.permute.xlu0 %4483
  %4485 = vrot.lane.b32.xlu0 %v4361, 48
  %v4486 = vpop.permute.xlu0 %4485
  %4487 = vrot.lane.b32.xlu0 %v4362, 48
  %v4488 = vpop.permute.xlu0 %4487
  %4489 = vrot.lane.b32.xlu0 %v4363, 48
  %v4490 = vpop.permute.xlu0 %4489
  %4491 = vrot.lane.b32.xlu0 %v4364, 48
  %v4492 = vpop.permute.xlu0 %4491
  %4509 = vrot.lane.b32.xlu0 %v4365, 64
  %v4510 = vpop.permute.xlu0 %4509
  %4511 = vrot.lane.b32.xlu0 %v4366, 64
  %v4512 = vpop.permute.xlu0 %4511
  %4513 = vrot.lane.b32.xlu0 %v4367, 64
  %v4514 = vpop.permute.xlu0 %4513
  %4515 = vrot.lane.b32.xlu0 %v4368, 64
  %v4516 = vpop.permute.xlu0 %4515
  %4517 = vrot.lane.b32.xlu0 %v4369, 64
  %v4518 = vpop.permute.xlu0 %4517
  %4519 = vrot.lane.b32.xlu0 %v4370, 64
  %v4520 = vpop.permute.xlu0 %4519
  %4521 = vrot.lane.b32.xlu0 %v4371, 64
  %v4522 = vpop.permute.xlu0 %4521
  %4523 = vrot.lane.b32.xlu0 %v4372, 64
  %v4524 = vpop.permute.xlu0 %4523
  %4541 = vrot.lane.b32.xlu0 %v4373, 80
  %v4542 = vpop.permute.xlu0 %4541
  %4543 = vrot.lane.b32.xlu0 %v4374, 80
  %v4544 = vpop.permute.xlu0 %4543
  %4545 = vrot.lane.b32.xlu0 %v4375, 80
  %v4546 = vpop.permute.xlu0 %4545
  %4547 = vrot.lane.b32.xlu0 %v4376, 80
  %v4548 = vpop.permute.xlu0 %4547
  %4549 = vrot.lane.b32.xlu0 %v4377, 80
  %v4550 = vpop.permute.xlu0 %4549
  %4551 = vrot.lane.b32.xlu0 %v4378, 80
  %v4552 = vpop.permute.xlu0 %4551
  %4553 = vrot.lane.b32.xlu0 %v4379, 80
  %v4554 = vpop.permute.xlu0 %4553
  %4555 = vrot.lane.b32.xlu0 %v4380, 80
  %v4556 = vpop.permute.xlu0 %4555
  %4573 = vrot.lane.b32.xlu0 %v4381, 96
  %v4574 = vpop.permute.xlu0 %4573
  %4575 = vrot.lane.b32.xlu0 %v4382, 96
  %v4576 = vpop.permute.xlu0 %4575
  %4577 = vrot.lane.b32.xlu0 %v4383, 96
  %v4578 = vpop.permute.xlu0 %4577
  %4579 = vrot.lane.b32.xlu0 %v4384, 96
  %v4580 = vpop.permute.xlu0 %4579
  %4581 = vrot.lane.b32.xlu0 %v4385, 96
  %v4582 = vpop.permute.xlu0 %4581
  %4583 = vrot.lane.b32.xlu0 %v4386, 96
  %v4584 = vpop.permute.xlu0 %4583
  %4585 = vrot.lane.b32.xlu0 %v4387, 96
  %v4586 = vpop.permute.xlu0 %4585
  %4587 = vrot.lane.b32.xlu0 %v4388, 96
  %v4588 = vpop.permute.xlu0 %4587
  %4605 = vrot.lane.b32.xlu0 %v4389, 112
  %v4606 = vpop.permute.xlu0 %4605
  %4607 = vrot.lane.b32.xlu0 %v4390, 112
  %v4608 = vpop.permute.xlu0 %4607
  %4609 = vrot.lane.b32.xlu0 %v4391, 112
  %v4610 = vpop.permute.xlu0 %4609
  %4611 = vrot.lane.b32.xlu0 %v4392, 112
  %v4612 = vpop.permute.xlu0 %4611
  %4613 = vrot.lane.b32.xlu0 %v4393, 112
  %v4614 = vpop.permute.xlu0 %4613
  %4615 = vrot.lane.b32.xlu0 %v4394, 112
  %v4616 = vpop.permute.xlu0 %4615
  %4617 = vrot.lane.b32.xlu0 %v4395, 112
  %v4618 = vpop.permute.xlu0 %4617
  %4619 = vrot.lane.b32.xlu0 %v4396, 112
  %v4620 = vpop.permute.xlu0 %4619
  %v4629 = vsel %vm1370, %v4317, %v4414
  %v4630 = vsel %vm1370, %v4318, %v4416
  %v4631 = vsel %vm1370, %v4319, %v4418
  %v4632 = vsel %vm1370, %v4320, %v4420
  %v4633 = vsel %vm1370, %v4321, %v4422
  %v4634 = vsel %vm1370, %v4322, %v4424
  %v4635 = vsel %vm1370, %v4323, %v4426
  %v4636 = vsel %vm1370, %v4324, %v4428
  %v4637 = vsel %vm1388, %v4629, %v4446
  %v4638 = vsel %vm1388, %v4630, %v4448
  %v4639 = vsel %vm1388, %v4631, %v4450
  %v4640 = vsel %vm1388, %v4632, %v4452
  %v4641 = vsel %vm1388, %v4633, %v4454
  %v4642 = vsel %vm1388, %v4634, %v4456
  %v4643 = vsel %vm1388, %v4635, %v4458
  %v4644 = vsel %vm1388, %v4636, %v4460
  %v4645 = vsel %vm1406, %v4637, %v4478
  %v4646 = vsel %vm1406, %v4638, %v4480
  %v4647 = vsel %vm1406, %v4639, %v4482
  %v4648 = vsel %vm1406, %v4640, %v4484
  %v4649 = vsel %vm1406, %v4641, %v4486
  %v4650 = vsel %vm1406, %v4642, %v4488
  %v4651 = vsel %vm1406, %v4643, %v4490
  %v4652 = vsel %vm1406, %v4644, %v4492
  %v4653 = vsel %vm1424, %v4645, %v4510
  %v4654 = vsel %vm1424, %v4646, %v4512
  %v4655 = vsel %vm1424, %v4647, %v4514
  %v4656 = vsel %vm1424, %v4648, %v4516
  %v4657 = vsel %vm1424, %v4649, %v4518
  %v4658 = vsel %vm1424, %v4650, %v4520
  %v4659 = vsel %vm1424, %v4651, %v4522
  %v4660 = vsel %vm1424, %v4652, %v4524
  %v4661 = vsel %vm2472, %v4653, %v4542
  %v4662 = vsel %vm2472, %v4654, %v4544
  %v4663 = vsel %vm2472, %v4655, %v4546
  %v4664 = vsel %vm2472, %v4656, %v4548
  %v4665 = vsel %vm2472, %v4657, %v4550
  %v4666 = vsel %vm2472, %v4658, %v4552
  %v4667 = vsel %vm2472, %v4659, %v4554
  %v4668 = vsel %vm2472, %v4660, %v4556
  %v4669 = vsel %vm2481, %v4661, %v4574
  %v4670 = vsel %vm2481, %v4662, %v4576
  %v4671 = vsel %vm2481, %v4663, %v4578
  %v4672 = vsel %vm2481, %v4664, %v4580
  %v4673 = vsel %vm2481, %v4665, %v4582
  %v4674 = vsel %vm2481, %v4666, %v4584
  %v4675 = vsel %vm2481, %v4667, %v4586
  %v4676 = vsel %vm2481, %v4668, %v4588
  %v4677 = vsel %vm2490, %v4669, %v4606
  %v4678 = vsel %vm2490, %v4670, %v4608
  %v4679 = vsel %vm2490, %v4671, %v4610
  %v4680 = vsel %vm2490, %v4672, %v4612
  %v4681 = vsel %vm2490, %v4673, %v4614
  %v4682 = vsel %vm2490, %v4674, %v4616
  %v4683 = vsel %vm2490, %v4675, %v4618
  %v4684 = vsel %vm2490, %v4676, %v4620
  %v4685 = vpack.c.bf16 %v4678, %v4677
  %v4686 = vpack.c.bf16 %v4398, %v4397
  %v4687 = vpack.c.bf16 %v4680, %v4679
  %v4688 = vpack.c.bf16 %v4400, %v4399
  %v4689 = vpack.c.bf16 %v4682, %v4681
  %v4690 = vpack.c.bf16 %v4402, %v4401
  %v4691 = vpack.c.bf16 %v4684, %v4683
  %v4692 = vpack.c.bf16 %v4404, %v4403
  %v4693 = vrot.slane %v2769, 7
  %v4694 = vrot.slane %v2770, 7
  %v4695 = vrot.slane %v2771, 7
  %v4696 = vrot.slane %v2772, 7
  %v4697 = vrot.slane %v2773, 7
  %v4698 = vrot.slane %v2774, 7
  %v4699 = vrot.slane %v2775, 7
  %v4700 = vrot.slane %v2776, 7
  %v4701 = vsel %vm1678, %v4699, %v4700
  %v4702 = vsel %vm1678, %v4698, %v4699
  %v4703 = vsel %vm1678, %v4697, %v4698
  %v4704 = vsel %vm1678, %v4696, %v4697
  %v4705 = vsel %vm1678, %v4695, %v4696
  %v4706 = vsel %vm1678, %v4694, %v4695
  %v4707 = vsel %vm1678, %v4693, %v4694
  %v4708 = vsel %vm1678, %v4700, %v4693
  %v4709 = vmul.f32 %v4701, %v1698
  %v4710 = vmul.f32 %v4708, %v1703
  %v4711 = vmul.f32 %v4707, %v1708
  %v4712 = vmul.f32 %v4706, %v1713
  %v4713 = vmul.f32 %v4705, %v1718
  %v4714 = vmul.f32 %v4704, %v1723
  %v4715 = vmul.f32 %v4703, %v1728
  %v4716 = vmul.f32 %v4702, %v1733
  %v4717 = vmul.f32 %v2776, %v1755
  %v4718 = vmul.f32 %v2769, %v1760
  %v4719 = vmul.f32 %v2770, %v1765
  %v4720 = vmul.f32 %v2771, %v1770
  %v4721 = vmul.f32 %v2772, %v1775
  %v4722 = vmul.f32 %v2773, %v1780
  %v4723 = vmul.f32 %v2774, %v1785
  %v4724 = vmul.f32 %v2775, %v1790
  %v4725 = vrot.slane %v2769, 1
  %v4726 = vrot.slane %v2770, 1
  %v4727 = vrot.slane %v2771, 1
  %v4728 = vrot.slane %v2772, 1
  %v4729 = vrot.slane %v2773, 1
  %v4730 = vrot.slane %v2774, 1
  %v4731 = vrot.slane %v2775, 1
  %v4732 = vrot.slane %v2776, 1
  %v4733 = vsel %vm1808, %v4731, %v4732
  %v4734 = vsel %vm1808, %v4730, %v4731
  %v4735 = vsel %vm1808, %v4729, %v4730
  %v4736 = vsel %vm1808, %v4728, %v4729
  %v4737 = vsel %vm1808, %v4727, %v4728
  %v4738 = vsel %vm1808, %v4726, %v4727
  %v4739 = vsel %vm1808, %v4725, %v4726
  %v4740 = vsel %vm1808, %v4732, %v4725
  %v4741 = vmul.f32 %v4740, %v1829
  %v4742 = vmul.f32 %v4739, %v1834
  %v4743 = vmul.f32 %v4738, %v1839
  %v4744 = vmul.f32 %v4737, %v1844
  %v4745 = vmul.f32 %v4736, %v1849
  %v4746 = vmul.f32 %v4735, %v1854
  %v4747 = vmul.f32 %v4734, %v1859
  %v4748 = vmul.f32 %v4733, %v1864
  %v4749 = vmul.f32 %v4708, %v1886
  %v4750 = vmul.f32 %v4707, %v1891
  %v4751 = vmul.f32 %v4706, %v1896
  %v4752 = vmul.f32 %v4705, %v1901
  %v4753 = vmul.f32 %v4704, %v1906
  %v4754 = vmul.f32 %v4703, %v1911
  %v4755 = vmul.f32 %v4702, %v1916
  %v4756 = vmul.f32 %v4701, %v1921
  %v4757 = vmul.f32 %v2769, %v1943
  %v4758 = vmul.f32 %v2770, %v1948
  %v4759 = vmul.f32 %v2771, %v1953
  %v4760 = vmul.f32 %v2772, %v1958
  %v4761 = vmul.f32 %v2773, %v1963
  %v4762 = vmul.f32 %v2774, %v1968
  %v4763 = vmul.f32 %v2775, %v1973
  %v4764 = vmul.f32 %v2776, %v1978
  %v4765 = vmul.f32 %v4739, %v2000
  %v4766 = vmul.f32 %v4738, %v2005
  %v4767 = vmul.f32 %v4737, %v2010
  %v4768 = vmul.f32 %v4736, %v2015
  %v4769 = vmul.f32 %v4735, %v2020
  %v4770 = vmul.f32 %v4734, %v2025
  %v4771 = vmul.f32 %v4733, %v2030
  %v4772 = vmul.f32 %v4740, %v2035
  %v4773 = vmul.f32 %v4707, %v2057
  %v4774 = vmul.f32 %v4706, %v2062
  %v4775 = vmul.f32 %v4705, %v2067
  %v4776 = vmul.f32 %v4704, %v2072
  %v4777 = vmul.f32 %v4703, %v2077
  %v4778 = vmul.f32 %v4702, %v2082
  %v4779 = vmul.f32 %v4701, %v2087
  %v4780 = vmul.f32 %v4708, %v2092
  %v4781 = vmul.f32 %v2770, %v2114
  %v4782 = vmul.f32 %v2771, %v2119
  %v4783 = vmul.f32 %v2772, %v2124
  %v4784 = vmul.f32 %v2773, %v2129
  %v4785 = vmul.f32 %v2774, %v2134
  %v4786 = vmul.f32 %v2775, %v2139
  %v4787 = vmul.f32 %v2776, %v2144
  %v4788 = vmul.f32 %v2769, %v2149
  %v4789 = vmul.f32 %v4738, %v2171
  %v4790 = vmul.f32 %v4737, %v2176
  %v4791 = vmul.f32 %v4736, %v2181
  %v4792 = vmul.f32 %v4735, %v2186
  %v4793 = vmul.f32 %v4734, %v2191
  %v4794 = vmul.f32 %v4733, %v2196
  %v4795 = vmul.f32 %v4740, %v2201
  %v4796 = vmul.f32 %v4739, %v2206
  %4805 = vrot.lane.b32.xlu0 %v4717, 16
  %v4806 = vpop.permute.xlu0 %4805
  %4807 = vrot.lane.b32.xlu0 %v4718, 16
  %v4808 = vpop.permute.xlu0 %4807
  %4809 = vrot.lane.b32.xlu0 %v4719, 16
  %v4810 = vpop.permute.xlu0 %4809
  %4811 = vrot.lane.b32.xlu0 %v4720, 16
  %v4812 = vpop.permute.xlu0 %4811
  %4813 = vrot.lane.b32.xlu0 %v4721, 16
  %v4814 = vpop.permute.xlu0 %4813
  %4815 = vrot.lane.b32.xlu0 %v4722, 16
  %v4816 = vpop.permute.xlu0 %4815
  %4817 = vrot.lane.b32.xlu0 %v4723, 16
  %v4818 = vpop.permute.xlu0 %4817
  %4819 = vrot.lane.b32.xlu0 %v4724, 16
  %v4820 = vpop.permute.xlu0 %4819
  %4837 = vrot.lane.b32.xlu0 %v4741, 32
  %v4838 = vpop.permute.xlu0 %4837
  %4839 = vrot.lane.b32.xlu0 %v4742, 32
  %v4840 = vpop.permute.xlu0 %4839
  %4841 = vrot.lane.b32.xlu0 %v4743, 32
  %v4842 = vpop.permute.xlu0 %4841
  %4843 = vrot.lane.b32.xlu0 %v4744, 32
  %v4844 = vpop.permute.xlu0 %4843
  %4845 = vrot.lane.b32.xlu0 %v4745, 32
  %v4846 = vpop.permute.xlu0 %4845
  %4847 = vrot.lane.b32.xlu0 %v4746, 32
  %v4848 = vpop.permute.xlu0 %4847
  %4849 = vrot.lane.b32.xlu0 %v4747, 32
  %v4850 = vpop.permute.xlu0 %4849
  %4851 = vrot.lane.b32.xlu0 %v4748, 32
  %v4852 = vpop.permute.xlu0 %4851
  %4869 = vrot.lane.b32.xlu0 %v4749, 48
  %v4870 = vpop.permute.xlu0 %4869
  %4871 = vrot.lane.b32.xlu0 %v4750, 48
  %v4872 = vpop.permute.xlu0 %4871
  %4873 = vrot.lane.b32.xlu0 %v4751, 48
  %v4874 = vpop.permute.xlu0 %4873
  %4875 = vrot.lane.b32.xlu0 %v4752, 48
  %v4876 = vpop.permute.xlu0 %4875
  %4877 = vrot.lane.b32.xlu0 %v4753, 48
  %v4878 = vpop.permute.xlu0 %4877
  %4879 = vrot.lane.b32.xlu0 %v4754, 48
  %v4880 = vpop.permute.xlu0 %4879
  %4881 = vrot.lane.b32.xlu0 %v4755, 48
  %v4882 = vpop.permute.xlu0 %4881
  %4883 = vrot.lane.b32.xlu0 %v4756, 48
  %v4884 = vpop.permute.xlu0 %4883
  %4901 = vrot.lane.b32.xlu0 %v4757, 64
  %v4902 = vpop.permute.xlu0 %4901
  %4903 = vrot.lane.b32.xlu0 %v4758, 64
  %v4904 = vpop.permute.xlu0 %4903
  %4905 = vrot.lane.b32.xlu0 %v4759, 64
  %v4906 = vpop.permute.xlu0 %4905
  %4907 = vrot.lane.b32.xlu0 %v4760, 64
  %v4908 = vpop.permute.xlu0 %4907
  %4909 = vrot.lane.b32.xlu0 %v4761, 64
  %v4910 = vpop.permute.xlu0 %4909
  %4911 = vrot.lane.b32.xlu0 %v4762, 64
  %v4912 = vpop.permute.xlu0 %4911
  %4913 = vrot.lane.b32.xlu0 %v4763, 64
  %v4914 = vpop.permute.xlu0 %4913
  %4915 = vrot.lane.b32.xlu0 %v4764, 64
  %v4916 = vpop.permute.xlu0 %4915
  %4933 = vrot.lane.b32.xlu0 %v4765, 80
  %v4934 = vpop.permute.xlu0 %4933
  %4935 = vrot.lane.b32.xlu0 %v4766, 80
  %v4936 = vpop.permute.xlu0 %4935
  %4937 = vrot.lane.b32.xlu0 %v4767, 80
  %v4938 = vpop.permute.xlu0 %4937
  %4939 = vrot.lane.b32.xlu0 %v4768, 80
  %v4940 = vpop.permute.xlu0 %4939
  %4941 = vrot.lane.b32.xlu0 %v4769, 80
  %v4942 = vpop.permute.xlu0 %4941
  %4943 = vrot.lane.b32.xlu0 %v4770, 80
  %v4944 = vpop.permute.xlu0 %4943
  %4945 = vrot.lane.b32.xlu0 %v4771, 80
  %v4946 = vpop.permute.xlu0 %4945
  %4947 = vrot.lane.b32.xlu0 %v4772, 80
  %v4948 = vpop.permute.xlu0 %4947
  %4965 = vrot.lane.b32.xlu0 %v4773, 96
  %v4966 = vpop.permute.xlu0 %4965
  %4967 = vrot.lane.b32.xlu0 %v4774, 96
  %v4968 = vpop.permute.xlu0 %4967
  %4969 = vrot.lane.b32.xlu0 %v4775, 96
  %v4970 = vpop.permute.xlu0 %4969
  %4971 = vrot.lane.b32.xlu0 %v4776, 96
  %v4972 = vpop.permute.xlu0 %4971
  %4973 = vrot.lane.b32.xlu0 %v4777, 96
  %v4974 = vpop.permute.xlu0 %4973
  %4975 = vrot.lane.b32.xlu0 %v4778, 96
  %v4976 = vpop.permute.xlu0 %4975
  %4977 = vrot.lane.b32.xlu0 %v4779, 96
  %v4978 = vpop.permute.xlu0 %4977
  %4979 = vrot.lane.b32.xlu0 %v4780, 96
  %v4980 = vpop.permute.xlu0 %4979
  %4997 = vrot.lane.b32.xlu0 %v4781, 112
  %v4998 = vpop.permute.xlu0 %4997
  %4999 = vrot.lane.b32.xlu0 %v4782, 112
  %v5000 = vpop.permute.xlu0 %4999
  %5001 = vrot.lane.b32.xlu0 %v4783, 112
  %v5002 = vpop.permute.xlu0 %5001
  %5003 = vrot.lane.b32.xlu0 %v4784, 112
  %v5004 = vpop.permute.xlu0 %5003
  %5005 = vrot.lane.b32.xlu0 %v4785, 112
  %v5006 = vpop.permute.xlu0 %5005
  %5007 = vrot.lane.b32.xlu0 %v4786, 112
  %v5008 = vpop.permute.xlu0 %5007
  %5009 = vrot.lane.b32.xlu0 %v4787, 112
  %v5010 = vpop.permute.xlu0 %5009
  %5011 = vrot.lane.b32.xlu0 %v4788, 112
  %v5012 = vpop.permute.xlu0 %5011
  %v5021 = vsel %vm1370, %v4709, %v4806
  %v5022 = vsel %vm1370, %v4710, %v4808
  %v5023 = vsel %vm1370, %v4711, %v4810
  %v5024 = vsel %vm1370, %v4712, %v4812
  %v5025 = vsel %vm1370, %v4713, %v4814
  %v5026 = vsel %vm1370, %v4714, %v4816
  %v5027 = vsel %vm1370, %v4715, %v4818
  %v5028 = vsel %vm1370, %v4716, %v4820
  %v5029 = vsel %vm1388, %v5021, %v4838
  %v5030 = vsel %vm1388, %v5022, %v4840
  %v5031 = vsel %vm1388, %v5023, %v4842
  %v5032 = vsel %vm1388, %v5024, %v4844
  %v5033 = vsel %vm1388, %v5025, %v4846
  %v5034 = vsel %vm1388, %v5026, %v4848
  %v5035 = vsel %vm1388, %v5027, %v4850
  %v5036 = vsel %vm1388, %v5028, %v4852
  %v5037 = vsel %vm1406, %v5029, %v4870
  %v5038 = vsel %vm1406, %v5030, %v4872
  %v5039 = vsel %vm1406, %v5031, %v4874
  %v5040 = vsel %vm1406, %v5032, %v4876
  %v5041 = vsel %vm1406, %v5033, %v4878
  %v5042 = vsel %vm1406, %v5034, %v4880
  %v5043 = vsel %vm1406, %v5035, %v4882
  %v5044 = vsel %vm1406, %v5036, %v4884
  %v5045 = vsel %vm1424, %v5037, %v4902
  %v5046 = vsel %vm1424, %v5038, %v4904
  %v5047 = vsel %vm1424, %v5039, %v4906
  %v5048 = vsel %vm1424, %v5040, %v4908
  %v5049 = vsel %vm1424, %v5041, %v4910
  %v5050 = vsel %vm1424, %v5042, %v4912
  %v5051 = vsel %vm1424, %v5043, %v4914
  %v5052 = vsel %vm1424, %v5044, %v4916
  %v5053 = vsel %vm2472, %v5045, %v4934
  %v5054 = vsel %vm2472, %v5046, %v4936
  %v5055 = vsel %vm2472, %v5047, %v4938
  %v5056 = vsel %vm2472, %v5048, %v4940
  %v5057 = vsel %vm2472, %v5049, %v4942
  %v5058 = vsel %vm2472, %v5050, %v4944
  %v5059 = vsel %vm2472, %v5051, %v4946
  %v5060 = vsel %vm2472, %v5052, %v4948
  %v5061 = vsel %vm2481, %v5053, %v4966
  %v5062 = vsel %vm2481, %v5054, %v4968
  %v5063 = vsel %vm2481, %v5055, %v4970
  %v5064 = vsel %vm2481, %v5056, %v4972
  %v5065 = vsel %vm2481, %v5057, %v4974
  %v5066 = vsel %vm2481, %v5058, %v4976
  %v5067 = vsel %vm2481, %v5059, %v4978
  %v5068 = vsel %vm2481, %v5060, %v4980
  %v5069 = vsel %vm2490, %v5061, %v4998
  %v5070 = vsel %vm2490, %v5062, %v5000
  %v5071 = vsel %vm2490, %v5063, %v5002
  %v5072 = vsel %vm2490, %v5064, %v5004
  %v5073 = vsel %vm2490, %v5065, %v5006
  %v5074 = vsel %vm2490, %v5066, %v5008
  %v5075 = vsel %vm2490, %v5067, %v5010
  %v5076 = vsel %vm2490, %v5068, %v5012
  %v5077 = vpack.c.bf16 %v5070, %v5069
  %v5078 = vpack.c.bf16 %v4790, %v4789
  %v5079 = vpack.c.bf16 %v5072, %v5071
  %v5080 = vpack.c.bf16 %v4792, %v4791
  %v5081 = vpack.c.bf16 %v5074, %v5073
  %v5082 = vpack.c.bf16 %v4794, %v4793
  %v5083 = vpack.c.bf16 %v5076, %v5075
  %v5084 = vpack.c.bf16 %v4796, %v4795
  %v5085 = vld [vmem:[%s11] sm:$0xf]
  %v5086 = vld [vmem:[%s11 + $0x4] sm:$0xf]
  %v5087 = vld [vmem:[%s11 + $0x8] sm:$0xf]
  %v5088 = vld [vmem:[%s11 + $0xc] sm:$0xf]
  %v5089 = vld [vmem:[%s11 + $0x10] sm:$0xf]
  %v5090 = vld [vmem:[%s11 + $0x14] sm:$0xf]
  %v5091 = vld [vmem:[%s11 + $0x18] sm:$0xf]
  %v5092 = vld [vmem:[%s11 + $0x1c] sm:$0xf]
  %v5093 = vld [vmem:[%s11 + $0x20] sm:$0xf]
  %v5094 = vld [vmem:[%s11 + $0x24] sm:$0xf]
  %v5095 = vld [vmem:[%s11 + $0x28] sm:$0xf]
  %v5096 = vld [vmem:[%s11 + $0x2c] sm:$0xf]
  %v5097 = vld [vmem:[%s11 + $0x30] sm:$0xf]
  %v5098 = vld [vmem:[%s11 + $0x34] sm:$0xf]
  %v5099 = vld [vmem:[%s11 + $0x38] sm:$0xf]
  %v5100 = vld [vmem:[%s11 + $0x3c] sm:$0xf]
  %v5101 = vld [vmem:[%s11 + $0x40] sm:$0xf]
  %v5102 = vld [vmem:[%s11 + $0x44] sm:$0xf]
  %v5103 = vld [vmem:[%s12] sm:$0xf]
  %v5104 = vld [vmem:[%s12 + $0x4] sm:$0xf]
  %v5105 = vld [vmem:[%s12 + $0x8] sm:$0xf]
  %v5106 = vld [vmem:[%s12 + $0xc] sm:$0xf]
  %v5107 = vld [vmem:[%s12 + $0x10] sm:$0xf]
  %v5108 = vld [vmem:[%s12 + $0x14] sm:$0xf]
  %v5109 = vld [vmem:[%s12 + $0x18] sm:$0xf]
  %v5110 = vld [vmem:[%s12 + $0x1c] sm:$0xf]
  %v5111 = vld [vmem:[%s12 + $0x20] sm:$0xf]
  %v5112 = vld [vmem:[%s12 + $0x24] sm:$0xf]
  %v5113 = vld [vmem:[%s12 + $0x28] sm:$0xf]
  %v5114 = vld [vmem:[%s12 + $0x2c] sm:$0xf]
  %v5115 = vld [vmem:[%s12 + $0x30] sm:$0xf]
  %v5116 = vld [vmem:[%s12 + $0x34] sm:$0xf]
  %v5117 = vld [vmem:[%s12 + $0x38] sm:$0xf]
  %v5118 = vld [vmem:[%s12 + $0x3c] sm:$0xf]
  %v5119 = vld [vmem:[%s12 + $0x40] sm:$0xf]
  %v5120 = vld [vmem:[%s12 + $0x44] sm:$0xf]
  %v5139 = vunpack.c.l.b16 %v5103
  %v5140 = vunpack.c.l.b16 %v5104
  %v5141 = vunpack.c.l.b16 %v5105
  %v5142 = vunpack.c.l.b16 %v5106
  %v5143 = vunpack.c.l.b16 %v5107
  %v5144 = vunpack.c.l.b16 %v5108
  %v5145 = vunpack.c.l.b16 %v5109
  %v5146 = vunpack.c.l.b16 %v5110
  %v5147 = vunpack.c.l.b16 %v5111
  %v5148 = vunpack.c.l.b16 %v5112
  %v5149 = vunpack.c.l.b16 %v5113
  %v5150 = vunpack.c.l.b16 %v5114
  %v5151 = vunpack.c.l.b16 %v5115
  %v5152 = vunpack.c.l.b16 %v5116
  %v5153 = vunpack.c.l.b16 %v5117
  %v5154 = vunpack.c.l.b16 %v5118
  %v5155 = vunpack.c.l.b16 %v5119
  %v5156 = vunpack.c.l.b16 %v5120
  %v5157 = vpack.c.b16 %v5140, %v5139
  %v5158 = vpack.c.b16 %v5142, %v5141
  %v5159 = vpack.c.b16 %v5144, %v5143
  %v5160 = vpack.c.b16 %v5146, %v5145
  %v5161 = vpack.c.b16 %v5148, %v5147
  %v5162 = vpack.c.b16 %v5150, %v5149
  %v5163 = vpack.c.b16 %v5152, %v5151
  %v5164 = vpack.c.b16 %v5154, %v5153
  %v5165 = vpack.c.b16 %v5156, %v5155
  %v5176 = vsel %vm1370, %v5078, 0
  %v5179 = vsel %vm1370, %v5080, 0
  %v5182 = vsel %vm1370, %v5082, 0
  %v5185 = vsel %vm1370, %v5084, 0
  %5187 = vmatprep.subr.bf16.mxu0 0
  %5188 = vmatpush1.bf16.msra.mxu0 %v5157
  %5189 = vmatprep.subr.bf16.mxu0 0
  %5190 = vmatpush1.bf16.msra.mxu0 %v5158
  %5191 = vmatprep.subr.bf16.mxu0 0
  %5192 = vmatpush1.bf16.msra.mxu0 %v5159
  %5193 = vmatprep.subr.bf16.mxu0 0
  %5194 = vmatpush1.bf16.msra.mxu0 %v5160
  %5195 = vmatprep.subr.bf16.mxu0 0
  %5196 = vmatpush1.bf16.msra.mxu0 %v5161
  %5197 = vmatprep.subr.bf16.mxu0 0
  %5198 = vmatpush1.bf16.msra.mxu0 %v5162
  %5199 = vmatprep.subr.bf16.mxu0 0
  %5200 = vmatpush1.bf16.msra.mxu0 %v5163
  %5201 = vmatprep.subr.bf16.mxu0 0
  %5202 = vmatpush1.bf16.msra.mxu0 %v5164
  %5203 = vmatprep.subr.bf16.mxu0 0
  %5204 = vmatpush1.bf16.msra.mxu0 %v5165
  %5205 = vmatprep.subr.bf16.mxu0 0
  %5206 = vmatpush1.bf16.msra.mxu0 0
  %5207 = vmatprep.subr.bf16.mxu0 0
  %5208 = vmatpush1.bf16.msra.mxu0 0
  %5209 = vmatprep.subr.bf16.mxu0 0
  %5210 = vmatpush1.bf16.msra.mxu0 0
  %5211 = vmatprep.subr.bf16.mxu0 0
  %5212 = vmatpush1.bf16.msra.mxu0 0
  %5213 = vmatprep.subr.bf16.mxu0 0
  %5214 = vmatpush1.bf16.msra.mxu0 0
  %5215 = vmatprep.subr.bf16.mxu0 0
  %5216 = vmatpush1.bf16.msra.mxu0 0
  %5217 = vmatprep.subr.bf16.mxu0 0
  %5218 = vmatpush1.bf16.msra.mxu0 0
  %5219 = vmatprep.mubr.bf16.mxu0 %v5176
  %5220 = vmatmul.mubr.bf16.gmra.mrb[0].mxu0 %v5077
  %v5221 = vpop.f32.mrb[0].mxu0
  %v5222 = vadd.f32 0.0, %v5221
  %v5223 = vpop.f32.mrb[0].mxu0
  %v5224 = vpop.f32.mrb[0].mxu0
  %v5225 = vadd.f32 0.0, %v5224
  %v5226 = vpop.f32.mrb[0].mxu0
  %5227 = vmatprep.mubr.bf16.mxu0 %v5179
  %5228 = vmatmul.mubr.bf16.gmra.mrb[0].mxu0 %v5079
  %v5229 = vpop.f32.mrb[0].mxu0
  %v5230 = vadd.f32 0.0, %v5229
  %v5231 = vpop.f32.mrb[0].mxu0
  %v5232 = vpop.f32.mrb[0].mxu0
  %v5233 = vadd.f32 0.0, %v5232
  %v5234 = vpop.f32.mrb[0].mxu0
  %5235 = vmatprep.mubr.bf16.mxu0 %v5182
  %5236 = vmatmul.mubr.bf16.gmra.mrb[0].mxu0 %v5081
  %v5237 = vpop.f32.mrb[0].mxu0
  %v5238 = vadd.f32 0.0, %v5237
  %v5239 = vpop.f32.mrb[0].mxu0
  %v5240 = vpop.f32.mrb[0].mxu0
  %v5241 = vadd.f32 0.0, %v5240
  %v5242 = vpop.f32.mrb[0].mxu0
  %5243 = vmatprep.mubr.bf16.mxu0 %v5185
  %5244 = vmatmul.mubr.bf16.gmra.mrb[0].mxu0 %v5083
  %v5245 = vpop.f32.mrb[0].mxu0
  %v5246 = vadd.f32 0.0, %v5245
  %v5247 = vpop.f32.mrb[0].mxu0
  %v5248 = vpop.f32.mrb[0].mxu0
  %v5249 = vadd.f32 0.0, %v5248
  %v5250 = vpop.f32.mrb[0].mxu0
  %5251 = vdwg.mxu0
  %v5270 = vunpack.c.l.b16 %v5085
  %v5271 = vunpack.c.l.b16 %v5086
  %v5272 = vunpack.c.l.b16 %v5087
  %v5273 = vunpack.c.l.b16 %v5088
  %v5274 = vunpack.c.l.b16 %v5089
  %v5275 = vunpack.c.l.b16 %v5090
  %v5276 = vunpack.c.l.b16 %v5091
  %v5277 = vunpack.c.l.b16 %v5092
  %v5278 = vunpack.c.l.b16 %v5093
  %v5279 = vunpack.c.l.b16 %v5094
  %v5280 = vunpack.c.l.b16 %v5095
  %v5281 = vunpack.c.l.b16 %v5096
  %v5282 = vunpack.c.l.b16 %v5097
  %v5283 = vunpack.c.l.b16 %v5098
  %v5284 = vunpack.c.l.b16 %v5099
  %v5285 = vunpack.c.l.b16 %v5100
  %v5286 = vunpack.c.l.b16 %v5101
  %v5287 = vunpack.c.l.b16 %v5102
  %v5288 = vpack.c.b16 %v5271, %v5270
  %v5289 = vpack.c.b16 %v5273, %v5272
  %v5290 = vpack.c.b16 %v5275, %v5274
  %v5291 = vpack.c.b16 %v5277, %v5276
  %v5292 = vpack.c.b16 %v5279, %v5278
  %v5293 = vpack.c.b16 %v5281, %v5280
  %v5294 = vpack.c.b16 %v5283, %v5282
  %v5295 = vpack.c.b16 %v5285, %v5284
  %v5296 = vpack.c.b16 %v5287, %v5286
  %v5307 = vsel %vm1370, %v4686, 0
  %v5310 = vsel %vm1370, %v4688, 0
  %v5313 = vsel %vm1370, %v4690, 0
  %v5316 = vsel %vm1370, %v4692, 0
  %5318 = vmatprep.subr.bf16.mxu0 0
  %5319 = vmatpush1.bf16.msra.mxu0 %v5288
  %5320 = vmatprep.subr.bf16.mxu0 0
  %5321 = vmatpush1.bf16.msra.mxu0 %v5289
  %5322 = vmatprep.subr.bf16.mxu0 0
  %5323 = vmatpush1.bf16.msra.mxu0 %v5290
  %5324 = vmatprep.subr.bf16.mxu0 0
  %5325 = vmatpush1.bf16.msra.mxu0 %v5291
  %5326 = vmatprep.subr.bf16.mxu0 0
  %5327 = vmatpush1.bf16.msra.mxu0 %v5292
  %5328 = vmatprep.subr.bf16.mxu0 0
  %5329 = vmatpush1.bf16.msra.mxu0 %v5293
  %5330 = vmatprep.subr.bf16.mxu0 0
  %5331 = vmatpush1.bf16.msra.mxu0 %v5294
  %5332 = vmatprep.subr.bf16.mxu0 0
  %5333 = vmatpush1.bf16.msra.mxu0 %v5295
  %5334 = vmatprep.subr.bf16.mxu0 0
  %5335 = vmatpush1.bf16.msra.mxu0 %v5296
  %5336 = vmatprep.subr.bf16.mxu0 0
  %5337 = vmatpush1.bf16.msra.mxu0 0
  %5338 = vmatprep.subr.bf16.mxu0 0
  %5339 = vmatpush1.bf16.msra.mxu0 0
  %5340 = vmatprep.subr.bf16.mxu0 0
  %5341 = vmatpush1.bf16.msra.mxu0 0
  %5342 = vmatprep.subr.bf16.mxu0 0
  %5343 = vmatpush1.bf16.msra.mxu0 0
  %5344 = vmatprep.subr.bf16.mxu0 0
  %5345 = vmatpush1.bf16.msra.mxu0 0
  %5346 = vmatprep.subr.bf16.mxu0 0
  %5347 = vmatpush1.bf16.msra.mxu0 0
  %5348 = vmatprep.subr.bf16.mxu0 0
  %5349 = vmatpush1.bf16.msra.mxu0 0
  %5350 = vmatprep.mubr.bf16.mxu0 %v5307
  %5351 = vmatmul.mubr.bf16.gmra.mrb[0].mxu0 %v4685
  %v5352 = vpop.f32.mrb[0].mxu0
  %v5353 = vadd.f32 %v5222, %v5352
  %v5354 = vpop.f32.mrb[0].mxu0
  %v5355 = vpop.f32.mrb[0].mxu0
  %v5356 = vadd.f32 %v5225, %v5355
  %v5357 = vpop.f32.mrb[0].mxu0
  %5358 = vmatprep.mubr.bf16.mxu0 %v5310
  %5359 = vmatmul.mubr.bf16.gmra.mrb[0].mxu0 %v4687
  %v5360 = vpop.f32.mrb[0].mxu0
  %v5361 = vadd.f32 %v5230, %v5360
  %v5362 = vpop.f32.mrb[0].mxu0
  %v5363 = vpop.f32.mrb[0].mxu0
  %v5364 = vadd.f32 %v5233, %v5363
  %v5365 = vpop.f32.mrb[0].mxu0
  %5366 = vmatprep.mubr.bf16.mxu0 %v5313
  %5367 = vmatmul.mubr.bf16.gmra.mrb[0].mxu0 %v4689
  %v5368 = vpop.f32.mrb[0].mxu0
  %v5369 = vadd.f32 %v5238, %v5368
  %v5370 = vpop.f32.mrb[0].mxu0
  %v5371 = vpop.f32.mrb[0].mxu0
  %v5372 = vadd.f32 %v5241, %v5371
  %v5373 = vpop.f32.mrb[0].mxu0
  %5374 = vmatprep.mubr.bf16.mxu0 %v5316
  %5375 = vmatmul.mubr.bf16.gmra.mrb[0].mxu0 %v4691
  %v5376 = vpop.f32.mrb[0].mxu0
  %v5377 = vadd.f32 %v5246, %v5376
  %v5378 = vpop.f32.mrb[0].mxu0
  %v5379 = vpop.f32.mrb[0].mxu0
  %v5380 = vadd.f32 %v5249, %v5379
  %v5381 = vpop.f32.mrb[0].mxu0
  %5382 = vdwg.mxu0
  %v5383 = vsel %vm1370, %v5353, 0.0
  %v5384 = vsel %vm1370, %v5356, 0.0
  %v5385 = vadd.f32 %v5383, %v5384
  %v5386 = vsel %vm1370, %v5361, 0.0
  %v5387 = vadd.f32 %v5385, %v5386
  %v5388 = vsel %vm1370, %v5364, 0.0
  %v5389 = vadd.f32 %v5387, %v5388
  %v5390 = vsel %vm1370, %v5369, 0.0
  %v5391 = vadd.f32 %v5389, %v5390
  %v5392 = vsel %vm1370, %v5372, 0.0
  %v5393 = vadd.f32 %v5391, %v5392
  %v5394 = vsel %vm1370, %v5377, 0.0
  %v5395 = vadd.f32 %v5393, %v5394
  %v5396 = vsel %vm1370, %v5380, 0.0
  %v5397 = vadd.f32 %v5395, %v5396
  %v5398 = vrot.slane %v5397, 4
  %v5399 = vadd.f32 %v5397, %v5398
  %v5400 = vrot.slane %v5399, 2
  %v5401 = vadd.f32 %v5399, %v5400
  %v5402 = vrot.slane %v5401, 1
  %v5403 = vadd.f32 %v5401, %v5402
  %v5404 = vmul.f32 %v5353, %v5353
  %v5405 = vmul.f32 %v5356, %v5356
  %v5406 = vmul.f32 %v5361, %v5361
  %v5407 = vmul.f32 %v5364, %v5364
  %v5408 = vmul.f32 %v5369, %v5369
  %v5409 = vmul.f32 %v5372, %v5372
  %v5410 = vmul.f32 %v5377, %v5377
  %v5411 = vmul.f32 %v5380, %v5380
  %v5412 = vsel %vm1370, %v5404, 0.0
  %v5413 = vsel %vm1370, %v5405, 0.0
  %v5414 = vadd.f32 %v5412, %v5413
  %v5415 = vsel %vm1370, %v5406, 0.0
  %v5416 = vadd.f32 %v5414, %v5415
  %v5417 = vsel %vm1370, %v5407, 0.0
  %v5418 = vadd.f32 %v5416, %v5417
  %v5419 = vsel %vm1370, %v5408, 0.0
  %v5420 = vadd.f32 %v5418, %v5419
  %v5421 = vsel %vm1370, %v5409, 0.0
  %v5422 = vadd.f32 %v5420, %v5421
  %v5423 = vsel %vm1370, %v5410, 0.0
  %v5424 = vadd.f32 %v5422, %v5423
  %v5425 = vsel %vm1370, %v5411, 0.0
  %v5426 = vadd.f32 %v5424, %v5425
  %v5427 = vrot.slane %v5426, 4
  %v5428 = vadd.f32 %v5426, %v5427
  %v5429 = vrot.slane %v5428, 2
  %v5430 = vadd.f32 %v5428, %v5429
  %v5431 = vrot.slane %v5430, 1
  %v5432 = vadd.f32 %v5430, %v5431
  %v5433 = vmul.f32 %v5403, 0.015625
  %v5434 = vmul.f32 %v5432, 0.015625
  %v5435 = vmul.f32 %v5433, %v5433
  %v5436 = vsub.f32 %v5434, %v5435
  %v5437 = vld [vmem:[%s19] sm:$0x3]
  %v5438 = vsub.f32 %v5353, %v5433
  %v5439 = vsub.f32 %v5356, %v5433
  %v5440 = vsub.f32 %v5361, %v5433
  %v5441 = vsub.f32 %v5364, %v5433
  %v5442 = vsub.f32 %v5369, %v5433
  %v5443 = vsub.f32 %v5372, %v5433
  %v5444 = vsub.f32 %v5377, %v5433
  %v5445 = vsub.f32 %v5380, %v5433
  %v5446 = vadd.f32 %v5436, 1e-05
  %v5447 = vrsqrt.pop %v5446
  %v5448 = vmul.f32 %v5438, %v5447
  %v5449 = vmul.f32 %v5439, %v5447
  %v5450 = vmul.f32 %v5440, %v5447
  %v5451 = vmul.f32 %v5441, %v5447
  %v5452 = vmul.f32 %v5442, %v5447
  %v5453 = vmul.f32 %v5443, %v5447
  %v5454 = vmul.f32 %v5444, %v5447
  %v5455 = vmul.f32 %v5445, %v5447
  %v5456 = vlaneseq
  %v5457 = vshrl.u32 %v5456, 7
  %v5458 = vsub.s32 0, %v5457
  %v5459 = vrot.slane %v5437, %v5458
  %v5460 = vmul.f32 %v5448, %v5459
  %v5461 = vmul.f32 %v5449, %v5459
  %v5462 = vmul.f32 %v5450, %v5459
  %v5463 = vmul.f32 %v5451, %v5459
  %v5464 = vmul.f32 %v5452, %v5459
  %v5465 = vmul.f32 %v5453, %v5459
  %v5466 = vmul.f32 %v5454, %v5459
  %v5467 = vmul.f32 %v5455, %v5459
  %v5468 = vlaneseq
  %v5469 = vshrl.u32 %v5468, 7
  %v5470 = vsub.s32 1, %v5469
  %v5471 = vrot.slane %v5437, %v5470
  %v5472 = vadd.f32 %v5460, %v5471
  %v5473 = vadd.f32 %v5461, %v5471
  %v5474 = vadd.f32 %v5462, %v5471
  %v5475 = vadd.f32 %v5463, %v5471
  %v5476 = vadd.f32 %v5464, %v5471
  %v5477 = vadd.f32 %v5465, %v5471
  %v5478 = vadd.f32 %v5466, %v5471
  %v5479 = vadd.f32 %v5467, %v5471
  %vm5480 = vcmp.ge.f32.partialorder %v5472, 0.0
  %vm5481 = vcmp.ge.f32.partialorder %v5473, 0.0
  %vm5482 = vcmp.ge.f32.partialorder %v5474, 0.0
  %vm5483 = vcmp.ge.f32.partialorder %v5475, 0.0
  %vm5484 = vcmp.ge.f32.partialorder %v5476, 0.0
  %vm5485 = vcmp.ge.f32.partialorder %v5477, 0.0
  %vm5486 = vcmp.ge.f32.partialorder %v5478, 0.0
  %vm5487 = vcmp.ge.f32.partialorder %v5479, 0.0
  %v5488 = vmul.f32 %v5472, 0.01
  %v5489 = vmul.f32 %v5473, 0.01
  %v5490 = vmul.f32 %v5474, 0.01
  %v5491 = vmul.f32 %v5475, 0.01
  %v5492 = vmul.f32 %v5476, 0.01
  %v5493 = vmul.f32 %v5477, 0.01
  %v5494 = vmul.f32 %v5478, 0.01
  %v5495 = vmul.f32 %v5479, 0.01
  %v5496 = vsel %vm5480, %v5472, %v5488
  %v5497 = vsel %vm5481, %v5473, %v5489
  %v5498 = vsel %vm5482, %v5474, %v5490
  %v5499 = vsel %vm5483, %v5475, %v5491
  %v5500 = vsel %vm5484, %v5476, %v5492
  %v5501 = vsel %vm5485, %v5477, %v5493
  %v5502 = vsel %vm5486, %v5478, %v5494
  %v5503 = vsel %vm5487, %v5479, %v5495
  %v5504 = vrot.slane %v5496, 7
  %v5505 = vrot.slane %v5497, 7
  %v5506 = vrot.slane %v5498, 7
  %v5507 = vrot.slane %v5499, 7
  %v5508 = vrot.slane %v5500, 7
  %v5509 = vrot.slane %v5501, 7
  %v5510 = vrot.slane %v5502, 7
  %v5511 = vrot.slane %v5503, 7
  %v5512 = vsel %vm1678, %v5510, %v5511
  %v5513 = vsel %vm1678, %v5509, %v5510
  %v5514 = vsel %vm1678, %v5508, %v5509
  %v5515 = vsel %vm1678, %v5507, %v5508
  %v5516 = vsel %vm1678, %v5506, %v5507
  %v5517 = vsel %vm1678, %v5505, %v5506
  %v5518 = vsel %vm1678, %v5504, %v5505
  %v5519 = vsel %vm1678, %v5511, %v5504
  %v5520 = vmul.f32 %v5512, %v1698
  %v5521 = vmul.f32 %v5519, %v1703
  %v5522 = vmul.f32 %v5518, %v1708
  %v5523 = vmul.f32 %v5517, %v1713
  %v5524 = vmul.f32 %v5516, %v1718
  %v5525 = vmul.f32 %v5515, %v1723
  %v5526 = vmul.f32 %v5514, %v1728
  %v5527 = vmul.f32 %v5513, %v1733
  %v5528 = vmul.f32 %v5503, %v1755
  %v5529 = vmul.f32 %v5496, %v1760
  %v5530 = vmul.f32 %v5497, %v1765
  %v5531 = vmul.f32 %v5498, %v1770
  %v5532 = vmul.f32 %v5499, %v1775
  %v5533 = vmul.f32 %v5500, %v1780
  %v5534 = vmul.f32 %v5501, %v1785
  %v5535 = vmul.f32 %v5502, %v1790
  %v5536 = vrot.slane %v5496, 1
  %v5537 = vrot.slane %v5497, 1
  %v5538 = vrot.slane %v5498, 1
  %v5539 = vrot.slane %v5499, 1
  %v5540 = vrot.slane %v5500, 1
  %v5541 = vrot.slane %v5501, 1
  %v5542 = vrot.slane %v5502, 1
  %v5543 = vrot.slane %v5503, 1
  %v5544 = vsel %vm1808, %v5542, %v5543
  %v5545 = vsel %vm1808, %v5541, %v5542
  %v5546 = vsel %vm1808, %v5540, %v5541
  %v5547 = vsel %vm1808, %v5539, %v5540
  %v5548 = vsel %vm1808, %v5538, %v5539
  %v5549 = vsel %vm1808, %v5537, %v5538
  %v5550 = vsel %vm1808, %v5536, %v5537
  %v5551 = vsel %vm1808, %v5543, %v5536
  %v5552 = vmul.f32 %v5551, %v1829
  %v5553 = vmul.f32 %v5550, %v1834
  %v5554 = vmul.f32 %v5549, %v1839
  %v5555 = vmul.f32 %v5548, %v1844
  %v5556 = vmul.f32 %v5547, %v1849
  %v5557 = vmul.f32 %v5546, %v1854
  %v5558 = vmul.f32 %v5545, %v1859
  %v5559 = vmul.f32 %v5544, %v1864
  %v5560 = vmul.f32 %v5519, %v1886
  %v5561 = vmul.f32 %v5518, %v1891
  %v5562 = vmul.f32 %v5517, %v1896
  %v5563 = vmul.f32 %v5516, %v1901
  %v5564 = vmul.f32 %v5515, %v1906
  %v5565 = vmul.f32 %v5514, %v1911
  %v5566 = vmul.f32 %v5513, %v1916
  %v5567 = vmul.f32 %v5512, %v1921
  %v5568 = vmul.f32 %v5496, %v1943
  %v5569 = vmul.f32 %v5497, %v1948
  %v5570 = vmul.f32 %v5498, %v1953
  %v5571 = vmul.f32 %v5499, %v1958
  %v5572 = vmul.f32 %v5500, %v1963
  %v5573 = vmul.f32 %v5501, %v1968
  %v5574 = vmul.f32 %v5502, %v1973
  %v5575 = vmul.f32 %v5503, %v1978
  %v5576 = vmul.f32 %v5550, %v2000
  %v5577 = vmul.f32 %v5549, %v2005
  %v5578 = vmul.f32 %v5548, %v2010
  %v5579 = vmul.f32 %v5547, %v2015
  %v5580 = vmul.f32 %v5546, %v2020
  %v5581 = vmul.f32 %v5545, %v2025
  %v5582 = vmul.f32 %v5544, %v2030
  %v5583 = vmul.f32 %v5551, %v2035
  %v5584 = vmul.f32 %v5518, %v2057
  %v5585 = vmul.f32 %v5517, %v2062
  %v5586 = vmul.f32 %v5516, %v2067
  %v5587 = vmul.f32 %v5515, %v2072
  %v5588 = vmul.f32 %v5514, %v2077
  %v5589 = vmul.f32 %v5513, %v2082
  %v5590 = vmul.f32 %v5512, %v2087
  %v5591 = vmul.f32 %v5519, %v2092
  %v5592 = vmul.f32 %v5497, %v2114
  %v5593 = vmul.f32 %v5498, %v2119
  %v5594 = vmul.f32 %v5499, %v2124
  %v5595 = vmul.f32 %v5500, %v2129
  %v5596 = vmul.f32 %v5501, %v2134
  %v5597 = vmul.f32 %v5502, %v2139
  %v5598 = vmul.f32 %v5503, %v2144
  %v5599 = vmul.f32 %v5496, %v2149
  %v5600 = vmul.f32 %v5549, %v2171
  %v5601 = vmul.f32 %v5548, %v2176
  %v5602 = vmul.f32 %v5547, %v2181
  %v5603 = vmul.f32 %v5546, %v2186
  %v5604 = vmul.f32 %v5545, %v2191
  %v5605 = vmul.f32 %v5544, %v2196
  %v5606 = vmul.f32 %v5551, %v2201
  %v5607 = vmul.f32 %v5550, %v2206
  %5616 = vrot.lane.b32.xlu0 %v5528, 16
  %v5617 = vpop.permute.xlu0 %5616
  %5618 = vrot.lane.b32.xlu0 %v5529, 16
  %v5619 = vpop.permute.xlu0 %5618
  %5620 = vrot.lane.b32.xlu0 %v5530, 16
  %v5621 = vpop.permute.xlu0 %5620
  %5622 = vrot.lane.b32.xlu0 %v5531, 16
  %v5623 = vpop.permute.xlu0 %5622
  %5624 = vrot.lane.b32.xlu0 %v5532, 16
  %v5625 = vpop.permute.xlu0 %5624
  %5626 = vrot.lane.b32.xlu0 %v5533, 16
  %v5627 = vpop.permute.xlu0 %5626
  %5628 = vrot.lane.b32.xlu0 %v5534, 16
  %v5629 = vpop.permute.xlu0 %5628
  %5630 = vrot.lane.b32.xlu0 %v5535, 16
  %v5631 = vpop.permute.xlu0 %5630
  %5648 = vrot.lane.b32.xlu0 %v5552, 32
  %v5649 = vpop.permute.xlu0 %5648
  %5650 = vrot.lane.b32.xlu0 %v5553, 32
  %v5651 = vpop.permute.xlu0 %5650
  %5652 = vrot.lane.b32.xlu0 %v5554, 32
  %v5653 = vpop.permute.xlu0 %5652
  %5654 = vrot.lane.b32.xlu0 %v5555, 32
  %v5655 = vpop.permute.xlu0 %5654
  %5656 = vrot.lane.b32.xlu0 %v5556, 32
  %v5657 = vpop.permute.xlu0 %5656
  %5658 = vrot.lane.b32.xlu0 %v5557, 32
  %v5659 = vpop.permute.xlu0 %5658
  %5660 = vrot.lane.b32.xlu0 %v5558, 32
  %v5661 = vpop.permute.xlu0 %5660
  %5662 = vrot.lane.b32.xlu0 %v5559, 32
  %v5663 = vpop.permute.xlu0 %5662
  %5680 = vrot.lane.b32.xlu0 %v5560, 48
  %v5681 = vpop.permute.xlu0 %5680
  %5682 = vrot.lane.b32.xlu0 %v5561, 48
  %v5683 = vpop.permute.xlu0 %5682
  %5684 = vrot.lane.b32.xlu0 %v5562, 48
  %v5685 = vpop.permute.xlu0 %5684
  %5686 = vrot.lane.b32.xlu0 %v5563, 48
  %v5687 = vpop.permute.xlu0 %5686
  %5688 = vrot.lane.b32.xlu0 %v5564, 48
  %v5689 = vpop.permute.xlu0 %5688
  %5690 = vrot.lane.b32.xlu0 %v5565, 48
  %v5691 = vpop.permute.xlu0 %5690
  %5692 = vrot.lane.b32.xlu0 %v5566, 48
  %v5693 = vpop.permute.xlu0 %5692
  %5694 = vrot.lane.b32.xlu0 %v5567, 48
  %v5695 = vpop.permute.xlu0 %5694
  %5712 = vrot.lane.b32.xlu0 %v5568, 64
  %v5713 = vpop.permute.xlu0 %5712
  %5714 = vrot.lane.b32.xlu0 %v5569, 64
  %v5715 = vpop.permute.xlu0 %5714
  %5716 = vrot.lane.b32.xlu0 %v5570, 64
  %v5717 = vpop.permute.xlu0 %5716
  %5718 = vrot.lane.b32.xlu0 %v5571, 64
  %v5719 = vpop.permute.xlu0 %5718
  %5720 = vrot.lane.b32.xlu0 %v5572, 64
  %v5721 = vpop.permute.xlu0 %5720
  %5722 = vrot.lane.b32.xlu0 %v5573, 64
  %v5723 = vpop.permute.xlu0 %5722
  %5724 = vrot.lane.b32.xlu0 %v5574, 64
  %v5725 = vpop.permute.xlu0 %5724
  %5726 = vrot.lane.b32.xlu0 %v5575, 64
  %v5727 = vpop.permute.xlu0 %5726
  %5744 = vrot.lane.b32.xlu0 %v5576, 80
  %v5745 = vpop.permute.xlu0 %5744
  %5746 = vrot.lane.b32.xlu0 %v5577, 80
  %v5747 = vpop.permute.xlu0 %5746
  %5748 = vrot.lane.b32.xlu0 %v5578, 80
  %v5749 = vpop.permute.xlu0 %5748
  %5750 = vrot.lane.b32.xlu0 %v5579, 80
  %v5751 = vpop.permute.xlu0 %5750
  %5752 = vrot.lane.b32.xlu0 %v5580, 80
  %v5753 = vpop.permute.xlu0 %5752
  %5754 = vrot.lane.b32.xlu0 %v5581, 80
  %v5755 = vpop.permute.xlu0 %5754
  %5756 = vrot.lane.b32.xlu0 %v5582, 80
  %v5757 = vpop.permute.xlu0 %5756
  %5758 = vrot.lane.b32.xlu0 %v5583, 80
  %v5759 = vpop.permute.xlu0 %5758
  %5776 = vrot.lane.b32.xlu0 %v5584, 96
  %v5777 = vpop.permute.xlu0 %5776
  %5778 = vrot.lane.b32.xlu0 %v5585, 96
  %v5779 = vpop.permute.xlu0 %5778
  %5780 = vrot.lane.b32.xlu0 %v5586, 96
  %v5781 = vpop.permute.xlu0 %5780
  %5782 = vrot.lane.b32.xlu0 %v5587, 96
  %v5783 = vpop.permute.xlu0 %5782
  %5784 = vrot.lane.b32.xlu0 %v5588, 96
  %v5785 = vpop.permute.xlu0 %5784
  %5786 = vrot.lane.b32.xlu0 %v5589, 96
  %v5787 = vpop.permute.xlu0 %5786
  %5788 = vrot.lane.b32.xlu0 %v5590, 96
  %v5789 = vpop.permute.xlu0 %5788
  %5790 = vrot.lane.b32.xlu0 %v5591, 96
  %v5791 = vpop.permute.xlu0 %5790
  %5808 = vrot.lane.b32.xlu0 %v5592, 112
  %v5809 = vpop.permute.xlu0 %5808
  %5810 = vrot.lane.b32.xlu0 %v5593, 112
  %v5811 = vpop.permute.xlu0 %5810
  %5812 = vrot.lane.b32.xlu0 %v5594, 112
  %v5813 = vpop.permute.xlu0 %5812
  %5814 = vrot.lane.b32.xlu0 %v5595, 112
  %v5815 = vpop.permute.xlu0 %5814
  %5816 = vrot.lane.b32.xlu0 %v5596, 112
  %v5817 = vpop.permute.xlu0 %5816
  %5818 = vrot.lane.b32.xlu0 %v5597, 112
  %v5819 = vpop.permute.xlu0 %5818
  %5820 = vrot.lane.b32.xlu0 %v5598, 112
  %v5821 = vpop.permute.xlu0 %5820
  %5822 = vrot.lane.b32.xlu0 %v5599, 112
  %v5823 = vpop.permute.xlu0 %5822
  %v5832 = vsel %vm1370, %v5520, %v5617
  %v5833 = vsel %vm1370, %v5521, %v5619
  %v5834 = vsel %vm1370, %v5522, %v5621
  %v5835 = vsel %vm1370, %v5523, %v5623
  %v5836 = vsel %vm1370, %v5524, %v5625
  %v5837 = vsel %vm1370, %v5525, %v5627
  %v5838 = vsel %vm1370, %v5526, %v5629
  %v5839 = vsel %vm1370, %v5527, %v5631
  %v5840 = vsel %vm1388, %v5832, %v5649
  %v5841 = vsel %vm1388, %v5833, %v5651
  %v5842 = vsel %vm1388, %v5834, %v5653
  %v5843 = vsel %vm1388, %v5835, %v5655
  %v5844 = vsel %vm1388, %v5836, %v5657
  %v5845 = vsel %vm1388, %v5837, %v5659
  %v5846 = vsel %vm1388, %v5838, %v5661
  %v5847 = vsel %vm1388, %v5839, %v5663
  %v5848 = vsel %vm1406, %v5840, %v5681
  %v5849 = vsel %vm1406, %v5841, %v5683
  %v5850 = vsel %vm1406, %v5842, %v5685
  %v5851 = vsel %vm1406, %v5843, %v5687
  %v5852 = vsel %vm1406, %v5844, %v5689
  %v5853 = vsel %vm1406, %v5845, %v5691
  %v5854 = vsel %vm1406, %v5846, %v5693
  %v5855 = vsel %vm1406, %v5847, %v5695
  %v5856 = vsel %vm1424, %v5848, %v5713
  %v5857 = vsel %vm1424, %v5849, %v5715
  %v5858 = vsel %vm1424, %v5850, %v5717
  %v5859 = vsel %vm1424, %v5851, %v5719
  %v5860 = vsel %vm1424, %v5852, %v5721
  %v5861 = vsel %vm1424, %v5853, %v5723
  %v5862 = vsel %vm1424, %v5854, %v5725
  %v5863 = vsel %vm1424, %v5855, %v5727
  %v5864 = vsel %vm2472, %v5856, %v5745
  %v5865 = vsel %vm2472, %v5857, %v5747
  %v5866 = vsel %vm2472, %v5858, %v5749
  %v5867 = vsel %vm2472, %v5859, %v5751
  %v5868 = vsel %vm2472, %v5860, %v5753
  %v5869 = vsel %vm2472, %v5861, %v5755
  %v5870 = vsel %vm2472, %v5862, %v5757
  %v5871 = vsel %vm2472, %v5863, %v5759
  %v5872 = vsel %vm2481, %v5864, %v5777
  %v5873 = vsel %vm2481, %v5865, %v5779
  %v5874 = vsel %vm2481, %v5866, %v5781
  %v5875 = vsel %vm2481, %v5867, %v5783
  %v5876 = vsel %vm2481, %v5868, %v5785
  %v5877 = vsel %vm2481, %v5869, %v5787
  %v5878 = vsel %vm2481, %v5870, %v5789
  %v5879 = vsel %vm2481, %v5871, %v5791
  %v5880 = vsel %vm2490, %v5872, %v5809
  %v5881 = vsel %vm2490, %v5873, %v5811
  %v5882 = vsel %vm2490, %v5874, %v5813
  %v5883 = vsel %vm2490, %v5875, %v5815
  %v5884 = vsel %vm2490, %v5876, %v5817
  %v5885 = vsel %vm2490, %v5877, %v5819
  %v5886 = vsel %vm2490, %v5878, %v5821
  %v5887 = vsel %vm2490, %v5879, %v5823
  %v5888 = vpack.c.bf16 %v5881, %v5880
  %v5889 = vpack.c.bf16 %v5601, %v5600
  %v5890 = vpack.c.bf16 %v5883, %v5882
  %v5891 = vpack.c.bf16 %v5603, %v5602
  %v5892 = vpack.c.bf16 %v5885, %v5884
  %v5893 = vpack.c.bf16 %v5605, %v5604
  %v5894 = vpack.c.bf16 %v5887, %v5886
  %v5895 = vpack.c.bf16 %v5607, %v5606
  %v5896 = vld [vmem:[%s13] sm:$0xf]
  %v5897 = vld [vmem:[%s13 + $0x4] sm:$0xf]
  %v5898 = vld [vmem:[%s13 + $0x8] sm:$0xf]
  %v5899 = vld [vmem:[%s13 + $0xc] sm:$0xf]
  %v5900 = vld [vmem:[%s13 + $0x10] sm:$0xf]
  %v5901 = vld [vmem:[%s13 + $0x14] sm:$0xf]
  %v5902 = vld [vmem:[%s13 + $0x18] sm:$0xf]
  %v5903 = vld [vmem:[%s13 + $0x1c] sm:$0xf]
  %v5904 = vld [vmem:[%s13 + $0x20] sm:$0xf]
  %v5905 = vld [vmem:[%s13 + $0x24] sm:$0xf]
  %v5906 = vld [vmem:[%s13 + $0x28] sm:$0xf]
  %v5907 = vld [vmem:[%s13 + $0x2c] sm:$0xf]
  %v5908 = vld [vmem:[%s13 + $0x30] sm:$0xf]
  %v5909 = vld [vmem:[%s13 + $0x34] sm:$0xf]
  %v5910 = vld [vmem:[%s13 + $0x38] sm:$0xf]
  %v5911 = vld [vmem:[%s13 + $0x3c] sm:$0xf]
  %v5912 = vld [vmem:[%s13 + $0x40] sm:$0xf]
  %v5913 = vld [vmem:[%s13 + $0x44] sm:$0xf]
  %v5932 = vunpack.c.l.b16 %v5896
  %v5933 = vunpack.c.l.b16 %v5897
  %v5934 = vunpack.c.l.b16 %v5898
  %v5935 = vunpack.c.l.b16 %v5899
  %v5936 = vunpack.c.l.b16 %v5900
  %v5937 = vunpack.c.l.b16 %v5901
  %v5938 = vunpack.c.l.b16 %v5902
  %v5939 = vunpack.c.l.b16 %v5903
  %v5940 = vunpack.c.l.b16 %v5904
  %v5941 = vunpack.c.l.b16 %v5905
  %v5942 = vunpack.c.l.b16 %v5906
  %v5943 = vunpack.c.l.b16 %v5907
  %v5944 = vunpack.c.l.b16 %v5908
  %v5945 = vunpack.c.l.b16 %v5909
  %v5946 = vunpack.c.l.b16 %v5910
  %v5947 = vunpack.c.l.b16 %v5911
  %v5948 = vunpack.c.l.b16 %v5912
  %v5949 = vunpack.c.l.b16 %v5913
  %v5950 = vpack.c.b16 %v5933, %v5932
  %v5951 = vpack.c.b16 %v5935, %v5934
  %v5952 = vpack.c.b16 %v5937, %v5936
  %v5953 = vpack.c.b16 %v5939, %v5938
  %v5954 = vpack.c.b16 %v5941, %v5940
  %v5955 = vpack.c.b16 %v5943, %v5942
  %v5956 = vpack.c.b16 %v5945, %v5944
  %v5957 = vpack.c.b16 %v5947, %v5946
  %v5958 = vpack.c.b16 %v5949, %v5948
  %v5969 = vsel %vm1370, %v5889, 0
  %v5972 = vsel %vm1370, %v5891, 0
  %v5975 = vsel %vm1370, %v5893, 0
  %v5978 = vsel %vm1370, %v5895, 0
  %5980 = vmatprep.subr.bf16.mxu0 0
  %5981 = vmatpush1.bf16.msra.mxu0 %v5950
  %5982 = vmatprep.subr.bf16.mxu0 0
  %5983 = vmatpush1.bf16.msra.mxu0 %v5951
  %5984 = vmatprep.subr.bf16.mxu0 0
  %5985 = vmatpush1.bf16.msra.mxu0 %v5952
  %5986 = vmatprep.subr.bf16.mxu0 0
  %5987 = vmatpush1.bf16.msra.mxu0 %v5953
  %5988 = vmatprep.subr.bf16.mxu0 0
  %5989 = vmatpush1.bf16.msra.mxu0 %v5954
  %5990 = vmatprep.subr.bf16.mxu0 0
  %5991 = vmatpush1.bf16.msra.mxu0 %v5955
  %5992 = vmatprep.subr.bf16.mxu0 0
  %5993 = vmatpush1.bf16.msra.mxu0 %v5956
  %5994 = vmatprep.subr.bf16.mxu0 0
  %5995 = vmatpush1.bf16.msra.mxu0 %v5957
  %5996 = vmatprep.subr.bf16.mxu0 0
  %5997 = vmatpush1.bf16.msra.mxu0 %v5958
  %5998 = vmatprep.subr.bf16.mxu0 0
  %5999 = vmatpush1.bf16.msra.mxu0 0
  %6000 = vmatprep.subr.bf16.mxu0 0
  %6001 = vmatpush1.bf16.msra.mxu0 0
  %6002 = vmatprep.subr.bf16.mxu0 0
  %6003 = vmatpush1.bf16.msra.mxu0 0
  %6004 = vmatprep.subr.bf16.mxu0 0
  %6005 = vmatpush1.bf16.msra.mxu0 0
  %6006 = vmatprep.subr.bf16.mxu0 0
  %6007 = vmatpush1.bf16.msra.mxu0 0
  %6008 = vmatprep.subr.bf16.mxu0 0
  %6009 = vmatpush1.bf16.msra.mxu0 0
  %6010 = vmatprep.subr.bf16.mxu0 0
  %6011 = vmatpush1.bf16.msra.mxu0 0
  %6012 = vmatprep.mubr.bf16.mxu0 %v5969
  %6013 = vmatmul.mubr.bf16.gmra.mrb[0].mxu0 %v5888
  %v6014 = vpop.f32.mrb[0].mxu0
  %v6015 = vadd.f32 0.0, %v6014
  %v6016 = vpop.f32.mrb[0].mxu0
  %v6017 = vpop.f32.mrb[0].mxu0
  %v6018 = vadd.f32 0.0, %v6017
  %v6019 = vpop.f32.mrb[0].mxu0
  %6020 = vmatprep.mubr.bf16.mxu0 %v5972
  %6021 = vmatmul.mubr.bf16.gmra.mrb[0].mxu0 %v5890
  %v6022 = vpop.f32.mrb[0].mxu0
  %v6023 = vadd.f32 0.0, %v6022
  %v6024 = vpop.f32.mrb[0].mxu0
  %v6025 = vpop.f32.mrb[0].mxu0
  %v6026 = vadd.f32 0.0, %v6025
  %v6027 = vpop.f32.mrb[0].mxu0
  %6028 = vmatprep.mubr.bf16.mxu0 %v5975
  %6029 = vmatmul.mubr.bf16.gmra.mrb[0].mxu0 %v5892
  %v6030 = vpop.f32.mrb[0].mxu0
  %v6031 = vadd.f32 0.0, %v6030
  %v6032 = vpop.f32.mrb[0].mxu0
  %v6033 = vpop.f32.mrb[0].mxu0
  %v6034 = vadd.f32 0.0, %v6033
  %v6035 = vpop.f32.mrb[0].mxu0
  %6036 = vmatprep.mubr.bf16.mxu0 %v5978
  %6037 = vmatmul.mubr.bf16.gmra.mrb[0].mxu0 %v5894
  %v6038 = vpop.f32.mrb[0].mxu0
  %v6039 = vadd.f32 0.0, %v6038
  %v6040 = vpop.f32.mrb[0].mxu0
  %v6041 = vpop.f32.mrb[0].mxu0
  %v6042 = vadd.f32 0.0, %v6041
  %v6043 = vpop.f32.mrb[0].mxu0
  %6044 = vdwg.mxu0
  %v6045 = vsel %vm1370, %v6015, 0.0
  %v6046 = vsel %vm1370, %v6018, 0.0
  %v6047 = vadd.f32 %v6045, %v6046
  %v6048 = vsel %vm1370, %v6023, 0.0
  %v6049 = vadd.f32 %v6047, %v6048
  %v6050 = vsel %vm1370, %v6026, 0.0
  %v6051 = vadd.f32 %v6049, %v6050
  %v6052 = vsel %vm1370, %v6031, 0.0
  %v6053 = vadd.f32 %v6051, %v6052
  %v6054 = vsel %vm1370, %v6034, 0.0
  %v6055 = vadd.f32 %v6053, %v6054
  %v6056 = vsel %vm1370, %v6039, 0.0
  %v6057 = vadd.f32 %v6055, %v6056
  %v6058 = vsel %vm1370, %v6042, 0.0
  %v6059 = vadd.f32 %v6057, %v6058
  %v6060 = vrot.slane %v6059, 4
  %v6061 = vadd.f32 %v6059, %v6060
  %v6062 = vrot.slane %v6061, 2
  %v6063 = vadd.f32 %v6061, %v6062
  %v6064 = vrot.slane %v6063, 1
  %v6065 = vadd.f32 %v6063, %v6064
  %v6066 = vmul.f32 %v6015, %v6015
  %v6067 = vmul.f32 %v6018, %v6018
  %v6068 = vmul.f32 %v6023, %v6023
  %v6069 = vmul.f32 %v6026, %v6026
  %v6070 = vmul.f32 %v6031, %v6031
  %v6071 = vmul.f32 %v6034, %v6034
  %v6072 = vmul.f32 %v6039, %v6039
  %v6073 = vmul.f32 %v6042, %v6042
  %v6074 = vsel %vm1370, %v6066, 0.0
  %v6075 = vsel %vm1370, %v6067, 0.0
  %v6076 = vadd.f32 %v6074, %v6075
  %v6077 = vsel %vm1370, %v6068, 0.0
  %v6078 = vadd.f32 %v6076, %v6077
  %v6079 = vsel %vm1370, %v6069, 0.0
  %v6080 = vadd.f32 %v6078, %v6079
  %v6081 = vsel %vm1370, %v6070, 0.0
  %v6082 = vadd.f32 %v6080, %v6081
  %v6083 = vsel %vm1370, %v6071, 0.0
  %v6084 = vadd.f32 %v6082, %v6083
  %v6085 = vsel %vm1370, %v6072, 0.0
  %v6086 = vadd.f32 %v6084, %v6085
  %v6087 = vsel %vm1370, %v6073, 0.0
  %v6088 = vadd.f32 %v6086, %v6087
  %v6089 = vrot.slane %v6088, 4
  %v6090 = vadd.f32 %v6088, %v6089
  %v6091 = vrot.slane %v6090, 2
  %v6092 = vadd.f32 %v6090, %v6091
  %v6093 = vrot.slane %v6092, 1
  %v6094 = vadd.f32 %v6092, %v6093
  %v6095 = vmul.f32 %v6065, 0.015625
  %v6096 = vmul.f32 %v6094, 0.015625
  %v6097 = vmul.f32 %v6095, %v6095
  %v6098 = vsub.f32 %v6096, %v6097
  %v6099 = vld [vmem:[%s20] sm:$0x3]
  %v6100 = vsub.f32 %v6015, %v6095
  %v6101 = vsub.f32 %v6018, %v6095
  %v6102 = vsub.f32 %v6023, %v6095
  %v6103 = vsub.f32 %v6026, %v6095
  %v6104 = vsub.f32 %v6031, %v6095
  %v6105 = vsub.f32 %v6034, %v6095
  %v6106 = vsub.f32 %v6039, %v6095
  %v6107 = vsub.f32 %v6042, %v6095
  %v6108 = vadd.f32 %v6098, 1e-05
  %v6109 = vrsqrt.pop %v6108
  %v6110 = vmul.f32 %v6100, %v6109
  %v6111 = vmul.f32 %v6101, %v6109
  %v6112 = vmul.f32 %v6102, %v6109
  %v6113 = vmul.f32 %v6103, %v6109
  %v6114 = vmul.f32 %v6104, %v6109
  %v6115 = vmul.f32 %v6105, %v6109
  %v6116 = vmul.f32 %v6106, %v6109
  %v6117 = vmul.f32 %v6107, %v6109
  %v6118 = vlaneseq
  %v6119 = vshrl.u32 %v6118, 7
  %v6120 = vsub.s32 0, %v6119
  %v6121 = vrot.slane %v6099, %v6120
  %v6122 = vmul.f32 %v6110, %v6121
  %v6123 = vmul.f32 %v6111, %v6121
  %v6124 = vmul.f32 %v6112, %v6121
  %v6125 = vmul.f32 %v6113, %v6121
  %v6126 = vmul.f32 %v6114, %v6121
  %v6127 = vmul.f32 %v6115, %v6121
  %v6128 = vmul.f32 %v6116, %v6121
  %v6129 = vmul.f32 %v6117, %v6121
  %v6130 = vlaneseq
  %v6131 = vshrl.u32 %v6130, 7
  %v6132 = vsub.s32 1, %v6131
  %v6133 = vrot.slane %v6099, %v6132
  %v6134 = vadd.f32 %v6122, %v6133
  %v6135 = vadd.f32 %v6123, %v6133
  %v6136 = vadd.f32 %v6124, %v6133
  %v6137 = vadd.f32 %v6125, %v6133
  %v6138 = vadd.f32 %v6126, %v6133
  %v6139 = vadd.f32 %v6127, %v6133
  %v6140 = vadd.f32 %v6128, %v6133
  %v6141 = vadd.f32 %v6129, %v6133
  %vm6142 = vcmp.ge.f32.partialorder %v6134, 0.0
  %vm6143 = vcmp.ge.f32.partialorder %v6135, 0.0
  %vm6144 = vcmp.ge.f32.partialorder %v6136, 0.0
  %vm6145 = vcmp.ge.f32.partialorder %v6137, 0.0
  %vm6146 = vcmp.ge.f32.partialorder %v6138, 0.0
  %vm6147 = vcmp.ge.f32.partialorder %v6139, 0.0
  %vm6148 = vcmp.ge.f32.partialorder %v6140, 0.0
  %vm6149 = vcmp.ge.f32.partialorder %v6141, 0.0
  %v6150 = vmul.f32 %v6134, 0.01
  %v6151 = vmul.f32 %v6135, 0.01
  %v6152 = vmul.f32 %v6136, 0.01
  %v6153 = vmul.f32 %v6137, 0.01
  %v6154 = vmul.f32 %v6138, 0.01
  %v6155 = vmul.f32 %v6139, 0.01
  %v6156 = vmul.f32 %v6140, 0.01
  %v6157 = vmul.f32 %v6141, 0.01
  %v6158 = vsel %vm6142, %v6134, %v6150
  %v6159 = vsel %vm6143, %v6135, %v6151
  %v6160 = vsel %vm6144, %v6136, %v6152
  %v6161 = vsel %vm6145, %v6137, %v6153
  %v6162 = vsel %vm6146, %v6138, %v6154
  %v6163 = vsel %vm6147, %v6139, %v6155
  %v6164 = vsel %vm6148, %v6140, %v6156
  %v6165 = vsel %vm6149, %v6141, %v6157
  %v6166 = vld [vmem:[%s14] sm:$0xff]
  %v6167 = vld [vmem:[%s14 + $0x8] sm:$0xff]
  %v6168 = vld [vmem:[%s21] sm:$0x1]
  %v6170 = vlaneseq
  %v6171 = vshrl.u32 %v6170, 7
  %v6172 = vsub.s32 0, %v6171
  %v6173 = vrot.slane %v6168, %v6172
  %v6176 = vsel %vm1370, %v6158, 0
  %v6179 = vsel %vm1370, %v6159, 0
  %v6182 = vsel %vm1370, %v6160, 0
  %v6185 = vsel %vm1370, %v6161, 0
  %v6188 = vsel %vm1370, %v6162, 0
  %v6191 = vsel %vm1370, %v6163, 0
  %v6194 = vsel %vm1370, %v6164, 0
  %v6197 = vsel %vm1370, %v6165, 0
  %6199 = vmatprep.subr.mxu0 0.0
  %6200 = vmatpush1.msra.mxu0 %v6166
  %6201 = vmatprep.subr.mxu0 0.0
  %6202 = vmatpush1.msra.mxu0 %v6167
  %6203 = vmatprep.subr.mxu0 0.0
  %6204 = vmatpush1.msra.mxu0 0.0
  %6205 = vmatprep.subr.mxu0 0.0
  %6206 = vmatpush1.msra.mxu0 0.0
  %6207 = vmatprep.subr.mxu0 0.0
  %6208 = vmatpush1.msra.mxu0 0.0
  %6209 = vmatprep.subr.mxu0 0.0
  %6210 = vmatpush1.msra.mxu0 0.0
  %6211 = vmatprep.subr.mxu0 0.0
  %6212 = vmatpush1.msra.mxu0 0.0
  %6213 = vmatprep.subr.mxu0 0.0
  %6214 = vmatpush1.msra.mxu0 0.0
  %6215 = vmatprep.subr.mxu0 0.0
  %6216 = vmatpush1.msra.mxu0 0.0
  %6217 = vmatprep.subr.mxu0 0.0
  %6218 = vmatpush1.msra.mxu0 0.0
  %6219 = vmatprep.subr.mxu0 0.0
  %6220 = vmatpush1.msra.mxu0 0.0
  %6221 = vmatprep.subr.mxu0 0.0
  %6222 = vmatpush1.msra.mxu0 0.0
  %6223 = vmatprep.subr.mxu0 0.0
  %6224 = vmatpush1.msra.mxu0 0.0
  %6225 = vmatprep.subr.mxu0 0.0
  %6226 = vmatpush1.msra.mxu0 0.0
  %6227 = vmatprep.subr.mxu0 0.0
  %6228 = vmatpush1.msra.mxu0 0.0
  %6229 = vmatprep.subr.mxu0 0.0
  %6230 = vmatpush1.msra.mxu0 0.0
  %6231 = vmatprep.subr.mxu0 0.0
  %6232 = vmatpush1.msra.mxu0 0.0
  %6233 = vmatprep.subr.mxu0 0.0
  %6234 = vmatpush1.msra.mxu0 0.0
  %6235 = vmatprep.subr.mxu0 0.0
  %6236 = vmatpush1.msra.mxu0 0.0
  %6237 = vmatprep.subr.mxu0 0.0
  %6238 = vmatpush1.msra.mxu0 0.0
  %6239 = vmatprep.subr.mxu0 0.0
  %6240 = vmatpush1.msra.mxu0 0.0
  %6241 = vmatprep.subr.mxu0 0.0
  %6242 = vmatpush1.msra.mxu0 0.0
  %6243 = vmatprep.subr.mxu0 0.0
  %6244 = vmatpush1.msra.mxu0 0.0
  %6245 = vmatprep.subr.mxu0 0.0
  %6246 = vmatpush1.msra.mxu0 0.0
  %6247 = vmatprep.subr.mxu0 0.0
  %6248 = vmatpush1.msra.mxu0 0.0
  %6249 = vmatprep.subr.mxu0 0.0
  %6250 = vmatpush1.msra.mxu0 0.0
  %6251 = vmatprep.subr.mxu0 0.0
  %6252 = vmatpush1.msra.mxu0 0.0
  %6253 = vmatprep.subr.mxu0 0.0
  %6254 = vmatpush1.msra.mxu0 0.0
  %6255 = vmatprep.subr.mxu0 0.0
  %6256 = vmatpush1.msra.mxu0 0.0
  %6257 = vmatprep.subr.mxu0 0.0
  %6258 = vmatpush1.msra.mxu0 0.0
  %6259 = vmatprep.subr.mxu0 0.0
  %6260 = vmatpush1.msra.mxu0 0.0
  %6261 = vmatprep.subr.mxu0 0.0
  %6262 = vmatpush1.msra.mxu0 0.0
  %6263 = vmatprep.mubr.f32.mxu0 0.0
  %6264 = vmatmul.mubr.f32.gmra.mrb[0].mxu0 %v6176
  %v6265 = vpop.f32.mrb[0].mxu0
  %v6266 = vadd.f32 %v6173, %v6265
  %v6267 = vpop.f32.mrb[0].mxu0
  %6268 = vmatprep.mubr.f32.mxu0 0.0
  %6269 = vmatmul.mubr.f32.gmra.mrb[0].mxu0 %v6179
  %v6270 = vpop.f32.mrb[0].mxu0
  %v6271 = vadd.f32 %v6173, %v6270
  %v6272 = vpop.f32.mrb[0].mxu0
  %6273 = vmatprep.mubr.f32.mxu0 0.0
  %6274 = vmatmul.mubr.f32.gmra.mrb[0].mxu0 %v6182
  %v6275 = vpop.f32.mrb[0].mxu0
  %v6276 = vadd.f32 %v6173, %v6275
  %v6277 = vpop.f32.mrb[0].mxu0
  %6278 = vmatprep.mubr.f32.mxu0 0.0
  %6279 = vmatmul.mubr.f32.gmra.mrb[0].mxu0 %v6185
  %v6280 = vpop.f32.mrb[0].mxu0
  %v6281 = vadd.f32 %v6173, %v6280
  %v6282 = vpop.f32.mrb[0].mxu0
  %6283 = vmatprep.mubr.f32.mxu0 0.0
  %6284 = vmatmul.mubr.f32.gmra.mrb[0].mxu0 %v6188
  %v6285 = vpop.f32.mrb[0].mxu0
  %v6286 = vadd.f32 %v6173, %v6285
  %v6287 = vpop.f32.mrb[0].mxu0
  %6288 = vmatprep.mubr.f32.mxu0 0.0
  %6289 = vmatmul.mubr.f32.gmra.mrb[0].mxu0 %v6191
  %v6290 = vpop.f32.mrb[0].mxu0
  %v6291 = vadd.f32 %v6173, %v6290
  %v6292 = vpop.f32.mrb[0].mxu0
  %6293 = vmatprep.mubr.f32.mxu0 0.0
  %6294 = vmatmul.mubr.f32.gmra.mrb[0].mxu0 %v6194
  %v6295 = vpop.f32.mrb[0].mxu0
  %v6296 = vadd.f32 %v6173, %v6295
  %v6297 = vpop.f32.mrb[0].mxu0
  %6298 = vmatprep.mubr.f32.mxu0 0.0
  %6299 = vmatmul.mubr.f32.gmra.mrb[0].mxu0 %v6197
  %v6300 = vpop.f32.mrb[0].mxu0
  %v6301 = vadd.f32 %v6173, %v6300
  %v6302 = vpop.f32.mrb[0].mxu0
  %6303 = vdwg.mxu0
  %6312 = vrot.lane.b32.xlu0 %v6266, 16
  %v6313 = vpop.permute.xlu0 %6312
  %6314 = vrot.lane.b32.xlu0 %v6271, 16
  %v6315 = vpop.permute.xlu0 %6314
  %6316 = vrot.lane.b32.xlu0 %v6276, 16
  %v6317 = vpop.permute.xlu0 %6316
  %6318 = vrot.lane.b32.xlu0 %v6281, 16
  %v6319 = vpop.permute.xlu0 %6318
  %6320 = vrot.lane.b32.xlu0 %v6286, 16
  %v6321 = vpop.permute.xlu0 %6320
  %6322 = vrot.lane.b32.xlu0 %v6291, 16
  %v6323 = vpop.permute.xlu0 %6322
  %6324 = vrot.lane.b32.xlu0 %v6296, 16
  %v6325 = vpop.permute.xlu0 %6324
  %6326 = vrot.lane.b32.xlu0 %v6301, 16
  %v6327 = vpop.permute.xlu0 %6326
  %v6336 = vsel %vm1370, %v6158, %v6313
  %v6337 = vsel %vm1370, %v6159, %v6315
  %v6338 = vsel %vm1370, %v6160, %v6317
  %v6339 = vsel %vm1370, %v6161, %v6319
  %v6340 = vsel %vm1370, %v6162, %v6321
  %v6341 = vsel %vm1370, %v6163, %v6323
  %v6342 = vsel %vm1370, %v6164, %v6325
  %v6343 = vsel %vm1370, %v6165, %v6327
  %6344 = vst.msk [vmem:[%s22] sm:$0xff] %vm1379, %v6336
  %6345 = vst.msk [vmem:[%s22 + $0x8] sm:$0xff] %vm1379, %v6337
  %6346 = vst.msk [vmem:[%s22 + $0x10] sm:$0xff] %vm1379, %v6338
  %6347 = vst.msk [vmem:[%s22 + $0x18] sm:$0xff] %vm1379, %v6339
  %6348 = vst.msk [vmem:[%s22 + $0x20] sm:$0xff] %vm1379, %v6340
  %6349 = vst.msk [vmem:[%s22 + $0x28] sm:$0xff] %vm1379, %v6341
  %6350 = vst.msk [vmem:[%s22 + $0x30] sm:$0xff] %vm1379, %v6342
  %6351 = vst.msk [vmem:[%s22 + $0x38] sm:$0xff] %vm1379, %v6343
  // Predicated region
  $region90: #{forward.1} parent=0 // pred_check
    _
  $region91: #{forward.1} parent=0 // pred_check_branch
    %6353 = sbr.rel (0) target = $region93
  $region92: #{forward.1} parent=0 // pred_region
    _
  $region93: #{forward.1} parent=0 // pred_fallthru
    _
  // Predicated region
  $region94: #{forward.1} parent=0 // pred_check
    _
  $region95: #{forward.1} parent=0 // pred_check_branch
    %6355 = sbr.rel (0) target = $region97
  $region96: #{forward.1} parent=0 // pred_region
    _
  $region97: #{forward.1} parent=0 // pred_fallthru
    _

</llo_original>
